<compile_context>
chip_gen: v6e
topology: v6e:2x2x1
jax: 0.10.0
libtpu: 0.0.40
codegen_flags: <defaults>
</compile_context>

<pallas_src>
import jax
import jax.numpy as jnp
from jax.experimental import pallas as pl
from jax.experimental.pallas import tpu as pltpu

MATMUL_DTYPE = jnp.bfloat16   # MXU operand dtype (accumulation + epilogue stay f32)
FC_WIDTH = 50
HID_WIDTH = 20
OUT_WIDTH = 128               # lane-dense packed head-output width (>= 123 used columns)


def _round_up(v, m):
    return ((v + m - 1) // m) * m


# ----------------------------------------------------------------------------
# Head structure of the PyTorch module
# ----------------------------------------------------------------------------
TWO_LAYER_HEADS = [           # (output name, channels, activation); hidden = Conv1x1(50->20)+ReLU
    ("stem_on", 1, "sigmoid"),
    ("stem_location_x", 12, "logsoftmax"),
    ("stem_location_y", 12, "logsoftmax"),
    ("iloop_on", 1, "sigmoid"),
    ("iloop_location_x", 12, "logsoftmax"),
    ("iloop_location_y", 12, "logsoftmax"),
    ("hloop_on", 1, "sigmoid"),
    ("hloop_location_x", 12, "logsoftmax"),
    ("hloop_location_y", 12, "logsoftmax"),
]
SHARED_HEADS = [              # (shared hidden name, logsoftmax output, linear output)
    ("stem_siz", "stem_sm_size", "stem_sl_size"),
    ("iloop_siz_x", "iloop_sm_size_x", "iloop_sl_size_x"),
    ("iloop_siz_y", "iloop_sm_size_y", "iloop_sl_size_y"),
    ("hloop_siz", "hloop_sm_size", "hloop_sl_size"),
]
# 13 hidden 50->20 blocks, packed side by side into one (50, 260) matmul.
HID_BLOCKS = [n for n, _, _ in TWO_LAYER_HEADS] + [h for h, _, _ in SHARED_HEADS]

# Packed output columns, grouped by activation:
#   [ 3 sigmoid 'on' cols | 4 linear 'sl' cols | 6x12 + 4x11 log-softmax cols | pad ]
# Each entry: (output name, hidden block it reads from, width, activation)
OUT_SEGMENTS = []
for _name, _width, _act in TWO_LAYER_HEADS:
    if _act == "sigmoid":
        OUT_SEGMENTS.append((_name, _name, _width, "sigmoid"))
for _hid_name, _sm, _sl in SHARED_HEADS:
    OUT_SEGMENTS.append((_sl, _hid_name, 1, "linear"))
for _name, _width, _act in TWO_LAYER_HEADS:
    if _act == "logsoftmax":
        OUT_SEGMENTS.append((_name, _name, _width, "logsoftmax"))
for _hid_name, _sm, _sl in SHARED_HEADS:
    OUT_SEGMENTS.append((_sm, _hid_name, 11, "logsoftmax"))

SEG_STARTS, _c = [], 0
for _seg in OUT_SEGMENTS:
    SEG_STARTS.append(_c)
    _c += _seg[2]
USED_COLS = _c                                                  # 123
N_SIG = sum(1 for s in OUT_SEGMENTS if s[3] == "sigmoid")       # 3
N_LIN = sum(1 for s in OUT_SEGMENTS if s[3] == "linear")        # 4
LS_SEGMENTS = [(st, s[2]) for s, st in zip(OUT_SEGMENTS, SEG_STARTS) if s[3] == "logsoftmax"]
assert USED_COLS <= OUT_WIDTH


# ----------------------------------------------------------------------------
# Deterministic parameter construction (PyTorch-style uniform fan-in init)
# ----------------------------------------------------------------------------
def make_raw_params(key, num_filters=(16, 16), filter_width=(3, 3)):
    chans = [8] + list(num_filters)
    keys = iter(jax.random.split(key, 256))

    def conv_init(cout, cin, k):
        k1, k2 = jax.random.split(next(keys))
        bound = 1.0 / float(cin * k * k) ** 0.5
        w = jax.random.uniform(k1, (cout, cin, k, k), jnp.float32, -bound, bound)
        b = jax.random.uniform(k2, (cout,), jnp.float32, -bound, bound)
        return w, b

    raw = {"cnn": [], "hid": {}, "out": {}}
    for i, (nf, fw) in enumerate(zip(num_filters, filter_width)):
        assert fw % 2 == 1
        w, b = conv_init(nf, chans[i], fw)
        kg, kb, km, kv = jax.random.split(next(keys), 4)
        raw["cnn"].append({
            "w": w, "b": b,
            "gamma": jax.random.uniform(kg, (nf,), jnp.float32, 0.9, 1.1),
            "beta": jax.random.uniform(kb, (nf,), jnp.float32, -0.1, 0.1),
            "rmean": jax.random.uniform(km, (nf,), jnp.float32, -0.1, 0.1),
            "rvar": jax.random.uniform(kv, (nf,), jnp.float32, 0.9, 1.1),
        })
    w, b = conv_init(FC_WIDTH, chans[-1], 1)
    raw["fc"] = {"w": w.reshape(FC_WIDTH, chans[-1]), "b": b}

    for name, width, _ in TWO_LAYER_HEADS:
        w, b = conv_init(HID_WIDTH, FC_WIDTH, 1)
        raw["hid"][name] = {"w": w.reshape(HID_WIDTH, FC_WIDTH), "b": b}
        w, b = conv_init(width, HID_WIDTH, 1)
        raw["out"][name] = {"w": w.reshape(width, HID_WIDTH), "b": b}
    for hid_name, sm_name, sl_name in SHARED_HEADS:
        w, b = conv_init(HID_WIDTH, FC_WIDTH, 1)
        raw["hid"][hid_name] = {"w": w.reshape(HID_WIDTH, FC_WIDTH), "b": b}
        w, b = conv_init(11, HID_WIDTH, 1)
        raw["out"][sm_name] = {"w": w.reshape(11, HID_WIDTH), "b": b}
        w, b = conv_init(1, HID_WIDTH, 1)
        raw["out"][sl_name] = {"w": w.reshape(1, HID_WIDTH), "b": b}
    return raw


# ----------------------------------------------------------------------------
# Parameter packing: BN folded, two resident slabs
# ----------------------------------------------------------------------------
def pack_params(raw):
    conv_meta, conv_w, conv_b = [], [], []
    for li, layer in enumerate(raw["cnn"]):
        cout, cin, k, _ = layer["w"].shape
        scale = layer["gamma"] / jnp.sqrt(layer["rvar"] + 1e-5)
        # (Cout,Cin,kh,kw) -> (kh*kw*Cin, Cout), matching the im2col tap order.
        w = jnp.transpose(layer["w"], (2, 3, 1, 0)).reshape(k * k * cin, cout) * scale[None, :]
        b = (layer["b"] - layer["rmean"]) * scale + layer["beta"]
        if li == 0:
            # conv1 consumes the wrapper-side im2col + interior-mask column; its (folded) bias
            # rides as the weight row paired with that mask column (mask==1 wherever conv1's
            # output is actually consumed), so the bias add happens inside the matmul.
            w = jnp.concatenate([w, b.reshape(1, cout)], axis=0)
        else:
            conv_b.append(b)
        conv_w.append(w)
        conv_meta.append({"k": int(k), "cin": int(cin), "cout": int(cout)})

    wfc = raw["fc"]["w"].T                                                   # (C_last, 50)
    bfc = raw["fc"]["b"]
    whid = jnp.concatenate([raw["hid"][nm]["w"].T for nm in HID_BLOCKS], axis=1)   # (50, 260)
    bhid = jnp.concatenate([raw["hid"][nm]["b"] for nm in HID_BLOCKS])             # (260,)
    wout = jnp.zeros((HID_WIDTH * len(HID_BLOCKS), OUT_WIDTH), jnp.float32)        # (260, 128)
    bout = jnp.zeros((OUT_WIDTH,), jnp.float32)
    for (name, blk, width, _), start in zip(OUT_SEGMENTS, SEG_STARTS):
        r = HID_BLOCKS.index(blk) * HID_WIDTH
        wout = wout.at[r:r + HID_WIDTH, start:start + width].set(raw["out"][name]["w"].T)
        bout = bout.at[start:start + width].set(raw["out"][name]["b"])

    mats = conv_w + [wfc, whid, wout]
    biases = conv_b + [bfc, bhid, bout]

    # bf16 weight slab, 16-row-aligned blocks (keeps packed-sublane loads aligned).
    offs, cur = [], 0
    for m_ in mats:
        offs.append(cur)
        cur = _round_up(cur + int(m_.shape[0]), 16)
    wall_w = max(int(m_.shape[1]) for m_ in mats)
    wall = jnp.zeros((_round_up(cur, 16), wall_w), jnp.float32)
    for m_, off in zip(mats, offs):
        wall = wall.at[off:off + m_.shape[0], :m_.shape[1]].set(m_)
    wall = wall.astype(MATMUL_DTYPE)

    # f32 aux slab: bias rows, then the (128,128) log-softmax segment-indicator matrix S.
    s_row0 = _round_up(len(biases), 8)
    aux_w = max(max(int(b_.shape[0]) for b_ in biases), OUT_WIDTH)
    aux = jnp.zeros((s_row0 + OUT_WIDTH, aux_w), jnp.float32)
    for i, b_ in enumerate(biases):
        aux = aux.at[i, :b_.shape[0]].set(b_)
    lane = jnp.arange(OUT_WIDTH)
    S = jnp.zeros((OUT_WIDTH, OUT_WIDTH), jnp.float32)
    for start, width in LS_SEGMENTS:
        ind = ((lane >= start) & (lane < start + width)).astype(jnp.float32)
        S = S + jnp.outer(ind, ind)
    aux = aux.at[s_row0:s_row0 + OUT_WIDTH, :OUT_WIDTH].set(S)

    layout = {
        "conv": conv_meta,
        "w_offs": offs,
        "w_shapes": [(int(m_.shape[0]), int(m_.shape[1])) for m_ in mats],
        "b_widths": [int(b_.shape[0]) for b_ in biases],
        "s_row0": s_row0,
    }
    return {"wall": wall, "aux": aux, "layout": layout}


# ----------------------------------------------------------------------------
# Fused forward: one pallas_call for the whole network, grid over batch images
# ----------------------------------------------------------------------------
def simple_convnet_forward(x_nchw, packed):
    layout = packed["layout"]
    conv = layout["conv"]
    n_conv = len(conv)
    w_offs, w_shapes = layout["w_offs"], layout["w_shapes"]
    b_widths, s_row0 = layout["b_widths"], layout["s_row0"]

    n, cin, h, w = x_nchw.shape
    assert cin == conv[0]["cin"]
    pmax = max(c["k"] // 2 for c in conv)          # padding ring kept through the convs
    hp, wp = h + 2 * pmax, w + 2 * pmax
    frame = hp * wp                                # positions per padded image frame
    BP = _round_up(frame, 16)                      # per-image positions block (16-row aligned)
    inner_pads = [c["k"] // 2 for c in conv[1:]]
    guard = _round_up(max(inner_pads) * (wp + 1), 16) if inner_pads else 0
    pext = guard + BP + guard                      # guarded rows for the staged activation
    k0 = conv[0]["k"]
    p0 = k0 // 2
    mask_col = k0 * k0 * cin                       # im2col width; mask rides in the next column
    in_w = mask_col + 1

    # ---- wrapper-side layout plumbing (pure data movement, no FLOPs moved) ----
    x = jnp.transpose(x_nchw, (0, 2, 3, 1)).astype(jnp.float32)               # NHWC
    xpp = jnp.pad(x, ((0, 0), (pmax + p0, pmax + p0), (pmax + p0, pmax + p0), (0, 0)))
    taps = [xpp[:, dh:dh + hp, dw:dw + wp, :] for dh in range(k0) for dw in range(k0)]
    mask = jnp.pad(jnp.ones((n, h, w, 1), jnp.float32),
                   ((0, 0), (pmax, pmax), (pmax, pmax), (0, 0)))
    patch = jnp.concatenate(taps + [mask], axis=-1).reshape(n, frame, in_w)
    x_in = jnp.pad(patch, ((0, 0), (0, BP - frame), (0, 0))).astype(MATMUL_DTYPE)

    def kernel(x_ref, wall_ref, aux_ref, out_ref, *stage_refs):
        def wmat(i):
            r, (kk, nn) = w_offs[i], w_shapes[i]
            return wall_ref[pl.ds(r, kk), pl.ds(0, nn)]

        def bvec(i):
            return aux_ref[pl.ds(i, 1), pl.ds(0, b_widths[i])]

        xall = x_ref[...]                                                     # (BP, 73) bf16
        m = xall[:, mask_col:mask_col + 1].astype(jnp.float32)                # (BP, 1) 0/1
        # conv layer 0: fused-K dot (K = 9*cin + 1; bias rides in the mask row of the weights)
        h_cur = jnp.maximum(
            jnp.dot(xall, wmat(0), preferred_element_type=jnp.float32), 0.0)

        for li in range(1, n_conv):
            k, ci, co = conv[li]["k"], conv[li]["cin"], conv[li]["cout"]
            pad = k // 2
            # stage previous activation (padding ring + row tail re-zeroed) into a guarded
            # VMEM scratch so every shifted tap read is a plain static slice
            sref = stage_refs[li - 1]
            sref[pl.ds(0, guard), :] = jnp.zeros((guard, ci), MATMUL_DTYPE)
            sref[pl.ds(guard + BP, pext - guard - BP), :] = (
                jnp.zeros((pext - guard - BP, ci), MATMUL_DTYPE))
            sref[pl.ds(guard, BP), :] = (h_cur * m).astype(MATMUL_DTYPE)
            # k*k shifted taps against one resident weight block, MXU f32 accumulation;
            # accumulator is initialised from the broadcast (folded BN) bias.
            acc = jnp.zeros((BP, co), jnp.float32) + bvec(li - 1)
            wrow = w_offs[li]
            for dh in range(k):
                for dw in range(k):
                    off = (dh - pad) * wp + (dw - pad)
                    xs = sref[pl.ds(guard + off, BP), :]
                    wt = wall_ref[pl.ds(wrow + (dh * k + dw) * ci, ci), pl.ds(0, co)]
                    acc = acc + jnp.dot(xs, wt, preferred_element_type=jnp.float32)
            h_cur = jnp.maximum(acc, 0.0)

        # fc (1x1 -> 50, ReLU), 13 packed head hiddens (50 -> 260, ReLU),
        # 17 packed head outputs (260 -> 128 lane-dense)
        feat = jnp.maximum(
            jnp.dot(h_cur.astype(MATMUL_DTYPE), wmat(n_conv),
                    preferred_element_type=jnp.float32) + bvec(n_conv - 1), 0.0)
        hid = jnp.maximum(
            jnp.dot(feat.astype(MATMUL_DTYPE), wmat(n_conv + 1),
                    preferred_element_type=jnp.float32) + bvec(n_conv), 0.0)
        z = (jnp.dot(hid.astype(MATMUL_DTYPE), wmat(n_conv + 2),
                     preferred_element_type=jnp.float32) + bvec(n_conv + 1))

        # ---- epilogue: one exp, one log, one tanh; per-head softmax sums on the MXU ----
        col = jax.lax.broadcasted_iota(jnp.int32, (1, OUT_WIDTH), 1)
        ls_mask = (col >= N_SIG + N_LIN) & (col < USED_COLS)
        shift = jnp.zeros_like(z)
        for start, width in LS_SEGMENTS:            # own-segment max (stability), select-masked
            ind = (col >= start) & (col < start + width)
            seg_max = jnp.max(jnp.where(ind, z, -jnp.inf), axis=-1, keepdims=True)
            shift = jnp.where(ind, seg_max, shift)
        shift = jnp.where(ls_mask, shift, z)        # non-LS lanes: exp()==1, finite, harmless
        e = jnp.exp(z - shift)                      # the single full-width exp (EUP)
        S = aux_ref[pl.ds(s_row0, OUT_WIDTH), pl.ds(0, OUT_WIDTH)]
        sums = jnp.dot(e, S, preferred_element_type=jnp.float32)  # own-segment sum per lane
        logsum = jnp.log(jnp.where(ls_mask, sums, 1.0))
        sig = 0.5 * (jnp.tanh(0.5 * z) + 1.0)       # stable sigmoid on the EUP
        y = jnp.where(col < N_SIG, sig, z)
        y = jnp.where(ls_mask, z - shift - logsum, y)
        y = jnp.where(col >= USED_COLS, 0.0, y)     # pad lanes -> lane-dense unmasked stores
        out_ref[...] = y

    out = pl.pallas_call(
        kernel,
        out_shape=jax.ShapeDtypeStruct((n, BP, OUT_WIDTH), jnp.float32),
        grid=(n,),
        in_specs=[
            pl.BlockSpec((None, BP, in_w), lambda b: (b, 0, 0)),
            pl.BlockSpec(packed["wall"].shape, lambda b: (0, 0)),
            pl.BlockSpec(packed["aux"].shape, lambda b: (0, 0)),
        ],
        out_specs=pl.BlockSpec((None, BP, OUT_WIDTH), lambda b: (b, 0, 0)),
        scratch_shapes=[pltpu.VMEM((pext, conv[li]["cin"]), MATMUL_DTYPE)
                        for li in range(1, n_conv)],
        compiler_params=pltpu.CompilerParams(dimension_semantics=("parallel",)),
    )(x_in, packed["wall"], packed["aux"])

    # Single lane-dense slab -> 17 NCHW outputs (layout plumbing, once).
    y4 = out[:, :frame, :].reshape(n, hp, wp, OUT_WIDTH)[:, pmax:pmax + h, pmax:pmax + w, :]
    outputs = {}
    for (name, _, width, _), start in zip(OUT_SEGMENTS, SEG_STARTS):
        outputs[name] = jnp.transpose(y4[..., start:start + width], (0, 3, 1, 2))
    return outputs


# ----------------------------------------------------------------------------
# Pure-JAX reference (independent path: XLA conv + einsum) for correctness check
# ----------------------------------------------------------------------------
def reference_forward(x_nchw, raw):
    x = jnp.transpose(x_nchw, (0, 2, 3, 1)).astype(jnp.float32)
    for layer in raw["cnn"]:
        w = jnp.transpose(layer["w"], (2, 3, 1, 0))        # HWIO
        x = jax.lax.conv_general_dilated(
            x, w, window_strides=(1, 1), padding="SAME",
            dimension_numbers=("NHWC", "HWIO", "NHWC"),
            precision=jax.lax.Precision.HIGHEST)
        x = x + layer["b"]
        x = (x - layer["rmean"]) / jnp.sqrt(layer["rvar"] + 1e-5) * layer["gamma"] + layer["beta"]
        x = jnp.maximum(x, 0.0)

    def conv1x1(t, w, b, relu=False):
        y = jnp.einsum("nhwc,kc->nhwk", t, w, precision=jax.lax.Precision.HIGHEST) + b
        return jnp.maximum(y, 0.0) if relu else y

    feat = conv1x1(x, raw["fc"]["w"], raw["fc"]["b"], relu=True)
    hid = {name: conv1x1(feat, p["w"], p["b"], relu=True) for name, p in raw["hid"].items()}
    outs = {}
    for name, blk, _, act in OUT_SEGMENTS:
        z = conv1x1(hid[blk], raw["out"][name]["w"], raw["out"][name]["b"])
        if act == "sigmoid":
            z = jax.nn.sigmoid(z)
        elif act == "logsoftmax":
            z = jax.nn.log_softmax(z, axis=-1)
        outs[name] = jnp.transpose(z, (0, 3, 1, 2))
    return outs


# ----------------------------------------------------------------------------
if __name__ == "__main__":
    key = jax.random.PRNGKey(0)
    k_param, k_x = jax.random.split(key)

    # SimpleConvNet(num_filters=[16, 16], filter_width=[3, 3], dropout=0.0), eval mode
    raw = make_raw_params(k_param, num_filters=(16, 16), filter_width=(3, 3))
    packed = pack_params(raw)

    # Input: NCHW, 8 channels (first cnn layer expects 8 input channels)
    x = jax.random.normal(k_x, (2, 8, 16, 16), dtype=jnp.float32)

    y = jax.jit(lambda t: simple_convnet_forward(t, packed))(x)
    jax.block_until_ready(y)

    y_ref = jax.jit(lambda t: reference_forward(t, raw))(x)
    jax.block_until_ready(y_ref)

    expected_c = {
        "stem_on": 1, "stem_location_x": 12, "stem_location_y": 12,
        "stem_sm_size": 11, "stem_sl_size": 1,
        "iloop_on": 1, "iloop_location_x": 12, "iloop_location_y": 12,
        "iloop_sm_size_x": 11, "iloop_sl_size_x": 1,
        "iloop_sm_size_y": 11, "iloop_sl_size_y": 1,
        "hloop_on": 1, "hloop_location_x": 12, "hloop_location_y": 12,
        "hloop_sm_size": 11, "hloop_sl_size": 1,
    }
    assert set(y.keys()) == set(expected_c.keys())
    for name, c in expected_c.items():
        assert y[name].shape == (2, c, 16, 16), (name, y[name].shape)
        assert bool(jnp.all(jnp.isfinite(y[name]))), name
        max_diff = float(jnp.max(jnp.abs(y[name] - y_ref[name])))
        assert bool(jnp.allclose(y[name], y_ref[name], atol=2e-2, rtol=2e-2)), (name, max_diff)

    print("KERNEL_OK")
</pallas_src>

<mosaic_0001>
module attributes {stable_mosaic.version = 11 : i64} {
  func.func @kernel(%arg0: i32, %arg1: memref<1x336x73xbf16, #tpu.memory_space<vmem>>, %arg2: memref<576x260xbf16, #tpu.memory_space<vmem>>, %arg3: memref<136x260xf32, #tpu.memory_space<vmem>>, %arg4: memref<1x336x128xf32, #tpu.memory_space<vmem>>, %arg5: memref<400x16xbf16, #tpu.memory_space<vmem>>) attributes {dimension_semantics = [#tpu.dimension_semantics<parallel>], iteration_bounds = array<i64: 2>, scalar_prefetch = 0 : i64, scratch_operands = 1 : i64, tpu.core_type = #tpu.core_type<tc>, window_params = [{transform_indices = @transform_0, window_bounds = array<i64: 1, 336, 73>}, {pipeline_mode = #tpu.pipeline_mode<synchronous>, transform_indices = @transform_1, window_bounds = array<i64: 576, 260>}, {pipeline_mode = #tpu.pipeline_mode<synchronous>, transform_indices = @transform_2, window_bounds = array<i64: 136, 260>}, {transform_indices = @transform_3, window_bounds = array<i64: 1, 336, 128>}]} {
    %c0 = arith.constant 0 : index
    %c0_0 = arith.constant 0 : index
    %c0_1 = arith.constant 0 : index
    %0 = vector.load %arg1[%c0, %c0_0, %c0_1] : memref<1x336x73xbf16, #tpu.memory_space<vmem>>, vector<1x336x73xbf16>
    %1 = vector.shape_cast %0 : vector<1x336x73xbf16> to vector<336x73xbf16>
    %2 = vector.extract_strided_slice %1 {offsets = [0, 72], sizes = [336, 1], strides = [1, 1]} : vector<336x73xbf16> to vector<336x1xbf16>
    %3 = arith.extf %2 : vector<336x1xbf16> to vector<336x1xf32>
    %c0_2 = arith.constant 0 : index
    %c0_3 = arith.constant 0 : index
    %4 = vector.load %arg2[%c0_2, %c0_3] : memref<576x260xbf16, #tpu.memory_space<vmem>>, vector<73x16xbf16>
    %cst = arith.constant dense<0.000000e+00> : vector<336x16xf32>
    %5 = tpu.matmul %1, %4, %cst {dimension_numbers = #tpu.dot_dimension_numbers<[1], [0], [0], [1], [0, 0, 1, 1], [], []>} : vector<336x73xbf16>, vector<73x16xbf16>, vector<336x16xf32> -> vector<336x16xf32>
    %cst_4 = arith.constant 0.000000e+00 : f32
    %6 = vector.broadcast %cst_4 : f32 to vector<336x16xf32>
    %7 = arith.maximumf %5, %6 : vector<336x16xf32>
    %cst_5 = arith.constant 0.000000e+00 : bf16
    %8 = vector.broadcast %cst_5 : bf16 to vector<32x16xbf16>
    %c0_6 = arith.constant 0 : index
    %c0_7 = arith.constant 0 : index
    %9 = vector.load %arg5[%c0_6, %c0_7] : memref<400x16xbf16, #tpu.memory_space<vmem>>, vector<32x16xbf16>
    tpu.vector_store %arg5[%c0_6, %c0_7], %8 {strides = array<i32>} : memref<400x16xbf16, #tpu.memory_space<vmem>>, vector<32x16xbf16>,
    %cst_8 = arith.constant 0.000000e+00 : bf16
    %10 = vector.broadcast %cst_8 : bf16 to vector<32x16xbf16>
    %c368 = arith.constant 368 : index
    %c0_9 = arith.constant 0 : index
    %11 = vector.load %arg5[%c368, %c0_9] : memref<400x16xbf16, #tpu.memory_space<vmem>>, vector<32x16xbf16>
    tpu.vector_store %arg5[%c368, %c0_9], %10 {strides = array<i32>} : memref<400x16xbf16, #tpu.memory_space<vmem>>, vector<32x16xbf16>,
    %12 = vector.broadcast %3 : vector<336x1xf32> to vector<336x16xf32>
    %13 = arith.mulf %7, %12 : vector<336x16xf32>
    %14 = arith.truncf %13 : vector<336x16xf32> to vector<336x16xbf16>
    %c32 = arith.constant 32 : index
    %c0_10 = arith.constant 0 : index
    %15 = vector.load %arg5[%c32, %c0_10] : memref<400x16xbf16, #tpu.memory_space<vmem>>, vector<336x16xbf16>
    tpu.vector_store %arg5[%c32, %c0_10], %14 {strides = array<i32>} : memref<400x16xbf16, #tpu.memory_space<vmem>>, vector<336x16xbf16>,
    %cst_11 = arith.constant 0.000000e+00 : f32
    %16 = vector.broadcast %cst_11 : f32 to vector<336x16xf32>
    %c0_12 = arith.constant 0 : index
    %c0_13 = arith.constant 0 : index
    %17 = vector.load %arg3[%c0_12, %c0_13] : memref<136x260xf32, #tpu.memory_space<vmem>>, vector<1x16xf32>
    %18 = vector.broadcast %17 : vector<1x16xf32> to vector<336x16xf32>
    %19 = arith.addf %16, %18 : vector<336x16xf32>
    %c13 = arith.constant 13 : index
    %c0_14 = arith.constant 0 : index
    %20 = vector.load %arg5[%c13, %c0_14] : memref<400x16xbf16, #tpu.memory_space<vmem>>, vector<336x16xbf16>
    %c80 = arith.constant 80 : index
    %c0_15 = arith.constant 0 : index
    %21 = vector.load %arg2[%c80, %c0_15] : memref<576x260xbf16, #tpu.memory_space<vmem>>, vector<16x16xbf16>
    %cst_16 = arith.constant dense<0.000000e+00> : vector<336x16xf32>
    %22 = tpu.matmul %20, %21, %cst_16 {dimension_numbers = #tpu.dot_dimension_numbers<[1], [0], [0], [1], [0, 0, 1, 1], [], []>} : vector<336x16xbf16>, vector<16x16xbf16>, vector<336x16xf32> -> vector<336x16xf32>
    %23 = arith.addf %19, %22 : vector<336x16xf32>
    %c14 = arith.constant 14 : index
    %c0_17 = arith.constant 0 : index
    %24 = vector.load %arg5[%c14, %c0_17] : memref<400x16xbf16, #tpu.memory_space<vmem>>, vector<336x16xbf16>
    %c96 = arith.constant 96 : index
    %c0_18 = arith.constant 0 : index
    %25 = vector.load %arg2[%c96, %c0_18] : memref<576x260xbf16, #tpu.memory_space<vmem>>, vector<16x16xbf16>
    %cst_19 = arith.constant dense<0.000000e+00> : vector<336x16xf32>
    %26 = tpu.matmul %24, %25, %cst_19 {dimension_numbers = #tpu.dot_dimension_numbers<[1], [0], [0], [1], [0, 0, 1, 1], [], []>} : vector<336x16xbf16>, vector<16x16xbf16>, vector<336x16xf32> -> vector<336x16xf32>
    %27 = arith.addf %23, %26 : vector<336x16xf32>
    %c15 = arith.constant 15 : index
    %c0_20 = arith.constant 0 : index
    %28 = vector.load %arg5[%c15, %c0_20] : memref<400x16xbf16, #tpu.memory_space<vmem>>, vector<336x16xbf16>
    %c112 = arith.constant 112 : index
    %c0_21 = arith.constant 0 : index
    %29 = vector.load %arg2[%c112, %c0_21] : memref<576x260xbf16, #tpu.memory_space<vmem>>, vector<16x16xbf16>
    %cst_22 = arith.constant dense<0.000000e+00> : vector<336x16xf32>
    %30 = tpu.matmul %28, %29, %cst_22 {dimension_numbers = #tpu.dot_dimension_numbers<[1], [0], [0], [1], [0, 0, 1, 1], [], []>} : vector<336x16xbf16>, vector<16x16xbf16>, vector<336x16xf32> -> vector<336x16xf32>
    %31 = arith.addf %27, %30 : vector<336x16xf32>
    %c31 = arith.constant 31 : index
    %c0_23 = arith.constant 0 : index
    %32 = vector.load %arg5[%c31, %c0_23] : memref<400x16xbf16, #tpu.memory_space<vmem>>, vector<336x16xbf16>
    %c128 = arith.constant 128 : index
    %c0_24 = arith.constant 0 : index
    %33 = vector.load %arg2[%c128, %c0_24] : memref<576x260xbf16, #tpu.memory_space<vmem>>, vector<16x16xbf16>
    %cst_25 = arith.constant dense<0.000000e+00> : vector<336x16xf32>
    %34 = tpu.matmul %32, %33, %cst_25 {dimension_numbers = #tpu.dot_dimension_numbers<[1], [0], [0], [1], [0, 0, 1, 1], [], []>} : vector<336x16xbf16>, vector<16x16xbf16>, vector<336x16xf32> -> vector<336x16xf32>
    %35 = arith.addf %31, %34 : vector<336x16xf32>
    %c32_26 = arith.constant 32 : index
    %c0_27 = arith.constant 0 : index
    %36 = vector.load %arg5[%c32_26, %c0_27] : memref<400x16xbf16, #tpu.memory_space<vmem>>, vector<336x16xbf16>
    %c144 = arith.constant 144 : index
    %c0_28 = arith.constant 0 : index
    %37 = vector.load %arg2[%c144, %c0_28] : memref<576x260xbf16, #tpu.memory_space<vmem>>, vector<16x16xbf16>
    %cst_29 = arith.constant dense<0.000000e+00> : vector<336x16xf32>
    %38 = tpu.matmul %36, %37, %cst_29 {dimension_numbers = #tpu.dot_dimension_numbers<[1], [0], [0], [1], [0, 0, 1, 1], [], []>} : vector<336x16xbf16>, vector<16x16xbf16>, vector<336x16xf32> -> vector<336x16xf32>
    %39 = arith.addf %35, %38 : vector<336x16xf32>
    %c33 = arith.constant 33 : index
    %c0_30 = arith.constant 0 : index
    %40 = vector.load %arg5[%c33, %c0_30] : memref<400x16xbf16, #tpu.memory_space<vmem>>, vector<336x16xbf16>
    %c160 = arith.constant 160 : index
    %c0_31 = arith.constant 0 : index
    %41 = vector.load %arg2[%c160, %c0_31] : memref<576x260xbf16, #tpu.memory_space<vmem>>, vector<16x16xbf16>
    %cst_32 = arith.constant dense<0.000000e+00> : vector<336x16xf32>
    %42 = tpu.matmul %40, %41, %cst_32 {dimension_numbers = #tpu.dot_dimension_numbers<[1], [0], [0], [1], [0, 0, 1, 1], [], []>} : vector<336x16xbf16>, vector<16x16xbf16>, vector<336x16xf32> -> vector<336x16xf32>
    %43 = arith.addf %39, %42 : vector<336x16xf32>
    %c49 = arith.constant 49 : index
    %c0_33 = arith.constant 0 : index
    %44 = vector.load %arg5[%c49, %c0_33] : memref<400x16xbf16, #tpu.memory_space<vmem>>, vector<336x16xbf16>
    %c176 = arith.constant 176 : index
    %c0_34 = arith.constant 0 : index
    %45 = vector.load %arg2[%c176, %c0_34] : memref<576x260xbf16, #tpu.memory_space<vmem>>, vector<16x16xbf16>
    %cst_35 = arith.constant dense<0.000000e+00> : vector<336x16xf32>
    %46 = tpu.matmul %44, %45, %cst_35 {dimension_numbers = #tpu.dot_dimension_numbers<[1], [0], [0], [1], [0, 0, 1, 1], [], []>} : vector<336x16xbf16>, vector<16x16xbf16>, vector<336x16xf32> -> vector<336x16xf32>
    %47 = arith.addf %43, %46 : vector<336x16xf32>
    %c50 = arith.constant 50 : index
    %c0_36 = arith.constant 0 : index
    %48 = vector.load %arg5[%c50, %c0_36] : memref<400x16xbf16, #tpu.memory_space<vmem>>, vector<336x16xbf16>
    %c192 = arith.constant 192 : index
    %c0_37 = arith.constant 0 : index
    %49 = vector.load %arg2[%c192, %c0_37] : memref<576x260xbf16, #tpu.memory_space<vmem>>, vector<16x16xbf16>
    %cst_38 = arith.constant dense<0.000000e+00> : vector<336x16xf32>
    %50 = tpu.matmul %48, %49, %cst_38 {dimension_numbers = #tpu.dot_dimension_numbers<[1], [0], [0], [1], [0, 0, 1, 1], [], []>} : vector<336x16xbf16>, vector<16x16xbf16>, vector<336x16xf32> -> vector<336x16xf32>
    %51 = arith.addf %47, %50 : vector<336x16xf32>
    %c51 = arith.constant 51 : index
    %c0_39 = arith.constant 0 : index
    %52 = vector.load %arg5[%c51, %c0_39] : memref<400x16xbf16, #tpu.memory_space<vmem>>, vector<336x16xbf16>
    %c208 = arith.constant 208 : index
    %c0_40 = arith.constant 0 : index
    %53 = vector.load %arg2[%c208, %c0_40] : memref<576x260xbf16, #tpu.memory_space<vmem>>, vector<16x16xbf16>
    %cst_41 = arith.constant dense<0.000000e+00> : vector<336x16xf32>
    %54 = tpu.matmul %52, %53, %cst_41 {dimension_numbers = #tpu.dot_dimension_numbers<[1], [0], [0], [1], [0, 0, 1, 1], [], []>} : vector<336x16xbf16>, vector<16x16xbf16>, vector<336x16xf32> -> vector<336x16xf32>
    %55 = arith.addf %51, %54 : vector<336x16xf32>
    %cst_42 = arith.constant 0.000000e+00 : f32
    %56 = vector.broadcast %cst_42 : f32 to vector<336x16xf32>
    %57 = arith.maximumf %55, %56 : vector<336x16xf32>
    %58 = arith.truncf %57 : vector<336x16xf32> to vector<336x16xbf16>
    %c224 = arith.constant 224 : index
    %c0_43 = arith.constant 0 : index
    %59 = vector.load %arg2[%c224, %c0_43] : memref<576x260xbf16, #tpu.memory_space<vmem>>, vector<16x50xbf16>
    %cst_44 = arith.constant dense<0.000000e+00> : vector<336x50xf32>
    %60 = tpu.matmul %58, %59, %cst_44 {dimension_numbers = #tpu.dot_dimension_numbers<[1], [0], [0], [1], [0, 0, 1, 1], [], []>} : vector<336x16xbf16>, vector<16x50xbf16>, vector<336x50xf32> -> vector<336x50xf32>
    %c1 = arith.constant 1 : index
    %c0_45 = arith.constant 0 : index
    %61 = vector.load %arg3[%c1, %c0_45] : memref<136x260xf32, #tpu.memory_space<vmem>>, vector<1x50xf32>
    %62 = vector.broadcast %61 : vector<1x50xf32> to vector<336x50xf32>
    %63 = arith.addf %60, %62 : vector<336x50xf32>
    %cst_46 = arith.constant 0.000000e+00 : f32
    %64 = vector.broadcast %cst_46 : f32 to vector<336x50xf32>
    %65 = arith.maximumf %63, %64 : vector<336x50xf32>
    %66 = arith.truncf %65 : vector<336x50xf32> to vector<336x50xbf16>
    %c240 = arith.constant 240 : index
    %c0_47 = arith.constant 0 : index
    %67 = vector.load %arg2[%c240, %c0_47] : memref<576x260xbf16, #tpu.memory_space<vmem>>, vector<50x260xbf16>
    %cst_48 = arith.constant dense<0.000000e+00> : vector<336x260xf32>
    %68 = tpu.matmul %66, %67, %cst_48 {dimension_numbers = #tpu.dot_dimension_numbers<[1], [0], [0], [1], [0, 0, 1, 1], [], []>} : vector<336x50xbf16>, vector<50x260xbf16>, vector<336x260xf32> -> vector<336x260xf32>
    %c2 = arith.constant 2 : index
    %c0_49 = arith.constant 0 : index
    %69 = vector.load %arg3[%c2, %c0_49] : memref<136x260xf32, #tpu.memory_space<vmem>>, vector<1x260xf32>
    %70 = vector.broadcast %69 : vector<1x260xf32> to vector<336x260xf32>
    %71 = arith.addf %68, %70 : vector<336x260xf32>
    %cst_50 = arith.constant 0.000000e+00 : f32
    %72 = vector.broadcast %cst_50 : f32 to vector<336x260xf32>
    %73 = arith.maximumf %71, %72 : vector<336x260xf32>
    %74 = arith.truncf %73 : vector<336x260xf32> to vector<336x260xbf16>
    %c304 = arith.constant 304 : index
    %c0_51 = arith.constant 0 : index
    %75 = vector.load %arg2[%c304, %c0_51] : memref<576x260xbf16, #tpu.memory_space<vmem>>, vector<260x128xbf16>
    %cst_52 = arith.constant dense<0.000000e+00> : vector<336x128xf32>
    %76 = tpu.matmul %74, %75, %cst_52 {dimension_numbers = #tpu.dot_dimension_numbers<[1], [0], [0], [1], [0, 0, 1, 1], [], []>} : vector<336x260xbf16>, vector<260x128xbf16>, vector<336x128xf32> -> vector<336x128xf32>
    %c3 = arith.constant 3 : index
    %c0_53 = arith.constant 0 : index
    %77 = vector.load %arg3[%c3, %c0_53] : memref<136x260xf32, #tpu.memory_space<vmem>>, vector<1x128xf32>
    %78 = vector.broadcast %77 : vector<1x128xf32> to vector<336x128xf32>
    %79 = arith.addf %76, %78 : vector<336x128xf32>
    %80 = tpu.iota {dimensions = array<i32: 1>} : vector<1x128xi32>
    %c7_i32 = arith.constant 7 : i32
    %81 = vector.broadcast %c7_i32 : i32 to vector<1x128xi32>
    %82 = arith.cmpi sge, %80, %81 : vector<1x128xi32>
    %c123_i32 = arith.constant 123 : i32
    %83 = vector.broadcast %c123_i32 : i32 to vector<1x128xi32>
    %84 = arith.cmpi slt, %80, %83 : vector<1x128xi32>
    %85 = arith.andi %82, %84 : vector<1x128xi1>
    %cst_54 = arith.constant 0.000000e+00 : f32
    %86 = vector.broadcast %cst_54 : f32 to vector<336x128xf32>
    %c7_i32_55 = arith.constant 7 : i32
    %87 = vector.broadcast %c7_i32_55 : i32 to vector<1x128xi32>
    %88 = arith.cmpi sge, %80, %87 : vector<1x128xi32>
    %c19_i32 = arith.constant 19 : i32
    %89 = vector.broadcast %c19_i32 : i32 to vector<1x128xi32>
    %90 = arith.cmpi slt, %80, %89 : vector<1x128xi32>
    %91 = arith.andi %88, %90 : vector<1x128xi1>
    %cst_56 = arith.constant 0xFF800000 : f32
    %92 = vector.shape_cast %91 : vector<1x128xi1> to vector<1x128xi1>
    %93 = vector.broadcast %92 : vector<1x128xi1> to vector<336x128xi1>
    %94 = vector.broadcast %cst_56 : f32 to vector<336x128xf32>
    %95 = arith.select %93, %79, %94 : vector<336x128xi1>, vector<336x128xf32>
    %cst_57 = arith.constant dense<0xFF800000> : vector<336xf32>
    %96 = vector.multi_reduction <maximumf>, %95, %cst_57 [1] : vector<336x128xf32> to vector<336xf32>
    %97 = vector.shape_cast %96 : vector<336xf32> to vector<336x1xf32>
    %98 = vector.shape_cast %91 : vector<1x128xi1> to vector<1x128xi1>
    %99 = vector.broadcast %98 : vector<1x128xi1> to vector<336x128xi1>
    %100 = vector.shape_cast %97 : vector<336x1xf32> to vector<336x1xf32>
    %101 = vector.broadcast %100 : vector<336x1xf32> to vector<336x128xf32>
    %102 = arith.select %99, %101, %86 : vector<336x128xi1>, vector<336x128xf32>
    %c19_i32_58 = arith.constant 19 : i32
    %103 = vector.broadcast %c19_i32_58 : i32 to vector<1x128xi32>
    %104 = arith.cmpi sge, %80, %103 : vector<1x128xi32>
    %c31_i32 = arith.constant 31 : i32
    %105 = vector.broadcast %c31_i32 : i32 to vector<1x128xi32>
    %106 = arith.cmpi slt, %80, %105 : vector<1x128xi32>
    %107 = arith.andi %104, %106 : vector<1x128xi1>
    %cst_59 = arith.constant 0xFF800000 : f32
    %108 = vector.shape_cast %107 : vector<1x128xi1> to vector<1x128xi1>
    %109 = vector.broadcast %108 : vector<1x128xi1> to vector<336x128xi1>
    %110 = vector.broadcast %cst_59 : f32 to vector<336x128xf32>
    %111 = arith.select %109, %79, %110 : vector<336x128xi1>, vector<336x128xf32>
    %cst_60 = arith.constant dense<0xFF800000> : vector<336xf32>
    %112 = vector.multi_reduction <maximumf>, %111, %cst_60 [1] : vector<336x128xf32> to vector<336xf32>
    %113 = vector.shape_cast %112 : vector<336xf32> to vector<336x1xf32>
    %114 = vector.shape_cast %107 : vector<1x128xi1> to vector<1x128xi1>
    %115 = vector.broadcast %114 : vector<1x128xi1> to vector<336x128xi1>
    %116 = vector.shape_cast %113 : vector<336x1xf32> to vector<336x1xf32>
    %117 = vector.broadcast %116 : vector<336x1xf32> to vector<336x128xf32>
    %118 = arith.select %115, %117, %102 : vector<336x128xi1>, vector<336x128xf32>
    %c31_i32_61 = arith.constant 31 : i32
    %119 = vector.broadcast %c31_i32_61 : i32 to vector<1x128xi32>
    %120 = arith.cmpi sge, %80, %119 : vector<1x128xi32>
    %c43_i32 = arith.constant 43 : i32
    %121 = vector.broadcast %c43_i32 : i32 to vector<1x128xi32>
    %122 = arith.cmpi slt, %80, %121 : vector<1x128xi32>
    %123 = arith.andi %120, %122 : vector<1x128xi1>
    %cst_62 = arith.constant 0xFF800000 : f32
    %124 = vector.shape_cast %123 : vector<1x128xi1> to vector<1x128xi1>
    %125 = vector.broadcast %124 : vector<1x128xi1> to vector<336x128xi1>
    %126 = vector.broadcast %cst_62 : f32 to vector<336x128xf32>
    %127 = arith.select %125, %79, %126 : vector<336x128xi1>, vector<336x128xf32>
    %cst_63 = arith.constant dense<0xFF800000> : vector<336xf32>
    %128 = vector.multi_reduction <maximumf>, %127, %cst_63 [1] : vector<336x128xf32> to vector<336xf32>
    %129 = vector.shape_cast %128 : vector<336xf32> to vector<336x1xf32>
    %130 = vector.shape_cast %123 : vector<1x128xi1> to vector<1x128xi1>
    %131 = vector.broadcast %130 : vector<1x128xi1> to vector<336x128xi1>
    %132 = vector.shape_cast %129 : vector<336x1xf32> to vector<336x1xf32>
    %133 = vector.broadcast %132 : vector<336x1xf32> to vector<336x128xf32>
    %134 = arith.select %131, %133, %118 : vector<336x128xi1>, vector<336x128xf32>
    %c43_i32_64 = arith.constant 43 : i32
    %135 = vector.broadcast %c43_i32_64 : i32 to vector<1x128xi32>
    %136 = arith.cmpi sge, %80, %135 : vector<1x128xi32>
    %c55_i32 = arith.constant 55 : i32
    %137 = vector.broadcast %c55_i32 : i32 to vector<1x128xi32>
    %138 = arith.cmpi slt, %80, %137 : vector<1x128xi32>
    %139 = arith.andi %136, %138 : vector<1x128xi1>
    %cst_65 = arith.constant 0xFF800000 : f32
    %140 = vector.shape_cast %139 : vector<1x128xi1> to vector<1x128xi1>
    %141 = vector.broadcast %140 : vector<1x128xi1> to vector<336x128xi1>
    %142 = vector.broadcast %cst_65 : f32 to vector<336x128xf32>
    %143 = arith.select %141, %79, %142 : vector<336x128xi1>, vector<336x128xf32>
    %cst_66 = arith.constant dense<0xFF800000> : vector<336xf32>
    %144 = vector.multi_reduction <maximumf>, %143, %cst_66 [1] : vector<336x128xf32> to vector<336xf32>
    %145 = vector.shape_cast %144 : vector<336xf32> to vector<336x1xf32>
    %146 = vector.shape_cast %139 : vector<1x128xi1> to vector<1x128xi1>
    %147 = vector.broadcast %146 : vector<1x128xi1> to vector<336x128xi1>
    %148 = vector.shape_cast %145 : vector<336x1xf32> to vector<336x1xf32>
    %149 = vector.broadcast %148 : vector<336x1xf32> to vector<336x128xf32>
    %150 = arith.select %147, %149, %134 : vector<336x128xi1>, vector<336x128xf32>
    %c55_i32_67 = arith.constant 55 : i32
    %151 = vector.broadcast %c55_i32_67 : i32 to vector<1x128xi32>
    %152 = arith.cmpi sge, %80, %151 : vector<1x128xi32>
    %c67_i32 = arith.constant 67 : i32
    %153 = vector.broadcast %c67_i32 : i32 to vector<1x128xi32>
    %154 = arith.cmpi slt, %80, %153 : vector<1x128xi32>
    %155 = arith.andi %152, %154 : vector<1x128xi1>
    %cst_68 = arith.constant 0xFF800000 : f32
    %156 = vector.shape_cast %155 : vector<1x128xi1> to vector<1x128xi1>
    %157 = vector.broadcast %156 : vector<1x128xi1> to vector<336x128xi1>
    %158 = vector.broadcast %cst_68 : f32 to vector<336x128xf32>
    %159 = arith.select %157, %79, %158 : vector<336x128xi1>, vector<336x128xf32>
    %cst_69 = arith.constant dense<0xFF800000> : vector<336xf32>
    %160 = vector.multi_reduction <maximumf>, %159, %cst_69 [1] : vector<336x128xf32> to vector<336xf32>
    %161 = vector.shape_cast %160 : vector<336xf32> to vector<336x1xf32>
    %162 = vector.shape_cast %155 : vector<1x128xi1> to vector<1x128xi1>
    %163 = vector.broadcast %162 : vector<1x128xi1> to vector<336x128xi1>
    %164 = vector.shape_cast %161 : vector<336x1xf32> to vector<336x1xf32>
    %165 = vector.broadcast %164 : vector<336x1xf32> to vector<336x128xf32>
    %166 = arith.select %163, %165, %150 : vector<336x128xi1>, vector<336x128xf32>
    %c67_i32_70 = arith.constant 67 : i32
    %167 = vector.broadcast %c67_i32_70 : i32 to vector<1x128xi32>
    %168 = arith.cmpi sge, %80, %167 : vector<1x128xi32>
    %c79_i32 = arith.constant 79 : i32
    %169 = vector.broadcast %c79_i32 : i32 to vector<1x128xi32>
    %170 = arith.cmpi slt, %80, %169 : vector<1x128xi32>
    %171 = arith.andi %168, %170 : vector<1x128xi1>
    %cst_71 = arith.constant 0xFF800000 : f32
    %172 = vector.shape_cast %171 : vector<1x128xi1> to vector<1x128xi1>
    %173 = vector.broadcast %172 : vector<1x128xi1> to vector<336x128xi1>
    %174 = vector.broadcast %cst_71 : f32 to vector<336x128xf32>
    %175 = arith.select %173, %79, %174 : vector<336x128xi1>, vector<336x128xf32>
    %cst_72 = arith.constant dense<0xFF800000> : vector<336xf32>
    %176 = vector.multi_reduction <maximumf>, %175, %cst_72 [1] : vector<336x128xf32> to vector<336xf32>
    %177 = vector.shape_cast %176 : vector<336xf32> to vector<336x1xf32>
    %178 = vector.shape_cast %171 : vector<1x128xi1> to vector<1x128xi1>
    %179 = vector.broadcast %178 : vector<1x128xi1> to vector<336x128xi1>
    %180 = vector.shape_cast %177 : vector<336x1xf32> to vector<336x1xf32>
    %181 = vector.broadcast %180 : vector<336x1xf32> to vector<336x128xf32>
    %182 = arith.select %179, %181, %166 : vector<336x128xi1>, vector<336x128xf32>
    %c79_i32_73 = arith.constant 79 : i32
    %183 = vector.broadcast %c79_i32_73 : i32 to vector<1x128xi32>
    %184 = arith.cmpi sge, %80, %183 : vector<1x128xi32>
    %c90_i32 = arith.constant 90 : i32
    %185 = vector.broadcast %c90_i32 : i32 to vector<1x128xi32>
    %186 = arith.cmpi slt, %80, %185 : vector<1x128xi32>
    %187 = arith.andi %184, %186 : vector<1x128xi1>
    %cst_74 = arith.constant 0xFF800000 : f32
    %188 = vector.shape_cast %187 : vector<1x128xi1> to vector<1x128xi1>
    %189 = vector.broadcast %188 : vector<1x128xi1> to vector<336x128xi1>
    %190 = vector.broadcast %cst_74 : f32 to vector<336x128xf32>
    %191 = arith.select %189, %79, %190 : vector<336x128xi1>, vector<336x128xf32>
    %cst_75 = arith.constant dense<0xFF800000> : vector<336xf32>
    %192 = vector.multi_reduction <maximumf>, %191, %cst_75 [1] : vector<336x128xf32> to vector<336xf32>
    %193 = vector.shape_cast %192 : vector<336xf32> to vector<336x1xf32>
    %194 = vector.shape_cast %187 : vector<1x128xi1> to vector<1x128xi1>
    %195 = vector.broadcast %194 : vector<1x128xi1> to vector<336x128xi1>
    %196 = vector.shape_cast %193 : vector<336x1xf32> to vector<336x1xf32>
    %197 = vector.broadcast %196 : vector<336x1xf32> to vector<336x128xf32>
    %198 = arith.select %195, %197, %182 : vector<336x128xi1>, vector<336x128xf32>
    %c90_i32_76 = arith.constant 90 : i32
    %199 = vector.broadcast %c90_i32_76 : i32 to vector<1x128xi32>
    %200 = arith.cmpi sge, %80, %199 : vector<1x128xi32>
    %c101_i32 = arith.constant 101 : i32
    %201 = vector.broadcast %c101_i32 : i32 to vector<1x128xi32>
    %202 = arith.cmpi slt, %80, %201 : vector<1x128xi32>
    %203 = arith.andi %200, %202 : vector<1x128xi1>
    %cst_77 = arith.constant 0xFF800000 : f32
    %204 = vector.shape_cast %203 : vector<1x128xi1> to vector<1x128xi1>
    %205 = vector.broadcast %204 : vector<1x128xi1> to vector<336x128xi1>
    %206 = vector.broadcast %cst_77 : f32 to vector<336x128xf32>
    %207 = arith.select %205, %79, %206 : vector<336x128xi1>, vector<336x128xf32>
    %cst_78 = arith.constant dense<0xFF800000> : vector<336xf32>
    %208 = vector.multi_reduction <maximumf>, %207, %cst_78 [1] : vector<336x128xf32> to vector<336xf32>
    %209 = vector.shape_cast %208 : vector<336xf32> to vector<336x1xf32>
    %210 = vector.shape_cast %203 : vector<1x128xi1> to vector<1x128xi1>
    %211 = vector.broadcast %210 : vector<1x128xi1> to vector<336x128xi1>
    %212 = vector.shape_cast %209 : vector<336x1xf32> to vector<336x1xf32>
    %213 = vector.broadcast %212 : vector<336x1xf32> to vector<336x128xf32>
    %214 = arith.select %211, %213, %198 : vector<336x128xi1>, vector<336x128xf32>
    %c101_i32_79 = arith.constant 101 : i32
    %215 = vector.broadcast %c101_i32_79 : i32 to vector<1x128xi32>
    %216 = arith.cmpi sge, %80, %215 : vector<1x128xi32>
    %c112_i32 = arith.constant 112 : i32
    %217 = vector.broadcast %c112_i32 : i32 to vector<1x128xi32>
    %218 = arith.cmpi slt, %80, %217 : vector<1x128xi32>
    %219 = arith.andi %216, %218 : vector<1x128xi1>
    %cst_80 = arith.constant 0xFF800000 : f32
    %220 = vector.shape_cast %219 : vector<1x128xi1> to vector<1x128xi1>
    %221 = vector.broadcast %220 : vector<1x128xi1> to vector<336x128xi1>
    %222 = vector.broadcast %cst_80 : f32 to vector<336x128xf32>
    %223 = arith.select %221, %79, %222 : vector<336x128xi1>, vector<336x128xf32>
    %cst_81 = arith.constant dense<0xFF800000> : vector<336xf32>
    %224 = vector.multi_reduction <maximumf>, %223, %cst_81 [1] : vector<336x128xf32> to vector<336xf32>
    %225 = vector.shape_cast %224 : vector<336xf32> to vector<336x1xf32>
    %226 = vector.shape_cast %219 : vector<1x128xi1> to vector<1x128xi1>
    %227 = vector.broadcast %226 : vector<1x128xi1> to vector<336x128xi1>
    %228 = vector.shape_cast %225 : vector<336x1xf32> to vector<336x1xf32>
    %229 = vector.broadcast %228 : vector<336x1xf32> to vector<336x128xf32>
    %230 = arith.select %227, %229, %214 : vector<336x128xi1>, vector<336x128xf32>
    %c112_i32_82 = arith.constant 112 : i32
    %231 = vector.broadcast %c112_i32_82 : i32 to vector<1x128xi32>
    %232 = arith.cmpi sge, %80, %231 : vector<1x128xi32>
    %c123_i32_83 = arith.constant 123 : i32
    %233 = vector.broadcast %c123_i32_83 : i32 to vector<1x128xi32>
    %234 = arith.cmpi slt, %80, %233 : vector<1x128xi32>
    %235 = arith.andi %232, %234 : vector<1x128xi1>
    %cst_84 = arith.constant 0xFF800000 : f32
    %236 = vector.shape_cast %235 : vector<1x128xi1> to vector<1x128xi1>
    %237 = vector.broadcast %236 : vector<1x128xi1> to vector<336x128xi1>
    %238 = vector.broadcast %cst_84 : f32 to vector<336x128xf32>
    %239 = arith.select %237, %79, %238 : vector<336x128xi1>, vector<336x128xf32>
    %cst_85 = arith.constant dense<0xFF800000> : vector<336xf32>
    %240 = vector.multi_reduction <maximumf>, %239, %cst_85 [1] : vector<336x128xf32> to vector<336xf32>
    %241 = vector.shape_cast %240 : vector<336xf32> to vector<336x1xf32>
    %242 = vector.shape_cast %235 : vector<1x128xi1> to vector<1x128xi1>
    %243 = vector.broadcast %242 : vector<1x128xi1> to vector<336x128xi1>
    %244 = vector.shape_cast %241 : vector<336x1xf32> to vector<336x1xf32>
    %245 = vector.broadcast %244 : vector<336x1xf32> to vector<336x128xf32>
    %246 = arith.select %243, %245, %230 : vector<336x128xi1>, vector<336x128xf32>
    %247 = vector.shape_cast %85 : vector<1x128xi1> to vector<1x128xi1>
    %248 = vector.broadcast %247 : vector<1x128xi1> to vector<336x128xi1>
    %249 = arith.select %248, %246, %79 : vector<336x128xi1>, vector<336x128xf32>
    %250 = arith.subf %79, %249 : vector<336x128xf32>
    %251 = math.exp %250 : vector<336x128xf32>
    %c8 = arith.constant 8 : index
    %c0_86 = arith.constant 0 : index
    %252 = vector.load %arg3[%c8, %c0_86] : memref<136x260xf32, #tpu.memory_space<vmem>>, vector<128x128xf32>
    %cst_87 = arith.constant dense<0.000000e+00> : vector<336x128xf32>
    %253 = tpu.matmul %251, %252, %cst_87 {dimension_numbers = #tpu.dot_dimension_numbers<[1], [0], [0], [1], [0, 0, 1, 1], [], []>} : vector<336x128xf32>, vector<128x128xf32>, vector<336x128xf32> -> vector<336x128xf32>
    %cst_88 = arith.constant 1.000000e+00 : f32
    %254 = vector.shape_cast %85 : vector<1x128xi1> to vector<1x128xi1>
    %255 = vector.broadcast %254 : vector<1x128xi1> to vector<336x128xi1>
    %256 = vector.broadcast %cst_88 : f32 to vector<336x128xf32>
    %257 = arith.select %255, %253, %256 : vector<336x128xi1>, vector<336x128xf32>
    %258 = math.log %257 : vector<336x128xf32>
    %cst_89 = arith.constant 5.000000e-01 : f32
    %259 = vector.broadcast %cst_89 : f32 to vector<336x128xf32>
    %260 = arith.mulf %259, %79 : vector<336x128xf32>
    %261 = math.tanh %260 : vector<336x128xf32>
    %cst_90 = arith.constant 1.000000e+00 : f32
    %262 = vector.broadcast %cst_90 : f32 to vector<336x128xf32>
    %263 = arith.addf %261, %262 : vector<336x128xf32>
    %cst_91 = arith.constant 5.000000e-01 : f32
    %264 = vector.broadcast %cst_91 : f32 to vector<336x128xf32>
    %265 = arith.mulf %264, %263 : vector<336x128xf32>
    %c3_i32 = arith.constant 3 : i32
    %266 = vector.broadcast %c3_i32 : i32 to vector<1x128xi32>
    %267 = arith.cmpi slt, %80, %266 : vector<1x128xi32>
    %268 = vector.shape_cast %267 : vector<1x128xi1> to vector<1x128xi1>
    %269 = vector.broadcast %268 : vector<1x128xi1> to vector<336x128xi1>
    %270 = arith.select %269, %265, %79 : vector<336x128xi1>, vector<336x128xf32>
    %271 = arith.subf %79, %249 : vector<336x128xf32>
    %272 = arith.subf %271, %258 : vector<336x128xf32>
    %273 = vector.shape_cast %85 : vector<1x128xi1> to vector<1x128xi1>
    %274 = vector.broadcast %273 : vector<1x128xi1> to vector<336x128xi1>
    %275 = arith.select %274, %272, %270 : vector<336x128xi1>, vector<336x128xf32>
    %c123_i32_92 = arith.constant 123 : i32
    %276 = vector.broadcast %c123_i32_92 : i32 to vector<1x128xi32>
    %277 = arith.cmpi sge, %80, %276 : vector<1x128xi32>
    %cst_93 = arith.constant 0.000000e+00 : f32
    %278 = vector.shape_cast %277 : vector<1x128xi1> to vector<1x128xi1>
    %279 = vector.broadcast %278 : vector<1x128xi1> to vector<336x128xi1>
    %280 = vector.broadcast %cst_93 : f32 to vector<336x128xf32>
    %281 = arith.select %279, %280, %275 : vector<336x128xi1>, vector<336x128xf32>
    %c0_94 = arith.constant 0 : index
    %c0_95 = arith.constant 0 : index
    %c0_96 = arith.constant 0 : index
    %282 = vector.load %arg4[%c0_94, %c0_95, %c0_96] : memref<1x336x128xf32, #tpu.memory_space<vmem>>, vector<1x336x128xf32>
    %283 = vector.shape_cast %282 : vector<1x336x128xf32> to vector<336x128xf32>
    %284 = vector.shape_cast %281 : vector<336x128xf32> to vector<1x336x128xf32>
    tpu.vector_store %arg4[%c0_94, %c0_95, %c0_96], %284 {strides = array<i32>} : memref<1x336x128xf32, #tpu.memory_space<vmem>>, vector<1x336x128xf32>,
    return
  }
  func.func @transform_0(%arg0: i32) -> (i32, i32, i32) {
    %c0_i32 = arith.constant 0 : i32
    %c0_i32_0 = arith.constant 0 : i32
    %c0_i32_1 = arith.constant 0 : i32
    return %arg0, %c0_i32, %c0_i32_0 : i32, i32, i32
  }
  func.func @transform_1(%arg0: i32) -> (i32, i32) {
    %c0_i32 = arith.constant 0 : i32
    %c0_i32_0 = arith.constant 0 : i32
    %c0_i32_1 = arith.constant 0 : i32
    return %c0_i32, %c0_i32_0 : i32, i32
  }
  func.func @transform_2(%arg0: i32) -> (i32, i32) {
    %c0_i32 = arith.constant 0 : i32
    %c0_i32_0 = arith.constant 0 : i32
    %c0_i32_1 = arith.constant 0 : i32
    return %c0_i32, %c0_i32_0 : i32, i32
  }
  func.func @transform_3(%arg0: i32) -> (i32, i32, i32) {
    %c0_i32 = arith.constant 0 : i32
    %c0_i32_0 = arith.constant 0 : i32
    %c0_i32_1 = arith.constant 0 : i32
    return %arg0, %c0_i32, %c0_i32_0 : i32, i32, i32
  }
}

</mosaic_0001>

<llo_original>
// kernel: _lambda_.1
$region0: #{_lambda_.1}
  #allocation0 [shape = 'u32[]', space=smem, size = 0x4, offset = 0x4, fixed_abs, tag = 'smem constant byte address 0x4 - core index']
  #allocation1 [shape = 'u32[144,128]{1,0:T(1,128)}', space=vmem, size = 0x12000, scoped, tag = 'internal scratch']
  #allocation2 [shape = 'bf16[400,16]{1,0:T(8,128)(2,1)}', space=vmem, size = 0x19000, scoped, tag = 'scratch operand']
  %s0 = inlined_call_operand.vmem [shape: bf16[2,336,73], index: 0, kind: input, shape index: {}]
  %s1 = inlined_call_operand.vmem [shape: bf16[576,260], index: 1, kind: input, shape index: {}]
  %s2 = inlined_call_operand.vmem [shape: f32[136,260], index: 2, kind: input, shape index: {}]
  %s3 = inlined_call_operand.vmem [shape: f32[2,336,128], index: 3, kind: output, shape index: {}]
  %s4 = sld [smem:[#allocation0]]
  $region45: #{_lambda_.1} parent=0
    _
  %s6 = ssub.s32 1, %s4
  %s7 = scalar_select 0, %s6, %s4
  loop: start=0, step=1, limit=4
  $region2: #{_lambda_.1} parent=0 // loop_pre_header
    _
  $region3: #{_lambda_.1} parent=0 // loop_header
    %s9 = sphi 0, %s13
    %p10 = scmp.ge.s32.totalorder %s9, 4
    %s19 = sphi 0, %s21
    %s22 = sphi 0, %s19
    %s23 = sphi 0, %s22
    %s39 = sphi 0, %s23
    %s43 = sphi 0, %s43
    %s45 = sphi 0, %s43
    %s46 = sphi 0, %s45
    %s60 = sphi 0, %s46
    %s64 = sphi 0, %s64
    %s66 = sphi 0, %s64
    %s67 = sphi 0, %s66
    %s81 = sphi 0, %s67
    %s87 = sphi 0, %s89
    %s90 = sphi 0, %s87
    %s91 = sphi 0, %s90
    %s107 = sphi 0, %s91
  $region4: #{_lambda_.1} parent=0 // loop_header_branch
    %12 = sbr.rel (%p10) target = $region8
  $region5: #{_lambda_.1} parent=0 // loop_body
    %s14 = ssub.s32 %s9, 1
    %s15 = ssub.s32 %s9, 2
    %s16 = sadd.s32 %s9, 1
    %s17 = ssub.s32 %s9, %s16
    %p18 = scmp.eq.s32.totalorder %s17, 0
    %s20 = sadd.s32 %s19, 1
    %s21 = scalar_select %p18, %s19, %s20
    %p24 = pneg %p18
    %p25 = scmp.eq.s32.totalorder %s9, 1
    %p26 = por %p24, %p25
    %p27 = scmp.ne.s32.totalorder %s19, %s22
    %p28 = scmp.eq.s32.totalorder %s9, 0
    %p29 = por %p27, %p28
    %p30 = scmp.ne.s32.totalorder %s19, %s22
    %p31 = scmp.eq.s32.totalorder %s14, 1
    %p32 = por %p30, %p31
    %p33 = scmp.ne.s32.totalorder %s22, %s23
    %p34 = scmp.eq.s32.totalorder %s14, 0
    %p35 = por %p33, %p34
    %p36 = scmp.ne.s32.totalorder %s22, %s23
    %p37 = scmp.eq.s32.totalorder %s15, 1
    %p38 = por %p36, %p37
    %p40 = scmp.ne.s32.totalorder %s23, %s39
    %p41 = scmp.eq.s32.totalorder %s15, 0
    %p42 = por %p40, %p41
    %s44 = sadd.s32 %s43, 1
    %p47 = scmp.eq.s32.totalorder %s9, 1
    %p48 = scmp.ne.s32.totalorder %s43, %s45
    %p49 = scmp.eq.s32.totalorder %s9, 0
    %p50 = por %p48, %p49
    %p51 = scmp.ne.s32.totalorder %s43, %s45
    %p52 = scmp.eq.s32.totalorder %s14, 1
    %p53 = por %p51, %p52
    %p54 = scmp.ne.s32.totalorder %s45, %s46
    %p55 = scmp.eq.s32.totalorder %s14, 0
    %p56 = por %p54, %p55
    %p57 = scmp.ne.s32.totalorder %s45, %s46
    %p58 = scmp.eq.s32.totalorder %s15, 1
    %p59 = por %p57, %p58
    %p61 = scmp.ne.s32.totalorder %s46, %s60
    %p62 = scmp.eq.s32.totalorder %s15, 0
    %p63 = por %p61, %p62
    %s65 = sadd.s32 %s64, 1
    %p68 = scmp.eq.s32.totalorder %s9, 1
    %p69 = scmp.ne.s32.totalorder %s64, %s66
    %p70 = scmp.eq.s32.totalorder %s9, 0
    %p71 = por %p69, %p70
    %p72 = scmp.ne.s32.totalorder %s64, %s66
    %p73 = scmp.eq.s32.totalorder %s14, 1
    %p74 = por %p72, %p73
    %p75 = scmp.ne.s32.totalorder %s66, %s67
    %p76 = scmp.eq.s32.totalorder %s14, 0
    %p77 = por %p75, %p76
    %p78 = scmp.ne.s32.totalorder %s66, %s67
    %p79 = scmp.eq.s32.totalorder %s15, 1
    %p80 = por %p78, %p79
    %p82 = scmp.ne.s32.totalorder %s67, %s81
    %p83 = scmp.eq.s32.totalorder %s15, 0
    %p84 = por %p82, %p83
    %s85 = ssub.s32 %s9, %s16
    %p86 = scmp.eq.s32.totalorder %s85, 0
    %s88 = sadd.s32 %s87, 1
    %s89 = scalar_select %p86, %s87, %s88
    %p92 = pneg %p86
    %p93 = scmp.eq.s32.totalorder %s9, 1
    %p94 = por %p92, %p93
    %p95 = scmp.ne.s32.totalorder %s87, %s90
    %p96 = scmp.eq.s32.totalorder %s9, 0
    %p97 = por %p95, %p96
    %p98 = scmp.ne.s32.totalorder %s87, %s90
    %p99 = scmp.eq.s32.totalorder %s14, 1
    %p100 = por %p98, %p99
    %p101 = scmp.ne.s32.totalorder %s90, %s91
    %p102 = scmp.eq.s32.totalorder %s14, 0
    %p103 = por %p101, %p102
    %p104 = scmp.ne.s32.totalorder %s90, %s91
    %p105 = scmp.eq.s32.totalorder %s15, 1
    %p106 = por %p104, %p105
    %p108 = scmp.ne.s32.totalorder %s91, %s107
    %p109 = scmp.eq.s32.totalorder %s15, 0
    %p110 = por %p108, %p109
    %p111 = scmp.le.s32.totalorder 1, %s9
    %p112 = scmp.lt.s32.totalorder %s9, 3
    %p113 = pnand %p111, %p112
    %p114 = pneg %p113
    // Predicated region
    $region9: #{_lambda_.1} parent=5 // pred_check
      _
    $region10: #{_lambda_.1} parent=5 // pred_check_branch
      %116 = sbr.rel (%p113) target = $region12
    $region11: #{_lambda_.1} parent=5 // pred_region
      %s117 = ssub.s32 %s9, 1
      // Predicated region
      $region13: #{_lambda_.1} parent=11 // pred_check
        %p118 = pneg %p56
      $region14: #{_lambda_.1} parent=11 // pred_check_branch
        %120 = sbr.rel (%p118) target = $region16
      $region15: #{_lambda_.1} parent=11 // pred_region
        _
      $region16: #{_lambda_.1} parent=11 // pred_fallthru
        _
      // Predicated region
      $region17: #{_lambda_.1} parent=11 // pred_check
        %p121 = pneg %p77
      $region18: #{_lambda_.1} parent=11 // pred_check_branch
        %123 = sbr.rel (%p121) target = $region20
      $region19: #{_lambda_.1} parent=11 // pred_region
        _
      $region20: #{_lambda_.1} parent=11 // pred_fallthru
        _
    $region12: #{_lambda_.1} parent=5 // pred_fallthru
      _
    %p124 = scmp.lt.s32.totalorder %s9, 2
    // Predicated region
    $region21: #{_lambda_.1} parent=5 // pred_check
      %p125 = pneg %p124
    $region22: #{_lambda_.1} parent=5 // pred_check_branch
      %127 = sbr.rel (%p125) target = $region24
    $region23: #{_lambda_.1} parent=5 // pred_region
      // Predicated region
      $region25: #{_lambda_.1} parent=23 // pred_check
        %p128 = pneg %p29
      $region26: #{_lambda_.1} parent=23 // pred_check_branch
        %130 = sbr.rel (%p128) target = $region28
      $region27: #{_lambda_.1} parent=23 // pred_region
        %p131 = scmp.lt.s32.totalorder %s9, 1
        %s132 = scalar_select %p131, %s9, 1
        %s133 = smul.addr %s132, 42
        %s134 = smul.addr %s133, 4
        %s135 = scalar_lea.vmem %s0, %s134
      $region28: #{_lambda_.1} parent=23 // pred_fallthru
        _
    $region24: #{_lambda_.1} parent=5 // pred_fallthru
      _
    %p136 = scmp.le.s32.totalorder 1, %s9
    %p137 = scmp.lt.s32.totalorder %s9, 3
    %p138 = pnand %p136, %p137
    %p139 = pneg %p138
    // Predicated region
    $region29: #{_lambda_.1} parent=5 // pred_check
      _
    $region30: #{_lambda_.1} parent=5 // pred_check_branch
      %141 = sbr.rel (%p138) target = $region32
    $region31: #{_lambda_.1} parent=5 // pred_region
      %s142 = ssub.s32 %s9, 1
      %p143 = scmp.lt.s32.totalorder %s14, 1
      %s144 = scalar_select %p143, %s14, 1
      %s145 = smul.addr %s144, 42
      %s146 = smul.addr %s145, 4
      %s147 = scalar_lea.vmem %s0, %s146
      %p148 = pneg %p35
      %p149 = pneg %p32
      %p150 = pneg %p56
      %p151 = pneg %p53
      %p152 = pneg %p77
      %p153 = pneg %p74
      %p154 = pneg %p103
      %p155 = pneg %p100
      %p156 = scmp.lt.s32.totalorder %s14, 1
      %s157 = scalar_select %p156, %s14, 1
      %s158 = smul.addr %s157, 42
      %s159 = smul.addr %s158, 8
      %s160 = scalar_lea.vmem %s3, %s159
      %p161 = scmp.lt.s32.totalorder %s14, 1
      %s162 = scalar_select %p161, %s14, 1
      %s163 = smul.addr %s162, 42
      %s164 = smul.addr %s163, 4
      %s165 = scalar_lea.vmem %s0, %s164
      %p166 = scmp.lt.s32.totalorder %s14, 1
      %s167 = scalar_select %p166, %s14, 1
      %s168 = smul.addr %s167, 42
      %s169 = smul.addr %s168, 8
      %s170 = scalar_lea.vmem %s3, %s169
      %v172 = vld [vmem:[%s165] sm:$0xf]
      %v173 = vld [vmem:[%s165 + $0x4] sm:$0xf]
      %v174 = vld [vmem:[%s165 + $0x8] sm:$0xf]
      %v175 = vld [vmem:[%s165 + $0xc] sm:$0xf]
      %v176 = vld [vmem:[%s165 + $0x10] sm:$0xf]
      %v177 = vld [vmem:[%s165 + $0x14] sm:$0xf]
      %v178 = vld [vmem:[%s165 + $0x18] sm:$0xf]
      %v179 = vld [vmem:[%s165 + $0x1c] sm:$0xf]
      %v180 = vld [vmem:[%s165 + $0x20] sm:$0xf]
      %v181 = vld [vmem:[%s165 + $0x24] sm:$0xf]
      %v182 = vld [vmem:[%s165 + $0x28] sm:$0xf]
      %v183 = vld [vmem:[%s165 + $0x2c] sm:$0xf]
      %v184 = vld [vmem:[%s165 + $0x30] sm:$0xf]
      %v185 = vld [vmem:[%s165 + $0x34] sm:$0xf]
      %v186 = vld [vmem:[%s165 + $0x38] sm:$0xf]
      %v187 = vld [vmem:[%s165 + $0x3c] sm:$0xf]
      %v188 = vld [vmem:[%s165 + $0x40] sm:$0xf]
      %v189 = vld [vmem:[%s165 + $0x44] sm:$0xf]
      %v190 = vld [vmem:[%s165 + $0x48] sm:$0xf]
      %v191 = vld [vmem:[%s165 + $0x4c] sm:$0xf]
      %v192 = vld [vmem:[%s165 + $0x50] sm:$0xf]
      %v193 = vld [vmem:[%s165 + $0x54] sm:$0xf]
      %v194 = vld [vmem:[%s165 + $0x58] sm:$0xf]
      %v195 = vld [vmem:[%s165 + $0x5c] sm:$0xf]
      %v196 = vld [vmem:[%s165 + $0x60] sm:$0xf]
      %v197 = vld [vmem:[%s165 + $0x64] sm:$0xf]
      %v198 = vld [vmem:[%s165 + $0x68] sm:$0xf]
      %v199 = vld [vmem:[%s165 + $0x6c] sm:$0xf]
      %v200 = vld [vmem:[%s165 + $0x70] sm:$0xf]
      %v201 = vld [vmem:[%s165 + $0x74] sm:$0xf]
      %v202 = vld [vmem:[%s165 + $0x78] sm:$0xf]
      %v203 = vld [vmem:[%s165 + $0x7c] sm:$0xf]
      %v204 = vld [vmem:[%s165 + $0x80] sm:$0xf]
      %v205 = vld [vmem:[%s165 + $0x84] sm:$0xf]
      %v206 = vld [vmem:[%s165 + $0x88] sm:$0xf]
      %v207 = vld [vmem:[%s165 + $0x8c] sm:$0xf]
      %v208 = vld [vmem:[%s165 + $0x90] sm:$0xf]
      %v209 = vld [vmem:[%s165 + $0x94] sm:$0xf]
      %v210 = vld [vmem:[%s165 + $0x98] sm:$0xf]
      %v211 = vld [vmem:[%s165 + $0x9c] sm:$0xf]
      %v212 = vld [vmem:[%s165 + $0xa0] sm:$0xf]
      %v213 = vld [vmem:[%s165 + $0xa4] sm:$0xf]
      %v214 = vunpack.c.l.bf16 %v172
      %v215 = vunpack.c.l.bf16 %v173
      %v216 = vunpack.c.l.bf16 %v174
      %v217 = vunpack.c.l.bf16 %v175
      %v218 = vunpack.c.l.bf16 %v176
      %v219 = vunpack.c.l.bf16 %v177
      %v220 = vunpack.c.l.bf16 %v178
      %v221 = vunpack.c.l.bf16 %v179
      %v222 = vunpack.c.l.bf16 %v180
      %v223 = vunpack.c.l.bf16 %v181
      %v224 = vunpack.c.l.bf16 %v182
      %v225 = vunpack.c.l.bf16 %v183
      %v226 = vunpack.c.l.bf16 %v184
      %v227 = vunpack.c.l.bf16 %v185
      %v228 = vunpack.c.l.bf16 %v186
      %v229 = vunpack.c.l.bf16 %v187
      %v230 = vunpack.c.l.bf16 %v188
      %v231 = vunpack.c.l.bf16 %v189
      %v232 = vunpack.c.l.bf16 %v190
      %v233 = vunpack.c.l.bf16 %v191
      %v234 = vunpack.c.l.bf16 %v192
      %v235 = vunpack.c.l.bf16 %v193
      %v236 = vunpack.c.l.bf16 %v194
      %v237 = vunpack.c.l.bf16 %v195
      %v238 = vunpack.c.l.bf16 %v196
      %v239 = vunpack.c.l.bf16 %v197
      %v240 = vunpack.c.l.bf16 %v198
      %v241 = vunpack.c.l.bf16 %v199
      %v242 = vunpack.c.l.bf16 %v200
      %v243 = vunpack.c.l.bf16 %v201
      %v244 = vunpack.c.l.bf16 %v202
      %v245 = vunpack.c.l.bf16 %v203
      %v246 = vunpack.c.l.bf16 %v204
      %v247 = vunpack.c.l.bf16 %v205
      %v248 = vunpack.c.l.bf16 %v206
      %v249 = vunpack.c.l.bf16 %v207
      %v250 = vunpack.c.l.bf16 %v208
      %v251 = vunpack.c.l.bf16 %v209
      %v252 = vunpack.c.l.bf16 %v210
      %v253 = vunpack.c.l.bf16 %v211
      %v254 = vunpack.c.l.bf16 %v212
      %v255 = vunpack.c.l.bf16 %v213
      %v256 = vld [vmem:[%s1] sm:$0xf]
      %v257 = vld [vmem:[%s1 + $0xc] sm:$0xf]
      %v258 = vld [vmem:[%s1 + $0x18] sm:$0xf]
      %v259 = vld [vmem:[%s1 + $0x24] sm:$0xf]
      %v260 = vld [vmem:[%s1 + $0x30] sm:$0xf]
      %v261 = vld [vmem:[%s1 + $0x3c] sm:$0xf]
      %v262 = vld [vmem:[%s1 + $0x48] sm:$0xf]
      %v263 = vld [vmem:[%s1 + $0x54] sm:$0xf]
      %v264 = vld [vmem:[%s1 + $0x60] sm:$0xf]
      %v265 = vld [vmem:[%s1 + $0x6c] sm:$0x1]
      %v308 = vunpack.c.l.b16 %v172
      %v309 = vunpack.c.l.b16 %v173
      %v310 = vunpack.c.l.b16 %v174
      %v311 = vunpack.c.l.b16 %v175
      %v312 = vunpack.c.l.b16 %v176
      %v313 = vunpack.c.l.b16 %v177
      %v314 = vunpack.c.l.b16 %v178
      %v315 = vunpack.c.l.b16 %v179
      %v316 = vunpack.c.l.b16 %v180
      %v317 = vunpack.c.l.b16 %v181
      %v318 = vunpack.c.l.b16 %v182
      %v319 = vunpack.c.l.b16 %v183
      %v320 = vunpack.c.l.b16 %v184
      %v321 = vunpack.c.l.b16 %v185
      %v322 = vunpack.c.l.b16 %v186
      %v323 = vunpack.c.l.b16 %v187
      %v324 = vunpack.c.l.b16 %v188
      %v325 = vunpack.c.l.b16 %v189
      %v326 = vunpack.c.l.b16 %v190
      %v327 = vunpack.c.l.b16 %v191
      %v328 = vunpack.c.l.b16 %v192
      %v329 = vunpack.c.l.b16 %v193
      %v330 = vunpack.c.l.b16 %v194
      %v331 = vunpack.c.l.b16 %v195
      %v332 = vunpack.c.l.b16 %v196
      %v333 = vunpack.c.l.b16 %v197
      %v334 = vunpack.c.l.b16 %v198
      %v335 = vunpack.c.l.b16 %v199
      %v336 = vunpack.c.l.b16 %v200
      %v337 = vunpack.c.l.b16 %v201
      %v338 = vunpack.c.l.b16 %v202
      %v339 = vunpack.c.l.b16 %v203
      %v340 = vunpack.c.l.b16 %v204
      %v341 = vunpack.c.l.b16 %v205
      %v342 = vunpack.c.l.b16 %v206
      %v343 = vunpack.c.l.b16 %v207
      %v344 = vunpack.c.l.b16 %v208
      %v345 = vunpack.c.l.b16 %v209
      %v346 = vunpack.c.l.b16 %v210
      %v347 = vunpack.c.l.b16 %v211
      %v348 = vunpack.c.l.b16 %v212
      %v349 = vunpack.c.l.b16 %v213
      %v350 = vpack.c.b16 %v309, %v308
      %v351 = vpack.c.b16 %v311, %v310
      %v352 = vpack.c.b16 %v313, %v312
      %v353 = vpack.c.b16 %v315, %v314
      %v354 = vpack.c.b16 %v317, %v316
      %v355 = vpack.c.b16 %v319, %v318
      %v356 = vpack.c.b16 %v321, %v320
      %v357 = vpack.c.b16 %v323, %v322
      %v358 = vpack.c.b16 %v325, %v324
      %v359 = vpack.c.b16 %v327, %v326
      %v360 = vpack.c.b16 %v329, %v328
      %v361 = vpack.c.b16 %v331, %v330
      %v362 = vpack.c.b16 %v333, %v332
      %v363 = vpack.c.b16 %v335, %v334
      %v364 = vpack.c.b16 %v337, %v336
      %v365 = vpack.c.b16 %v339, %v338
      %v366 = vpack.c.b16 %v341, %v340
      %v367 = vpack.c.b16 %v343, %v342
      %v368 = vpack.c.b16 %v345, %v344
      %v369 = vpack.c.b16 %v347, %v346
      %v370 = vpack.c.b16 %v349, %v348
      %v381 = vunpack.c.l.b16 %v256
      %v382 = vunpack.c.l.b16 %v257
      %v383 = vunpack.c.l.b16 %v258
      %v384 = vunpack.c.l.b16 %v259
      %v385 = vunpack.c.l.b16 %v260
      %v386 = vunpack.c.l.b16 %v261
      %v387 = vunpack.c.l.b16 %v262
      %v388 = vunpack.c.l.b16 %v263
      %v389 = vunpack.c.l.b16 %v264
      %v390 = vunpack.c.l.b16 %v265
      %v391 = vpack.c.b16 %v382, %v381
      %v392 = vpack.c.b16 %v384, %v383
      %v393 = vpack.c.b16 %v386, %v385
      %v394 = vpack.c.b16 %v388, %v387
      %v395 = vpack.c.b16 %v390, %v389
      %vm400 = vcmask 596992
      %v402 = vsel %vm400, %v350, 0
      %v405 = vsel %vm400, %v351, 0
      %v408 = vsel %vm400, %v352, 0
      %v411 = vsel %vm400, %v353, 0
      %v414 = vsel %vm400, %v354, 0
      %v417 = vsel %vm400, %v355, 0
      %v420 = vsel %vm400, %v356, 0
      %v423 = vsel %vm400, %v357, 0
      %v426 = vsel %vm400, %v358, 0
      %v429 = vsel %vm400, %v359, 0
      %v432 = vsel %vm400, %v360, 0
      %v435 = vsel %vm400, %v361, 0
      %v438 = vsel %vm400, %v362, 0
      %v441 = vsel %vm400, %v363, 0
      %v444 = vsel %vm400, %v364, 0
      %v447 = vsel %vm400, %v365, 0
      %v450 = vsel %vm400, %v366, 0
      %v453 = vsel %vm400, %v367, 0
      %v456 = vsel %vm400, %v368, 0
      %v459 = vsel %vm400, %v369, 0
      %v462 = vsel %vm400, %v370, 0
      %vm464 = vcmask 1043456
      %vm465 = vcmask 1044480
      %v466 = vsel %vm464, 4294967295, 65535
      %v467 = vsel %vm465, %v466, 0
      %v469 = vand.u32 %v395, %v467
      %471 = vmatprep.subr.bf16.mxu0 0
      %472 = vmatpush1.bf16.msra.mxu0 0
      %473 = vmatprep.subr.bf16.mxu0 0
      %474 = vmatpush1.bf16.msra.mxu0 0
      %475 = vmatprep.subr.bf16.mxu0 0
      %476 = vmatpush1.bf16.msra.mxu0 0
      %477 = vmatprep.subr.bf16.mxu0 0
      %478 = vmatpush1.bf16.msra.mxu0 %v469
      %479 = vmatprep.subr.bf16.mxu0 0
      %480 = vmatpush1.bf16.msra.mxu0 %v394
      %481 = vmatprep.subr.bf16.mxu0 0
      %482 = vmatpush1.bf16.msra.mxu0 %v393
      %483 = vmatprep.subr.bf16.mxu0 0
      %484 = vmatpush1.bf16.msra.mxu0 %v392
      %485 = vmatprep.subr.bf16.mxu0 0
      %486 = vmatpush1.bf16.msra.mxu0 %v391
      %487 = vmatprep.subr.bf16.mxu0 0
      %488 = vmatpush2.bf16.msra.mxu0 0
      %489 = vmatprep.subr.bf16.mxu0 0
      %490 = vmatpush2.bf16.msra.mxu0 0
      %491 = vmatprep.subr.bf16.mxu0 0
      %492 = vmatpush2.bf16.msra.mxu0 0
      %493 = vmatprep.subr.bf16.mxu0 0
      %494 = vmatpush2.bf16.msra.mxu0 0
      %495 = vmatprep.subr.bf16.mxu0 0
      %496 = vmatpush2.bf16.msra.mxu0 0
      %497 = vmatprep.subr.bf16.mxu0 0
      %498 = vmatpush2.bf16.msra.mxu0 0
      %499 = vmatprep.subr.bf16.mxu0 0
      %500 = vmatpush2.bf16.msra.mxu0 0
      %501 = vmatprep.subr.bf16.mxu0 0
      %502 = vmatpush2.bf16.msra.mxu0 0
      %503 = vmatprep.mubr.bf16.mxu0 0
      %504 = vmatmul.mubr.bf16.gmra.mxu0 %v402
      %v505 = vpop.f32.mrf.mxu0
      %v506 = vadd.f32 0.0, %v505
      %v507 = vpop.f32.mrf.mxu0
      %v508 = vpop.f32.mrf.mxu0
      %v509 = vadd.f32 0.0, %v508
      %v510 = vpop.f32.mrf.mxu0
      %511 = vmatprep.mubr.bf16.mxu0 0
      %512 = vmatmul.mubr.bf16.gmra.mxu0 %v405
      %v513 = vpop.f32.mrf.mxu0
      %v514 = vadd.f32 0.0, %v513
      %v515 = vpop.f32.mrf.mxu0
      %v516 = vpop.f32.mrf.mxu0
      %v517 = vadd.f32 0.0, %v516
      %v518 = vpop.f32.mrf.mxu0
      %519 = vmatprep.mubr.bf16.mxu0 0
      %520 = vmatmul.mubr.bf16.gmra.mxu0 %v408
      %v521 = vpop.f32.mrf.mxu0
      %v522 = vadd.f32 0.0, %v521
      %v523 = vpop.f32.mrf.mxu0
      %v524 = vpop.f32.mrf.mxu0
      %v525 = vadd.f32 0.0, %v524
      %v526 = vpop.f32.mrf.mxu0
      %527 = vmatprep.mubr.bf16.mxu0 0
      %528 = vmatmul.mubr.bf16.gmra.mxu0 %v411
      %v529 = vpop.f32.mrf.mxu0
      %v530 = vadd.f32 0.0, %v529
      %v531 = vpop.f32.mrf.mxu0
      %v532 = vpop.f32.mrf.mxu0
      %v533 = vadd.f32 0.0, %v532
      %v534 = vpop.f32.mrf.mxu0
      %535 = vmatprep.mubr.bf16.mxu0 0
      %536 = vmatmul.mubr.bf16.gmra.mxu0 %v414
      %v537 = vpop.f32.mrf.mxu0
      %v538 = vadd.f32 0.0, %v537
      %v539 = vpop.f32.mrf.mxu0
      %v540 = vpop.f32.mrf.mxu0
      %v541 = vadd.f32 0.0, %v540
      %v542 = vpop.f32.mrf.mxu0
      %543 = vmatprep.mubr.bf16.mxu0 0
      %544 = vmatmul.mubr.bf16.gmra.mxu0 %v417
      %v545 = vpop.f32.mrf.mxu0
      %v546 = vadd.f32 0.0, %v545
      %v547 = vpop.f32.mrf.mxu0
      %v548 = vpop.f32.mrf.mxu0
      %v549 = vadd.f32 0.0, %v548
      %v550 = vpop.f32.mrf.mxu0
      %551 = vmatprep.mubr.bf16.mxu0 0
      %552 = vmatmul.mubr.bf16.gmra.mxu0 %v420
      %v553 = vpop.f32.mrf.mxu0
      %v554 = vadd.f32 0.0, %v553
      %v555 = vpop.f32.mrf.mxu0
      %v556 = vpop.f32.mrf.mxu0
      %v557 = vadd.f32 0.0, %v556
      %v558 = vpop.f32.mrf.mxu0
      %559 = vmatprep.mubr.bf16.mxu0 0
      %560 = vmatmul.mubr.bf16.gmra.mxu0 %v423
      %v561 = vpop.f32.mrf.mxu0
      %v562 = vadd.f32 0.0, %v561
      %v563 = vpop.f32.mrf.mxu0
      %v564 = vpop.f32.mrf.mxu0
      %v565 = vadd.f32 0.0, %v564
      %v566 = vpop.f32.mrf.mxu0
      %567 = vmatprep.mubr.bf16.mxu0 0
      %568 = vmatmul.mubr.bf16.gmra.mxu0 %v426
      %v569 = vpop.f32.mrf.mxu0
      %v570 = vadd.f32 0.0, %v569
      %v571 = vpop.f32.mrf.mxu0
      %v572 = vpop.f32.mrf.mxu0
      %v573 = vadd.f32 0.0, %v572
      %v574 = vpop.f32.mrf.mxu0
      %575 = vmatprep.mubr.bf16.mxu0 0
      %576 = vmatmul.mubr.bf16.gmra.mxu0 %v429
      %v577 = vpop.f32.mrf.mxu0
      %v578 = vadd.f32 0.0, %v577
      %v579 = vpop.f32.mrf.mxu0
      %v580 = vpop.f32.mrf.mxu0
      %v581 = vadd.f32 0.0, %v580
      %v582 = vpop.f32.mrf.mxu0
      %583 = vmatprep.mubr.bf16.mxu0 0
      %584 = vmatmul.mubr.bf16.gmra.mxu0 %v432
      %v585 = vpop.f32.mrf.mxu0
      %v586 = vadd.f32 0.0, %v585
      %v587 = vpop.f32.mrf.mxu0
      %v588 = vpop.f32.mrf.mxu0
      %v589 = vadd.f32 0.0, %v588
      %v590 = vpop.f32.mrf.mxu0
      %591 = vmatprep.mubr.bf16.mxu0 0
      %592 = vmatmul.mubr.bf16.gmra.mxu0 %v435
      %v593 = vpop.f32.mrf.mxu0
      %v594 = vadd.f32 0.0, %v593
      %v595 = vpop.f32.mrf.mxu0
      %v596 = vpop.f32.mrf.mxu0
      %v597 = vadd.f32 0.0, %v596
      %v598 = vpop.f32.mrf.mxu0
      %599 = vmatprep.mubr.bf16.mxu0 0
      %600 = vmatmul.mubr.bf16.gmra.mxu0 %v438
      %v601 = vpop.f32.mrf.mxu0
      %v602 = vadd.f32 0.0, %v601
      %v603 = vpop.f32.mrf.mxu0
      %v604 = vpop.f32.mrf.mxu0
      %v605 = vadd.f32 0.0, %v604
      %v606 = vpop.f32.mrf.mxu0
      %607 = vmatprep.mubr.bf16.mxu0 0
      %608 = vmatmul.mubr.bf16.gmra.mxu0 %v441
      %v609 = vpop.f32.mrf.mxu0
      %v610 = vadd.f32 0.0, %v609
      %v611 = vpop.f32.mrf.mxu0
      %v612 = vpop.f32.mrf.mxu0
      %v613 = vadd.f32 0.0, %v612
      %v614 = vpop.f32.mrf.mxu0
      %615 = vmatprep.mubr.bf16.mxu0 0
      %616 = vmatmul.mubr.bf16.gmra.mxu0 %v444
      %v617 = vpop.f32.mrf.mxu0
      %v618 = vadd.f32 0.0, %v617
      %v619 = vpop.f32.mrf.mxu0
      %v620 = vpop.f32.mrf.mxu0
      %v621 = vadd.f32 0.0, %v620
      %v622 = vpop.f32.mrf.mxu0
      %623 = vmatprep.mubr.bf16.mxu0 0
      %624 = vmatmul.mubr.bf16.gmra.mxu0 %v447
      %v625 = vpop.f32.mrf.mxu0
      %v626 = vadd.f32 0.0, %v625
      %v627 = vpop.f32.mrf.mxu0
      %v628 = vpop.f32.mrf.mxu0
      %v629 = vadd.f32 0.0, %v628
      %v630 = vpop.f32.mrf.mxu0
      %631 = vmatprep.mubr.bf16.mxu0 0
      %632 = vmatmul.mubr.bf16.gmra.mxu0 %v450
      %v633 = vpop.f32.mrf.mxu0
      %v634 = vadd.f32 0.0, %v633
      %v635 = vpop.f32.mrf.mxu0
      %v636 = vpop.f32.mrf.mxu0
      %v637 = vadd.f32 0.0, %v636
      %v638 = vpop.f32.mrf.mxu0
      %639 = vmatprep.mubr.bf16.mxu0 0
      %640 = vmatmul.mubr.bf16.gmra.mxu0 %v453
      %v641 = vpop.f32.mrf.mxu0
      %v642 = vadd.f32 0.0, %v641
      %v643 = vpop.f32.mrf.mxu0
      %v644 = vpop.f32.mrf.mxu0
      %v645 = vadd.f32 0.0, %v644
      %v646 = vpop.f32.mrf.mxu0
      %647 = vmatprep.mubr.bf16.mxu0 0
      %648 = vmatmul.mubr.bf16.gmra.mxu0 %v456
      %v649 = vpop.f32.mrf.mxu0
      %v650 = vadd.f32 0.0, %v649
      %v651 = vpop.f32.mrf.mxu0
      %v652 = vpop.f32.mrf.mxu0
      %v653 = vadd.f32 0.0, %v652
      %v654 = vpop.f32.mrf.mxu0
      %655 = vmatprep.mubr.bf16.mxu0 0
      %656 = vmatmul.mubr.bf16.gmra.mxu0 %v459
      %v657 = vpop.f32.mrf.mxu0
      %v658 = vadd.f32 0.0, %v657
      %v659 = vpop.f32.mrf.mxu0
      %v660 = vpop.f32.mrf.mxu0
      %v661 = vadd.f32 0.0, %v660
      %v662 = vpop.f32.mrf.mxu0
      %663 = vmatprep.mubr.bf16.mxu0 0
      %664 = vmatmul.mubr.bf16.gmra.mxu0 %v462
      %v665 = vpop.f32.mrf.mxu0
      %v666 = vadd.f32 0.0, %v665
      %v667 = vpop.f32.mrf.mxu0
      %v668 = vpop.f32.mrf.mxu0
      %v669 = vadd.f32 0.0, %v668
      %v670 = vpop.f32.mrf.mxu0
      %671 = vdwg.mxu0
      %v672 = vmax.f32 %v506, 0.0
      %v673 = vmax.f32 %v509, 0.0
      %v674 = vmax.f32 %v514, 0.0
      %v675 = vmax.f32 %v517, 0.0
      %v676 = vmax.f32 %v522, 0.0
      %v677 = vmax.f32 %v525, 0.0
      %v678 = vmax.f32 %v530, 0.0
      %v679 = vmax.f32 %v533, 0.0
      %v680 = vmax.f32 %v538, 0.0
      %v681 = vmax.f32 %v541, 0.0
      %v682 = vmax.f32 %v546, 0.0
      %v683 = vmax.f32 %v549, 0.0
      %v684 = vmax.f32 %v554, 0.0
      %v685 = vmax.f32 %v557, 0.0
      %v686 = vmax.f32 %v562, 0.0
      %v687 = vmax.f32 %v565, 0.0
      %v688 = vmax.f32 %v570, 0.0
      %v689 = vmax.f32 %v573, 0.0
      %v690 = vmax.f32 %v578, 0.0
      %v691 = vmax.f32 %v581, 0.0
      %v692 = vmax.f32 %v586, 0.0
      %v693 = vmax.f32 %v589, 0.0
      %v694 = vmax.f32 %v594, 0.0
      %v695 = vmax.f32 %v597, 0.0
      %v696 = vmax.f32 %v602, 0.0
      %v697 = vmax.f32 %v605, 0.0
      %v698 = vmax.f32 %v610, 0.0
      %v699 = vmax.f32 %v613, 0.0
      %v700 = vmax.f32 %v618, 0.0
      %v701 = vmax.f32 %v621, 0.0
      %v702 = vmax.f32 %v626, 0.0
      %v703 = vmax.f32 %v629, 0.0
      %v704 = vmax.f32 %v634, 0.0
      %v705 = vmax.f32 %v637, 0.0
      %v706 = vmax.f32 %v642, 0.0
      %v707 = vmax.f32 %v645, 0.0
      %v708 = vmax.f32 %v650, 0.0
      %v709 = vmax.f32 %v653, 0.0
      %v710 = vmax.f32 %v658, 0.0
      %v711 = vmax.f32 %v661, 0.0
      %v712 = vmax.f32 %v666, 0.0
      %v713 = vmax.f32 %v669, 0.0
      %vm714 = vcmask 125952
      %715 = vst.msk [vmem:[#allocation2] sm:$0xf] %vm714, 0
      %716 = vst.msk [vmem:[#allocation2 + $0x4] sm:$0xf] %vm714, 0
      %717 = vst.msk [vmem:[#allocation2 + $0x8] sm:$0xf] %vm714, 0
      %718 = vst.msk [vmem:[#allocation2 + $0xc] sm:$0xf] %vm714, 0
      %719 = vst.msk [vmem:[#allocation2 + $0xb8] sm:$0xf] %vm714, 0
      %720 = vst.msk [vmem:[#allocation2 + $0xbc] sm:$0xf] %vm714, 0
      %721 = vst.msk [vmem:[#allocation2 + $0xc0] sm:$0xf] %vm714, 0
      %722 = vst.msk [vmem:[#allocation2 + $0xc4] sm:$0xf] %vm714, 0
      %724 = vset.pattern.permute.xlu0 72
      %725 = vperm.xlu0 %724, %v214
      %v726 = vpop.permute.xlu0 %725
      %729 = vset.pattern.permute.xlu0 72
      %730 = vperm.xlu0 %729, %v215
      %v731 = vpop.permute.xlu0 %730
      %734 = vset.pattern.permute.xlu0 72
      %735 = vperm.xlu0 %734, %v216
      %v736 = vpop.permute.xlu0 %735
      %739 = vset.pattern.permute.xlu0 72
      %740 = vperm.xlu0 %739, %v217
      %v741 = vpop.permute.xlu0 %740
      %744 = vset.pattern.permute.xlu0 72
      %745 = vperm.xlu0 %744, %v218
      %v746 = vpop.permute.xlu0 %745
      %749 = vset.pattern.permute.xlu0 72
      %750 = vperm.xlu0 %749, %v219
      %v751 = vpop.permute.xlu0 %750
      %754 = vset.pattern.permute.xlu0 72
      %755 = vperm.xlu0 %754, %v220
      %v756 = vpop.permute.xlu0 %755
      %759 = vset.pattern.permute.xlu0 72
      %760 = vperm.xlu0 %759, %v221
      %v761 = vpop.permute.xlu0 %760
      %764 = vset.pattern.permute.xlu0 72
      %765 = vperm.xlu0 %764, %v222
      %v766 = vpop.permute.xlu0 %765
      %769 = vset.pattern.permute.xlu0 72
      %770 = vperm.xlu0 %769, %v223
      %v771 = vpop.permute.xlu0 %770
      %774 = vset.pattern.permute.xlu0 72
      %775 = vperm.xlu0 %774, %v224
      %v776 = vpop.permute.xlu0 %775
      %779 = vset.pattern.permute.xlu0 72
      %780 = vperm.xlu0 %779, %v225
      %v781 = vpop.permute.xlu0 %780
      %784 = vset.pattern.permute.xlu0 72
      %785 = vperm.xlu0 %784, %v226
      %v786 = vpop.permute.xlu0 %785
      %789 = vset.pattern.permute.xlu0 72
      %790 = vperm.xlu0 %789, %v227
      %v791 = vpop.permute.xlu0 %790
      %794 = vset.pattern.permute.xlu0 72
      %795 = vperm.xlu0 %794, %v228
      %v796 = vpop.permute.xlu0 %795
      %799 = vset.pattern.permute.xlu0 72
      %800 = vperm.xlu0 %799, %v229
      %v801 = vpop.permute.xlu0 %800
      %804 = vset.pattern.permute.xlu0 72
      %805 = vperm.xlu0 %804, %v230
      %v806 = vpop.permute.xlu0 %805
      %809 = vset.pattern.permute.xlu0 72
      %810 = vperm.xlu0 %809, %v231
      %v811 = vpop.permute.xlu0 %810
      %814 = vset.pattern.permute.xlu0 72
      %815 = vperm.xlu0 %814, %v232
      %v816 = vpop.permute.xlu0 %815
      %819 = vset.pattern.permute.xlu0 72
      %820 = vperm.xlu0 %819, %v233
      %v821 = vpop.permute.xlu0 %820
      %824 = vset.pattern.permute.xlu0 72
      %825 = vperm.xlu0 %824, %v234
      %v826 = vpop.permute.xlu0 %825
      %829 = vset.pattern.permute.xlu0 72
      %830 = vperm.xlu0 %829, %v235
      %v831 = vpop.permute.xlu0 %830
      %834 = vset.pattern.permute.xlu0 72
      %835 = vperm.xlu0 %834, %v236
      %v836 = vpop.permute.xlu0 %835
      %839 = vset.pattern.permute.xlu0 72
      %840 = vperm.xlu0 %839, %v237
      %v841 = vpop.permute.xlu0 %840
      %844 = vset.pattern.permute.xlu0 72
      %845 = vperm.xlu0 %844, %v238
      %v846 = vpop.permute.xlu0 %845
      %849 = vset.pattern.permute.xlu0 72
      %850 = vperm.xlu0 %849, %v239
      %v851 = vpop.permute.xlu0 %850
      %854 = vset.pattern.permute.xlu0 72
      %855 = vperm.xlu0 %854, %v240
      %v856 = vpop.permute.xlu0 %855
      %859 = vset.pattern.permute.xlu0 72
      %860 = vperm.xlu0 %859, %v241
      %v861 = vpop.permute.xlu0 %860
      %864 = vset.pattern.permute.xlu0 72
      %865 = vperm.xlu0 %864, %v242
      %v866 = vpop.permute.xlu0 %865
      %869 = vset.pattern.permute.xlu0 72
      %870 = vperm.xlu0 %869, %v243
      %v871 = vpop.permute.xlu0 %870
      %874 = vset.pattern.permute.xlu0 72
      %875 = vperm.xlu0 %874, %v244
      %v876 = vpop.permute.xlu0 %875
      %879 = vset.pattern.permute.xlu0 72
      %880 = vperm.xlu0 %879, %v245
      %v881 = vpop.permute.xlu0 %880
      %884 = vset.pattern.permute.xlu0 72
      %885 = vperm.xlu0 %884, %v246
      %v886 = vpop.permute.xlu0 %885
      %889 = vset.pattern.permute.xlu0 72
      %890 = vperm.xlu0 %889, %v247
      %v891 = vpop.permute.xlu0 %890
      %894 = vset.pattern.permute.xlu0 72
      %895 = vperm.xlu0 %894, %v248
      %v896 = vpop.permute.xlu0 %895
      %899 = vset.pattern.permute.xlu0 72
      %900 = vperm.xlu0 %899, %v249
      %v901 = vpop.permute.xlu0 %900
      %904 = vset.pattern.permute.xlu0 72
      %905 = vperm.xlu0 %904, %v250
      %v906 = vpop.permute.xlu0 %905
      %909 = vset.pattern.permute.xlu0 72
      %910 = vperm.xlu0 %909, %v251
      %v911 = vpop.permute.xlu0 %910
      %914 = vset.pattern.permute.xlu0 72
      %915 = vperm.xlu0 %914, %v252
      %v916 = vpop.permute.xlu0 %915
      %919 = vset.pattern.permute.xlu0 72
      %920 = vperm.xlu0 %919, %v253
      %v921 = vpop.permute.xlu0 %920
      %924 = vset.pattern.permute.xlu0 72
      %925 = vperm.xlu0 %924, %v254
      %v926 = vpop.permute.xlu0 %925
      %929 = vset.pattern.permute.xlu0 72
      %930 = vperm.xlu0 %929, %v255
      %v931 = vpop.permute.xlu0 %930
      %v933 = vmul.f32 %v672, %v726
      %v934 = vmul.f32 %v673, %v731
      %v935 = vmul.f32 %v674, %v736
      %v936 = vmul.f32 %v675, %v741
      %v937 = vmul.f32 %v676, %v746
      %v938 = vmul.f32 %v677, %v751
      %v939 = vmul.f32 %v678, %v756
      %v940 = vmul.f32 %v679, %v761
      %v941 = vmul.f32 %v680, %v766
      %v942 = vmul.f32 %v681, %v771
      %v943 = vmul.f32 %v682, %v776
      %v944 = vmul.f32 %v683, %v781
      %v945 = vmul.f32 %v684, %v786
      %v946 = vmul.f32 %v685, %v791
      %v947 = vmul.f32 %v686, %v796
      %v948 = vmul.f32 %v687, %v801
      %v949 = vmul.f32 %v688, %v806
      %v950 = vmul.f32 %v689, %v811
      %v951 = vmul.f32 %v690, %v816
      %v952 = vmul.f32 %v691, %v821
      %v953 = vmul.f32 %v692, %v826
      %v954 = vmul.f32 %v693, %v831
      %v955 = vmul.f32 %v694, %v836
      %v956 = vmul.f32 %v695, %v841
      %v957 = vmul.f32 %v696, %v846
      %v958 = vmul.f32 %v697, %v851
      %v959 = vmul.f32 %v698, %v856
      %v960 = vmul.f32 %v699, %v861
      %v961 = vmul.f32 %v700, %v866
      %v962 = vmul.f32 %v701, %v871
      %v963 = vmul.f32 %v702, %v876
      %v964 = vmul.f32 %v703, %v881
      %v965 = vmul.f32 %v704, %v886
      %v966 = vmul.f32 %v705, %v891
      %v967 = vmul.f32 %v706, %v896
      %v968 = vmul.f32 %v707, %v901
      %v969 = vmul.f32 %v708, %v906
      %v970 = vmul.f32 %v709, %v911
      %v971 = vmul.f32 %v710, %v916
      %v972 = vmul.f32 %v711, %v921
      %v973 = vmul.f32 %v712, %v926
      %v974 = vmul.f32 %v713, %v931
      %v975 = vpack.c.bf16 %v934, %v933
      %v976 = vpack.c.bf16 %v936, %v935
      %v977 = vpack.c.bf16 %v938, %v937
      %v978 = vpack.c.bf16 %v940, %v939
      %v979 = vpack.c.bf16 %v942, %v941
      %v980 = vpack.c.bf16 %v944, %v943
      %v981 = vpack.c.bf16 %v946, %v945
      %v982 = vpack.c.bf16 %v948, %v947
      %v983 = vpack.c.bf16 %v950, %v949
      %v984 = vpack.c.bf16 %v952, %v951
      %v985 = vpack.c.bf16 %v954, %v953
      %v986 = vpack.c.bf16 %v956, %v955
      %v987 = vpack.c.bf16 %v958, %v957
      %v988 = vpack.c.bf16 %v960, %v959
      %v989 = vpack.c.bf16 %v962, %v961
      %v990 = vpack.c.bf16 %v964, %v963
      %v991 = vpack.c.bf16 %v966, %v965
      %v992 = vpack.c.bf16 %v968, %v967
      %v993 = vpack.c.bf16 %v970, %v969
      %v994 = vpack.c.bf16 %v972, %v971
      %v995 = vpack.c.bf16 %v974, %v973
      %v1017 = vunpack.c.l.b16 %v975
      %v1018 = vunpack.c.h.b16 %v975
      %v1019 = vunpack.c.l.b16 %v976
      %v1020 = vunpack.c.h.b16 %v976
      %v1021 = vunpack.c.l.b16 %v977
      %v1022 = vunpack.c.h.b16 %v977
      %v1023 = vunpack.c.l.b16 %v978
      %v1024 = vunpack.c.h.b16 %v978
      %v1025 = vunpack.c.l.b16 %v979
      %v1026 = vunpack.c.h.b16 %v979
      %v1027 = vunpack.c.l.b16 %v980
      %v1028 = vunpack.c.h.b16 %v980
      %v1029 = vunpack.c.l.b16 %v981
      %v1030 = vunpack.c.h.b16 %v981
      %v1031 = vunpack.c.l.b16 %v982
      %v1032 = vunpack.c.h.b16 %v982
      %v1033 = vunpack.c.l.b16 %v983
      %v1034 = vunpack.c.h.b16 %v983
      %v1035 = vunpack.c.l.b16 %v984
      %v1036 = vunpack.c.h.b16 %v984
      %v1037 = vunpack.c.l.b16 %v985
      %v1038 = vunpack.c.h.b16 %v985
      %v1039 = vunpack.c.l.b16 %v986
      %v1040 = vunpack.c.h.b16 %v986
      %v1041 = vunpack.c.l.b16 %v987
      %v1042 = vunpack.c.h.b16 %v987
      %v1043 = vunpack.c.l.b16 %v988
      %v1044 = vunpack.c.h.b16 %v988
      %v1045 = vunpack.c.l.b16 %v989
      %v1046 = vunpack.c.h.b16 %v989
      %v1047 = vunpack.c.l.b16 %v990
      %v1048 = vunpack.c.h.b16 %v990
      %v1049 = vunpack.c.l.b16 %v991
      %v1050 = vunpack.c.h.b16 %v991
      %v1051 = vunpack.c.l.b16 %v992
      %v1052 = vunpack.c.h.b16 %v992
      %v1053 = vunpack.c.l.b16 %v993
      %v1054 = vunpack.c.h.b16 %v993
      %v1055 = vunpack.c.l.b16 %v994
      %v1056 = vunpack.c.h.b16 %v994
      %v1057 = vunpack.c.l.b16 %v995
      %v1058 = vunpack.c.h.b16 %v995
      %v1059 = vpack.c.b16 %v1017, %v1017
      %v1060 = vpack.c.b16 %v1018, %v1018
      %v1061 = vpack.c.b16 %v1019, %v1019
      %v1062 = vpack.c.b16 %v1020, %v1020
      %v1063 = vpack.c.b16 %v1021, %v1021
      %v1064 = vpack.c.b16 %v1022, %v1022
      %v1065 = vpack.c.b16 %v1023, %v1023
      %v1066 = vpack.c.b16 %v1024, %v1024
      %v1067 = vpack.c.b16 %v1025, %v1025
      %v1068 = vpack.c.b16 %v1026, %v1026
      %v1069 = vpack.c.b16 %v1027, %v1027
      %v1070 = vpack.c.b16 %v1028, %v1028
      %v1071 = vpack.c.b16 %v1029, %v1029
      %v1072 = vpack.c.b16 %v1030, %v1030
      %v1073 = vpack.c.b16 %v1031, %v1031
      %v1074 = vpack.c.b16 %v1032, %v1032
      %v1075 = vpack.c.b16 %v1033, %v1033
      %v1076 = vpack.c.b16 %v1034, %v1034
      %v1077 = vpack.c.b16 %v1035, %v1035
      %v1078 = vpack.c.b16 %v1036, %v1036
      %v1079 = vpack.c.b16 %v1037, %v1037
      %v1080 = vpack.c.b16 %v1038, %v1038
      %v1081 = vpack.c.b16 %v1039, %v1039
      %v1082 = vpack.c.b16 %v1040, %v1040
      %v1083 = vpack.c.b16 %v1041, %v1041
      %v1084 = vpack.c.b16 %v1042, %v1042
      %v1085 = vpack.c.b16 %v1043, %v1043
      %v1086 = vpack.c.b16 %v1044, %v1044
      %v1087 = vpack.c.b16 %v1045, %v1045
      %v1088 = vpack.c.b16 %v1046, %v1046
      %v1089 = vpack.c.b16 %v1047, %v1047
      %v1090 = vpack.c.b16 %v1048, %v1048
      %v1091 = vpack.c.b16 %v1049, %v1049
      %v1092 = vpack.c.b16 %v1050, %v1050
      %v1093 = vpack.c.b16 %v1051, %v1051
      %v1094 = vpack.c.b16 %v1052, %v1052
      %v1095 = vpack.c.b16 %v1053, %v1053
      %v1096 = vpack.c.b16 %v1054, %v1054
      %v1097 = vpack.c.b16 %v1055, %v1055
      %v1098 = vpack.c.b16 %v1056, %v1056
      %v1099 = vpack.c.b16 %v1057, %v1057
      %v1100 = vpack.c.b16 %v1058, %v1058
      %1143 = vst.msk [vmem:[#allocation2 + $0x10] sm:$0xf] %vm714, %v1059
      %1144 = vst.msk [vmem:[#allocation2 + $0x14] sm:$0xf] %vm714, %v1060
      %1145 = vst.msk [vmem:[#allocation2 + $0x18] sm:$0xf] %vm714, %v1061
      %1146 = vst.msk [vmem:[#allocation2 + $0x1c] sm:$0xf] %vm714, %v1062
      %1147 = vst.msk [vmem:[#allocation2 + $0x20] sm:$0xf] %vm714, %v1063
      %1148 = vst.msk [vmem:[#allocation2 + $0x24] sm:$0xf] %vm714, %v1064
      %1149 = vst.msk [vmem:[#allocation2 + $0x28] sm:$0xf] %vm714, %v1065
      %1150 = vst.msk [vmem:[#allocation2 + $0x2c] sm:$0xf] %vm714, %v1066
      %1151 = vst.msk [vmem:[#allocation2 + $0x30] sm:$0xf] %vm714, %v1067
      %1152 = vst.msk [vmem:[#allocation2 + $0x34] sm:$0xf] %vm714, %v1068
      %1153 = vst.msk [vmem:[#allocation2 + $0x38] sm:$0xf] %vm714, %v1069
      %1154 = vst.msk [vmem:[#allocation2 + $0x3c] sm:$0xf] %vm714, %v1070
      %1155 = vst.msk [vmem:[#allocation2 + $0x40] sm:$0xf] %vm714, %v1071
      %1156 = vst.msk [vmem:[#allocation2 + $0x44] sm:$0xf] %vm714, %v1072
      %1157 = vst.msk [vmem:[#allocation2 + $0x48] sm:$0xf] %vm714, %v1073
      %1158 = vst.msk [vmem:[#allocation2 + $0x4c] sm:$0xf] %vm714, %v1074
      %1159 = vst.msk [vmem:[#allocation2 + $0x50] sm:$0xf] %vm714, %v1075
      %1160 = vst.msk [vmem:[#allocation2 + $0x54] sm:$0xf] %vm714, %v1076
      %1161 = vst.msk [vmem:[#allocation2 + $0x58] sm:$0xf] %vm714, %v1077
      %1162 = vst.msk [vmem:[#allocation2 + $0x5c] sm:$0xf] %vm714, %v1078
      %1163 = vst.msk [vmem:[#allocation2 + $0x60] sm:$0xf] %vm714, %v1079
      %1164 = vst.msk [vmem:[#allocation2 + $0x64] sm:$0xf] %vm714, %v1080
      %1165 = vst.msk [vmem:[#allocation2 + $0x68] sm:$0xf] %vm714, %v1081
      %1166 = vst.msk [vmem:[#allocation2 + $0x6c] sm:$0xf] %vm714, %v1082
      %1167 = vst.msk [vmem:[#allocation2 + $0x70] sm:$0xf] %vm714, %v1083
      %1168 = vst.msk [vmem:[#allocation2 + $0x74] sm:$0xf] %vm714, %v1084
      %1169 = vst.msk [vmem:[#allocation2 + $0x78] sm:$0xf] %vm714, %v1085
      %1170 = vst.msk [vmem:[#allocation2 + $0x7c] sm:$0xf] %vm714, %v1086
      %1171 = vst.msk [vmem:[#allocation2 + $0x80] sm:$0xf] %vm714, %v1087
      %1172 = vst.msk [vmem:[#allocation2 + $0x84] sm:$0xf] %vm714, %v1088
      %1173 = vst.msk [vmem:[#allocation2 + $0x88] sm:$0xf] %vm714, %v1089
      %1174 = vst.msk [vmem:[#allocation2 + $0x8c] sm:$0xf] %vm714, %v1090
      %1175 = vst.msk [vmem:[#allocation2 + $0x90] sm:$0xf] %vm714, %v1091
      %1176 = vst.msk [vmem:[#allocation2 + $0x94] sm:$0xf] %vm714, %v1092
      %1177 = vst.msk [vmem:[#allocation2 + $0x98] sm:$0xf] %vm714, %v1093
      %1178 = vst.msk [vmem:[#allocation2 + $0x9c] sm:$0xf] %vm714, %v1094
      %1179 = vst.msk [vmem:[#allocation2 + $0xa0] sm:$0xf] %vm714, %v1095
      %1180 = vst.msk [vmem:[#allocation2 + $0xa4] sm:$0xf] %vm714, %v1096
      %1181 = vst.msk [vmem:[#allocation2 + $0xa8] sm:$0xf] %vm714, %v1097
      %1182 = vst.msk [vmem:[#allocation2 + $0xac] sm:$0xf] %vm714, %v1098
      %1183 = vst.msk [vmem:[#allocation2 + $0xb0] sm:$0xf] %vm714, %v1099
      %1184 = vst.msk [vmem:[#allocation2 + $0xb4] sm:$0xf] %vm714, %v1100
      %v1185 = vld [vmem:[%s2] ss:$0 sm:$0xff]
      %v1186 = vadd.f32 %v1185, 0.0
      %v1187 = vld [vmem:[#allocation2 + $0x4] sm:$0xc]
      %v1188 = vld [vmem:[#allocation2 + $0x8] sm:$0xf]
      %v1189 = vld [vmem:[#allocation2 + $0xc] sm:$0xf]
      %v1190 = vld [vmem:[#allocation2 + $0x10] sm:$0xf]
      %v1191 = vld [vmem:[#allocation2 + $0x14] sm:$0xf]
      %v1192 = vld [vmem:[#allocation2 + $0x18] sm:$0xf]
      %v1193 = vld [vmem:[#allocation2 + $0x1c] sm:$0xf]
      %v1194 = vld [vmem:[#allocation2 + $0x20] sm:$0xf]
      %v1195 = vld [vmem:[#allocation2 + $0x24] sm:$0xf]
      %v1196 = vld [vmem:[#allocation2 + $0x28] sm:$0xf]
      %v1197 = vld [vmem:[#allocation2 + $0x2c] sm:$0xf]
      %v1198 = vld [vmem:[#allocation2 + $0x30] sm:$0xf]
      %v1199 = vld [vmem:[#allocation2 + $0x34] sm:$0xf]
      %v1200 = vld [vmem:[#allocation2 + $0x38] sm:$0xf]
      %v1201 = vld [vmem:[#allocation2 + $0x3c] sm:$0xf]
      %v1202 = vld [vmem:[#allocation2 + $0x40] sm:$0xf]
      %v1203 = vld [vmem:[#allocation2 + $0x44] sm:$0xf]
      %v1204 = vld [vmem:[#allocation2 + $0x48] sm:$0xf]
      %v1205 = vld [vmem:[#allocation2 + $0x4c] sm:$0xf]
      %v1206 = vld [vmem:[#allocation2 + $0x50] sm:$0xf]
      %v1207 = vld [vmem:[#allocation2 + $0x54] sm:$0xf]
      %v1208 = vld [vmem:[#allocation2 + $0x58] sm:$0xf]
      %v1209 = vld [vmem:[#allocation2 + $0x5c] sm:$0xf]
      %v1210 = vld [vmem:[#allocation2 + $0x60] sm:$0xf]
      %v1211 = vld [vmem:[#allocation2 + $0x64] sm:$0xf]
      %v1212 = vld [vmem:[#allocation2 + $0x68] sm:$0xf]
      %v1213 = vld [vmem:[#allocation2 + $0x6c] sm:$0xf]
      %v1214 = vld [vmem:[#allocation2 + $0x70] sm:$0xf]
      %v1215 = vld [vmem:[#allocation2 + $0x74] sm:$0xf]
      %v1216 = vld [vmem:[#allocation2 + $0x78] sm:$0xf]
      %v1217 = vld [vmem:[#allocation2 + $0x7c] sm:$0xf]
      %v1218 = vld [vmem:[#allocation2 + $0x80] sm:$0xf]
      %v1219 = vld [vmem:[#allocation2 + $0x84] sm:$0xf]
      %v1220 = vld [vmem:[#allocation2 + $0x88] sm:$0xf]
      %v1221 = vld [vmem:[#allocation2 + $0x8c] sm:$0xf]
      %v1222 = vld [vmem:[#allocation2 + $0x90] sm:$0xf]
      %v1223 = vld [vmem:[#allocation2 + $0x94] sm:$0xf]
      %v1224 = vld [vmem:[#allocation2 + $0x98] sm:$0xf]
      %v1225 = vld [vmem:[#allocation2 + $0x9c] sm:$0xf]
      %v1226 = vld [vmem:[#allocation2 + $0xa0] sm:$0xf]
      %v1227 = vld [vmem:[#allocation2 + $0xa4] sm:$0xf]
      %v1228 = vld [vmem:[#allocation2 + $0xa8] sm:$0xf]
      %v1229 = vld [vmem:[#allocation2 + $0xac] sm:$0x7]
      %v1230 = vld [vmem:[%s1 + $0x78] sm:$0xf]
      %v1231 = vld [vmem:[%s1 + $0x84] sm:$0xf]
      %v1275 = vunpack.c.l.b16 %v1187
      %v1276 = vunpack.c.l.b16 %v1188
      %v1277 = vunpack.c.l.b16 %v1189
      %v1278 = vunpack.c.l.b16 %v1190
      %v1279 = vunpack.c.l.b16 %v1191
      %v1280 = vunpack.c.l.b16 %v1192
      %v1281 = vunpack.c.l.b16 %v1193
      %v1282 = vunpack.c.l.b16 %v1194
      %v1283 = vunpack.c.l.b16 %v1195
      %v1284 = vunpack.c.l.b16 %v1196
      %v1285 = vunpack.c.l.b16 %v1197
      %v1286 = vunpack.c.l.b16 %v1198
      %v1287 = vunpack.c.l.b16 %v1199
      %v1288 = vunpack.c.l.b16 %v1200
      %v1289 = vunpack.c.l.b16 %v1201
      %v1290 = vunpack.c.l.b16 %v1202
      %v1291 = vunpack.c.l.b16 %v1203
      %v1292 = vunpack.c.l.b16 %v1204
      %v1293 = vunpack.c.l.b16 %v1205
      %v1294 = vunpack.c.l.b16 %v1206
      %v1295 = vunpack.c.l.b16 %v1207
      %v1296 = vunpack.c.l.b16 %v1208
      %v1297 = vunpack.c.l.b16 %v1209
      %v1298 = vunpack.c.l.b16 %v1210
      %v1299 = vunpack.c.l.b16 %v1211
      %v1300 = vunpack.c.l.b16 %v1212
      %v1301 = vunpack.c.l.b16 %v1213
      %v1302 = vunpack.c.l.b16 %v1214
      %v1303 = vunpack.c.l.b16 %v1215
      %v1304 = vunpack.c.l.b16 %v1216
      %v1305 = vunpack.c.l.b16 %v1217
      %v1306 = vunpack.c.l.b16 %v1218
      %v1307 = vunpack.c.l.b16 %v1219
      %v1308 = vunpack.c.l.b16 %v1220
      %v1309 = vunpack.c.l.b16 %v1221
      %v1310 = vunpack.c.l.b16 %v1222
      %v1311 = vunpack.c.l.b16 %v1223
      %v1312 = vunpack.c.l.b16 %v1224
      %v1313 = vunpack.c.l.b16 %v1225
      %v1314 = vunpack.c.l.b16 %v1226
      %v1315 = vunpack.c.l.b16 %v1227
      %v1316 = vunpack.c.l.b16 %v1228
      %v1317 = vunpack.c.l.b16 %v1229
      %v1318 = vpack.c.b16 %v1276, %v1275
      %v1319 = vpack.c.b16 %v1278, %v1277
      %v1320 = vpack.c.b16 %v1280, %v1279
      %v1321 = vpack.c.b16 %v1282, %v1281
      %v1322 = vpack.c.b16 %v1284, %v1283
      %v1323 = vpack.c.b16 %v1286, %v1285
      %v1324 = vpack.c.b16 %v1288, %v1287
      %v1325 = vpack.c.b16 %v1290, %v1289
      %v1326 = vpack.c.b16 %v1292, %v1291
      %v1327 = vpack.c.b16 %v1294, %v1293
      %v1328 = vpack.c.b16 %v1296, %v1295
      %v1329 = vpack.c.b16 %v1298, %v1297
      %v1330 = vpack.c.b16 %v1300, %v1299
      %v1331 = vpack.c.b16 %v1302, %v1301
      %v1332 = vpack.c.b16 %v1304, %v1303
      %v1333 = vpack.c.b16 %v1306, %v1305
      %v1334 = vpack.c.b16 %v1308, %v1307
      %v1335 = vpack.c.b16 %v1310, %v1309
      %v1336 = vpack.c.b16 %v1312, %v1311
      %v1337 = vpack.c.b16 %v1314, %v1313
      %v1338 = vpack.c.b16 %v1316, %v1315
      %v1339 = vpack.c.b16 %v1317, %v1317
      %vm1340 = vsmask.f32 5376
      %v1342 = vshrl.u32 %v1318, 16
      %v1344 = vrot.slane %v1342, 2
      %v1345 = vshll.u32 %v1318, 16
      %v1347 = vrot.slane %v1345, 3
      %v1348 = vor.u32 %v1344, %v1347
      %v1350 = vshrl.u32 %v1319, 16
      %v1352 = vrot.slane %v1350, 2
      %v1353 = vshll.u32 %v1319, 16
      %v1355 = vrot.slane %v1353, 3
      %v1356 = vor.u32 %v1352, %v1355
      %v1357 = vsel %vm1340, %v1348, %v1356
      %v1359 = vshrl.u32 %v1320, 16
      %v1361 = vrot.slane %v1359, 2
      %v1362 = vshll.u32 %v1320, 16
      %v1364 = vrot.slane %v1362, 3
      %v1365 = vor.u32 %v1361, %v1364
      %v1366 = vsel %vm1340, %v1356, %v1365
      %v1368 = vshrl.u32 %v1321, 16
      %v1370 = vrot.slane %v1368, 2
      %v1371 = vshll.u32 %v1321, 16
      %v1373 = vrot.slane %v1371, 3
      %v1374 = vor.u32 %v1370, %v1373
      %v1375 = vsel %vm1340, %v1365, %v1374
      %v1377 = vshrl.u32 %v1322, 16
      %v1379 = vrot.slane %v1377, 2
      %v1380 = vshll.u32 %v1322, 16
      %v1382 = vrot.slane %v1380, 3
      %v1383 = vor.u32 %v1379, %v1382
      %v1384 = vsel %vm1340, %v1374, %v1383
      %v1386 = vshrl.u32 %v1323, 16
      %v1388 = vrot.slane %v1386, 2
      %v1389 = vshll.u32 %v1323, 16
      %v1391 = vrot.slane %v1389, 3
      %v1392 = vor.u32 %v1388, %v1391
      %v1393 = vsel %vm1340, %v1383, %v1392
      %v1395 = vshrl.u32 %v1324, 16
      %v1397 = vrot.slane %v1395, 2
      %v1398 = vshll.u32 %v1324, 16
      %v1400 = vrot.slane %v1398, 3
      %v1401 = vor.u32 %v1397, %v1400
      %v1402 = vsel %vm1340, %v1392, %v1401
      %v1404 = vshrl.u32 %v1325, 16
      %v1406 = vrot.slane %v1404, 2
      %v1407 = vshll.u32 %v1325, 16
      %v1409 = vrot.slane %v1407, 3
      %v1410 = vor.u32 %v1406, %v1409
      %v1411 = vsel %vm1340, %v1401, %v1410
      %v1413 = vshrl.u32 %v1326, 16
      %v1415 = vrot.slane %v1413, 2
      %v1416 = vshll.u32 %v1326, 16
      %v1418 = vrot.slane %v1416, 3
      %v1419 = vor.u32 %v1415, %v1418
      %v1420 = vsel %vm1340, %v1410, %v1419
      %v1422 = vshrl.u32 %v1327, 16
      %v1424 = vrot.slane %v1422, 2
      %v1425 = vshll.u32 %v1327, 16
      %v1427 = vrot.slane %v1425, 3
      %v1428 = vor.u32 %v1424, %v1427
      %v1429 = vsel %vm1340, %v1419, %v1428
      %v1431 = vshrl.u32 %v1328, 16
      %v1433 = vrot.slane %v1431, 2
      %v1434 = vshll.u32 %v1328, 16
      %v1436 = vrot.slane %v1434, 3
      %v1437 = vor.u32 %v1433, %v1436
      %v1438 = vsel %vm1340, %v1428, %v1437
      %v1440 = vshrl.u32 %v1329, 16
      %v1442 = vrot.slane %v1440, 2
      %v1443 = vshll.u32 %v1329, 16
      %v1445 = vrot.slane %v1443, 3
      %v1446 = vor.u32 %v1442, %v1445
      %v1447 = vsel %vm1340, %v1437, %v1446
      %v1449 = vshrl.u32 %v1330, 16
      %v1451 = vrot.slane %v1449, 2
      %v1452 = vshll.u32 %v1330, 16
      %v1454 = vrot.slane %v1452, 3
      %v1455 = vor.u32 %v1451, %v1454
      %v1456 = vsel %vm1340, %v1446, %v1455
      %v1458 = vshrl.u32 %v1331, 16
      %v1460 = vrot.slane %v1458, 2
      %v1461 = vshll.u32 %v1331, 16
      %v1463 = vrot.slane %v1461, 3
      %v1464 = vor.u32 %v1460, %v1463
      %v1465 = vsel %vm1340, %v1455, %v1464
      %v1467 = vshrl.u32 %v1332, 16
      %v1469 = vrot.slane %v1467, 2
      %v1470 = vshll.u32 %v1332, 16
      %v1472 = vrot.slane %v1470, 3
      %v1473 = vor.u32 %v1469, %v1472
      %v1474 = vsel %vm1340, %v1464, %v1473
      %v1476 = vshrl.u32 %v1333, 16
      %v1478 = vrot.slane %v1476, 2
      %v1479 = vshll.u32 %v1333, 16
      %v1481 = vrot.slane %v1479, 3
      %v1482 = vor.u32 %v1478, %v1481
      %v1483 = vsel %vm1340, %v1473, %v1482
      %v1485 = vshrl.u32 %v1334, 16
      %v1487 = vrot.slane %v1485, 2
      %v1488 = vshll.u32 %v1334, 16
      %v1490 = vrot.slane %v1488, 3
      %v1491 = vor.u32 %v1487, %v1490
      %v1492 = vsel %vm1340, %v1482, %v1491
      %v1494 = vshrl.u32 %v1335, 16
      %v1496 = vrot.slane %v1494, 2
      %v1497 = vshll.u32 %v1335, 16
      %v1499 = vrot.slane %v1497, 3
      %v1500 = vor.u32 %v1496, %v1499
      %v1501 = vsel %vm1340, %v1491, %v1500
      %v1503 = vshrl.u32 %v1336, 16
      %v1505 = vrot.slane %v1503, 2
      %v1506 = vshll.u32 %v1336, 16
      %v1508 = vrot.slane %v1506, 3
      %v1509 = vor.u32 %v1505, %v1508
      %v1510 = vsel %vm1340, %v1500, %v1509
      %v1512 = vshrl.u32 %v1337, 16
      %v1514 = vrot.slane %v1512, 2
      %v1515 = vshll.u32 %v1337, 16
      %v1517 = vrot.slane %v1515, 3
      %v1518 = vor.u32 %v1514, %v1517
      %v1519 = vsel %vm1340, %v1509, %v1518
      %v1521 = vshrl.u32 %v1338, 16
      %v1523 = vrot.slane %v1521, 2
      %v1524 = vshll.u32 %v1338, 16
      %v1526 = vrot.slane %v1524, 3
      %v1527 = vor.u32 %v1523, %v1526
      %v1528 = vsel %vm1340, %v1518, %v1527
      %v1530 = vshrl.u32 %v1339, 16
      %v1532 = vrot.slane %v1530, 2
      %v1533 = vshll.u32 %v1339, 16
      %v1535 = vrot.slane %v1533, 3
      %v1536 = vor.u32 %v1532, %v1535
      %v1537 = vsel %vm1340, %v1527, %v1536
      %v1540 = vunpack.c.l.b16 %v1230
      %v1541 = vunpack.c.l.b16 %v1231
      %v1542 = vpack.c.b16 %v1541, %v1540
      %vm1544 = vcmask 130048
      %v1546 = vsel %vm1544, %v1357, 0
      %v1549 = vsel %vm1544, %v1366, 0
      %v1552 = vsel %vm1544, %v1375, 0
      %v1555 = vsel %vm1544, %v1384, 0
      %v1558 = vsel %vm1544, %v1393, 0
      %v1561 = vsel %vm1544, %v1402, 0
      %v1564 = vsel %vm1544, %v1411, 0
      %v1567 = vsel %vm1544, %v1420, 0
      %v1570 = vsel %vm1544, %v1429, 0
      %v1573 = vsel %vm1544, %v1438, 0
      %v1576 = vsel %vm1544, %v1447, 0
      %v1579 = vsel %vm1544, %v1456, 0
      %v1582 = vsel %vm1544, %v1465, 0
      %v1585 = vsel %vm1544, %v1474, 0
      %v1588 = vsel %vm1544, %v1483, 0
      %v1591 = vsel %vm1544, %v1492, 0
      %v1594 = vsel %vm1544, %v1501, 0
      %v1597 = vsel %vm1544, %v1510, 0
      %v1600 = vsel %vm1544, %v1519, 0
      %v1603 = vsel %vm1544, %v1528, 0
      %v1606 = vsel %vm1544, %v1537, 0
      %1608 = vmatprep.subr.bf16.mxu0 0
      %1609 = vmatpush1.bf16.msra.mxu0 0
      %1610 = vmatprep.subr.bf16.mxu0 0
      %1611 = vmatpush1.bf16.msra.mxu0 0
      %1612 = vmatprep.subr.bf16.mxu0 0
      %1613 = vmatpush1.bf16.msra.mxu0 0
      %1614 = vmatprep.subr.bf16.mxu0 0
      %1615 = vmatpush1.bf16.msra.mxu0 0
      %1616 = vmatprep.subr.bf16.mxu0 0
      %1617 = vmatpush1.bf16.msra.mxu0 0
      %1618 = vmatprep.subr.bf16.mxu0 0
      %1619 = vmatpush1.bf16.msra.mxu0 0
      %1620 = vmatprep.subr.bf16.mxu0 0
      %1621 = vmatpush1.bf16.msra.mxu0 0
      %1622 = vmatprep.subr.bf16.mxu0 0
      %1623 = vmatpush1.bf16.msra.mxu0 %v1542
      %1624 = vmatprep.subr.bf16.mxu0 0
      %1625 = vmatpush2.bf16.msra.mxu0 0
      %1626 = vmatprep.subr.bf16.mxu0 0
      %1627 = vmatpush2.bf16.msra.mxu0 0
      %1628 = vmatprep.subr.bf16.mxu0 0
      %1629 = vmatpush2.bf16.msra.mxu0 0
      %1630 = vmatprep.subr.bf16.mxu0 0
      %1631 = vmatpush2.bf16.msra.mxu0 0
      %1632 = vmatprep.subr.bf16.mxu0 0
      %1633 = vmatpush2.bf16.msra.mxu0 0
      %1634 = vmatprep.subr.bf16.mxu0 0
      %1635 = vmatpush2.bf16.msra.mxu0 0
      %1636 = vmatprep.subr.bf16.mxu0 0
      %1637 = vmatpush2.bf16.msra.mxu0 0
      %1638 = vmatprep.subr.bf16.mxu0 0
      %1639 = vmatpush2.bf16.msra.mxu0 0
      %1640 = vmatprep.mubr.bf16.mxu0 0
      %1641 = vmatmul.mubr.bf16.gmra.mxu0 %v1546
      %v1642 = vpop.f32.mrf.mxu0
      %v1643 = vadd.f32 0.0, %v1642
      %v1644 = vpop.f32.mrf.mxu0
      %v1645 = vpop.f32.mrf.mxu0
      %v1646 = vadd.f32 0.0, %v1645
      %v1647 = vpop.f32.mrf.mxu0
      %1648 = vmatprep.mubr.bf16.mxu0 0
      %1649 = vmatmul.mubr.bf16.gmra.mxu0 %v1549
      %v1650 = vpop.f32.mrf.mxu0
      %v1651 = vadd.f32 0.0, %v1650
      %v1652 = vpop.f32.mrf.mxu0
      %v1653 = vpop.f32.mrf.mxu0
      %v1654 = vadd.f32 0.0, %v1653
      %v1655 = vpop.f32.mrf.mxu0
      %1656 = vmatprep.mubr.bf16.mxu0 0
      %1657 = vmatmul.mubr.bf16.gmra.mxu0 %v1552
      %v1658 = vpop.f32.mrf.mxu0
      %v1659 = vadd.f32 0.0, %v1658
      %v1660 = vpop.f32.mrf.mxu0
      %v1661 = vpop.f32.mrf.mxu0
      %v1662 = vadd.f32 0.0, %v1661
      %v1663 = vpop.f32.mrf.mxu0
      %1664 = vmatprep.mubr.bf16.mxu0 0
      %1665 = vmatmul.mubr.bf16.gmra.mxu0 %v1555
      %v1666 = vpop.f32.mrf.mxu0
      %v1667 = vadd.f32 0.0, %v1666
      %v1668 = vpop.f32.mrf.mxu0
      %v1669 = vpop.f32.mrf.mxu0
      %v1670 = vadd.f32 0.0, %v1669
      %v1671 = vpop.f32.mrf.mxu0
      %1672 = vmatprep.mubr.bf16.mxu0 0
      %1673 = vmatmul.mubr.bf16.gmra.mxu0 %v1558
      %v1674 = vpop.f32.mrf.mxu0
      %v1675 = vadd.f32 0.0, %v1674
      %v1676 = vpop.f32.mrf.mxu0
      %v1677 = vpop.f32.mrf.mxu0
      %v1678 = vadd.f32 0.0, %v1677
      %v1679 = vpop.f32.mrf.mxu0
      %1680 = vmatprep.mubr.bf16.mxu0 0
      %1681 = vmatmul.mubr.bf16.gmra.mxu0 %v1561
      %v1682 = vpop.f32.mrf.mxu0
      %v1683 = vadd.f32 0.0, %v1682
      %v1684 = vpop.f32.mrf.mxu0
      %v1685 = vpop.f32.mrf.mxu0
      %v1686 = vadd.f32 0.0, %v1685
      %v1687 = vpop.f32.mrf.mxu0
      %1688 = vmatprep.mubr.bf16.mxu0 0
      %1689 = vmatmul.mubr.bf16.gmra.mxu0 %v1564
      %v1690 = vpop.f32.mrf.mxu0
      %v1691 = vadd.f32 0.0, %v1690
      %v1692 = vpop.f32.mrf.mxu0
      %v1693 = vpop.f32.mrf.mxu0
      %v1694 = vadd.f32 0.0, %v1693
      %v1695 = vpop.f32.mrf.mxu0
      %1696 = vmatprep.mubr.bf16.mxu0 0
      %1697 = vmatmul.mubr.bf16.gmra.mxu0 %v1567
      %v1698 = vpop.f32.mrf.mxu0
      %v1699 = vadd.f32 0.0, %v1698
      %v1700 = vpop.f32.mrf.mxu0
      %v1701 = vpop.f32.mrf.mxu0
      %v1702 = vadd.f32 0.0, %v1701
      %v1703 = vpop.f32.mrf.mxu0
      %1704 = vmatprep.mubr.bf16.mxu0 0
      %1705 = vmatmul.mubr.bf16.gmra.mxu0 %v1570
      %v1706 = vpop.f32.mrf.mxu0
      %v1707 = vadd.f32 0.0, %v1706
      %v1708 = vpop.f32.mrf.mxu0
      %v1709 = vpop.f32.mrf.mxu0
      %v1710 = vadd.f32 0.0, %v1709
      %v1711 = vpop.f32.mrf.mxu0
      %1712 = vmatprep.mubr.bf16.mxu0 0
      %1713 = vmatmul.mubr.bf16.gmra.mxu0 %v1573
      %v1714 = vpop.f32.mrf.mxu0
      %v1715 = vadd.f32 0.0, %v1714
      %v1716 = vpop.f32.mrf.mxu0
      %v1717 = vpop.f32.mrf.mxu0
      %v1718 = vadd.f32 0.0, %v1717
      %v1719 = vpop.f32.mrf.mxu0
      %1720 = vmatprep.mubr.bf16.mxu0 0
      %1721 = vmatmul.mubr.bf16.gmra.mxu0 %v1576
      %v1722 = vpop.f32.mrf.mxu0
      %v1723 = vadd.f32 0.0, %v1722
      %v1724 = vpop.f32.mrf.mxu0
      %v1725 = vpop.f32.mrf.mxu0
      %v1726 = vadd.f32 0.0, %v1725
      %v1727 = vpop.f32.mrf.mxu0
      %1728 = vmatprep.mubr.bf16.mxu0 0
      %1729 = vmatmul.mubr.bf16.gmra.mxu0 %v1579
      %v1730 = vpop.f32.mrf.mxu0
      %v1731 = vadd.f32 0.0, %v1730
      %v1732 = vpop.f32.mrf.mxu0
      %v1733 = vpop.f32.mrf.mxu0
      %v1734 = vadd.f32 0.0, %v1733
      %v1735 = vpop.f32.mrf.mxu0
      %1736 = vmatprep.mubr.bf16.mxu0 0
      %1737 = vmatmul.mubr.bf16.gmra.mxu0 %v1582
      %v1738 = vpop.f32.mrf.mxu0
      %v1739 = vadd.f32 0.0, %v1738
      %v1740 = vpop.f32.mrf.mxu0
      %v1741 = vpop.f32.mrf.mxu0
      %v1742 = vadd.f32 0.0, %v1741
      %v1743 = vpop.f32.mrf.mxu0
      %1744 = vmatprep.mubr.bf16.mxu0 0
      %1745 = vmatmul.mubr.bf16.gmra.mxu0 %v1585
      %v1746 = vpop.f32.mrf.mxu0
      %v1747 = vadd.f32 0.0, %v1746
      %v1748 = vpop.f32.mrf.mxu0
      %v1749 = vpop.f32.mrf.mxu0
      %v1750 = vadd.f32 0.0, %v1749
      %v1751 = vpop.f32.mrf.mxu0
      %1752 = vmatprep.mubr.bf16.mxu0 0
      %1753 = vmatmul.mubr.bf16.gmra.mxu0 %v1588
      %v1754 = vpop.f32.mrf.mxu0
      %v1755 = vadd.f32 0.0, %v1754
      %v1756 = vpop.f32.mrf.mxu0
      %v1757 = vpop.f32.mrf.mxu0
      %v1758 = vadd.f32 0.0, %v1757
      %v1759 = vpop.f32.mrf.mxu0
      %1760 = vmatprep.mubr.bf16.mxu0 0
      %1761 = vmatmul.mubr.bf16.gmra.mxu0 %v1591
      %v1762 = vpop.f32.mrf.mxu0
      %v1763 = vadd.f32 0.0, %v1762
      %v1764 = vpop.f32.mrf.mxu0
      %v1765 = vpop.f32.mrf.mxu0
      %v1766 = vadd.f32 0.0, %v1765
      %v1767 = vpop.f32.mrf.mxu0
      %1768 = vmatprep.mubr.bf16.mxu0 0
      %1769 = vmatmul.mubr.bf16.gmra.mxu0 %v1594
      %v1770 = vpop.f32.mrf.mxu0
      %v1771 = vadd.f32 0.0, %v1770
      %v1772 = vpop.f32.mrf.mxu0
      %v1773 = vpop.f32.mrf.mxu0
      %v1774 = vadd.f32 0.0, %v1773
      %v1775 = vpop.f32.mrf.mxu0
      %1776 = vmatprep.mubr.bf16.mxu0 0
      %1777 = vmatmul.mubr.bf16.gmra.mxu0 %v1597
      %v1778 = vpop.f32.mrf.mxu0
      %v1779 = vadd.f32 0.0, %v1778
      %v1780 = vpop.f32.mrf.mxu0
      %v1781 = vpop.f32.mrf.mxu0
      %v1782 = vadd.f32 0.0, %v1781
      %v1783 = vpop.f32.mrf.mxu0
      %1784 = vmatprep.mubr.bf16.mxu0 0
      %1785 = vmatmul.mubr.bf16.gmra.mxu0 %v1600
      %v1786 = vpop.f32.mrf.mxu0
      %v1787 = vadd.f32 0.0, %v1786
      %v1788 = vpop.f32.mrf.mxu0
      %v1789 = vpop.f32.mrf.mxu0
      %v1790 = vadd.f32 0.0, %v1789
      %v1791 = vpop.f32.mrf.mxu0
      %1792 = vmatprep.mubr.bf16.mxu0 0
      %1793 = vmatmul.mubr.bf16.gmra.mxu0 %v1603
      %v1794 = vpop.f32.mrf.mxu0
      %v1795 = vadd.f32 0.0, %v1794
      %v1796 = vpop.f32.mrf.mxu0
      %v1797 = vpop.f32.mrf.mxu0
      %v1798 = vadd.f32 0.0, %v1797
      %v1799 = vpop.f32.mrf.mxu0
      %1800 = vmatprep.mubr.bf16.mxu0 0
      %1801 = vmatmul.mubr.bf16.gmra.mxu0 %v1606
      %v1802 = vpop.f32.mrf.mxu0
      %v1803 = vadd.f32 0.0, %v1802
      %v1804 = vpop.f32.mrf.mxu0
      %v1805 = vpop.f32.mrf.mxu0
      %v1806 = vadd.f32 0.0, %v1805
      %v1807 = vpop.f32.mrf.mxu0
      %1808 = vdwg.mxu0
      %v1809 = vadd.f32 %v1186, %v1643
      %v1810 = vadd.f32 %v1186, %v1646
      %v1811 = vadd.f32 %v1186, %v1651
      %v1812 = vadd.f32 %v1186, %v1654
      %v1813 = vadd.f32 %v1186, %v1659
      %v1814 = vadd.f32 %v1186, %v1662
      %v1815 = vadd.f32 %v1186, %v1667
      %v1816 = vadd.f32 %v1186, %v1670
      %v1817 = vadd.f32 %v1186, %v1675
      %v1818 = vadd.f32 %v1186, %v1678
      %v1819 = vadd.f32 %v1186, %v1683
      %v1820 = vadd.f32 %v1186, %v1686
      %v1821 = vadd.f32 %v1186, %v1691
      %v1822 = vadd.f32 %v1186, %v1694
      %v1823 = vadd.f32 %v1186, %v1699
      %v1824 = vadd.f32 %v1186, %v1702
      %v1825 = vadd.f32 %v1186, %v1707
      %v1826 = vadd.f32 %v1186, %v1710
      %v1827 = vadd.f32 %v1186, %v1715
      %v1828 = vadd.f32 %v1186, %v1718
      %v1829 = vadd.f32 %v1186, %v1723
      %v1830 = vadd.f32 %v1186, %v1726
      %v1831 = vadd.f32 %v1186, %v1731
      %v1832 = vadd.f32 %v1186, %v1734
      %v1833 = vadd.f32 %v1186, %v1739
      %v1834 = vadd.f32 %v1186, %v1742
      %v1835 = vadd.f32 %v1186, %v1747
      %v1836 = vadd.f32 %v1186, %v1750
      %v1837 = vadd.f32 %v1186, %v1755
      %v1838 = vadd.f32 %v1186, %v1758
      %v1839 = vadd.f32 %v1186, %v1763
      %v1840 = vadd.f32 %v1186, %v1766
      %v1841 = vadd.f32 %v1186, %v1771
      %v1842 = vadd.f32 %v1186, %v1774
      %v1843 = vadd.f32 %v1186, %v1779
      %v1844 = vadd.f32 %v1186, %v1782
      %v1845 = vadd.f32 %v1186, %v1787
      %v1846 = vadd.f32 %v1186, %v1790
      %v1847 = vadd.f32 %v1186, %v1795
      %v1848 = vadd.f32 %v1186, %v1798
      %v1849 = vadd.f32 %v1186, %v1803
      %v1850 = vadd.f32 %v1186, %v1806
      %v1851 = vld [vmem:[#allocation2 + $0x4] sm:$0x8]
      %v1852 = vld [vmem:[%s1 + $0x90] sm:$0xf]
      %v1853 = vld [vmem:[%s1 + $0x9c] sm:$0xf]
      %v1855 = vunpack.c.l.b16 %v1851
      %v1856 = vpack.c.b16 %v1276, %v1855
      %vm1857 = vcmask 1044480
      %v1858 = vrot.slane %v1856, 3
      %v1859 = vrot.slane %v1319, 3
      %v1860 = vsel %vm1857, %v1858, %v1859
      %v1861 = vrot.slane %v1320, 3
      %v1862 = vsel %vm1857, %v1859, %v1861
      %v1863 = vrot.slane %v1321, 3
      %v1864 = vsel %vm1857, %v1861, %v1863
      %v1865 = vrot.slane %v1322, 3
      %v1866 = vsel %vm1857, %v1863, %v1865
      %v1867 = vrot.slane %v1323, 3
      %v1868 = vsel %vm1857, %v1865, %v1867
      %v1869 = vrot.slane %v1324, 3
      %v1870 = vsel %vm1857, %v1867, %v1869
      %v1871 = vrot.slane %v1325, 3
      %v1872 = vsel %vm1857, %v1869, %v1871
      %v1873 = vrot.slane %v1326, 3
      %v1874 = vsel %vm1857, %v1871, %v1873
      %v1875 = vrot.slane %v1327, 3
      %v1876 = vsel %vm1857, %v1873, %v1875
      %v1877 = vrot.slane %v1328, 3
      %v1878 = vsel %vm1857, %v1875, %v1877
      %v1879 = vrot.slane %v1329, 3
      %v1880 = vsel %vm1857, %v1877, %v1879
      %v1881 = vrot.slane %v1330, 3
      %v1882 = vsel %vm1857, %v1879, %v1881
      %v1883 = vrot.slane %v1331, 3
      %v1884 = vsel %vm1857, %v1881, %v1883
      %v1885 = vrot.slane %v1332, 3
      %v1886 = vsel %vm1857, %v1883, %v1885
      %v1887 = vrot.slane %v1333, 3
      %v1888 = vsel %vm1857, %v1885, %v1887
      %v1889 = vrot.slane %v1334, 3
      %v1890 = vsel %vm1857, %v1887, %v1889
      %v1891 = vrot.slane %v1335, 3
      %v1892 = vsel %vm1857, %v1889, %v1891
      %v1893 = vrot.slane %v1336, 3
      %v1894 = vsel %vm1857, %v1891, %v1893
      %v1895 = vrot.slane %v1337, 3
      %v1896 = vsel %vm1857, %v1893, %v1895
      %v1897 = vrot.slane %v1338, 3
      %v1898 = vsel %vm1857, %v1895, %v1897
      %v1899 = vrot.slane %v1339, 3
      %v1900 = vsel %vm1857, %v1897, %v1899
      %v1903 = vunpack.c.l.b16 %v1852
      %v1904 = vunpack.c.l.b16 %v1853
      %v1905 = vpack.c.b16 %v1904, %v1903
      %v1908 = vsel %vm1544, %v1860, 0
      %v1911 = vsel %vm1544, %v1862, 0
      %v1914 = vsel %vm1544, %v1864, 0
      %v1917 = vsel %vm1544, %v1866, 0
      %v1920 = vsel %vm1544, %v1868, 0
      %v1923 = vsel %vm1544, %v1870, 0
      %v1926 = vsel %vm1544, %v1872, 0
      %v1929 = vsel %vm1544, %v1874, 0
      %v1932 = vsel %vm1544, %v1876, 0
      %v1935 = vsel %vm1544, %v1878, 0
      %v1938 = vsel %vm1544, %v1880, 0
      %v1941 = vsel %vm1544, %v1882, 0
      %v1944 = vsel %vm1544, %v1884, 0
      %v1947 = vsel %vm1544, %v1886, 0
      %v1950 = vsel %vm1544, %v1888, 0
      %v1953 = vsel %vm1544, %v1890, 0
      %v1956 = vsel %vm1544, %v1892, 0
      %v1959 = vsel %vm1544, %v1894, 0
      %v1962 = vsel %vm1544, %v1896, 0
      %v1965 = vsel %vm1544, %v1898, 0
      %v1968 = vsel %vm1544, %v1900, 0
      %1970 = vmatprep.subr.bf16.mxu0 0
      %1971 = vmatpush1.bf16.msra.mxu0 0
      %1972 = vmatprep.subr.bf16.mxu0 0
      %1973 = vmatpush1.bf16.msra.mxu0 0
      %1974 = vmatprep.subr.bf16.mxu0 0
      %1975 = vmatpush1.bf16.msra.mxu0 0
      %1976 = vmatprep.subr.bf16.mxu0 0
      %1977 = vmatpush1.bf16.msra.mxu0 0
      %1978 = vmatprep.subr.bf16.mxu0 0
      %1979 = vmatpush1.bf16.msra.mxu0 0
      %1980 = vmatprep.subr.bf16.mxu0 0
      %1981 = vmatpush1.bf16.msra.mxu0 0
      %1982 = vmatprep.subr.bf16.mxu0 0
      %1983 = vmatpush1.bf16.msra.mxu0 0
      %1984 = vmatprep.subr.bf16.mxu0 0
      %1985 = vmatpush1.bf16.msra.mxu0 %v1905
      %1986 = vmatprep.subr.bf16.mxu0 0
      %1987 = vmatpush2.bf16.msra.mxu0 0
      %1988 = vmatprep.subr.bf16.mxu0 0
      %1989 = vmatpush2.bf16.msra.mxu0 0
      %1990 = vmatprep.subr.bf16.mxu0 0
      %1991 = vmatpush2.bf16.msra.mxu0 0
      %1992 = vmatprep.subr.bf16.mxu0 0
      %1993 = vmatpush2.bf16.msra.mxu0 0
      %1994 = vmatprep.subr.bf16.mxu0 0
      %1995 = vmatpush2.bf16.msra.mxu0 0
      %1996 = vmatprep.subr.bf16.mxu0 0
      %1997 = vmatpush2.bf16.msra.mxu0 0
      %1998 = vmatprep.subr.bf16.mxu0 0
      %1999 = vmatpush2.bf16.msra.mxu0 0
      %2000 = vmatprep.subr.bf16.mxu0 0
      %2001 = vmatpush2.bf16.msra.mxu0 0
      %2002 = vmatprep.mubr.bf16.mxu0 0
      %2003 = vmatmul.mubr.bf16.gmra.mxu0 %v1908
      %v2004 = vpop.f32.mrf.mxu0
      %v2005 = vadd.f32 0.0, %v2004
      %v2006 = vpop.f32.mrf.mxu0
      %v2007 = vpop.f32.mrf.mxu0
      %v2008 = vadd.f32 0.0, %v2007
      %v2009 = vpop.f32.mrf.mxu0
      %2010 = vmatprep.mubr.bf16.mxu0 0
      %2011 = vmatmul.mubr.bf16.gmra.mxu0 %v1911
      %v2012 = vpop.f32.mrf.mxu0
      %v2013 = vadd.f32 0.0, %v2012
      %v2014 = vpop.f32.mrf.mxu0
      %v2015 = vpop.f32.mrf.mxu0
      %v2016 = vadd.f32 0.0, %v2015
      %v2017 = vpop.f32.mrf.mxu0
      %2018 = vmatprep.mubr.bf16.mxu0 0
      %2019 = vmatmul.mubr.bf16.gmra.mxu0 %v1914
      %v2020 = vpop.f32.mrf.mxu0
      %v2021 = vadd.f32 0.0, %v2020
      %v2022 = vpop.f32.mrf.mxu0
      %v2023 = vpop.f32.mrf.mxu0
      %v2024 = vadd.f32 0.0, %v2023
      %v2025 = vpop.f32.mrf.mxu0
      %2026 = vmatprep.mubr.bf16.mxu0 0
      %2027 = vmatmul.mubr.bf16.gmra.mxu0 %v1917
      %v2028 = vpop.f32.mrf.mxu0
      %v2029 = vadd.f32 0.0, %v2028
      %v2030 = vpop.f32.mrf.mxu0
      %v2031 = vpop.f32.mrf.mxu0
      %v2032 = vadd.f32 0.0, %v2031
      %v2033 = vpop.f32.mrf.mxu0
      %2034 = vmatprep.mubr.bf16.mxu0 0
      %2035 = vmatmul.mubr.bf16.gmra.mxu0 %v1920
      %v2036 = vpop.f32.mrf.mxu0
      %v2037 = vadd.f32 0.0, %v2036
      %v2038 = vpop.f32.mrf.mxu0
      %v2039 = vpop.f32.mrf.mxu0
      %v2040 = vadd.f32 0.0, %v2039
      %v2041 = vpop.f32.mrf.mxu0
      %2042 = vmatprep.mubr.bf16.mxu0 0
      %2043 = vmatmul.mubr.bf16.gmra.mxu0 %v1923
      %v2044 = vpop.f32.mrf.mxu0
      %v2045 = vadd.f32 0.0, %v2044
      %v2046 = vpop.f32.mrf.mxu0
      %v2047 = vpop.f32.mrf.mxu0
      %v2048 = vadd.f32 0.0, %v2047
      %v2049 = vpop.f32.mrf.mxu0
      %2050 = vmatprep.mubr.bf16.mxu0 0
      %2051 = vmatmul.mubr.bf16.gmra.mxu0 %v1926
      %v2052 = vpop.f32.mrf.mxu0
      %v2053 = vadd.f32 0.0, %v2052
      %v2054 = vpop.f32.mrf.mxu0
      %v2055 = vpop.f32.mrf.mxu0
      %v2056 = vadd.f32 0.0, %v2055
      %v2057 = vpop.f32.mrf.mxu0
      %2058 = vmatprep.mubr.bf16.mxu0 0
      %2059 = vmatmul.mubr.bf16.gmra.mxu0 %v1929
      %v2060 = vpop.f32.mrf.mxu0
      %v2061 = vadd.f32 0.0, %v2060
      %v2062 = vpop.f32.mrf.mxu0
      %v2063 = vpop.f32.mrf.mxu0
      %v2064 = vadd.f32 0.0, %v2063
      %v2065 = vpop.f32.mrf.mxu0
      %2066 = vmatprep.mubr.bf16.mxu0 0
      %2067 = vmatmul.mubr.bf16.gmra.mxu0 %v1932
      %v2068 = vpop.f32.mrf.mxu0
      %v2069 = vadd.f32 0.0, %v2068
      %v2070 = vpop.f32.mrf.mxu0
      %v2071 = vpop.f32.mrf.mxu0
      %v2072 = vadd.f32 0.0, %v2071
      %v2073 = vpop.f32.mrf.mxu0
      %2074 = vmatprep.mubr.bf16.mxu0 0
      %2075 = vmatmul.mubr.bf16.gmra.mxu0 %v1935
      %v2076 = vpop.f32.mrf.mxu0
      %v2077 = vadd.f32 0.0, %v2076
      %v2078 = vpop.f32.mrf.mxu0
      %v2079 = vpop.f32.mrf.mxu0
      %v2080 = vadd.f32 0.0, %v2079
      %v2081 = vpop.f32.mrf.mxu0
      %2082 = vmatprep.mubr.bf16.mxu0 0
      %2083 = vmatmul.mubr.bf16.gmra.mxu0 %v1938
      %v2084 = vpop.f32.mrf.mxu0
      %v2085 = vadd.f32 0.0, %v2084
      %v2086 = vpop.f32.mrf.mxu0
      %v2087 = vpop.f32.mrf.mxu0
      %v2088 = vadd.f32 0.0, %v2087
      %v2089 = vpop.f32.mrf.mxu0
      %2090 = vmatprep.mubr.bf16.mxu0 0
      %2091 = vmatmul.mubr.bf16.gmra.mxu0 %v1941
      %v2092 = vpop.f32.mrf.mxu0
      %v2093 = vadd.f32 0.0, %v2092
      %v2094 = vpop.f32.mrf.mxu0
      %v2095 = vpop.f32.mrf.mxu0
      %v2096 = vadd.f32 0.0, %v2095
      %v2097 = vpop.f32.mrf.mxu0
      %2098 = vmatprep.mubr.bf16.mxu0 0
      %2099 = vmatmul.mubr.bf16.gmra.mxu0 %v1944
      %v2100 = vpop.f32.mrf.mxu0
      %v2101 = vadd.f32 0.0, %v2100
      %v2102 = vpop.f32.mrf.mxu0
      %v2103 = vpop.f32.mrf.mxu0
      %v2104 = vadd.f32 0.0, %v2103
      %v2105 = vpop.f32.mrf.mxu0
      %2106 = vmatprep.mubr.bf16.mxu0 0
      %2107 = vmatmul.mubr.bf16.gmra.mxu0 %v1947
      %v2108 = vpop.f32.mrf.mxu0
      %v2109 = vadd.f32 0.0, %v2108
      %v2110 = vpop.f32.mrf.mxu0
      %v2111 = vpop.f32.mrf.mxu0
      %v2112 = vadd.f32 0.0, %v2111
      %v2113 = vpop.f32.mrf.mxu0
      %2114 = vmatprep.mubr.bf16.mxu0 0
      %2115 = vmatmul.mubr.bf16.gmra.mxu0 %v1950
      %v2116 = vpop.f32.mrf.mxu0
      %v2117 = vadd.f32 0.0, %v2116
      %v2118 = vpop.f32.mrf.mxu0
      %v2119 = vpop.f32.mrf.mxu0
      %v2120 = vadd.f32 0.0, %v2119
      %v2121 = vpop.f32.mrf.mxu0
      %2122 = vmatprep.mubr.bf16.mxu0 0
      %2123 = vmatmul.mubr.bf16.gmra.mxu0 %v1953
      %v2124 = vpop.f32.mrf.mxu0
      %v2125 = vadd.f32 0.0, %v2124
      %v2126 = vpop.f32.mrf.mxu0
      %v2127 = vpop.f32.mrf.mxu0
      %v2128 = vadd.f32 0.0, %v2127
      %v2129 = vpop.f32.mrf.mxu0
      %2130 = vmatprep.mubr.bf16.mxu0 0
      %2131 = vmatmul.mubr.bf16.gmra.mxu0 %v1956
      %v2132 = vpop.f32.mrf.mxu0
      %v2133 = vadd.f32 0.0, %v2132
      %v2134 = vpop.f32.mrf.mxu0
      %v2135 = vpop.f32.mrf.mxu0
      %v2136 = vadd.f32 0.0, %v2135
      %v2137 = vpop.f32.mrf.mxu0
      %2138 = vmatprep.mubr.bf16.mxu0 0
      %2139 = vmatmul.mubr.bf16.gmra.mxu0 %v1959
      %v2140 = vpop.f32.mrf.mxu0
      %v2141 = vadd.f32 0.0, %v2140
      %v2142 = vpop.f32.mrf.mxu0
      %v2143 = vpop.f32.mrf.mxu0
      %v2144 = vadd.f32 0.0, %v2143
      %v2145 = vpop.f32.mrf.mxu0
      %2146 = vmatprep.mubr.bf16.mxu0 0
      %2147 = vmatmul.mubr.bf16.gmra.mxu0 %v1962
      %v2148 = vpop.f32.mrf.mxu0
      %v2149 = vadd.f32 0.0, %v2148
      %v2150 = vpop.f32.mrf.mxu0
      %v2151 = vpop.f32.mrf.mxu0
      %v2152 = vadd.f32 0.0, %v2151
      %v2153 = vpop.f32.mrf.mxu0
      %2154 = vmatprep.mubr.bf16.mxu0 0
      %2155 = vmatmul.mubr.bf16.gmra.mxu0 %v1965
      %v2156 = vpop.f32.mrf.mxu0
      %v2157 = vadd.f32 0.0, %v2156
      %v2158 = vpop.f32.mrf.mxu0
      %v2159 = vpop.f32.mrf.mxu0
      %v2160 = vadd.f32 0.0, %v2159
      %v2161 = vpop.f32.mrf.mxu0
      %2162 = vmatprep.mubr.bf16.mxu0 0
      %2163 = vmatmul.mubr.bf16.gmra.mxu0 %v1968
      %v2164 = vpop.f32.mrf.mxu0
      %v2165 = vadd.f32 0.0, %v2164
      %v2166 = vpop.f32.mrf.mxu0
      %v2167 = vpop.f32.mrf.mxu0
      %v2168 = vadd.f32 0.0, %v2167
      %v2169 = vpop.f32.mrf.mxu0
      %2170 = vdwg.mxu0
      %v2171 = vadd.f32 %v1809, %v2005
      %v2172 = vadd.f32 %v1810, %v2008
      %v2173 = vadd.f32 %v1811, %v2013
      %v2174 = vadd.f32 %v1812, %v2016
      %v2175 = vadd.f32 %v1813, %v2021
      %v2176 = vadd.f32 %v1814, %v2024
      %v2177 = vadd.f32 %v1815, %v2029
      %v2178 = vadd.f32 %v1816, %v2032
      %v2179 = vadd.f32 %v1817, %v2037
      %v2180 = vadd.f32 %v1818, %v2040
      %v2181 = vadd.f32 %v1819, %v2045
      %v2182 = vadd.f32 %v1820, %v2048
      %v2183 = vadd.f32 %v1821, %v2053
      %v2184 = vadd.f32 %v1822, %v2056
      %v2185 = vadd.f32 %v1823, %v2061
      %v2186 = vadd.f32 %v1824, %v2064
      %v2187 = vadd.f32 %v1825, %v2069
      %v2188 = vadd.f32 %v1826, %v2072
      %v2189 = vadd.f32 %v1827, %v2077
      %v2190 = vadd.f32 %v1828, %v2080
      %v2191 = vadd.f32 %v1829, %v2085
      %v2192 = vadd.f32 %v1830, %v2088
      %v2193 = vadd.f32 %v1831, %v2093
      %v2194 = vadd.f32 %v1832, %v2096
      %v2195 = vadd.f32 %v1833, %v2101
      %v2196 = vadd.f32 %v1834, %v2104
      %v2197 = vadd.f32 %v1835, %v2109
      %v2198 = vadd.f32 %v1836, %v2112
      %v2199 = vadd.f32 %v1837, %v2117
      %v2200 = vadd.f32 %v1838, %v2120
      %v2201 = vadd.f32 %v1839, %v2125
      %v2202 = vadd.f32 %v1840, %v2128
      %v2203 = vadd.f32 %v1841, %v2133
      %v2204 = vadd.f32 %v1842, %v2136
      %v2205 = vadd.f32 %v1843, %v2141
      %v2206 = vadd.f32 %v1844, %v2144
      %v2207 = vadd.f32 %v1845, %v2149
      %v2208 = vadd.f32 %v1846, %v2152
      %v2209 = vadd.f32 %v1847, %v2157
      %v2210 = vadd.f32 %v1848, %v2160
      %v2211 = vadd.f32 %v1849, %v2165
      %v2212 = vadd.f32 %v1850, %v2168
      %v2213 = vld [vmem:[#allocation2 + $0xac] sm:$0xf]
      %v2214 = vld [vmem:[%s1 + $0xa8] sm:$0xf]
      %v2215 = vld [vmem:[%s1 + $0xb4] sm:$0xf]
      %v2217 = vunpack.c.l.b16 %v2213
      %v2218 = vpack.c.b16 %v2217, %v2217
      %vm2219 = vsmask.f32 4352
      %v2221 = vshrl.u32 %v1856, 16
      %v2223 = vrot.slane %v2221, 3
      %v2224 = vshll.u32 %v1856, 16
      %v2226 = vrot.slane %v2224, 4
      %v2227 = vor.u32 %v2223, %v2226
      %v2228 = vrot.slane %v1350, 3
      %v2229 = vrot.slane %v1353, 4
      %v2230 = vor.u32 %v2228, %v2229
      %v2231 = vsel %vm2219, %v2227, %v2230
      %v2232 = vrot.slane %v1359, 3
      %v2233 = vrot.slane %v1362, 4
      %v2234 = vor.u32 %v2232, %v2233
      %v2235 = vsel %vm2219, %v2230, %v2234
      %v2236 = vrot.slane %v1368, 3
      %v2237 = vrot.slane %v1371, 4
      %v2238 = vor.u32 %v2236, %v2237
      %v2239 = vsel %vm2219, %v2234, %v2238
      %v2240 = vrot.slane %v1377, 3
      %v2241 = vrot.slane %v1380, 4
      %v2242 = vor.u32 %v2240, %v2241
      %v2243 = vsel %vm2219, %v2238, %v2242
      %v2244 = vrot.slane %v1386, 3
      %v2245 = vrot.slane %v1389, 4
      %v2246 = vor.u32 %v2244, %v2245
      %v2247 = vsel %vm2219, %v2242, %v2246
      %v2248 = vrot.slane %v1395, 3
      %v2249 = vrot.slane %v1398, 4
      %v2250 = vor.u32 %v2248, %v2249
      %v2251 = vsel %vm2219, %v2246, %v2250
      %v2252 = vrot.slane %v1404, 3
      %v2253 = vrot.slane %v1407, 4
      %v2254 = vor.u32 %v2252, %v2253
      %v2255 = vsel %vm2219, %v2250, %v2254
      %v2256 = vrot.slane %v1413, 3
      %v2257 = vrot.slane %v1416, 4
      %v2258 = vor.u32 %v2256, %v2257
      %v2259 = vsel %vm2219, %v2254, %v2258
      %v2260 = vrot.slane %v1422, 3
      %v2261 = vrot.slane %v1425, 4
      %v2262 = vor.u32 %v2260, %v2261
      %v2263 = vsel %vm2219, %v2258, %v2262
      %v2264 = vrot.slane %v1431, 3
      %v2265 = vrot.slane %v1434, 4
      %v2266 = vor.u32 %v2264, %v2265
      %v2267 = vsel %vm2219, %v2262, %v2266
      %v2268 = vrot.slane %v1440, 3
      %v2269 = vrot.slane %v1443, 4
      %v2270 = vor.u32 %v2268, %v2269
      %v2271 = vsel %vm2219, %v2266, %v2270
      %v2272 = vrot.slane %v1449, 3
      %v2273 = vrot.slane %v1452, 4
      %v2274 = vor.u32 %v2272, %v2273
      %v2275 = vsel %vm2219, %v2270, %v2274
      %v2276 = vrot.slane %v1458, 3
      %v2277 = vrot.slane %v1461, 4
      %v2278 = vor.u32 %v2276, %v2277
      %v2279 = vsel %vm2219, %v2274, %v2278
      %v2280 = vrot.slane %v1467, 3
      %v2281 = vrot.slane %v1470, 4
      %v2282 = vor.u32 %v2280, %v2281
      %v2283 = vsel %vm2219, %v2278, %v2282
      %v2284 = vrot.slane %v1476, 3
      %v2285 = vrot.slane %v1479, 4
      %v2286 = vor.u32 %v2284, %v2285
      %v2287 = vsel %vm2219, %v2282, %v2286
      %v2288 = vrot.slane %v1485, 3
      %v2289 = vrot.slane %v1488, 4
      %v2290 = vor.u32 %v2288, %v2289
      %v2291 = vsel %vm2219, %v2286, %v2290
      %v2292 = vrot.slane %v1494, 3
      %v2293 = vrot.slane %v1497, 4
      %v2294 = vor.u32 %v2292, %v2293
      %v2295 = vsel %vm2219, %v2290, %v2294
      %v2296 = vrot.slane %v1503, 3
      %v2297 = vrot.slane %v1506, 4
      %v2298 = vor.u32 %v2296, %v2297
      %v2299 = vsel %vm2219, %v2294, %v2298
      %v2300 = vrot.slane %v1512, 3
      %v2301 = vrot.slane %v1515, 4
      %v2302 = vor.u32 %v2300, %v2301
      %v2303 = vsel %vm2219, %v2298, %v2302
      %v2304 = vrot.slane %v1521, 3
      %v2305 = vrot.slane %v1524, 4
      %v2306 = vor.u32 %v2304, %v2305
      %v2307 = vsel %vm2219, %v2302, %v2306
      %v2309 = vshrl.u32 %v2218, 16
      %v2311 = vrot.slane %v2309, 3
      %v2312 = vshll.u32 %v2218, 16
      %v2314 = vrot.slane %v2312, 4
      %v2315 = vor.u32 %v2311, %v2314
      %v2316 = vsel %vm2219, %v2306, %v2315
      %v2319 = vunpack.c.l.b16 %v2214
      %v2320 = vunpack.c.l.b16 %v2215
      %v2321 = vpack.c.b16 %v2320, %v2319
      %v2324 = vsel %vm1544, %v2231, 0
      %v2327 = vsel %vm1544, %v2235, 0
      %v2330 = vsel %vm1544, %v2239, 0
      %v2333 = vsel %vm1544, %v2243, 0
      %v2336 = vsel %vm1544, %v2247, 0
      %v2339 = vsel %vm1544, %v2251, 0
      %v2342 = vsel %vm1544, %v2255, 0
      %v2345 = vsel %vm1544, %v2259, 0
      %v2348 = vsel %vm1544, %v2263, 0
      %v2351 = vsel %vm1544, %v2267, 0
      %v2354 = vsel %vm1544, %v2271, 0
      %v2357 = vsel %vm1544, %v2275, 0
      %v2360 = vsel %vm1544, %v2279, 0
      %v2363 = vsel %vm1544, %v2283, 0
      %v2366 = vsel %vm1544, %v2287, 0
      %v2369 = vsel %vm1544, %v2291, 0
      %v2372 = vsel %vm1544, %v2295, 0
      %v2375 = vsel %vm1544, %v2299, 0
      %v2378 = vsel %vm1544, %v2303, 0
      %v2381 = vsel %vm1544, %v2307, 0
      %v2384 = vsel %vm1544, %v2316, 0
      %2386 = vmatprep.subr.bf16.mxu0 0
      %2387 = vmatpush1.bf16.msra.mxu0 0
      %2388 = vmatprep.subr.bf16.mxu0 0
      %2389 = vmatpush1.bf16.msra.mxu0 0
      %2390 = vmatprep.subr.bf16.mxu0 0
      %2391 = vmatpush1.bf16.msra.mxu0 0
      %2392 = vmatprep.subr.bf16.mxu0 0
      %2393 = vmatpush1.bf16.msra.mxu0 0
      %2394 = vmatprep.subr.bf16.mxu0 0
      %2395 = vmatpush1.bf16.msra.mxu0 0
      %2396 = vmatprep.subr.bf16.mxu0 0
      %2397 = vmatpush1.bf16.msra.mxu0 0
      %2398 = vmatprep.subr.bf16.mxu0 0
      %2399 = vmatpush1.bf16.msra.mxu0 0
      %2400 = vmatprep.subr.bf16.mxu0 0
      %2401 = vmatpush1.bf16.msra.mxu0 %v2321
      %2402 = vmatprep.subr.bf16.mxu0 0
      %2403 = vmatpush2.bf16.msra.mxu0 0
      %2404 = vmatprep.subr.bf16.mxu0 0
      %2405 = vmatpush2.bf16.msra.mxu0 0
      %2406 = vmatprep.subr.bf16.mxu0 0
      %2407 = vmatpush2.bf16.msra.mxu0 0
      %2408 = vmatprep.subr.bf16.mxu0 0
      %2409 = vmatpush2.bf16.msra.mxu0 0
      %2410 = vmatprep.subr.bf16.mxu0 0
      %2411 = vmatpush2.bf16.msra.mxu0 0
      %2412 = vmatprep.subr.bf16.mxu0 0
      %2413 = vmatpush2.bf16.msra.mxu0 0
      %2414 = vmatprep.subr.bf16.mxu0 0
      %2415 = vmatpush2.bf16.msra.mxu0 0
      %2416 = vmatprep.subr.bf16.mxu0 0
      %2417 = vmatpush2.bf16.msra.mxu0 0
      %2418 = vmatprep.mubr.bf16.mxu0 0
      %2419 = vmatmul.mubr.bf16.gmra.mxu0 %v2324
      %v2420 = vpop.f32.mrf.mxu0
      %v2421 = vadd.f32 0.0, %v2420
      %v2422 = vpop.f32.mrf.mxu0
      %v2423 = vpop.f32.mrf.mxu0
      %v2424 = vadd.f32 0.0, %v2423
      %v2425 = vpop.f32.mrf.mxu0
      %2426 = vmatprep.mubr.bf16.mxu0 0
      %2427 = vmatmul.mubr.bf16.gmra.mxu0 %v2327
      %v2428 = vpop.f32.mrf.mxu0
      %v2429 = vadd.f32 0.0, %v2428
      %v2430 = vpop.f32.mrf.mxu0
      %v2431 = vpop.f32.mrf.mxu0
      %v2432 = vadd.f32 0.0, %v2431
      %v2433 = vpop.f32.mrf.mxu0
      %2434 = vmatprep.mubr.bf16.mxu0 0
      %2435 = vmatmul.mubr.bf16.gmra.mxu0 %v2330
      %v2436 = vpop.f32.mrf.mxu0
      %v2437 = vadd.f32 0.0, %v2436
      %v2438 = vpop.f32.mrf.mxu0
      %v2439 = vpop.f32.mrf.mxu0
      %v2440 = vadd.f32 0.0, %v2439
      %v2441 = vpop.f32.mrf.mxu0
      %2442 = vmatprep.mubr.bf16.mxu0 0
      %2443 = vmatmul.mubr.bf16.gmra.mxu0 %v2333
      %v2444 = vpop.f32.mrf.mxu0
      %v2445 = vadd.f32 0.0, %v2444
      %v2446 = vpop.f32.mrf.mxu0
      %v2447 = vpop.f32.mrf.mxu0
      %v2448 = vadd.f32 0.0, %v2447
      %v2449 = vpop.f32.mrf.mxu0
      %2450 = vmatprep.mubr.bf16.mxu0 0
      %2451 = vmatmul.mubr.bf16.gmra.mxu0 %v2336
      %v2452 = vpop.f32.mrf.mxu0
      %v2453 = vadd.f32 0.0, %v2452
      %v2454 = vpop.f32.mrf.mxu0
      %v2455 = vpop.f32.mrf.mxu0
      %v2456 = vadd.f32 0.0, %v2455
      %v2457 = vpop.f32.mrf.mxu0
      %2458 = vmatprep.mubr.bf16.mxu0 0
      %2459 = vmatmul.mubr.bf16.gmra.mxu0 %v2339
      %v2460 = vpop.f32.mrf.mxu0
      %v2461 = vadd.f32 0.0, %v2460
      %v2462 = vpop.f32.mrf.mxu0
      %v2463 = vpop.f32.mrf.mxu0
      %v2464 = vadd.f32 0.0, %v2463
      %v2465 = vpop.f32.mrf.mxu0
      %2466 = vmatprep.mubr.bf16.mxu0 0
      %2467 = vmatmul.mubr.bf16.gmra.mxu0 %v2342
      %v2468 = vpop.f32.mrf.mxu0
      %v2469 = vadd.f32 0.0, %v2468
      %v2470 = vpop.f32.mrf.mxu0
      %v2471 = vpop.f32.mrf.mxu0
      %v2472 = vadd.f32 0.0, %v2471
      %v2473 = vpop.f32.mrf.mxu0
      %2474 = vmatprep.mubr.bf16.mxu0 0
      %2475 = vmatmul.mubr.bf16.gmra.mxu0 %v2345
      %v2476 = vpop.f32.mrf.mxu0
      %v2477 = vadd.f32 0.0, %v2476
      %v2478 = vpop.f32.mrf.mxu0
      %v2479 = vpop.f32.mrf.mxu0
      %v2480 = vadd.f32 0.0, %v2479
      %v2481 = vpop.f32.mrf.mxu0
      %2482 = vmatprep.mubr.bf16.mxu0 0
      %2483 = vmatmul.mubr.bf16.gmra.mxu0 %v2348
      %v2484 = vpop.f32.mrf.mxu0
      %v2485 = vadd.f32 0.0, %v2484
      %v2486 = vpop.f32.mrf.mxu0
      %v2487 = vpop.f32.mrf.mxu0
      %v2488 = vadd.f32 0.0, %v2487
      %v2489 = vpop.f32.mrf.mxu0
      %2490 = vmatprep.mubr.bf16.mxu0 0
      %2491 = vmatmul.mubr.bf16.gmra.mxu0 %v2351
      %v2492 = vpop.f32.mrf.mxu0
      %v2493 = vadd.f32 0.0, %v2492
      %v2494 = vpop.f32.mrf.mxu0
      %v2495 = vpop.f32.mrf.mxu0
      %v2496 = vadd.f32 0.0, %v2495
      %v2497 = vpop.f32.mrf.mxu0
      %2498 = vmatprep.mubr.bf16.mxu0 0
      %2499 = vmatmul.mubr.bf16.gmra.mxu0 %v2354
      %v2500 = vpop.f32.mrf.mxu0
      %v2501 = vadd.f32 0.0, %v2500
      %v2502 = vpop.f32.mrf.mxu0
      %v2503 = vpop.f32.mrf.mxu0
      %v2504 = vadd.f32 0.0, %v2503
      %v2505 = vpop.f32.mrf.mxu0
      %2506 = vmatprep.mubr.bf16.mxu0 0
      %2507 = vmatmul.mubr.bf16.gmra.mxu0 %v2357
      %v2508 = vpop.f32.mrf.mxu0
      %v2509 = vadd.f32 0.0, %v2508
      %v2510 = vpop.f32.mrf.mxu0
      %v2511 = vpop.f32.mrf.mxu0
      %v2512 = vadd.f32 0.0, %v2511
      %v2513 = vpop.f32.mrf.mxu0
      %2514 = vmatprep.mubr.bf16.mxu0 0
      %2515 = vmatmul.mubr.bf16.gmra.mxu0 %v2360
      %v2516 = vpop.f32.mrf.mxu0
      %v2517 = vadd.f32 0.0, %v2516
      %v2518 = vpop.f32.mrf.mxu0
      %v2519 = vpop.f32.mrf.mxu0
      %v2520 = vadd.f32 0.0, %v2519
      %v2521 = vpop.f32.mrf.mxu0
      %2522 = vmatprep.mubr.bf16.mxu0 0
      %2523 = vmatmul.mubr.bf16.gmra.mxu0 %v2363
      %v2524 = vpop.f32.mrf.mxu0
      %v2525 = vadd.f32 0.0, %v2524
      %v2526 = vpop.f32.mrf.mxu0
      %v2527 = vpop.f32.mrf.mxu0
      %v2528 = vadd.f32 0.0, %v2527
      %v2529 = vpop.f32.mrf.mxu0
      %2530 = vmatprep.mubr.bf16.mxu0 0
      %2531 = vmatmul.mubr.bf16.gmra.mxu0 %v2366
      %v2532 = vpop.f32.mrf.mxu0
      %v2533 = vadd.f32 0.0, %v2532
      %v2534 = vpop.f32.mrf.mxu0
      %v2535 = vpop.f32.mrf.mxu0
      %v2536 = vadd.f32 0.0, %v2535
      %v2537 = vpop.f32.mrf.mxu0
      %2538 = vmatprep.mubr.bf16.mxu0 0
      %2539 = vmatmul.mubr.bf16.gmra.mxu0 %v2369
      %v2540 = vpop.f32.mrf.mxu0
      %v2541 = vadd.f32 0.0, %v2540
      %v2542 = vpop.f32.mrf.mxu0
      %v2543 = vpop.f32.mrf.mxu0
      %v2544 = vadd.f32 0.0, %v2543
      %v2545 = vpop.f32.mrf.mxu0
      %2546 = vmatprep.mubr.bf16.mxu0 0
      %2547 = vmatmul.mubr.bf16.gmra.mxu0 %v2372
      %v2548 = vpop.f32.mrf.mxu0
      %v2549 = vadd.f32 0.0, %v2548
      %v2550 = vpop.f32.mrf.mxu0
      %v2551 = vpop.f32.mrf.mxu0
      %v2552 = vadd.f32 0.0, %v2551
      %v2553 = vpop.f32.mrf.mxu0
      %2554 = vmatprep.mubr.bf16.mxu0 0
      %2555 = vmatmul.mubr.bf16.gmra.mxu0 %v2375
      %v2556 = vpop.f32.mrf.mxu0
      %v2557 = vadd.f32 0.0, %v2556
      %v2558 = vpop.f32.mrf.mxu0
      %v2559 = vpop.f32.mrf.mxu0
      %v2560 = vadd.f32 0.0, %v2559
      %v2561 = vpop.f32.mrf.mxu0
      %2562 = vmatprep.mubr.bf16.mxu0 0
      %2563 = vmatmul.mubr.bf16.gmra.mxu0 %v2378
      %v2564 = vpop.f32.mrf.mxu0
      %v2565 = vadd.f32 0.0, %v2564
      %v2566 = vpop.f32.mrf.mxu0
      %v2567 = vpop.f32.mrf.mxu0
      %v2568 = vadd.f32 0.0, %v2567
      %v2569 = vpop.f32.mrf.mxu0
      %2570 = vmatprep.mubr.bf16.mxu0 0
      %2571 = vmatmul.mubr.bf16.gmra.mxu0 %v2381
      %v2572 = vpop.f32.mrf.mxu0
      %v2573 = vadd.f32 0.0, %v2572
      %v2574 = vpop.f32.mrf.mxu0
      %v2575 = vpop.f32.mrf.mxu0
      %v2576 = vadd.f32 0.0, %v2575
      %v2577 = vpop.f32.mrf.mxu0
      %2578 = vmatprep.mubr.bf16.mxu0 0
      %2579 = vmatmul.mubr.bf16.gmra.mxu0 %v2384
      %v2580 = vpop.f32.mrf.mxu0
      %v2581 = vadd.f32 0.0, %v2580
      %v2582 = vpop.f32.mrf.mxu0
      %v2583 = vpop.f32.mrf.mxu0
      %v2584 = vadd.f32 0.0, %v2583
      %v2585 = vpop.f32.mrf.mxu0
      %2586 = vdwg.mxu0
      %v2587 = vadd.f32 %v2171, %v2421
      %v2588 = vadd.f32 %v2172, %v2424
      %v2589 = vadd.f32 %v2173, %v2429
      %v2590 = vadd.f32 %v2174, %v2432
      %v2591 = vadd.f32 %v2175, %v2437
      %v2592 = vadd.f32 %v2176, %v2440
      %v2593 = vadd.f32 %v2177, %v2445
      %v2594 = vadd.f32 %v2178, %v2448
      %v2595 = vadd.f32 %v2179, %v2453
      %v2596 = vadd.f32 %v2180, %v2456
      %v2597 = vadd.f32 %v2181, %v2461
      %v2598 = vadd.f32 %v2182, %v2464
      %v2599 = vadd.f32 %v2183, %v2469
      %v2600 = vadd.f32 %v2184, %v2472
      %v2601 = vadd.f32 %v2185, %v2477
      %v2602 = vadd.f32 %v2186, %v2480
      %v2603 = vadd.f32 %v2187, %v2485
      %v2604 = vadd.f32 %v2188, %v2488
      %v2605 = vadd.f32 %v2189, %v2493
      %v2606 = vadd.f32 %v2190, %v2496
      %v2607 = vadd.f32 %v2191, %v2501
      %v2608 = vadd.f32 %v2192, %v2504
      %v2609 = vadd.f32 %v2193, %v2509
      %v2610 = vadd.f32 %v2194, %v2512
      %v2611 = vadd.f32 %v2195, %v2517
      %v2612 = vadd.f32 %v2196, %v2520
      %v2613 = vadd.f32 %v2197, %v2525
      %v2614 = vadd.f32 %v2198, %v2528
      %v2615 = vadd.f32 %v2199, %v2533
      %v2616 = vadd.f32 %v2200, %v2536
      %v2617 = vadd.f32 %v2201, %v2541
      %v2618 = vadd.f32 %v2202, %v2544
      %v2619 = vadd.f32 %v2203, %v2549
      %v2620 = vadd.f32 %v2204, %v2552
      %v2621 = vadd.f32 %v2205, %v2557
      %v2622 = vadd.f32 %v2206, %v2560
      %v2623 = vadd.f32 %v2207, %v2565
      %v2624 = vadd.f32 %v2208, %v2568
      %v2625 = vadd.f32 %v2209, %v2573
      %v2626 = vadd.f32 %v2210, %v2576
      %v2627 = vadd.f32 %v2211, %v2581
      %v2628 = vadd.f32 %v2212, %v2584
      %v2629 = vld [vmem:[#allocation2 + $0xc] sm:$0x8]
      %v2630 = vld [vmem:[#allocation2 + $0x10] sm:$0xf]
      %v2631 = vld [vmem:[#allocation2 + $0x14] sm:$0xf]
      %v2632 = vld [vmem:[#allocation2 + $0x18] sm:$0xf]
      %v2633 = vld [vmem:[#allocation2 + $0x1c] sm:$0xf]
      %v2634 = vld [vmem:[#allocation2 + $0x20] sm:$0xf]
      %v2635 = vld [vmem:[#allocation2 + $0x24] sm:$0xf]
      %v2636 = vld [vmem:[#allocation2 + $0x28] sm:$0xf]
      %v2637 = vld [vmem:[#allocation2 + $0x2c] sm:$0xf]
      %v2638 = vld [vmem:[#allocation2 + $0x30] sm:$0xf]
      %v2639 = vld [vmem:[#allocation2 + $0x34] sm:$0xf]
      %v2640 = vld [vmem:[#allocation2 + $0x38] sm:$0xf]
      %v2641 = vld [vmem:[#allocation2 + $0x3c] sm:$0xf]
      %v2642 = vld [vmem:[#allocation2 + $0x40] sm:$0xf]
      %v2643 = vld [vmem:[#allocation2 + $0x44] sm:$0xf]
      %v2644 = vld [vmem:[#allocation2 + $0x48] sm:$0xf]
      %v2645 = vld [vmem:[#allocation2 + $0x4c] sm:$0xf]
      %v2646 = vld [vmem:[#allocation2 + $0x50] sm:$0xf]
      %v2647 = vld [vmem:[#allocation2 + $0x54] sm:$0xf]
      %v2648 = vld [vmem:[#allocation2 + $0x58] sm:$0xf]
      %v2649 = vld [vmem:[#allocation2 + $0x5c] sm:$0xf]
      %v2650 = vld [vmem:[#allocation2 + $0x60] sm:$0xf]
      %v2651 = vld [vmem:[#allocation2 + $0x64] sm:$0xf]
      %v2652 = vld [vmem:[#allocation2 + $0x68] sm:$0xf]
      %v2653 = vld [vmem:[#allocation2 + $0x6c] sm:$0xf]
      %v2654 = vld [vmem:[#allocation2 + $0x70] sm:$0xf]
      %v2655 = vld [vmem:[#allocation2 + $0x74] sm:$0xf]
      %v2656 = vld [vmem:[#allocation2 + $0x78] sm:$0xf]
      %v2657 = vld [vmem:[#allocation2 + $0x7c] sm:$0xf]
      %v2658 = vld [vmem:[#allocation2 + $0x80] sm:$0xf]
      %v2659 = vld [vmem:[#allocation2 + $0x84] sm:$0xf]
      %v2660 = vld [vmem:[#allocation2 + $0x88] sm:$0xf]
      %v2661 = vld [vmem:[#allocation2 + $0x8c] sm:$0xf]
      %v2662 = vld [vmem:[#allocation2 + $0x90] sm:$0xf]
      %v2663 = vld [vmem:[#allocation2 + $0x94] sm:$0xf]
      %v2664 = vld [vmem:[#allocation2 + $0x98] sm:$0xf]
      %v2665 = vld [vmem:[#allocation2 + $0x9c] sm:$0xf]
      %v2666 = vld [vmem:[#allocation2 + $0xa0] sm:$0xf]
      %v2667 = vld [vmem:[#allocation2 + $0xa4] sm:$0xf]
      %v2668 = vld [vmem:[#allocation2 + $0xa8] sm:$0xf]
      %v2669 = vld [vmem:[#allocation2 + $0xac] sm:$0xf]
      %v2670 = vld [vmem:[#allocation2 + $0xb0] sm:$0xf]
      %v2671 = vld [vmem:[#allocation2 + $0xb4] sm:$0xf]
      %v2672 = vld [vmem:[%s1 + $0xc0] sm:$0xf]
      %v2673 = vld [vmem:[%s1 + $0xcc] sm:$0xf]
      %v2717 = vunpack.c.l.b16 %v2629
      %v2718 = vunpack.c.l.b16 %v2630
      %v2719 = vunpack.c.l.b16 %v2631
      %v2720 = vunpack.c.l.b16 %v2632
      %v2721 = vunpack.c.l.b16 %v2633
      %v2722 = vunpack.c.l.b16 %v2634
      %v2723 = vunpack.c.l.b16 %v2635
      %v2724 = vunpack.c.l.b16 %v2636
      %v2725 = vunpack.c.l.b16 %v2637
      %v2726 = vunpack.c.l.b16 %v2638
      %v2727 = vunpack.c.l.b16 %v2639
      %v2728 = vunpack.c.l.b16 %v2640
      %v2729 = vunpack.c.l.b16 %v2641
      %v2730 = vunpack.c.l.b16 %v2642
      %v2731 = vunpack.c.l.b16 %v2643
      %v2732 = vunpack.c.l.b16 %v2644
      %v2733 = vunpack.c.l.b16 %v2645
      %v2734 = vunpack.c.l.b16 %v2646
      %v2735 = vunpack.c.l.b16 %v2647
      %v2736 = vunpack.c.l.b16 %v2648
      %v2737 = vunpack.c.l.b16 %v2649
      %v2738 = vunpack.c.l.b16 %v2650
      %v2739 = vunpack.c.l.b16 %v2651
      %v2740 = vunpack.c.l.b16 %v2652
      %v2741 = vunpack.c.l.b16 %v2653
      %v2742 = vunpack.c.l.b16 %v2654
      %v2743 = vunpack.c.l.b16 %v2655
      %v2744 = vunpack.c.l.b16 %v2656
      %v2745 = vunpack.c.l.b16 %v2657
      %v2746 = vunpack.c.l.b16 %v2658
      %v2747 = vunpack.c.l.b16 %v2659
      %v2748 = vunpack.c.l.b16 %v2660
      %v2749 = vunpack.c.l.b16 %v2661
      %v2750 = vunpack.c.l.b16 %v2662
      %v2751 = vunpack.c.l.b16 %v2663
      %v2752 = vunpack.c.l.b16 %v2664
      %v2753 = vunpack.c.l.b16 %v2665
      %v2754 = vunpack.c.l.b16 %v2666
      %v2755 = vunpack.c.l.b16 %v2667
      %v2756 = vunpack.c.l.b16 %v2668
      %v2757 = vunpack.c.l.b16 %v2669
      %v2758 = vunpack.c.l.b16 %v2670
      %v2759 = vunpack.c.l.b16 %v2671
      %v2760 = vpack.c.b16 %v2718, %v2717
      %v2761 = vpack.c.b16 %v2720, %v2719
      %v2762 = vpack.c.b16 %v2722, %v2721
      %v2763 = vpack.c.b16 %v2724, %v2723
      %v2764 = vpack.c.b16 %v2726, %v2725
      %v2765 = vpack.c.b16 %v2728, %v2727
      %v2766 = vpack.c.b16 %v2730, %v2729
      %v2767 = vpack.c.b16 %v2732, %v2731
      %v2768 = vpack.c.b16 %v2734, %v2733
      %v2769 = vpack.c.b16 %v2736, %v2735
      %v2770 = vpack.c.b16 %v2738, %v2737
      %v2771 = vpack.c.b16 %v2740, %v2739
      %v2772 = vpack.c.b16 %v2742, %v2741
      %v2773 = vpack.c.b16 %v2744, %v2743
      %v2774 = vpack.c.b16 %v2746, %v2745
      %v2775 = vpack.c.b16 %v2748, %v2747
      %v2776 = vpack.c.b16 %v2750, %v2749
      %v2777 = vpack.c.b16 %v2752, %v2751
      %v2778 = vpack.c.b16 %v2754, %v2753
      %v2779 = vpack.c.b16 %v2756, %v2755
      %v2780 = vpack.c.b16 %v2758, %v2757
      %v2781 = vpack.c.b16 %v2759, %v2759
      %v2783 = vshrl.u32 %v2760, 16
      %v2785 = vrot.slane %v2783, 3
      %v2786 = vshll.u32 %v2760, 16
      %v2788 = vrot.slane %v2786, 4
      %v2789 = vor.u32 %v2785, %v2788
      %v2791 = vshrl.u32 %v2761, 16
      %v2793 = vrot.slane %v2791, 3
      %v2794 = vshll.u32 %v2761, 16
      %v2796 = vrot.slane %v2794, 4
      %v2797 = vor.u32 %v2793, %v2796
      %v2798 = vsel %vm2219, %v2789, %v2797
      %v2800 = vshrl.u32 %v2762, 16
      %v2802 = vrot.slane %v2800, 3
      %v2803 = vshll.u32 %v2762, 16
      %v2805 = vrot.slane %v2803, 4
      %v2806 = vor.u32 %v2802, %v2805
      %v2807 = vsel %vm2219, %v2797, %v2806
      %v2809 = vshrl.u32 %v2763, 16
      %v2811 = vrot.slane %v2809, 3
      %v2812 = vshll.u32 %v2763, 16
      %v2814 = vrot.slane %v2812, 4
      %v2815 = vor.u32 %v2811, %v2814
      %v2816 = vsel %vm2219, %v2806, %v2815
      %v2818 = vshrl.u32 %v2764, 16
      %v2820 = vrot.slane %v2818, 3
      %v2821 = vshll.u32 %v2764, 16
      %v2823 = vrot.slane %v2821, 4
      %v2824 = vor.u32 %v2820, %v2823
      %v2825 = vsel %vm2219, %v2815, %v2824
      %v2827 = vshrl.u32 %v2765, 16
      %v2829 = vrot.slane %v2827, 3
      %v2830 = vshll.u32 %v2765, 16
      %v2832 = vrot.slane %v2830, 4
      %v2833 = vor.u32 %v2829, %v2832
      %v2834 = vsel %vm2219, %v2824, %v2833
      %v2836 = vshrl.u32 %v2766, 16
      %v2838 = vrot.slane %v2836, 3
      %v2839 = vshll.u32 %v2766, 16
      %v2841 = vrot.slane %v2839, 4
      %v2842 = vor.u32 %v2838, %v2841
      %v2843 = vsel %vm2219, %v2833, %v2842
      %v2845 = vshrl.u32 %v2767, 16
      %v2847 = vrot.slane %v2845, 3
      %v2848 = vshll.u32 %v2767, 16
      %v2850 = vrot.slane %v2848, 4
      %v2851 = vor.u32 %v2847, %v2850
      %v2852 = vsel %vm2219, %v2842, %v2851
      %v2854 = vshrl.u32 %v2768, 16
      %v2856 = vrot.slane %v2854, 3
      %v2857 = vshll.u32 %v2768, 16
      %v2859 = vrot.slane %v2857, 4
      %v2860 = vor.u32 %v2856, %v2859
      %v2861 = vsel %vm2219, %v2851, %v2860
      %v2863 = vshrl.u32 %v2769, 16
      %v2865 = vrot.slane %v2863, 3
      %v2866 = vshll.u32 %v2769, 16
      %v2868 = vrot.slane %v2866, 4
      %v2869 = vor.u32 %v2865, %v2868
      %v2870 = vsel %vm2219, %v2860, %v2869
      %v2872 = vshrl.u32 %v2770, 16
      %v2874 = vrot.slane %v2872, 3
      %v2875 = vshll.u32 %v2770, 16
      %v2877 = vrot.slane %v2875, 4
      %v2878 = vor.u32 %v2874, %v2877
      %v2879 = vsel %vm2219, %v2869, %v2878
      %v2881 = vshrl.u32 %v2771, 16
      %v2883 = vrot.slane %v2881, 3
      %v2884 = vshll.u32 %v2771, 16
      %v2886 = vrot.slane %v2884, 4
      %v2887 = vor.u32 %v2883, %v2886
      %v2888 = vsel %vm2219, %v2878, %v2887
      %v2890 = vshrl.u32 %v2772, 16
      %v2892 = vrot.slane %v2890, 3
      %v2893 = vshll.u32 %v2772, 16
      %v2895 = vrot.slane %v2893, 4
      %v2896 = vor.u32 %v2892, %v2895
      %v2897 = vsel %vm2219, %v2887, %v2896
      %v2899 = vshrl.u32 %v2773, 16
      %v2901 = vrot.slane %v2899, 3
      %v2902 = vshll.u32 %v2773, 16
      %v2904 = vrot.slane %v2902, 4
      %v2905 = vor.u32 %v2901, %v2904
      %v2906 = vsel %vm2219, %v2896, %v2905
      %v2908 = vshrl.u32 %v2774, 16
      %v2910 = vrot.slane %v2908, 3
      %v2911 = vshll.u32 %v2774, 16
      %v2913 = vrot.slane %v2911, 4
      %v2914 = vor.u32 %v2910, %v2913
      %v2915 = vsel %vm2219, %v2905, %v2914
      %v2917 = vshrl.u32 %v2775, 16
      %v2919 = vrot.slane %v2917, 3
      %v2920 = vshll.u32 %v2775, 16
      %v2922 = vrot.slane %v2920, 4
      %v2923 = vor.u32 %v2919, %v2922
      %v2924 = vsel %vm2219, %v2914, %v2923
      %v2926 = vshrl.u32 %v2776, 16
      %v2928 = vrot.slane %v2926, 3
      %v2929 = vshll.u32 %v2776, 16
      %v2931 = vrot.slane %v2929, 4
      %v2932 = vor.u32 %v2928, %v2931
      %v2933 = vsel %vm2219, %v2923, %v2932
      %v2935 = vshrl.u32 %v2777, 16
      %v2937 = vrot.slane %v2935, 3
      %v2938 = vshll.u32 %v2777, 16
      %v2940 = vrot.slane %v2938, 4
      %v2941 = vor.u32 %v2937, %v2940
      %v2942 = vsel %vm2219, %v2932, %v2941
      %v2944 = vshrl.u32 %v2778, 16
      %v2946 = vrot.slane %v2944, 3
      %v2947 = vshll.u32 %v2778, 16
      %v2949 = vrot.slane %v2947, 4
      %v2950 = vor.u32 %v2946, %v2949
      %v2951 = vsel %vm2219, %v2941, %v2950
      %v2953 = vshrl.u32 %v2779, 16
      %v2955 = vrot.slane %v2953, 3
      %v2956 = vshll.u32 %v2779, 16
      %v2958 = vrot.slane %v2956, 4
      %v2959 = vor.u32 %v2955, %v2958
      %v2960 = vsel %vm2219, %v2950, %v2959
      %v2962 = vshrl.u32 %v2780, 16
      %v2964 = vrot.slane %v2962, 3
      %v2965 = vshll.u32 %v2780, 16
      %v2967 = vrot.slane %v2965, 4
      %v2968 = vor.u32 %v2964, %v2967
      %v2969 = vsel %vm2219, %v2959, %v2968
      %v2971 = vshrl.u32 %v2781, 16
      %v2973 = vrot.slane %v2971, 3
      %v2974 = vshll.u32 %v2781, 16
      %v2976 = vrot.slane %v2974, 4
      %v2977 = vor.u32 %v2973, %v2976
      %v2978 = vsel %vm2219, %v2968, %v2977
      %v2981 = vunpack.c.l.b16 %v2672
      %v2982 = vunpack.c.l.b16 %v2673
      %v2983 = vpack.c.b16 %v2982, %v2981
      %v2986 = vsel %vm1544, %v2798, 0
      %v2989 = vsel %vm1544, %v2807, 0
      %v2992 = vsel %vm1544, %v2816, 0
      %v2995 = vsel %vm1544, %v2825, 0
      %v2998 = vsel %vm1544, %v2834, 0
      %v3001 = vsel %vm1544, %v2843, 0
      %v3004 = vsel %vm1544, %v2852, 0
      %v3007 = vsel %vm1544, %v2861, 0
      %v3010 = vsel %vm1544, %v2870, 0
      %v3013 = vsel %vm1544, %v2879, 0
      %v3016 = vsel %vm1544, %v2888, 0
      %v3019 = vsel %vm1544, %v2897, 0
      %v3022 = vsel %vm1544, %v2906, 0
      %v3025 = vsel %vm1544, %v2915, 0
      %v3028 = vsel %vm1544, %v2924, 0
      %v3031 = vsel %vm1544, %v2933, 0
      %v3034 = vsel %vm1544, %v2942, 0
      %v3037 = vsel %vm1544, %v2951, 0
      %v3040 = vsel %vm1544, %v2960, 0
      %v3043 = vsel %vm1544, %v2969, 0
      %v3046 = vsel %vm1544, %v2978, 0
      %3048 = vmatprep.subr.bf16.mxu0 0
      %3049 = vmatpush1.bf16.msra.mxu0 0
      %3050 = vmatprep.subr.bf16.mxu0 0
      %3051 = vmatpush1.bf16.msra.mxu0 0
      %3052 = vmatprep.subr.bf16.mxu0 0
      %3053 = vmatpush1.bf16.msra.mxu0 0
      %3054 = vmatprep.subr.bf16.mxu0 0
      %3055 = vmatpush1.bf16.msra.mxu0 0
      %3056 = vmatprep.subr.bf16.mxu0 0
      %3057 = vmatpush1.bf16.msra.mxu0 0
      %3058 = vmatprep.subr.bf16.mxu0 0
      %3059 = vmatpush1.bf16.msra.mxu0 0
      %3060 = vmatprep.subr.bf16.mxu0 0
      %3061 = vmatpush1.bf16.msra.mxu0 0
      %3062 = vmatprep.subr.bf16.mxu0 0
      %3063 = vmatpush1.bf16.msra.mxu0 %v2983
      %3064 = vmatprep.subr.bf16.mxu0 0
      %3065 = vmatpush2.bf16.msra.mxu0 0
      %3066 = vmatprep.subr.bf16.mxu0 0
      %3067 = vmatpush2.bf16.msra.mxu0 0
      %3068 = vmatprep.subr.bf16.mxu0 0
      %3069 = vmatpush2.bf16.msra.mxu0 0
      %3070 = vmatprep.subr.bf16.mxu0 0
      %3071 = vmatpush2.bf16.msra.mxu0 0
      %3072 = vmatprep.subr.bf16.mxu0 0
      %3073 = vmatpush2.bf16.msra.mxu0 0
      %3074 = vmatprep.subr.bf16.mxu0 0
      %3075 = vmatpush2.bf16.msra.mxu0 0
      %3076 = vmatprep.subr.bf16.mxu0 0
      %3077 = vmatpush2.bf16.msra.mxu0 0
      %3078 = vmatprep.subr.bf16.mxu0 0
      %3079 = vmatpush2.bf16.msra.mxu0 0
      %3080 = vmatprep.mubr.bf16.mxu0 0
      %3081 = vmatmul.mubr.bf16.gmra.mxu0 %v2986
      %v3082 = vpop.f32.mrf.mxu0
      %v3083 = vadd.f32 0.0, %v3082
      %v3084 = vpop.f32.mrf.mxu0
      %v3085 = vpop.f32.mrf.mxu0
      %v3086 = vadd.f32 0.0, %v3085
      %v3087 = vpop.f32.mrf.mxu0
      %3088 = vmatprep.mubr.bf16.mxu0 0
      %3089 = vmatmul.mubr.bf16.gmra.mxu0 %v2989
      %v3090 = vpop.f32.mrf.mxu0
      %v3091 = vadd.f32 0.0, %v3090
      %v3092 = vpop.f32.mrf.mxu0
      %v3093 = vpop.f32.mrf.mxu0
      %v3094 = vadd.f32 0.0, %v3093
      %v3095 = vpop.f32.mrf.mxu0
      %3096 = vmatprep.mubr.bf16.mxu0 0
      %3097 = vmatmul.mubr.bf16.gmra.mxu0 %v2992
      %v3098 = vpop.f32.mrf.mxu0
      %v3099 = vadd.f32 0.0, %v3098
      %v3100 = vpop.f32.mrf.mxu0
      %v3101 = vpop.f32.mrf.mxu0
      %v3102 = vadd.f32 0.0, %v3101
      %v3103 = vpop.f32.mrf.mxu0
      %3104 = vmatprep.mubr.bf16.mxu0 0
      %3105 = vmatmul.mubr.bf16.gmra.mxu0 %v2995
      %v3106 = vpop.f32.mrf.mxu0
      %v3107 = vadd.f32 0.0, %v3106
      %v3108 = vpop.f32.mrf.mxu0
      %v3109 = vpop.f32.mrf.mxu0
      %v3110 = vadd.f32 0.0, %v3109
      %v3111 = vpop.f32.mrf.mxu0
      %3112 = vmatprep.mubr.bf16.mxu0 0
      %3113 = vmatmul.mubr.bf16.gmra.mxu0 %v2998
      %v3114 = vpop.f32.mrf.mxu0
      %v3115 = vadd.f32 0.0, %v3114
      %v3116 = vpop.f32.mrf.mxu0
      %v3117 = vpop.f32.mrf.mxu0
      %v3118 = vadd.f32 0.0, %v3117
      %v3119 = vpop.f32.mrf.mxu0
      %3120 = vmatprep.mubr.bf16.mxu0 0
      %3121 = vmatmul.mubr.bf16.gmra.mxu0 %v3001
      %v3122 = vpop.f32.mrf.mxu0
      %v3123 = vadd.f32 0.0, %v3122
      %v3124 = vpop.f32.mrf.mxu0
      %v3125 = vpop.f32.mrf.mxu0
      %v3126 = vadd.f32 0.0, %v3125
      %v3127 = vpop.f32.mrf.mxu0
      %3128 = vmatprep.mubr.bf16.mxu0 0
      %3129 = vmatmul.mubr.bf16.gmra.mxu0 %v3004
      %v3130 = vpop.f32.mrf.mxu0
      %v3131 = vadd.f32 0.0, %v3130
      %v3132 = vpop.f32.mrf.mxu0
      %v3133 = vpop.f32.mrf.mxu0
      %v3134 = vadd.f32 0.0, %v3133
      %v3135 = vpop.f32.mrf.mxu0
      %3136 = vmatprep.mubr.bf16.mxu0 0
      %3137 = vmatmul.mubr.bf16.gmra.mxu0 %v3007
      %v3138 = vpop.f32.mrf.mxu0
      %v3139 = vadd.f32 0.0, %v3138
      %v3140 = vpop.f32.mrf.mxu0
      %v3141 = vpop.f32.mrf.mxu0
      %v3142 = vadd.f32 0.0, %v3141
      %v3143 = vpop.f32.mrf.mxu0
      %3144 = vmatprep.mubr.bf16.mxu0 0
      %3145 = vmatmul.mubr.bf16.gmra.mxu0 %v3010
      %v3146 = vpop.f32.mrf.mxu0
      %v3147 = vadd.f32 0.0, %v3146
      %v3148 = vpop.f32.mrf.mxu0
      %v3149 = vpop.f32.mrf.mxu0
      %v3150 = vadd.f32 0.0, %v3149
      %v3151 = vpop.f32.mrf.mxu0
      %3152 = vmatprep.mubr.bf16.mxu0 0
      %3153 = vmatmul.mubr.bf16.gmra.mxu0 %v3013
      %v3154 = vpop.f32.mrf.mxu0
      %v3155 = vadd.f32 0.0, %v3154
      %v3156 = vpop.f32.mrf.mxu0
      %v3157 = vpop.f32.mrf.mxu0
      %v3158 = vadd.f32 0.0, %v3157
      %v3159 = vpop.f32.mrf.mxu0
      %3160 = vmatprep.mubr.bf16.mxu0 0
      %3161 = vmatmul.mubr.bf16.gmra.mxu0 %v3016
      %v3162 = vpop.f32.mrf.mxu0
      %v3163 = vadd.f32 0.0, %v3162
      %v3164 = vpop.f32.mrf.mxu0
      %v3165 = vpop.f32.mrf.mxu0
      %v3166 = vadd.f32 0.0, %v3165
      %v3167 = vpop.f32.mrf.mxu0
      %3168 = vmatprep.mubr.bf16.mxu0 0
      %3169 = vmatmul.mubr.bf16.gmra.mxu0 %v3019
      %v3170 = vpop.f32.mrf.mxu0
      %v3171 = vadd.f32 0.0, %v3170
      %v3172 = vpop.f32.mrf.mxu0
      %v3173 = vpop.f32.mrf.mxu0
      %v3174 = vadd.f32 0.0, %v3173
      %v3175 = vpop.f32.mrf.mxu0
      %3176 = vmatprep.mubr.bf16.mxu0 0
      %3177 = vmatmul.mubr.bf16.gmra.mxu0 %v3022
      %v3178 = vpop.f32.mrf.mxu0
      %v3179 = vadd.f32 0.0, %v3178
      %v3180 = vpop.f32.mrf.mxu0
      %v3181 = vpop.f32.mrf.mxu0
      %v3182 = vadd.f32 0.0, %v3181
      %v3183 = vpop.f32.mrf.mxu0
      %3184 = vmatprep.mubr.bf16.mxu0 0
      %3185 = vmatmul.mubr.bf16.gmra.mxu0 %v3025
      %v3186 = vpop.f32.mrf.mxu0
      %v3187 = vadd.f32 0.0, %v3186
      %v3188 = vpop.f32.mrf.mxu0
      %v3189 = vpop.f32.mrf.mxu0
      %v3190 = vadd.f32 0.0, %v3189
      %v3191 = vpop.f32.mrf.mxu0
      %3192 = vmatprep.mubr.bf16.mxu0 0
      %3193 = vmatmul.mubr.bf16.gmra.mxu0 %v3028
      %v3194 = vpop.f32.mrf.mxu0
      %v3195 = vadd.f32 0.0, %v3194
      %v3196 = vpop.f32.mrf.mxu0
      %v3197 = vpop.f32.mrf.mxu0
      %v3198 = vadd.f32 0.0, %v3197
      %v3199 = vpop.f32.mrf.mxu0
      %3200 = vmatprep.mubr.bf16.mxu0 0
      %3201 = vmatmul.mubr.bf16.gmra.mxu0 %v3031
      %v3202 = vpop.f32.mrf.mxu0
      %v3203 = vadd.f32 0.0, %v3202
      %v3204 = vpop.f32.mrf.mxu0
      %v3205 = vpop.f32.mrf.mxu0
      %v3206 = vadd.f32 0.0, %v3205
      %v3207 = vpop.f32.mrf.mxu0
      %3208 = vmatprep.mubr.bf16.mxu0 0
      %3209 = vmatmul.mubr.bf16.gmra.mxu0 %v3034
      %v3210 = vpop.f32.mrf.mxu0
      %v3211 = vadd.f32 0.0, %v3210
      %v3212 = vpop.f32.mrf.mxu0
      %v3213 = vpop.f32.mrf.mxu0
      %v3214 = vadd.f32 0.0, %v3213
      %v3215 = vpop.f32.mrf.mxu0
      %3216 = vmatprep.mubr.bf16.mxu0 0
      %3217 = vmatmul.mubr.bf16.gmra.mxu0 %v3037
      %v3218 = vpop.f32.mrf.mxu0
      %v3219 = vadd.f32 0.0, %v3218
      %v3220 = vpop.f32.mrf.mxu0
      %v3221 = vpop.f32.mrf.mxu0
      %v3222 = vadd.f32 0.0, %v3221
      %v3223 = vpop.f32.mrf.mxu0
      %3224 = vmatprep.mubr.bf16.mxu0 0
      %3225 = vmatmul.mubr.bf16.gmra.mxu0 %v3040
      %v3226 = vpop.f32.mrf.mxu0
      %v3227 = vadd.f32 0.0, %v3226
      %v3228 = vpop.f32.mrf.mxu0
      %v3229 = vpop.f32.mrf.mxu0
      %v3230 = vadd.f32 0.0, %v3229
      %v3231 = vpop.f32.mrf.mxu0
      %3232 = vmatprep.mubr.bf16.mxu0 0
      %3233 = vmatmul.mubr.bf16.gmra.mxu0 %v3043
      %v3234 = vpop.f32.mrf.mxu0
      %v3235 = vadd.f32 0.0, %v3234
      %v3236 = vpop.f32.mrf.mxu0
      %v3237 = vpop.f32.mrf.mxu0
      %v3238 = vadd.f32 0.0, %v3237
      %v3239 = vpop.f32.mrf.mxu0
      %3240 = vmatprep.mubr.bf16.mxu0 0
      %3241 = vmatmul.mubr.bf16.gmra.mxu0 %v3046
      %v3242 = vpop.f32.mrf.mxu0
      %v3243 = vadd.f32 0.0, %v3242
      %v3244 = vpop.f32.mrf.mxu0
      %v3245 = vpop.f32.mrf.mxu0
      %v3246 = vadd.f32 0.0, %v3245
      %v3247 = vpop.f32.mrf.mxu0
      %3248 = vdwg.mxu0
      %v3249 = vadd.f32 %v2587, %v3083
      %v3250 = vadd.f32 %v2588, %v3086
      %v3251 = vadd.f32 %v2589, %v3091
      %v3252 = vadd.f32 %v2590, %v3094
      %v3253 = vadd.f32 %v2591, %v3099
      %v3254 = vadd.f32 %v2592, %v3102
      %v3255 = vadd.f32 %v2593, %v3107
      %v3256 = vadd.f32 %v2594, %v3110
      %v3257 = vadd.f32 %v2595, %v3115
      %v3258 = vadd.f32 %v2596, %v3118
      %v3259 = vadd.f32 %v2597, %v3123
      %v3260 = vadd.f32 %v2598, %v3126
      %v3261 = vadd.f32 %v2599, %v3131
      %v3262 = vadd.f32 %v2600, %v3134
      %v3263 = vadd.f32 %v2601, %v3139
      %v3264 = vadd.f32 %v2602, %v3142
      %v3265 = vadd.f32 %v2603, %v3147
      %v3266 = vadd.f32 %v2604, %v3150
      %v3267 = vadd.f32 %v2605, %v3155
      %v3268 = vadd.f32 %v2606, %v3158
      %v3269 = vadd.f32 %v2607, %v3163
      %v3270 = vadd.f32 %v2608, %v3166
      %v3271 = vadd.f32 %v2609, %v3171
      %v3272 = vadd.f32 %v2610, %v3174
      %v3273 = vadd.f32 %v2611, %v3179
      %v3274 = vadd.f32 %v2612, %v3182
      %v3275 = vadd.f32 %v2613, %v3187
      %v3276 = vadd.f32 %v2614, %v3190
      %v3277 = vadd.f32 %v2615, %v3195
      %v3278 = vadd.f32 %v2616, %v3198
      %v3279 = vadd.f32 %v2617, %v3203
      %v3280 = vadd.f32 %v2618, %v3206
      %v3281 = vadd.f32 %v2619, %v3211
      %v3282 = vadd.f32 %v2620, %v3214
      %v3283 = vadd.f32 %v2621, %v3219
      %v3284 = vadd.f32 %v2622, %v3222
      %v3285 = vadd.f32 %v2623, %v3227
      %v3286 = vadd.f32 %v2624, %v3230
      %v3287 = vadd.f32 %v2625, %v3235
      %v3288 = vadd.f32 %v2626, %v3238
      %v3289 = vadd.f32 %v2627, %v3243
      %v3290 = vadd.f32 %v2628, %v3246
      %v3291 = vld [vmem:[%s1 + $0xd8] sm:$0xf]
      %v3292 = vld [vmem:[%s1 + $0xe4] sm:$0xf]
      %v3293 = vpack.c.b16 %v2719, %v2718
      %v3294 = vpack.c.b16 %v2721, %v2720
      %v3295 = vpack.c.b16 %v2723, %v2722
      %v3296 = vpack.c.b16 %v2725, %v2724
      %v3297 = vpack.c.b16 %v2727, %v2726
      %v3298 = vpack.c.b16 %v2729, %v2728
      %v3299 = vpack.c.b16 %v2731, %v2730
      %v3300 = vpack.c.b16 %v2733, %v2732
      %v3301 = vpack.c.b16 %v2735, %v2734
      %v3302 = vpack.c.b16 %v2737, %v2736
      %v3303 = vpack.c.b16 %v2739, %v2738
      %v3304 = vpack.c.b16 %v2741, %v2740
      %v3305 = vpack.c.b16 %v2743, %v2742
      %v3306 = vpack.c.b16 %v2745, %v2744
      %v3307 = vpack.c.b16 %v2747, %v2746
      %v3308 = vpack.c.b16 %v2749, %v2748
      %v3309 = vpack.c.b16 %v2751, %v2750
      %v3310 = vpack.c.b16 %v2753, %v2752
      %v3311 = vpack.c.b16 %v2755, %v2754
      %v3312 = vpack.c.b16 %v2757, %v2756
      %v3313 = vpack.c.b16 %v2759, %v2758
      %v3316 = vunpack.c.l.b16 %v3291
      %v3317 = vunpack.c.l.b16 %v3292
      %v3318 = vpack.c.b16 %v3317, %v3316
      %v3321 = vsel %vm1544, %v3293, 0
      %v3324 = vsel %vm1544, %v3294, 0
      %v3327 = vsel %vm1544, %v3295, 0
      %v3330 = vsel %vm1544, %v3296, 0
      %v3333 = vsel %vm1544, %v3297, 0
      %v3336 = vsel %vm1544, %v3298, 0
      %v3339 = vsel %vm1544, %v3299, 0
      %v3342 = vsel %vm1544, %v3300, 0
      %v3345 = vsel %vm1544, %v3301, 0
      %v3348 = vsel %vm1544, %v3302, 0
      %v3351 = vsel %vm1544, %v3303, 0
      %v3354 = vsel %vm1544, %v3304, 0
      %v3357 = vsel %vm1544, %v3305, 0
      %v3360 = vsel %vm1544, %v3306, 0
      %v3363 = vsel %vm1544, %v3307, 0
      %v3366 = vsel %vm1544, %v3308, 0
      %v3369 = vsel %vm1544, %v3309, 0
      %v3372 = vsel %vm1544, %v3310, 0
      %v3375 = vsel %vm1544, %v3311, 0
      %v3378 = vsel %vm1544, %v3312, 0
      %v3381 = vsel %vm1544, %v3313, 0
      %3383 = vmatprep.subr.bf16.mxu0 0
      %3384 = vmatpush1.bf16.msra.mxu0 0
      %3385 = vmatprep.subr.bf16.mxu0 0
      %3386 = vmatpush1.bf16.msra.mxu0 0
      %3387 = vmatprep.subr.bf16.mxu0 0
      %3388 = vmatpush1.bf16.msra.mxu0 0
      %3389 = vmatprep.subr.bf16.mxu0 0
      %3390 = vmatpush1.bf16.msra.mxu0 0
      %3391 = vmatprep.subr.bf16.mxu0 0
      %3392 = vmatpush1.bf16.msra.mxu0 0
      %3393 = vmatprep.subr.bf16.mxu0 0
      %3394 = vmatpush1.bf16.msra.mxu0 0
      %3395 = vmatprep.subr.bf16.mxu0 0
      %3396 = vmatpush1.bf16.msra.mxu0 0
      %3397 = vmatprep.subr.bf16.mxu0 0
      %3398 = vmatpush1.bf16.msra.mxu0 %v3318
      %3399 = vmatprep.subr.bf16.mxu0 0
      %3400 = vmatpush2.bf16.msra.mxu0 0
      %3401 = vmatprep.subr.bf16.mxu0 0
      %3402 = vmatpush2.bf16.msra.mxu0 0
      %3403 = vmatprep.subr.bf16.mxu0 0
      %3404 = vmatpush2.bf16.msra.mxu0 0
      %3405 = vmatprep.subr.bf16.mxu0 0
      %3406 = vmatpush2.bf16.msra.mxu0 0
      %3407 = vmatprep.subr.bf16.mxu0 0
      %3408 = vmatpush2.bf16.msra.mxu0 0
      %3409 = vmatprep.subr.bf16.mxu0 0
      %3410 = vmatpush2.bf16.msra.mxu0 0
      %3411 = vmatprep.subr.bf16.mxu0 0
      %3412 = vmatpush2.bf16.msra.mxu0 0
      %3413 = vmatprep.subr.bf16.mxu0 0
      %3414 = vmatpush2.bf16.msra.mxu0 0
      %3415 = vmatprep.mubr.bf16.mxu0 0
      %3416 = vmatmul.mubr.bf16.gmra.mxu0 %v3321
      %v3417 = vpop.f32.mrf.mxu0
      %v3418 = vadd.f32 0.0, %v3417
      %v3419 = vpop.f32.mrf.mxu0
      %v3420 = vpop.f32.mrf.mxu0
      %v3421 = vadd.f32 0.0, %v3420
      %v3422 = vpop.f32.mrf.mxu0
      %3423 = vmatprep.mubr.bf16.mxu0 0
      %3424 = vmatmul.mubr.bf16.gmra.mxu0 %v3324
      %v3425 = vpop.f32.mrf.mxu0
      %v3426 = vadd.f32 0.0, %v3425
      %v3427 = vpop.f32.mrf.mxu0
      %v3428 = vpop.f32.mrf.mxu0
      %v3429 = vadd.f32 0.0, %v3428
      %v3430 = vpop.f32.mrf.mxu0
      %3431 = vmatprep.mubr.bf16.mxu0 0
      %3432 = vmatmul.mubr.bf16.gmra.mxu0 %v3327
      %v3433 = vpop.f32.mrf.mxu0
      %v3434 = vadd.f32 0.0, %v3433
      %v3435 = vpop.f32.mrf.mxu0
      %v3436 = vpop.f32.mrf.mxu0
      %v3437 = vadd.f32 0.0, %v3436
      %v3438 = vpop.f32.mrf.mxu0
      %3439 = vmatprep.mubr.bf16.mxu0 0
      %3440 = vmatmul.mubr.bf16.gmra.mxu0 %v3330
      %v3441 = vpop.f32.mrf.mxu0
      %v3442 = vadd.f32 0.0, %v3441
      %v3443 = vpop.f32.mrf.mxu0
      %v3444 = vpop.f32.mrf.mxu0
      %v3445 = vadd.f32 0.0, %v3444
      %v3446 = vpop.f32.mrf.mxu0
      %3447 = vmatprep.mubr.bf16.mxu0 0
      %3448 = vmatmul.mubr.bf16.gmra.mxu0 %v3333
      %v3449 = vpop.f32.mrf.mxu0
      %v3450 = vadd.f32 0.0, %v3449
      %v3451 = vpop.f32.mrf.mxu0
      %v3452 = vpop.f32.mrf.mxu0
      %v3453 = vadd.f32 0.0, %v3452
      %v3454 = vpop.f32.mrf.mxu0
      %3455 = vmatprep.mubr.bf16.mxu0 0
      %3456 = vmatmul.mubr.bf16.gmra.mxu0 %v3336
      %v3457 = vpop.f32.mrf.mxu0
      %v3458 = vadd.f32 0.0, %v3457
      %v3459 = vpop.f32.mrf.mxu0
      %v3460 = vpop.f32.mrf.mxu0
      %v3461 = vadd.f32 0.0, %v3460
      %v3462 = vpop.f32.mrf.mxu0
      %3463 = vmatprep.mubr.bf16.mxu0 0
      %3464 = vmatmul.mubr.bf16.gmra.mxu0 %v3339
      %v3465 = vpop.f32.mrf.mxu0
      %v3466 = vadd.f32 0.0, %v3465
      %v3467 = vpop.f32.mrf.mxu0
      %v3468 = vpop.f32.mrf.mxu0
      %v3469 = vadd.f32 0.0, %v3468
      %v3470 = vpop.f32.mrf.mxu0
      %3471 = vmatprep.mubr.bf16.mxu0 0
      %3472 = vmatmul.mubr.bf16.gmra.mxu0 %v3342
      %v3473 = vpop.f32.mrf.mxu0
      %v3474 = vadd.f32 0.0, %v3473
      %v3475 = vpop.f32.mrf.mxu0
      %v3476 = vpop.f32.mrf.mxu0
      %v3477 = vadd.f32 0.0, %v3476
      %v3478 = vpop.f32.mrf.mxu0
      %3479 = vmatprep.mubr.bf16.mxu0 0
      %3480 = vmatmul.mubr.bf16.gmra.mxu0 %v3345
      %v3481 = vpop.f32.mrf.mxu0
      %v3482 = vadd.f32 0.0, %v3481
      %v3483 = vpop.f32.mrf.mxu0
      %v3484 = vpop.f32.mrf.mxu0
      %v3485 = vadd.f32 0.0, %v3484
      %v3486 = vpop.f32.mrf.mxu0
      %3487 = vmatprep.mubr.bf16.mxu0 0
      %3488 = vmatmul.mubr.bf16.gmra.mxu0 %v3348
      %v3489 = vpop.f32.mrf.mxu0
      %v3490 = vadd.f32 0.0, %v3489
      %v3491 = vpop.f32.mrf.mxu0
      %v3492 = vpop.f32.mrf.mxu0
      %v3493 = vadd.f32 0.0, %v3492
      %v3494 = vpop.f32.mrf.mxu0
      %3495 = vmatprep.mubr.bf16.mxu0 0
      %3496 = vmatmul.mubr.bf16.gmra.mxu0 %v3351
      %v3497 = vpop.f32.mrf.mxu0
      %v3498 = vadd.f32 0.0, %v3497
      %v3499 = vpop.f32.mrf.mxu0
      %v3500 = vpop.f32.mrf.mxu0
      %v3501 = vadd.f32 0.0, %v3500
      %v3502 = vpop.f32.mrf.mxu0
      %3503 = vmatprep.mubr.bf16.mxu0 0
      %3504 = vmatmul.mubr.bf16.gmra.mxu0 %v3354
      %v3505 = vpop.f32.mrf.mxu0
      %v3506 = vadd.f32 0.0, %v3505
      %v3507 = vpop.f32.mrf.mxu0
      %v3508 = vpop.f32.mrf.mxu0
      %v3509 = vadd.f32 0.0, %v3508
      %v3510 = vpop.f32.mrf.mxu0
      %3511 = vmatprep.mubr.bf16.mxu0 0
      %3512 = vmatmul.mubr.bf16.gmra.mxu0 %v3357
      %v3513 = vpop.f32.mrf.mxu0
      %v3514 = vadd.f32 0.0, %v3513
      %v3515 = vpop.f32.mrf.mxu0
      %v3516 = vpop.f32.mrf.mxu0
      %v3517 = vadd.f32 0.0, %v3516
      %v3518 = vpop.f32.mrf.mxu0
      %3519 = vmatprep.mubr.bf16.mxu0 0
      %3520 = vmatmul.mubr.bf16.gmra.mxu0 %v3360
      %v3521 = vpop.f32.mrf.mxu0
      %v3522 = vadd.f32 0.0, %v3521
      %v3523 = vpop.f32.mrf.mxu0
      %v3524 = vpop.f32.mrf.mxu0
      %v3525 = vadd.f32 0.0, %v3524
      %v3526 = vpop.f32.mrf.mxu0
      %3527 = vmatprep.mubr.bf16.mxu0 0
      %3528 = vmatmul.mubr.bf16.gmra.mxu0 %v3363
      %v3529 = vpop.f32.mrf.mxu0
      %v3530 = vadd.f32 0.0, %v3529
      %v3531 = vpop.f32.mrf.mxu0
      %v3532 = vpop.f32.mrf.mxu0
      %v3533 = vadd.f32 0.0, %v3532
      %v3534 = vpop.f32.mrf.mxu0
      %3535 = vmatprep.mubr.bf16.mxu0 0
      %3536 = vmatmul.mubr.bf16.gmra.mxu0 %v3366
      %v3537 = vpop.f32.mrf.mxu0
      %v3538 = vadd.f32 0.0, %v3537
      %v3539 = vpop.f32.mrf.mxu0
      %v3540 = vpop.f32.mrf.mxu0
      %v3541 = vadd.f32 0.0, %v3540
      %v3542 = vpop.f32.mrf.mxu0
      %3543 = vmatprep.mubr.bf16.mxu0 0
      %3544 = vmatmul.mubr.bf16.gmra.mxu0 %v3369
      %v3545 = vpop.f32.mrf.mxu0
      %v3546 = vadd.f32 0.0, %v3545
      %v3547 = vpop.f32.mrf.mxu0
      %v3548 = vpop.f32.mrf.mxu0
      %v3549 = vadd.f32 0.0, %v3548
      %v3550 = vpop.f32.mrf.mxu0
      %3551 = vmatprep.mubr.bf16.mxu0 0
      %3552 = vmatmul.mubr.bf16.gmra.mxu0 %v3372
      %v3553 = vpop.f32.mrf.mxu0
      %v3554 = vadd.f32 0.0, %v3553
      %v3555 = vpop.f32.mrf.mxu0
      %v3556 = vpop.f32.mrf.mxu0
      %v3557 = vadd.f32 0.0, %v3556
      %v3558 = vpop.f32.mrf.mxu0
      %3559 = vmatprep.mubr.bf16.mxu0 0
      %3560 = vmatmul.mubr.bf16.gmra.mxu0 %v3375
      %v3561 = vpop.f32.mrf.mxu0
      %v3562 = vadd.f32 0.0, %v3561
      %v3563 = vpop.f32.mrf.mxu0
      %v3564 = vpop.f32.mrf.mxu0
      %v3565 = vadd.f32 0.0, %v3564
      %v3566 = vpop.f32.mrf.mxu0
      %3567 = vmatprep.mubr.bf16.mxu0 0
      %3568 = vmatmul.mubr.bf16.gmra.mxu0 %v3378
      %v3569 = vpop.f32.mrf.mxu0
      %v3570 = vadd.f32 0.0, %v3569
      %v3571 = vpop.f32.mrf.mxu0
      %v3572 = vpop.f32.mrf.mxu0
      %v3573 = vadd.f32 0.0, %v3572
      %v3574 = vpop.f32.mrf.mxu0
      %3575 = vmatprep.mubr.bf16.mxu0 0
      %3576 = vmatmul.mubr.bf16.gmra.mxu0 %v3381
      %v3577 = vpop.f32.mrf.mxu0
      %v3578 = vadd.f32 0.0, %v3577
      %v3579 = vpop.f32.mrf.mxu0
      %v3580 = vpop.f32.mrf.mxu0
      %v3581 = vadd.f32 0.0, %v3580
      %v3582 = vpop.f32.mrf.mxu0
      %3583 = vdwg.mxu0
      %v3584 = vadd.f32 %v3249, %v3418
      %v3585 = vadd.f32 %v3250, %v3421
      %v3586 = vadd.f32 %v3251, %v3426
      %v3587 = vadd.f32 %v3252, %v3429
      %v3588 = vadd.f32 %v3253, %v3434
      %v3589 = vadd.f32 %v3254, %v3437
      %v3590 = vadd.f32 %v3255, %v3442
      %v3591 = vadd.f32 %v3256, %v3445
      %v3592 = vadd.f32 %v3257, %v3450
      %v3593 = vadd.f32 %v3258, %v3453
      %v3594 = vadd.f32 %v3259, %v3458
      %v3595 = vadd.f32 %v3260, %v3461
      %v3596 = vadd.f32 %v3261, %v3466
      %v3597 = vadd.f32 %v3262, %v3469
      %v3598 = vadd.f32 %v3263, %v3474
      %v3599 = vadd.f32 %v3264, %v3477
      %v3600 = vadd.f32 %v3265, %v3482
      %v3601 = vadd.f32 %v3266, %v3485
      %v3602 = vadd.f32 %v3267, %v3490
      %v3603 = vadd.f32 %v3268, %v3493
      %v3604 = vadd.f32 %v3269, %v3498
      %v3605 = vadd.f32 %v3270, %v3501
      %v3606 = vadd.f32 %v3271, %v3506
      %v3607 = vadd.f32 %v3272, %v3509
      %v3608 = vadd.f32 %v3273, %v3514
      %v3609 = vadd.f32 %v3274, %v3517
      %v3610 = vadd.f32 %v3275, %v3522
      %v3611 = vadd.f32 %v3276, %v3525
      %v3612 = vadd.f32 %v3277, %v3530
      %v3613 = vadd.f32 %v3278, %v3533
      %v3614 = vadd.f32 %v3279, %v3538
      %v3615 = vadd.f32 %v3280, %v3541
      %v3616 = vadd.f32 %v3281, %v3546
      %v3617 = vadd.f32 %v3282, %v3549
      %v3618 = vadd.f32 %v3283, %v3554
      %v3619 = vadd.f32 %v3284, %v3557
      %v3620 = vadd.f32 %v3285, %v3562
      %v3621 = vadd.f32 %v3286, %v3565
      %v3622 = vadd.f32 %v3287, %v3570
      %v3623 = vadd.f32 %v3288, %v3573
      %v3624 = vadd.f32 %v3289, %v3578
      %v3625 = vadd.f32 %v3290, %v3581
      %v3626 = vld [vmem:[#allocation2 + $0x10] sm:$0xf]
      %v3627 = vld [vmem:[#allocation2 + $0x14] sm:$0xf]
      %v3628 = vld [vmem:[#allocation2 + $0x18] sm:$0xf]
      %v3629 = vld [vmem:[#allocation2 + $0x1c] sm:$0xf]
      %v3630 = vld [vmem:[#allocation2 + $0x20] sm:$0xf]
      %v3631 = vld [vmem:[#allocation2 + $0x24] sm:$0xf]
      %v3632 = vld [vmem:[#allocation2 + $0x28] sm:$0xf]
      %v3633 = vld [vmem:[#allocation2 + $0x2c] sm:$0xf]
      %v3634 = vld [vmem:[#allocation2 + $0x30] sm:$0xf]
      %v3635 = vld [vmem:[#allocation2 + $0x34] sm:$0xf]
      %v3636 = vld [vmem:[#allocation2 + $0x38] sm:$0xf]
      %v3637 = vld [vmem:[#allocation2 + $0x3c] sm:$0xf]
      %v3638 = vld [vmem:[#allocation2 + $0x40] sm:$0xf]
      %v3639 = vld [vmem:[#allocation2 + $0x44] sm:$0xf]
      %v3640 = vld [vmem:[#allocation2 + $0x48] sm:$0xf]
      %v3641 = vld [vmem:[#allocation2 + $0x4c] sm:$0xf]
      %v3642 = vld [vmem:[#allocation2 + $0x50] sm:$0xf]
      %v3643 = vld [vmem:[#allocation2 + $0x54] sm:$0xf]
      %v3644 = vld [vmem:[#allocation2 + $0x58] sm:$0xf]
      %v3645 = vld [vmem:[#allocation2 + $0x5c] sm:$0xf]
      %v3646 = vld [vmem:[#allocation2 + $0x60] sm:$0xf]
      %v3647 = vld [vmem:[#allocation2 + $0x64] sm:$0xf]
      %v3648 = vld [vmem:[#allocation2 + $0x68] sm:$0xf]
      %v3649 = vld [vmem:[#allocation2 + $0x6c] sm:$0xf]
      %v3650 = vld [vmem:[#allocation2 + $0x70] sm:$0xf]
      %v3651 = vld [vmem:[#allocation2 + $0x74] sm:$0xf]
      %v3652 = vld [vmem:[#allocation2 + $0x78] sm:$0xf]
      %v3653 = vld [vmem:[#allocation2 + $0x7c] sm:$0xf]
      %v3654 = vld [vmem:[#allocation2 + $0x80] sm:$0xf]
      %v3655 = vld [vmem:[#allocation2 + $0x84] sm:$0xf]
      %v3656 = vld [vmem:[#allocation2 + $0x88] sm:$0xf]
      %v3657 = vld [vmem:[#allocation2 + $0x8c] sm:$0xf]
      %v3658 = vld [vmem:[#allocation2 + $0x90] sm:$0xf]
      %v3659 = vld [vmem:[#allocation2 + $0x94] sm:$0xf]
      %v3660 = vld [vmem:[#allocation2 + $0x98] sm:$0xf]
      %v3661 = vld [vmem:[#allocation2 + $0x9c] sm:$0xf]
      %v3662 = vld [vmem:[#allocation2 + $0xa0] sm:$0xf]
      %v3663 = vld [vmem:[#allocation2 + $0xa4] sm:$0xf]
      %v3664 = vld [vmem:[#allocation2 + $0xa8] sm:$0xf]
      %v3665 = vld [vmem:[#allocation2 + $0xac] sm:$0xf]
      %v3666 = vld [vmem:[#allocation2 + $0xb0] sm:$0xf]
      %v3667 = vld [vmem:[#allocation2 + $0xb4] sm:$0xf]
      %v3668 = vld [vmem:[#allocation2 + $0xb8] sm:$0x1]
      %v3669 = vld [vmem:[%s1 + $0xf0] sm:$0xf]
      %v3670 = vld [vmem:[%s1 + $0xfc] sm:$0xf]
      %v3714 = vunpack.c.l.b16 %v3626
      %v3715 = vunpack.c.l.b16 %v3627
      %v3716 = vunpack.c.l.b16 %v3628
      %v3717 = vunpack.c.l.b16 %v3629
      %v3718 = vunpack.c.l.b16 %v3630
      %v3719 = vunpack.c.l.b16 %v3631
      %v3720 = vunpack.c.l.b16 %v3632
      %v3721 = vunpack.c.l.b16 %v3633
      %v3722 = vunpack.c.l.b16 %v3634
      %v3723 = vunpack.c.l.b16 %v3635
      %v3724 = vunpack.c.l.b16 %v3636
      %v3725 = vunpack.c.l.b16 %v3637
      %v3726 = vunpack.c.l.b16 %v3638
      %v3727 = vunpack.c.l.b16 %v3639
      %v3728 = vunpack.c.l.b16 %v3640
      %v3729 = vunpack.c.l.b16 %v3641
      %v3730 = vunpack.c.l.b16 %v3642
      %v3731 = vunpack.c.l.b16 %v3643
      %v3732 = vunpack.c.l.b16 %v3644
      %v3733 = vunpack.c.l.b16 %v3645
      %v3734 = vunpack.c.l.b16 %v3646
      %v3735 = vunpack.c.l.b16 %v3647
      %v3736 = vunpack.c.l.b16 %v3648
      %v3737 = vunpack.c.l.b16 %v3649
      %v3738 = vunpack.c.l.b16 %v3650
      %v3739 = vunpack.c.l.b16 %v3651
      %v3740 = vunpack.c.l.b16 %v3652
      %v3741 = vunpack.c.l.b16 %v3653
      %v3742 = vunpack.c.l.b16 %v3654
      %v3743 = vunpack.c.l.b16 %v3655
      %v3744 = vunpack.c.l.b16 %v3656
      %v3745 = vunpack.c.l.b16 %v3657
      %v3746 = vunpack.c.l.b16 %v3658
      %v3747 = vunpack.c.l.b16 %v3659
      %v3748 = vunpack.c.l.b16 %v3660
      %v3749 = vunpack.c.l.b16 %v3661
      %v3750 = vunpack.c.l.b16 %v3662
      %v3751 = vunpack.c.l.b16 %v3663
      %v3752 = vunpack.c.l.b16 %v3664
      %v3753 = vunpack.c.l.b16 %v3665
      %v3754 = vunpack.c.l.b16 %v3666
      %v3755 = vunpack.c.l.b16 %v3667
      %v3756 = vunpack.c.l.b16 %v3668
      %v3757 = vpack.c.b16 %v3715, %v3714
      %v3758 = vpack.c.b16 %v3717, %v3716
      %v3759 = vpack.c.b16 %v3719, %v3718
      %v3760 = vpack.c.b16 %v3721, %v3720
      %v3761 = vpack.c.b16 %v3723, %v3722
      %v3762 = vpack.c.b16 %v3725, %v3724
      %v3763 = vpack.c.b16 %v3727, %v3726
      %v3764 = vpack.c.b16 %v3729, %v3728
      %v3765 = vpack.c.b16 %v3731, %v3730
      %v3766 = vpack.c.b16 %v3733, %v3732
      %v3767 = vpack.c.b16 %v3735, %v3734
      %v3768 = vpack.c.b16 %v3737, %v3736
      %v3769 = vpack.c.b16 %v3739, %v3738
      %v3770 = vpack.c.b16 %v3741, %v3740
      %v3771 = vpack.c.b16 %v3743, %v3742
      %v3772 = vpack.c.b16 %v3745, %v3744
      %v3773 = vpack.c.b16 %v3747, %v3746
      %v3774 = vpack.c.b16 %v3749, %v3748
      %v3775 = vpack.c.b16 %v3751, %v3750
      %v3776 = vpack.c.b16 %v3753, %v3752
      %v3777 = vpack.c.b16 %v3755, %v3754
      %v3778 = vpack.c.b16 %v3756, %v3756
      %vm3779 = vsmask.f32 7424
      %v3781 = vshrl.u32 %v3757, 16
      %v3783 = vshll.u32 %v3757, 16
      %v3785 = vrot.slane %v3783, 1
      %v3786 = vor.u32 %v3781, %v3785
      %v3788 = vshll.u32 %v3758, 16
      %v3790 = vrot.slane %v3788, 1
      %v3791 = vsel %vm3779, %v3786, %v3790
      %v3792 = vshrl.u32 %v3758, 16
      %v3794 = vor.u32 %v3792, %v3790
      %v3796 = vshll.u32 %v3759, 16
      %v3798 = vrot.slane %v3796, 1
      %v3799 = vsel %vm3779, %v3794, %v3798
      %v3800 = vshrl.u32 %v3759, 16
      %v3802 = vor.u32 %v3800, %v3798
      %v3804 = vshll.u32 %v3760, 16
      %v3806 = vrot.slane %v3804, 1
      %v3807 = vsel %vm3779, %v3802, %v3806
      %v3808 = vshrl.u32 %v3760, 16
      %v3810 = vor.u32 %v3808, %v3806
      %v3812 = vshll.u32 %v3761, 16
      %v3814 = vrot.slane %v3812, 1
      %v3815 = vsel %vm3779, %v3810, %v3814
      %v3816 = vshrl.u32 %v3761, 16
      %v3818 = vor.u32 %v3816, %v3814
      %v3820 = vshll.u32 %v3762, 16
      %v3822 = vrot.slane %v3820, 1
      %v3823 = vsel %vm3779, %v3818, %v3822
      %v3824 = vshrl.u32 %v3762, 16
      %v3826 = vor.u32 %v3824, %v3822
      %v3828 = vshll.u32 %v3763, 16
      %v3830 = vrot.slane %v3828, 1
      %v3831 = vsel %vm3779, %v3826, %v3830
      %v3832 = vshrl.u32 %v3763, 16
      %v3834 = vor.u32 %v3832, %v3830
      %v3836 = vshll.u32 %v3764, 16
      %v3838 = vrot.slane %v3836, 1
      %v3839 = vsel %vm3779, %v3834, %v3838
      %v3840 = vshrl.u32 %v3764, 16
      %v3842 = vor.u32 %v3840, %v3838
      %v3844 = vshll.u32 %v3765, 16
      %v3846 = vrot.slane %v3844, 1
      %v3847 = vsel %vm3779, %v3842, %v3846
      %v3848 = vshrl.u32 %v3765, 16
      %v3850 = vor.u32 %v3848, %v3846
      %v3852 = vshll.u32 %v3766, 16
      %v3854 = vrot.slane %v3852, 1
      %v3855 = vsel %vm3779, %v3850, %v3854
      %v3856 = vshrl.u32 %v3766, 16
      %v3858 = vor.u32 %v3856, %v3854
      %v3860 = vshll.u32 %v3767, 16
      %v3862 = vrot.slane %v3860, 1
      %v3863 = vsel %vm3779, %v3858, %v3862
      %v3864 = vshrl.u32 %v3767, 16
      %v3866 = vor.u32 %v3864, %v3862
      %v3868 = vshll.u32 %v3768, 16
      %v3870 = vrot.slane %v3868, 1
      %v3871 = vsel %vm3779, %v3866, %v3870
      %v3872 = vshrl.u32 %v3768, 16
      %v3874 = vor.u32 %v3872, %v3870
      %v3876 = vshll.u32 %v3769, 16
      %v3878 = vrot.slane %v3876, 1
      %v3879 = vsel %vm3779, %v3874, %v3878
      %v3880 = vshrl.u32 %v3769, 16
      %v3882 = vor.u32 %v3880, %v3878
      %v3884 = vshll.u32 %v3770, 16
      %v3886 = vrot.slane %v3884, 1
      %v3887 = vsel %vm3779, %v3882, %v3886
      %v3888 = vshrl.u32 %v3770, 16
      %v3890 = vor.u32 %v3888, %v3886
      %v3892 = vshll.u32 %v3771, 16
      %v3894 = vrot.slane %v3892, 1
      %v3895 = vsel %vm3779, %v3890, %v3894
      %v3896 = vshrl.u32 %v3771, 16
      %v3898 = vor.u32 %v3896, %v3894
      %v3900 = vshll.u32 %v3772, 16
      %v3902 = vrot.slane %v3900, 1
      %v3903 = vsel %vm3779, %v3898, %v3902
      %v3904 = vshrl.u32 %v3772, 16
      %v3906 = vor.u32 %v3904, %v3902
      %v3908 = vshll.u32 %v3773, 16
      %v3910 = vrot.slane %v3908, 1
      %v3911 = vsel %vm3779, %v3906, %v3910
      %v3912 = vshrl.u32 %v3773, 16
      %v3914 = vor.u32 %v3912, %v3910
      %v3916 = vshll.u32 %v3774, 16
      %v3918 = vrot.slane %v3916, 1
      %v3919 = vsel %vm3779, %v3914, %v3918
      %v3920 = vshrl.u32 %v3774, 16
      %v3922 = vor.u32 %v3920, %v3918
      %v3924 = vshll.u32 %v3775, 16
      %v3926 = vrot.slane %v3924, 1
      %v3927 = vsel %vm3779, %v3922, %v3926
      %v3928 = vshrl.u32 %v3775, 16
      %v3930 = vor.u32 %v3928, %v3926
      %v3932 = vshll.u32 %v3776, 16
      %v3934 = vrot.slane %v3932, 1
      %v3935 = vsel %vm3779, %v3930, %v3934
      %v3936 = vshrl.u32 %v3776, 16
      %v3938 = vor.u32 %v3936, %v3934
      %v3940 = vshll.u32 %v3777, 16
      %v3942 = vrot.slane %v3940, 1
      %v3943 = vsel %vm3779, %v3938, %v3942
      %v3944 = vshrl.u32 %v3777, 16
      %v3946 = vor.u32 %v3944, %v3942
      %v3948 = vshll.u32 %v3778, 16
      %v3950 = vrot.slane %v3948, 1
      %v3951 = vsel %vm3779, %v3946, %v3950
      %v3954 = vunpack.c.l.b16 %v3669
      %v3955 = vunpack.c.l.b16 %v3670
      %v3956 = vpack.c.b16 %v3955, %v3954
      %v3959 = vsel %vm1544, %v3791, 0
      %v3962 = vsel %vm1544, %v3799, 0
      %v3965 = vsel %vm1544, %v3807, 0
      %v3968 = vsel %vm1544, %v3815, 0
      %v3971 = vsel %vm1544, %v3823, 0
      %v3974 = vsel %vm1544, %v3831, 0
      %v3977 = vsel %vm1544, %v3839, 0
      %v3980 = vsel %vm1544, %v3847, 0
      %v3983 = vsel %vm1544, %v3855, 0
      %v3986 = vsel %vm1544, %v3863, 0
      %v3989 = vsel %vm1544, %v3871, 0
      %v3992 = vsel %vm1544, %v3879, 0
      %v3995 = vsel %vm1544, %v3887, 0
      %v3998 = vsel %vm1544, %v3895, 0
      %v4001 = vsel %vm1544, %v3903, 0
      %v4004 = vsel %vm1544, %v3911, 0
      %v4007 = vsel %vm1544, %v3919, 0
      %v4010 = vsel %vm1544, %v3927, 0
      %v4013 = vsel %vm1544, %v3935, 0
      %v4016 = vsel %vm1544, %v3943, 0
      %v4019 = vsel %vm1544, %v3951, 0
      %4021 = vmatprep.subr.bf16.mxu0 0
      %4022 = vmatpush1.bf16.msra.mxu0 0
      %4023 = vmatprep.subr.bf16.mxu0 0
      %4024 = vmatpush1.bf16.msra.mxu0 0
      %4025 = vmatprep.subr.bf16.mxu0 0
      %4026 = vmatpush1.bf16.msra.mxu0 0
      %4027 = vmatprep.subr.bf16.mxu0 0
      %4028 = vmatpush1.bf16.msra.mxu0 0
      %4029 = vmatprep.subr.bf16.mxu0 0
      %4030 = vmatpush1.bf16.msra.mxu0 0
      %4031 = vmatprep.subr.bf16.mxu0 0
      %4032 = vmatpush1.bf16.msra.mxu0 0
      %4033 = vmatprep.subr.bf16.mxu0 0
      %4034 = vmatpush1.bf16.msra.mxu0 0
      %4035 = vmatprep.subr.bf16.mxu0 0
      %4036 = vmatpush1.bf16.msra.mxu0 %v3956
      %4037 = vmatprep.subr.bf16.mxu0 0
      %4038 = vmatpush2.bf16.msra.mxu0 0
      %4039 = vmatprep.subr.bf16.mxu0 0
      %4040 = vmatpush2.bf16.msra.mxu0 0
      %4041 = vmatprep.subr.bf16.mxu0 0
      %4042 = vmatpush2.bf16.msra.mxu0 0
      %4043 = vmatprep.subr.bf16.mxu0 0
      %4044 = vmatpush2.bf16.msra.mxu0 0
      %4045 = vmatprep.subr.bf16.mxu0 0
      %4046 = vmatpush2.bf16.msra.mxu0 0
      %4047 = vmatprep.subr.bf16.mxu0 0
      %4048 = vmatpush2.bf16.msra.mxu0 0
      %4049 = vmatprep.subr.bf16.mxu0 0
      %4050 = vmatpush2.bf16.msra.mxu0 0
      %4051 = vmatprep.subr.bf16.mxu0 0
      %4052 = vmatpush2.bf16.msra.mxu0 0
      %4053 = vmatprep.mubr.bf16.mxu0 0
      %4054 = vmatmul.mubr.bf16.gmra.mxu0 %v3959
      %v4055 = vpop.f32.mrf.mxu0
      %v4056 = vadd.f32 0.0, %v4055
      %v4057 = vpop.f32.mrf.mxu0
      %v4058 = vpop.f32.mrf.mxu0
      %v4059 = vadd.f32 0.0, %v4058
      %v4060 = vpop.f32.mrf.mxu0
      %4061 = vmatprep.mubr.bf16.mxu0 0
      %4062 = vmatmul.mubr.bf16.gmra.mxu0 %v3962
      %v4063 = vpop.f32.mrf.mxu0
      %v4064 = vadd.f32 0.0, %v4063
      %v4065 = vpop.f32.mrf.mxu0
      %v4066 = vpop.f32.mrf.mxu0
      %v4067 = vadd.f32 0.0, %v4066
      %v4068 = vpop.f32.mrf.mxu0
      %4069 = vmatprep.mubr.bf16.mxu0 0
      %4070 = vmatmul.mubr.bf16.gmra.mxu0 %v3965
      %v4071 = vpop.f32.mrf.mxu0
      %v4072 = vadd.f32 0.0, %v4071
      %v4073 = vpop.f32.mrf.mxu0
      %v4074 = vpop.f32.mrf.mxu0
      %v4075 = vadd.f32 0.0, %v4074
      %v4076 = vpop.f32.mrf.mxu0
      %4077 = vmatprep.mubr.bf16.mxu0 0
      %4078 = vmatmul.mubr.bf16.gmra.mxu0 %v3968
      %v4079 = vpop.f32.mrf.mxu0
      %v4080 = vadd.f32 0.0, %v4079
      %v4081 = vpop.f32.mrf.mxu0
      %v4082 = vpop.f32.mrf.mxu0
      %v4083 = vadd.f32 0.0, %v4082
      %v4084 = vpop.f32.mrf.mxu0
      %4085 = vmatprep.mubr.bf16.mxu0 0
      %4086 = vmatmul.mubr.bf16.gmra.mxu0 %v3971
      %v4087 = vpop.f32.mrf.mxu0
      %v4088 = vadd.f32 0.0, %v4087
      %v4089 = vpop.f32.mrf.mxu0
      %v4090 = vpop.f32.mrf.mxu0
      %v4091 = vadd.f32 0.0, %v4090
      %v4092 = vpop.f32.mrf.mxu0
      %4093 = vmatprep.mubr.bf16.mxu0 0
      %4094 = vmatmul.mubr.bf16.gmra.mxu0 %v3974
      %v4095 = vpop.f32.mrf.mxu0
      %v4096 = vadd.f32 0.0, %v4095
      %v4097 = vpop.f32.mrf.mxu0
      %v4098 = vpop.f32.mrf.mxu0
      %v4099 = vadd.f32 0.0, %v4098
      %v4100 = vpop.f32.mrf.mxu0
      %4101 = vmatprep.mubr.bf16.mxu0 0
      %4102 = vmatmul.mubr.bf16.gmra.mxu0 %v3977
      %v4103 = vpop.f32.mrf.mxu0
      %v4104 = vadd.f32 0.0, %v4103
      %v4105 = vpop.f32.mrf.mxu0
      %v4106 = vpop.f32.mrf.mxu0
      %v4107 = vadd.f32 0.0, %v4106
      %v4108 = vpop.f32.mrf.mxu0
      %4109 = vmatprep.mubr.bf16.mxu0 0
      %4110 = vmatmul.mubr.bf16.gmra.mxu0 %v3980
      %v4111 = vpop.f32.mrf.mxu0
      %v4112 = vadd.f32 0.0, %v4111
      %v4113 = vpop.f32.mrf.mxu0
      %v4114 = vpop.f32.mrf.mxu0
      %v4115 = vadd.f32 0.0, %v4114
      %v4116 = vpop.f32.mrf.mxu0
      %4117 = vmatprep.mubr.bf16.mxu0 0
      %4118 = vmatmul.mubr.bf16.gmra.mxu0 %v3983
      %v4119 = vpop.f32.mrf.mxu0
      %v4120 = vadd.f32 0.0, %v4119
      %v4121 = vpop.f32.mrf.mxu0
      %v4122 = vpop.f32.mrf.mxu0
      %v4123 = vadd.f32 0.0, %v4122
      %v4124 = vpop.f32.mrf.mxu0
      %4125 = vmatprep.mubr.bf16.mxu0 0
      %4126 = vmatmul.mubr.bf16.gmra.mxu0 %v3986
      %v4127 = vpop.f32.mrf.mxu0
      %v4128 = vadd.f32 0.0, %v4127
      %v4129 = vpop.f32.mrf.mxu0
      %v4130 = vpop.f32.mrf.mxu0
      %v4131 = vadd.f32 0.0, %v4130
      %v4132 = vpop.f32.mrf.mxu0
      %4133 = vmatprep.mubr.bf16.mxu0 0
      %4134 = vmatmul.mubr.bf16.gmra.mxu0 %v3989
      %v4135 = vpop.f32.mrf.mxu0
      %v4136 = vadd.f32 0.0, %v4135
      %v4137 = vpop.f32.mrf.mxu0
      %v4138 = vpop.f32.mrf.mxu0
      %v4139 = vadd.f32 0.0, %v4138
      %v4140 = vpop.f32.mrf.mxu0
      %4141 = vmatprep.mubr.bf16.mxu0 0
      %4142 = vmatmul.mubr.bf16.gmra.mxu0 %v3992
      %v4143 = vpop.f32.mrf.mxu0
      %v4144 = vadd.f32 0.0, %v4143
      %v4145 = vpop.f32.mrf.mxu0
      %v4146 = vpop.f32.mrf.mxu0
      %v4147 = vadd.f32 0.0, %v4146
      %v4148 = vpop.f32.mrf.mxu0
      %4149 = vmatprep.mubr.bf16.mxu0 0
      %4150 = vmatmul.mubr.bf16.gmra.mxu0 %v3995
      %v4151 = vpop.f32.mrf.mxu0
      %v4152 = vadd.f32 0.0, %v4151
      %v4153 = vpop.f32.mrf.mxu0
      %v4154 = vpop.f32.mrf.mxu0
      %v4155 = vadd.f32 0.0, %v4154
      %v4156 = vpop.f32.mrf.mxu0
      %4157 = vmatprep.mubr.bf16.mxu0 0
      %4158 = vmatmul.mubr.bf16.gmra.mxu0 %v3998
      %v4159 = vpop.f32.mrf.mxu0
      %v4160 = vadd.f32 0.0, %v4159
      %v4161 = vpop.f32.mrf.mxu0
      %v4162 = vpop.f32.mrf.mxu0
      %v4163 = vadd.f32 0.0, %v4162
      %v4164 = vpop.f32.mrf.mxu0
      %4165 = vmatprep.mubr.bf16.mxu0 0
      %4166 = vmatmul.mubr.bf16.gmra.mxu0 %v4001
      %v4167 = vpop.f32.mrf.mxu0
      %v4168 = vadd.f32 0.0, %v4167
      %v4169 = vpop.f32.mrf.mxu0
      %v4170 = vpop.f32.mrf.mxu0
      %v4171 = vadd.f32 0.0, %v4170
      %v4172 = vpop.f32.mrf.mxu0
      %4173 = vmatprep.mubr.bf16.mxu0 0
      %4174 = vmatmul.mubr.bf16.gmra.mxu0 %v4004
      %v4175 = vpop.f32.mrf.mxu0
      %v4176 = vadd.f32 0.0, %v4175
      %v4177 = vpop.f32.mrf.mxu0
      %v4178 = vpop.f32.mrf.mxu0
      %v4179 = vadd.f32 0.0, %v4178
      %v4180 = vpop.f32.mrf.mxu0
      %4181 = vmatprep.mubr.bf16.mxu0 0
      %4182 = vmatmul.mubr.bf16.gmra.mxu0 %v4007
      %v4183 = vpop.f32.mrf.mxu0
      %v4184 = vadd.f32 0.0, %v4183
      %v4185 = vpop.f32.mrf.mxu0
      %v4186 = vpop.f32.mrf.mxu0
      %v4187 = vadd.f32 0.0, %v4186
      %v4188 = vpop.f32.mrf.mxu0
      %4189 = vmatprep.mubr.bf16.mxu0 0
      %4190 = vmatmul.mubr.bf16.gmra.mxu0 %v4010
      %v4191 = vpop.f32.mrf.mxu0
      %v4192 = vadd.f32 0.0, %v4191
      %v4193 = vpop.f32.mrf.mxu0
      %v4194 = vpop.f32.mrf.mxu0
      %v4195 = vadd.f32 0.0, %v4194
      %v4196 = vpop.f32.mrf.mxu0
      %4197 = vmatprep.mubr.bf16.mxu0 0
      %4198 = vmatmul.mubr.bf16.gmra.mxu0 %v4013
      %v4199 = vpop.f32.mrf.mxu0
      %v4200 = vadd.f32 0.0, %v4199
      %v4201 = vpop.f32.mrf.mxu0
      %v4202 = vpop.f32.mrf.mxu0
      %v4203 = vadd.f32 0.0, %v4202
      %v4204 = vpop.f32.mrf.mxu0
      %4205 = vmatprep.mubr.bf16.mxu0 0
      %4206 = vmatmul.mubr.bf16.gmra.mxu0 %v4016
      %v4207 = vpop.f32.mrf.mxu0
      %v4208 = vadd.f32 0.0, %v4207
      %v4209 = vpop.f32.mrf.mxu0
      %v4210 = vpop.f32.mrf.mxu0
      %v4211 = vadd.f32 0.0, %v4210
      %v4212 = vpop.f32.mrf.mxu0
      %4213 = vmatprep.mubr.bf16.mxu0 0
      %4214 = vmatmul.mubr.bf16.gmra.mxu0 %v4019
      %v4215 = vpop.f32.mrf.mxu0
      %v4216 = vadd.f32 0.0, %v4215
      %v4217 = vpop.f32.mrf.mxu0
      %v4218 = vpop.f32.mrf.mxu0
      %v4219 = vadd.f32 0.0, %v4218
      %v4220 = vpop.f32.mrf.mxu0
      %4221 = vdwg.mxu0
      %v4222 = vadd.f32 %v3584, %v4056
      %v4223 = vadd.f32 %v3585, %v4059
      %v4224 = vadd.f32 %v3586, %v4064
      %v4225 = vadd.f32 %v3587, %v4067
      %v4226 = vadd.f32 %v3588, %v4072
      %v4227 = vadd.f32 %v3589, %v4075
      %v4228 = vadd.f32 %v3590, %v4080
      %v4229 = vadd.f32 %v3591, %v4083
      %v4230 = vadd.f32 %v3592, %v4088
      %v4231 = vadd.f32 %v3593, %v4091
      %v4232 = vadd.f32 %v3594, %v4096
      %v4233 = vadd.f32 %v3595, %v4099
      %v4234 = vadd.f32 %v3596, %v4104
      %v4235 = vadd.f32 %v3597, %v4107
      %v4236 = vadd.f32 %v3598, %v4112
      %v4237 = vadd.f32 %v3599, %v4115
      %v4238 = vadd.f32 %v3600, %v4120
      %v4239 = vadd.f32 %v3601, %v4123
      %v4240 = vadd.f32 %v3602, %v4128
      %v4241 = vadd.f32 %v3603, %v4131
      %v4242 = vadd.f32 %v3604, %v4136
      %v4243 = vadd.f32 %v3605, %v4139
      %v4244 = vadd.f32 %v3606, %v4144
      %v4245 = vadd.f32 %v3607, %v4147
      %v4246 = vadd.f32 %v3608, %v4152
      %v4247 = vadd.f32 %v3609, %v4155
      %v4248 = vadd.f32 %v3610, %v4160
      %v4249 = vadd.f32 %v3611, %v4163
      %v4250 = vadd.f32 %v3612, %v4168
      %v4251 = vadd.f32 %v3613, %v4171
      %v4252 = vadd.f32 %v3614, %v4176
      %v4253 = vadd.f32 %v3615, %v4179
      %v4254 = vadd.f32 %v3616, %v4184
      %v4255 = vadd.f32 %v3617, %v4187
      %v4256 = vadd.f32 %v3618, %v4192
      %v4257 = vadd.f32 %v3619, %v4195
      %v4258 = vadd.f32 %v3620, %v4200
      %v4259 = vadd.f32 %v3621, %v4203
      %v4260 = vadd.f32 %v3622, %v4208
      %v4261 = vadd.f32 %v3623, %v4211
      %v4262 = vadd.f32 %v3624, %v4216
      %v4263 = vadd.f32 %v3625, %v4219
      %v4264 = vld [vmem:[#allocation2 + $0x18] sm:$0xf]
      %v4265 = vld [vmem:[#allocation2 + $0x1c] sm:$0xf]
      %v4266 = vld [vmem:[#allocation2 + $0x20] sm:$0xf]
      %v4267 = vld [vmem:[#allocation2 + $0x24] sm:$0xf]
      %v4268 = vld [vmem:[#allocation2 + $0x28] sm:$0xf]
      %v4269 = vld [vmem:[#allocation2 + $0x2c] sm:$0xf]
      %v4270 = vld [vmem:[#allocation2 + $0x30] sm:$0xf]
      %v4271 = vld [vmem:[#allocation2 + $0x34] sm:$0xf]
      %v4272 = vld [vmem:[#allocation2 + $0x38] sm:$0xf]
      %v4273 = vld [vmem:[#allocation2 + $0x3c] sm:$0xf]
      %v4274 = vld [vmem:[#allocation2 + $0x40] sm:$0xf]
      %v4275 = vld [vmem:[#allocation2 + $0x44] sm:$0xf]
      %v4276 = vld [vmem:[#allocation2 + $0x48] sm:$0xf]
      %v4277 = vld [vmem:[#allocation2 + $0x4c] sm:$0xf]
      %v4278 = vld [vmem:[#allocation2 + $0x50] sm:$0xf]
      %v4279 = vld [vmem:[#allocation2 + $0x54] sm:$0xf]
      %v4280 = vld [vmem:[#allocation2 + $0x58] sm:$0xf]
      %v4281 = vld [vmem:[#allocation2 + $0x5c] sm:$0xf]
      %v4282 = vld [vmem:[#allocation2 + $0x60] sm:$0xf]
      %v4283 = vld [vmem:[#allocation2 + $0x64] sm:$0xf]
      %v4284 = vld [vmem:[#allocation2 + $0x68] sm:$0xf]
      %v4285 = vld [vmem:[#allocation2 + $0x6c] sm:$0xf]
      %v4286 = vld [vmem:[#allocation2 + $0x70] sm:$0xf]
      %v4287 = vld [vmem:[#allocation2 + $0x74] sm:$0xf]
      %v4288 = vld [vmem:[#allocation2 + $0x78] sm:$0xf]
      %v4289 = vld [vmem:[#allocation2 + $0x7c] sm:$0xf]
      %v4290 = vld [vmem:[#allocation2 + $0x80] sm:$0xf]
      %v4291 = vld [vmem:[#allocation2 + $0x84] sm:$0xf]
      %v4292 = vld [vmem:[#allocation2 + $0x88] sm:$0xf]
      %v4293 = vld [vmem:[#allocation2 + $0x8c] sm:$0xf]
      %v4294 = vld [vmem:[#allocation2 + $0x90] sm:$0xf]
      %v4295 = vld [vmem:[#allocation2 + $0x94] sm:$0xf]
      %v4296 = vld [vmem:[#allocation2 + $0x98] sm:$0xf]
      %v4297 = vld [vmem:[#allocation2 + $0x9c] sm:$0xf]
      %v4298 = vld [vmem:[#allocation2 + $0xa0] sm:$0xf]
      %v4299 = vld [vmem:[#allocation2 + $0xa4] sm:$0xf]
      %v4300 = vld [vmem:[#allocation2 + $0xa8] sm:$0xf]
      %v4301 = vld [vmem:[#allocation2 + $0xac] sm:$0xf]
      %v4302 = vld [vmem:[#allocation2 + $0xb0] sm:$0xf]
      %v4303 = vld [vmem:[#allocation2 + $0xb4] sm:$0xf]
      %v4304 = vld [vmem:[#allocation2 + $0xb8] sm:$0xf]
      %v4305 = vld [vmem:[#allocation2 + $0xbc] sm:$0xf]
      %v4306 = vld [vmem:[#allocation2 + $0xc0] sm:$0x1]
      %v4307 = vld [vmem:[%s1 + $0x108] sm:$0xf]
      %v4308 = vld [vmem:[%s1 + $0x114] sm:$0xf]
      %v4352 = vunpack.c.l.b16 %v4264
      %v4353 = vunpack.c.l.b16 %v4265
      %v4354 = vunpack.c.l.b16 %v4266
      %v4355 = vunpack.c.l.b16 %v4267
      %v4356 = vunpack.c.l.b16 %v4268
      %v4357 = vunpack.c.l.b16 %v4269
      %v4358 = vunpack.c.l.b16 %v4270
      %v4359 = vunpack.c.l.b16 %v4271
      %v4360 = vunpack.c.l.b16 %v4272
      %v4361 = vunpack.c.l.b16 %v4273
      %v4362 = vunpack.c.l.b16 %v4274
      %v4363 = vunpack.c.l.b16 %v4275
      %v4364 = vunpack.c.l.b16 %v4276
      %v4365 = vunpack.c.l.b16 %v4277
      %v4366 = vunpack.c.l.b16 %v4278
      %v4367 = vunpack.c.l.b16 %v4279
      %v4368 = vunpack.c.l.b16 %v4280
      %v4369 = vunpack.c.l.b16 %v4281
      %v4370 = vunpack.c.l.b16 %v4282
      %v4371 = vunpack.c.l.b16 %v4283
      %v4372 = vunpack.c.l.b16 %v4284
      %v4373 = vunpack.c.l.b16 %v4285
      %v4374 = vunpack.c.l.b16 %v4286
      %v4375 = vunpack.c.l.b16 %v4287
      %v4376 = vunpack.c.l.b16 %v4288
      %v4377 = vunpack.c.l.b16 %v4289
      %v4378 = vunpack.c.l.b16 %v4290
      %v4379 = vunpack.c.l.b16 %v4291
      %v4380 = vunpack.c.l.b16 %v4292
      %v4381 = vunpack.c.l.b16 %v4293
      %v4382 = vunpack.c.l.b16 %v4294
      %v4383 = vunpack.c.l.b16 %v4295
      %v4384 = vunpack.c.l.b16 %v4296
      %v4385 = vunpack.c.l.b16 %v4297
      %v4386 = vunpack.c.l.b16 %v4298
      %v4387 = vunpack.c.l.b16 %v4299
      %v4388 = vunpack.c.l.b16 %v4300
      %v4389 = vunpack.c.l.b16 %v4301
      %v4390 = vunpack.c.l.b16 %v4302
      %v4391 = vunpack.c.l.b16 %v4303
      %v4392 = vunpack.c.l.b16 %v4304
      %v4393 = vunpack.c.l.b16 %v4305
      %v4394 = vunpack.c.l.b16 %v4306
      %v4395 = vpack.c.b16 %v4353, %v4352
      %v4396 = vpack.c.b16 %v4355, %v4354
      %v4397 = vpack.c.b16 %v4357, %v4356
      %v4398 = vpack.c.b16 %v4359, %v4358
      %v4399 = vpack.c.b16 %v4361, %v4360
      %v4400 = vpack.c.b16 %v4363, %v4362
      %v4401 = vpack.c.b16 %v4365, %v4364
      %v4402 = vpack.c.b16 %v4367, %v4366
      %v4403 = vpack.c.b16 %v4369, %v4368
      %v4404 = vpack.c.b16 %v4371, %v4370
      %v4405 = vpack.c.b16 %v4373, %v4372
      %v4406 = vpack.c.b16 %v4375, %v4374
      %v4407 = vpack.c.b16 %v4377, %v4376
      %v4408 = vpack.c.b16 %v4379, %v4378
      %v4409 = vpack.c.b16 %v4381, %v4380
      %v4410 = vpack.c.b16 %v4383, %v4382
      %v4411 = vpack.c.b16 %v4385, %v4384
      %v4412 = vpack.c.b16 %v4387, %v4386
      %v4413 = vpack.c.b16 %v4389, %v4388
      %v4414 = vpack.c.b16 %v4391, %v4390
      %v4415 = vpack.c.b16 %v4393, %v4392
      %v4416 = vpack.c.b16 %v4394, %v4394
      %v4418 = vshrl.u32 %v4395, 16
      %v4420 = vshll.u32 %v4395, 16
      %v4422 = vrot.slane %v4420, 1
      %v4423 = vor.u32 %v4418, %v4422
      %v4425 = vshll.u32 %v4396, 16
      %v4427 = vrot.slane %v4425, 1
      %v4428 = vsel %vm3779, %v4423, %v4427
      %v4429 = vshrl.u32 %v4396, 16
      %v4431 = vor.u32 %v4429, %v4427
      %v4433 = vshll.u32 %v4397, 16
      %v4435 = vrot.slane %v4433, 1
      %v4436 = vsel %vm3779, %v4431, %v4435
      %v4437 = vshrl.u32 %v4397, 16
      %v4439 = vor.u32 %v4437, %v4435
      %v4441 = vshll.u32 %v4398, 16
      %v4443 = vrot.slane %v4441, 1
      %v4444 = vsel %vm3779, %v4439, %v4443
      %v4445 = vshrl.u32 %v4398, 16
      %v4447 = vor.u32 %v4445, %v4443
      %v4449 = vshll.u32 %v4399, 16
      %v4451 = vrot.slane %v4449, 1
      %v4452 = vsel %vm3779, %v4447, %v4451
      %v4453 = vshrl.u32 %v4399, 16
      %v4455 = vor.u32 %v4453, %v4451
      %v4457 = vshll.u32 %v4400, 16
      %v4459 = vrot.slane %v4457, 1
      %v4460 = vsel %vm3779, %v4455, %v4459
      %v4461 = vshrl.u32 %v4400, 16
      %v4463 = vor.u32 %v4461, %v4459
      %v4465 = vshll.u32 %v4401, 16
      %v4467 = vrot.slane %v4465, 1
      %v4468 = vsel %vm3779, %v4463, %v4467
      %v4469 = vshrl.u32 %v4401, 16
      %v4471 = vor.u32 %v4469, %v4467
      %v4473 = vshll.u32 %v4402, 16
      %v4475 = vrot.slane %v4473, 1
      %v4476 = vsel %vm3779, %v4471, %v4475
      %v4477 = vshrl.u32 %v4402, 16
      %v4479 = vor.u32 %v4477, %v4475
      %v4481 = vshll.u32 %v4403, 16
      %v4483 = vrot.slane %v4481, 1
      %v4484 = vsel %vm3779, %v4479, %v4483
      %v4485 = vshrl.u32 %v4403, 16
      %v4487 = vor.u32 %v4485, %v4483
      %v4489 = vshll.u32 %v4404, 16
      %v4491 = vrot.slane %v4489, 1
      %v4492 = vsel %vm3779, %v4487, %v4491
      %v4493 = vshrl.u32 %v4404, 16
      %v4495 = vor.u32 %v4493, %v4491
      %v4497 = vshll.u32 %v4405, 16
      %v4499 = vrot.slane %v4497, 1
      %v4500 = vsel %vm3779, %v4495, %v4499
      %v4501 = vshrl.u32 %v4405, 16
      %v4503 = vor.u32 %v4501, %v4499
      %v4505 = vshll.u32 %v4406, 16
      %v4507 = vrot.slane %v4505, 1
      %v4508 = vsel %vm3779, %v4503, %v4507
      %v4509 = vshrl.u32 %v4406, 16
      %v4511 = vor.u32 %v4509, %v4507
      %v4513 = vshll.u32 %v4407, 16
      %v4515 = vrot.slane %v4513, 1
      %v4516 = vsel %vm3779, %v4511, %v4515
      %v4517 = vshrl.u32 %v4407, 16
      %v4519 = vor.u32 %v4517, %v4515
      %v4521 = vshll.u32 %v4408, 16
      %v4523 = vrot.slane %v4521, 1
      %v4524 = vsel %vm3779, %v4519, %v4523
      %v4525 = vshrl.u32 %v4408, 16
      %v4527 = vor.u32 %v4525, %v4523
      %v4529 = vshll.u32 %v4409, 16
      %v4531 = vrot.slane %v4529, 1
      %v4532 = vsel %vm3779, %v4527, %v4531
      %v4533 = vshrl.u32 %v4409, 16
      %v4535 = vor.u32 %v4533, %v4531
      %v4537 = vshll.u32 %v4410, 16
      %v4539 = vrot.slane %v4537, 1
      %v4540 = vsel %vm3779, %v4535, %v4539
      %v4541 = vshrl.u32 %v4410, 16
      %v4543 = vor.u32 %v4541, %v4539
      %v4545 = vshll.u32 %v4411, 16
      %v4547 = vrot.slane %v4545, 1
      %v4548 = vsel %vm3779, %v4543, %v4547
      %v4549 = vshrl.u32 %v4411, 16
      %v4551 = vor.u32 %v4549, %v4547
      %v4553 = vshll.u32 %v4412, 16
      %v4555 = vrot.slane %v4553, 1
      %v4556 = vsel %vm3779, %v4551, %v4555
      %v4557 = vshrl.u32 %v4412, 16
      %v4559 = vor.u32 %v4557, %v4555
      %v4561 = vshll.u32 %v4413, 16
      %v4563 = vrot.slane %v4561, 1
      %v4564 = vsel %vm3779, %v4559, %v4563
      %v4565 = vshrl.u32 %v4413, 16
      %v4567 = vor.u32 %v4565, %v4563
      %v4569 = vshll.u32 %v4414, 16
      %v4571 = vrot.slane %v4569, 1
      %v4572 = vsel %vm3779, %v4567, %v4571
      %v4573 = vshrl.u32 %v4414, 16
      %v4575 = vor.u32 %v4573, %v4571
      %v4577 = vshll.u32 %v4415, 16
      %v4579 = vrot.slane %v4577, 1
      %v4580 = vsel %vm3779, %v4575, %v4579
      %v4581 = vshrl.u32 %v4415, 16
      %v4583 = vor.u32 %v4581, %v4579
      %v4585 = vshll.u32 %v4416, 16
      %v4587 = vrot.slane %v4585, 1
      %v4588 = vsel %vm3779, %v4583, %v4587
      %v4591 = vunpack.c.l.b16 %v4307
      %v4592 = vunpack.c.l.b16 %v4308
      %v4593 = vpack.c.b16 %v4592, %v4591
      %v4596 = vsel %vm1544, %v4428, 0
      %v4599 = vsel %vm1544, %v4436, 0
      %v4602 = vsel %vm1544, %v4444, 0
      %v4605 = vsel %vm1544, %v4452, 0
      %v4608 = vsel %vm1544, %v4460, 0
      %v4611 = vsel %vm1544, %v4468, 0
      %v4614 = vsel %vm1544, %v4476, 0
      %v4617 = vsel %vm1544, %v4484, 0
      %v4620 = vsel %vm1544, %v4492, 0
      %v4623 = vsel %vm1544, %v4500, 0
      %v4626 = vsel %vm1544, %v4508, 0
      %v4629 = vsel %vm1544, %v4516, 0
      %v4632 = vsel %vm1544, %v4524, 0
      %v4635 = vsel %vm1544, %v4532, 0
      %v4638 = vsel %vm1544, %v4540, 0
      %v4641 = vsel %vm1544, %v4548, 0
      %v4644 = vsel %vm1544, %v4556, 0
      %v4647 = vsel %vm1544, %v4564, 0
      %v4650 = vsel %vm1544, %v4572, 0
      %v4653 = vsel %vm1544, %v4580, 0
      %v4656 = vsel %vm1544, %v4588, 0
      %4658 = vmatprep.subr.bf16.mxu0 0
      %4659 = vmatpush1.bf16.msra.mxu0 0
      %4660 = vmatprep.subr.bf16.mxu0 0
      %4661 = vmatpush1.bf16.msra.mxu0 0
      %4662 = vmatprep.subr.bf16.mxu0 0
      %4663 = vmatpush1.bf16.msra.mxu0 0
      %4664 = vmatprep.subr.bf16.mxu0 0
      %4665 = vmatpush1.bf16.msra.mxu0 0
      %4666 = vmatprep.subr.bf16.mxu0 0
      %4667 = vmatpush1.bf16.msra.mxu0 0
      %4668 = vmatprep.subr.bf16.mxu0 0
      %4669 = vmatpush1.bf16.msra.mxu0 0
      %4670 = vmatprep.subr.bf16.mxu0 0
      %4671 = vmatpush1.bf16.msra.mxu0 0
      %4672 = vmatprep.subr.bf16.mxu0 0
      %4673 = vmatpush1.bf16.msra.mxu0 %v4593
      %4674 = vmatprep.subr.bf16.mxu0 0
      %4675 = vmatpush2.bf16.msra.mxu0 0
      %4676 = vmatprep.subr.bf16.mxu0 0
      %4677 = vmatpush2.bf16.msra.mxu0 0
      %4678 = vmatprep.subr.bf16.mxu0 0
      %4679 = vmatpush2.bf16.msra.mxu0 0
      %4680 = vmatprep.subr.bf16.mxu0 0
      %4681 = vmatpush2.bf16.msra.mxu0 0
      %4682 = vmatprep.subr.bf16.mxu0 0
      %4683 = vmatpush2.bf16.msra.mxu0 0
      %4684 = vmatprep.subr.bf16.mxu0 0
      %4685 = vmatpush2.bf16.msra.mxu0 0
      %4686 = vmatprep.subr.bf16.mxu0 0
      %4687 = vmatpush2.bf16.msra.mxu0 0
      %4688 = vmatprep.subr.bf16.mxu0 0
      %4689 = vmatpush2.bf16.msra.mxu0 0
      %4690 = vmatprep.mubr.bf16.mxu0 0
      %4691 = vmatmul.mubr.bf16.gmra.mxu0 %v4596
      %v4692 = vpop.f32.mrf.mxu0
      %v4693 = vadd.f32 0.0, %v4692
      %v4694 = vpop.f32.mrf.mxu0
      %v4695 = vpop.f32.mrf.mxu0
      %v4696 = vadd.f32 0.0, %v4695
      %v4697 = vpop.f32.mrf.mxu0
      %4698 = vmatprep.mubr.bf16.mxu0 0
      %4699 = vmatmul.mubr.bf16.gmra.mxu0 %v4599
      %v4700 = vpop.f32.mrf.mxu0
      %v4701 = vadd.f32 0.0, %v4700
      %v4702 = vpop.f32.mrf.mxu0
      %v4703 = vpop.f32.mrf.mxu0
      %v4704 = vadd.f32 0.0, %v4703
      %v4705 = vpop.f32.mrf.mxu0
      %4706 = vmatprep.mubr.bf16.mxu0 0
      %4707 = vmatmul.mubr.bf16.gmra.mxu0 %v4602
      %v4708 = vpop.f32.mrf.mxu0
      %v4709 = vadd.f32 0.0, %v4708
      %v4710 = vpop.f32.mrf.mxu0
      %v4711 = vpop.f32.mrf.mxu0
      %v4712 = vadd.f32 0.0, %v4711
      %v4713 = vpop.f32.mrf.mxu0
      %4714 = vmatprep.mubr.bf16.mxu0 0
      %4715 = vmatmul.mubr.bf16.gmra.mxu0 %v4605
      %v4716 = vpop.f32.mrf.mxu0
      %v4717 = vadd.f32 0.0, %v4716
      %v4718 = vpop.f32.mrf.mxu0
      %v4719 = vpop.f32.mrf.mxu0
      %v4720 = vadd.f32 0.0, %v4719
      %v4721 = vpop.f32.mrf.mxu0
      %4722 = vmatprep.mubr.bf16.mxu0 0
      %4723 = vmatmul.mubr.bf16.gmra.mxu0 %v4608
      %v4724 = vpop.f32.mrf.mxu0
      %v4725 = vadd.f32 0.0, %v4724
      %v4726 = vpop.f32.mrf.mxu0
      %v4727 = vpop.f32.mrf.mxu0
      %v4728 = vadd.f32 0.0, %v4727
      %v4729 = vpop.f32.mrf.mxu0
      %4730 = vmatprep.mubr.bf16.mxu0 0
      %4731 = vmatmul.mubr.bf16.gmra.mxu0 %v4611
      %v4732 = vpop.f32.mrf.mxu0
      %v4733 = vadd.f32 0.0, %v4732
      %v4734 = vpop.f32.mrf.mxu0
      %v4735 = vpop.f32.mrf.mxu0
      %v4736 = vadd.f32 0.0, %v4735
      %v4737 = vpop.f32.mrf.mxu0
      %4738 = vmatprep.mubr.bf16.mxu0 0
      %4739 = vmatmul.mubr.bf16.gmra.mxu0 %v4614
      %v4740 = vpop.f32.mrf.mxu0
      %v4741 = vadd.f32 0.0, %v4740
      %v4742 = vpop.f32.mrf.mxu0
      %v4743 = vpop.f32.mrf.mxu0
      %v4744 = vadd.f32 0.0, %v4743
      %v4745 = vpop.f32.mrf.mxu0
      %4746 = vmatprep.mubr.bf16.mxu0 0
      %4747 = vmatmul.mubr.bf16.gmra.mxu0 %v4617
      %v4748 = vpop.f32.mrf.mxu0
      %v4749 = vadd.f32 0.0, %v4748
      %v4750 = vpop.f32.mrf.mxu0
      %v4751 = vpop.f32.mrf.mxu0
      %v4752 = vadd.f32 0.0, %v4751
      %v4753 = vpop.f32.mrf.mxu0
      %4754 = vmatprep.mubr.bf16.mxu0 0
      %4755 = vmatmul.mubr.bf16.gmra.mxu0 %v4620
      %v4756 = vpop.f32.mrf.mxu0
      %v4757 = vadd.f32 0.0, %v4756
      %v4758 = vpop.f32.mrf.mxu0
      %v4759 = vpop.f32.mrf.mxu0
      %v4760 = vadd.f32 0.0, %v4759
      %v4761 = vpop.f32.mrf.mxu0
      %4762 = vmatprep.mubr.bf16.mxu0 0
      %4763 = vmatmul.mubr.bf16.gmra.mxu0 %v4623
      %v4764 = vpop.f32.mrf.mxu0
      %v4765 = vadd.f32 0.0, %v4764
      %v4766 = vpop.f32.mrf.mxu0
      %v4767 = vpop.f32.mrf.mxu0
      %v4768 = vadd.f32 0.0, %v4767
      %v4769 = vpop.f32.mrf.mxu0
      %4770 = vmatprep.mubr.bf16.mxu0 0
      %4771 = vmatmul.mubr.bf16.gmra.mxu0 %v4626
      %v4772 = vpop.f32.mrf.mxu0
      %v4773 = vadd.f32 0.0, %v4772
      %v4774 = vpop.f32.mrf.mxu0
      %v4775 = vpop.f32.mrf.mxu0
      %v4776 = vadd.f32 0.0, %v4775
      %v4777 = vpop.f32.mrf.mxu0
      %4778 = vmatprep.mubr.bf16.mxu0 0
      %4779 = vmatmul.mubr.bf16.gmra.mxu0 %v4629
      %v4780 = vpop.f32.mrf.mxu0
      %v4781 = vadd.f32 0.0, %v4780
      %v4782 = vpop.f32.mrf.mxu0
      %v4783 = vpop.f32.mrf.mxu0
      %v4784 = vadd.f32 0.0, %v4783
      %v4785 = vpop.f32.mrf.mxu0
      %4786 = vmatprep.mubr.bf16.mxu0 0
      %4787 = vmatmul.mubr.bf16.gmra.mxu0 %v4632
      %v4788 = vpop.f32.mrf.mxu0
      %v4789 = vadd.f32 0.0, %v4788
      %v4790 = vpop.f32.mrf.mxu0
      %v4791 = vpop.f32.mrf.mxu0
      %v4792 = vadd.f32 0.0, %v4791
      %v4793 = vpop.f32.mrf.mxu0
      %4794 = vmatprep.mubr.bf16.mxu0 0
      %4795 = vmatmul.mubr.bf16.gmra.mxu0 %v4635
      %v4796 = vpop.f32.mrf.mxu0
      %v4797 = vadd.f32 0.0, %v4796
      %v4798 = vpop.f32.mrf.mxu0
      %v4799 = vpop.f32.mrf.mxu0
      %v4800 = vadd.f32 0.0, %v4799
      %v4801 = vpop.f32.mrf.mxu0
      %4802 = vmatprep.mubr.bf16.mxu0 0
      %4803 = vmatmul.mubr.bf16.gmra.mxu0 %v4638
      %v4804 = vpop.f32.mrf.mxu0
      %v4805 = vadd.f32 0.0, %v4804
      %v4806 = vpop.f32.mrf.mxu0
      %v4807 = vpop.f32.mrf.mxu0
      %v4808 = vadd.f32 0.0, %v4807
      %v4809 = vpop.f32.mrf.mxu0
      %4810 = vmatprep.mubr.bf16.mxu0 0
      %4811 = vmatmul.mubr.bf16.gmra.mxu0 %v4641
      %v4812 = vpop.f32.mrf.mxu0
      %v4813 = vadd.f32 0.0, %v4812
      %v4814 = vpop.f32.mrf.mxu0
      %v4815 = vpop.f32.mrf.mxu0
      %v4816 = vadd.f32 0.0, %v4815
      %v4817 = vpop.f32.mrf.mxu0
      %4818 = vmatprep.mubr.bf16.mxu0 0
      %4819 = vmatmul.mubr.bf16.gmra.mxu0 %v4644
      %v4820 = vpop.f32.mrf.mxu0
      %v4821 = vadd.f32 0.0, %v4820
      %v4822 = vpop.f32.mrf.mxu0
      %v4823 = vpop.f32.mrf.mxu0
      %v4824 = vadd.f32 0.0, %v4823
      %v4825 = vpop.f32.mrf.mxu0
      %4826 = vmatprep.mubr.bf16.mxu0 0
      %4827 = vmatmul.mubr.bf16.gmra.mxu0 %v4647
      %v4828 = vpop.f32.mrf.mxu0
      %v4829 = vadd.f32 0.0, %v4828
      %v4830 = vpop.f32.mrf.mxu0
      %v4831 = vpop.f32.mrf.mxu0
      %v4832 = vadd.f32 0.0, %v4831
      %v4833 = vpop.f32.mrf.mxu0
      %4834 = vmatprep.mubr.bf16.mxu0 0
      %4835 = vmatmul.mubr.bf16.gmra.mxu0 %v4650
      %v4836 = vpop.f32.mrf.mxu0
      %v4837 = vadd.f32 0.0, %v4836
      %v4838 = vpop.f32.mrf.mxu0
      %v4839 = vpop.f32.mrf.mxu0
      %v4840 = vadd.f32 0.0, %v4839
      %v4841 = vpop.f32.mrf.mxu0
      %4842 = vmatprep.mubr.bf16.mxu0 0
      %4843 = vmatmul.mubr.bf16.gmra.mxu0 %v4653
      %v4844 = vpop.f32.mrf.mxu0
      %v4845 = vadd.f32 0.0, %v4844
      %v4846 = vpop.f32.mrf.mxu0
      %v4847 = vpop.f32.mrf.mxu0
      %v4848 = vadd.f32 0.0, %v4847
      %v4849 = vpop.f32.mrf.mxu0
      %4850 = vmatprep.mubr.bf16.mxu0 0
      %4851 = vmatmul.mubr.bf16.gmra.mxu0 %v4656
      %v4852 = vpop.f32.mrf.mxu0
      %v4853 = vadd.f32 0.0, %v4852
      %v4854 = vpop.f32.mrf.mxu0
      %v4855 = vpop.f32.mrf.mxu0
      %v4856 = vadd.f32 0.0, %v4855
      %v4857 = vpop.f32.mrf.mxu0
      %4858 = vdwg.mxu0
      %v4859 = vadd.f32 %v4222, %v4693
      %v4860 = vadd.f32 %v4223, %v4696
      %v4861 = vadd.f32 %v4224, %v4701
      %v4862 = vadd.f32 %v4225, %v4704
      %v4863 = vadd.f32 %v4226, %v4709
      %v4864 = vadd.f32 %v4227, %v4712
      %v4865 = vadd.f32 %v4228, %v4717
      %v4866 = vadd.f32 %v4229, %v4720
      %v4867 = vadd.f32 %v4230, %v4725
      %v4868 = vadd.f32 %v4231, %v4728
      %v4869 = vadd.f32 %v4232, %v4733
      %v4870 = vadd.f32 %v4233, %v4736
      %v4871 = vadd.f32 %v4234, %v4741
      %v4872 = vadd.f32 %v4235, %v4744
      %v4873 = vadd.f32 %v4236, %v4749
      %v4874 = vadd.f32 %v4237, %v4752
      %v4875 = vadd.f32 %v4238, %v4757
      %v4876 = vadd.f32 %v4239, %v4760
      %v4877 = vadd.f32 %v4240, %v4765
      %v4878 = vadd.f32 %v4241, %v4768
      %v4879 = vadd.f32 %v4242, %v4773
      %v4880 = vadd.f32 %v4243, %v4776
      %v4881 = vadd.f32 %v4244, %v4781
      %v4882 = vadd.f32 %v4245, %v4784
      %v4883 = vadd.f32 %v4246, %v4789
      %v4884 = vadd.f32 %v4247, %v4792
      %v4885 = vadd.f32 %v4248, %v4797
      %v4886 = vadd.f32 %v4249, %v4800
      %v4887 = vadd.f32 %v4250, %v4805
      %v4888 = vadd.f32 %v4251, %v4808
      %v4889 = vadd.f32 %v4252, %v4813
      %v4890 = vadd.f32 %v4253, %v4816
      %v4891 = vadd.f32 %v4254, %v4821
      %v4892 = vadd.f32 %v4255, %v4824
      %v4893 = vadd.f32 %v4256, %v4829
      %v4894 = vadd.f32 %v4257, %v4832
      %v4895 = vadd.f32 %v4258, %v4837
      %v4896 = vadd.f32 %v4259, %v4840
      %v4897 = vadd.f32 %v4260, %v4845
      %v4898 = vadd.f32 %v4261, %v4848
      %v4899 = vadd.f32 %v4262, %v4853
      %v4900 = vadd.f32 %v4263, %v4856
      %v4901 = vld [vmem:[#allocation2 + $0x18] sm:$0xe]
      %v4902 = vld [vmem:[%s1 + $0x120] sm:$0xf]
      %v4903 = vld [vmem:[%s1 + $0x12c] sm:$0xf]
      %v4905 = vunpack.c.l.b16 %v4901
      %v4906 = vpack.c.b16 %v4353, %v4905
      %vm4907 = vcmask 1046528
      %v4908 = vrot.slane %v4906, 1
      %v4909 = vrot.slane %v4396, 1
      %v4910 = vsel %vm4907, %v4908, %v4909
      %v4911 = vrot.slane %v4397, 1
      %v4912 = vsel %vm4907, %v4909, %v4911
      %v4913 = vrot.slane %v4398, 1
      %v4914 = vsel %vm4907, %v4911, %v4913
      %v4915 = vrot.slane %v4399, 1
      %v4916 = vsel %vm4907, %v4913, %v4915
      %v4917 = vrot.slane %v4400, 1
      %v4918 = vsel %vm4907, %v4915, %v4917
      %v4919 = vrot.slane %v4401, 1
      %v4920 = vsel %vm4907, %v4917, %v4919
      %v4921 = vrot.slane %v4402, 1
      %v4922 = vsel %vm4907, %v4919, %v4921
      %v4923 = vrot.slane %v4403, 1
      %v4924 = vsel %vm4907, %v4921, %v4923
      %v4925 = vrot.slane %v4404, 1
      %v4926 = vsel %vm4907, %v4923, %v4925
      %v4927 = vrot.slane %v4405, 1
      %v4928 = vsel %vm4907, %v4925, %v4927
      %v4929 = vrot.slane %v4406, 1
      %v4930 = vsel %vm4907, %v4927, %v4929
      %v4931 = vrot.slane %v4407, 1
      %v4932 = vsel %vm4907, %v4929, %v4931
      %v4933 = vrot.slane %v4408, 1
      %v4934 = vsel %vm4907, %v4931, %v4933
      %v4935 = vrot.slane %v4409, 1
      %v4936 = vsel %vm4907, %v4933, %v4935
      %v4937 = vrot.slane %v4410, 1
      %v4938 = vsel %vm4907, %v4935, %v4937
      %v4939 = vrot.slane %v4411, 1
      %v4940 = vsel %vm4907, %v4937, %v4939
      %v4941 = vrot.slane %v4412, 1
      %v4942 = vsel %vm4907, %v4939, %v4941
      %v4943 = vrot.slane %v4413, 1
      %v4944 = vsel %vm4907, %v4941, %v4943
      %v4945 = vrot.slane %v4414, 1
      %v4946 = vsel %vm4907, %v4943, %v4945
      %v4947 = vrot.slane %v4415, 1
      %v4948 = vsel %vm4907, %v4945, %v4947
      %v4949 = vrot.slane %v4416, 1
      %v4950 = vsel %vm4907, %v4947, %v4949
      %v4953 = vunpack.c.l.b16 %v4902
      %v4954 = vunpack.c.l.b16 %v4903
      %v4955 = vpack.c.b16 %v4954, %v4953
      %v4958 = vsel %vm1544, %v4910, 0
      %v4961 = vsel %vm1544, %v4912, 0
      %v4964 = vsel %vm1544, %v4914, 0
      %v4967 = vsel %vm1544, %v4916, 0
      %v4970 = vsel %vm1544, %v4918, 0
      %v4973 = vsel %vm1544, %v4920, 0
      %v4976 = vsel %vm1544, %v4922, 0
      %v4979 = vsel %vm1544, %v4924, 0
      %v4982 = vsel %vm1544, %v4926, 0
      %v4985 = vsel %vm1544, %v4928, 0
      %v4988 = vsel %vm1544, %v4930, 0
      %v4991 = vsel %vm1544, %v4932, 0
      %v4994 = vsel %vm1544, %v4934, 0
      %v4997 = vsel %vm1544, %v4936, 0
      %v5000 = vsel %vm1544, %v4938, 0
      %v5003 = vsel %vm1544, %v4940, 0
      %v5006 = vsel %vm1544, %v4942, 0
      %v5009 = vsel %vm1544, %v4944, 0
      %v5012 = vsel %vm1544, %v4946, 0
      %v5015 = vsel %vm1544, %v4948, 0
      %v5018 = vsel %vm1544, %v4950, 0
      %5020 = vmatprep.subr.bf16.mxu0 0
      %5021 = vmatpush1.bf16.msra.mxu0 0
      %5022 = vmatprep.subr.bf16.mxu0 0
      %5023 = vmatpush1.bf16.msra.mxu0 0
      %5024 = vmatprep.subr.bf16.mxu0 0
      %5025 = vmatpush1.bf16.msra.mxu0 0
      %5026 = vmatprep.subr.bf16.mxu0 0
      %5027 = vmatpush1.bf16.msra.mxu0 0
      %5028 = vmatprep.subr.bf16.mxu0 0
      %5029 = vmatpush1.bf16.msra.mxu0 0
      %5030 = vmatprep.subr.bf16.mxu0 0
      %5031 = vmatpush1.bf16.msra.mxu0 0
      %5032 = vmatprep.subr.bf16.mxu0 0
      %5033 = vmatpush1.bf16.msra.mxu0 0
      %5034 = vmatprep.subr.bf16.mxu0 0
      %5035 = vmatpush1.bf16.msra.mxu0 %v4955
      %5036 = vmatprep.subr.bf16.mxu0 0
      %5037 = vmatpush2.bf16.msra.mxu0 0
      %5038 = vmatprep.subr.bf16.mxu0 0
      %5039 = vmatpush2.bf16.msra.mxu0 0
      %5040 = vmatprep.subr.bf16.mxu0 0
      %5041 = vmatpush2.bf16.msra.mxu0 0
      %5042 = vmatprep.subr.bf16.mxu0 0
      %5043 = vmatpush2.bf16.msra.mxu0 0
      %5044 = vmatprep.subr.bf16.mxu0 0
      %5045 = vmatpush2.bf16.msra.mxu0 0
      %5046 = vmatprep.subr.bf16.mxu0 0
      %5047 = vmatpush2.bf16.msra.mxu0 0
      %5048 = vmatprep.subr.bf16.mxu0 0
      %5049 = vmatpush2.bf16.msra.mxu0 0
      %5050 = vmatprep.subr.bf16.mxu0 0
      %5051 = vmatpush2.bf16.msra.mxu0 0
      %5052 = vmatprep.mubr.bf16.mxu0 0
      %5053 = vmatmul.mubr.bf16.gmra.mxu0 %v4958
      %v5054 = vpop.f32.mrf.mxu0
      %v5055 = vadd.f32 0.0, %v5054
      %v5056 = vpop.f32.mrf.mxu0
      %v5057 = vpop.f32.mrf.mxu0
      %v5058 = vadd.f32 0.0, %v5057
      %v5059 = vpop.f32.mrf.mxu0
      %5060 = vmatprep.mubr.bf16.mxu0 0
      %5061 = vmatmul.mubr.bf16.gmra.mxu0 %v4961
      %v5062 = vpop.f32.mrf.mxu0
      %v5063 = vadd.f32 0.0, %v5062
      %v5064 = vpop.f32.mrf.mxu0
      %v5065 = vpop.f32.mrf.mxu0
      %v5066 = vadd.f32 0.0, %v5065
      %v5067 = vpop.f32.mrf.mxu0
      %5068 = vmatprep.mubr.bf16.mxu0 0
      %5069 = vmatmul.mubr.bf16.gmra.mxu0 %v4964
      %v5070 = vpop.f32.mrf.mxu0
      %v5071 = vadd.f32 0.0, %v5070
      %v5072 = vpop.f32.mrf.mxu0
      %v5073 = vpop.f32.mrf.mxu0
      %v5074 = vadd.f32 0.0, %v5073
      %v5075 = vpop.f32.mrf.mxu0
      %5076 = vmatprep.mubr.bf16.mxu0 0
      %5077 = vmatmul.mubr.bf16.gmra.mxu0 %v4967
      %v5078 = vpop.f32.mrf.mxu0
      %v5079 = vadd.f32 0.0, %v5078
      %v5080 = vpop.f32.mrf.mxu0
      %v5081 = vpop.f32.mrf.mxu0
      %v5082 = vadd.f32 0.0, %v5081
      %v5083 = vpop.f32.mrf.mxu0
      %5084 = vmatprep.mubr.bf16.mxu0 0
      %5085 = vmatmul.mubr.bf16.gmra.mxu0 %v4970
      %v5086 = vpop.f32.mrf.mxu0
      %v5087 = vadd.f32 0.0, %v5086
      %v5088 = vpop.f32.mrf.mxu0
      %v5089 = vpop.f32.mrf.mxu0
      %v5090 = vadd.f32 0.0, %v5089
      %v5091 = vpop.f32.mrf.mxu0
      %5092 = vmatprep.mubr.bf16.mxu0 0
      %5093 = vmatmul.mubr.bf16.gmra.mxu0 %v4973
      %v5094 = vpop.f32.mrf.mxu0
      %v5095 = vadd.f32 0.0, %v5094
      %v5096 = vpop.f32.mrf.mxu0
      %v5097 = vpop.f32.mrf.mxu0
      %v5098 = vadd.f32 0.0, %v5097
      %v5099 = vpop.f32.mrf.mxu0
      %5100 = vmatprep.mubr.bf16.mxu0 0
      %5101 = vmatmul.mubr.bf16.gmra.mxu0 %v4976
      %v5102 = vpop.f32.mrf.mxu0
      %v5103 = vadd.f32 0.0, %v5102
      %v5104 = vpop.f32.mrf.mxu0
      %v5105 = vpop.f32.mrf.mxu0
      %v5106 = vadd.f32 0.0, %v5105
      %v5107 = vpop.f32.mrf.mxu0
      %5108 = vmatprep.mubr.bf16.mxu0 0
      %5109 = vmatmul.mubr.bf16.gmra.mxu0 %v4979
      %v5110 = vpop.f32.mrf.mxu0
      %v5111 = vadd.f32 0.0, %v5110
      %v5112 = vpop.f32.mrf.mxu0
      %v5113 = vpop.f32.mrf.mxu0
      %v5114 = vadd.f32 0.0, %v5113
      %v5115 = vpop.f32.mrf.mxu0
      %5116 = vmatprep.mubr.bf16.mxu0 0
      %5117 = vmatmul.mubr.bf16.gmra.mxu0 %v4982
      %v5118 = vpop.f32.mrf.mxu0
      %v5119 = vadd.f32 0.0, %v5118
      %v5120 = vpop.f32.mrf.mxu0
      %v5121 = vpop.f32.mrf.mxu0
      %v5122 = vadd.f32 0.0, %v5121
      %v5123 = vpop.f32.mrf.mxu0
      %5124 = vmatprep.mubr.bf16.mxu0 0
      %5125 = vmatmul.mubr.bf16.gmra.mxu0 %v4985
      %v5126 = vpop.f32.mrf.mxu0
      %v5127 = vadd.f32 0.0, %v5126
      %v5128 = vpop.f32.mrf.mxu0
      %v5129 = vpop.f32.mrf.mxu0
      %v5130 = vadd.f32 0.0, %v5129
      %v5131 = vpop.f32.mrf.mxu0
      %5132 = vmatprep.mubr.bf16.mxu0 0
      %5133 = vmatmul.mubr.bf16.gmra.mxu0 %v4988
      %v5134 = vpop.f32.mrf.mxu0
      %v5135 = vadd.f32 0.0, %v5134
      %v5136 = vpop.f32.mrf.mxu0
      %v5137 = vpop.f32.mrf.mxu0
      %v5138 = vadd.f32 0.0, %v5137
      %v5139 = vpop.f32.mrf.mxu0
      %5140 = vmatprep.mubr.bf16.mxu0 0
      %5141 = vmatmul.mubr.bf16.gmra.mxu0 %v4991
      %v5142 = vpop.f32.mrf.mxu0
      %v5143 = vadd.f32 0.0, %v5142
      %v5144 = vpop.f32.mrf.mxu0
      %v5145 = vpop.f32.mrf.mxu0
      %v5146 = vadd.f32 0.0, %v5145
      %v5147 = vpop.f32.mrf.mxu0
      %5148 = vmatprep.mubr.bf16.mxu0 0
      %5149 = vmatmul.mubr.bf16.gmra.mxu0 %v4994
      %v5150 = vpop.f32.mrf.mxu0
      %v5151 = vadd.f32 0.0, %v5150
      %v5152 = vpop.f32.mrf.mxu0
      %v5153 = vpop.f32.mrf.mxu0
      %v5154 = vadd.f32 0.0, %v5153
      %v5155 = vpop.f32.mrf.mxu0
      %5156 = vmatprep.mubr.bf16.mxu0 0
      %5157 = vmatmul.mubr.bf16.gmra.mxu0 %v4997
      %v5158 = vpop.f32.mrf.mxu0
      %v5159 = vadd.f32 0.0, %v5158
      %v5160 = vpop.f32.mrf.mxu0
      %v5161 = vpop.f32.mrf.mxu0
      %v5162 = vadd.f32 0.0, %v5161
      %v5163 = vpop.f32.mrf.mxu0
      %5164 = vmatprep.mubr.bf16.mxu0 0
      %5165 = vmatmul.mubr.bf16.gmra.mxu0 %v5000
      %v5166 = vpop.f32.mrf.mxu0
      %v5167 = vadd.f32 0.0, %v5166
      %v5168 = vpop.f32.mrf.mxu0
      %v5169 = vpop.f32.mrf.mxu0
      %v5170 = vadd.f32 0.0, %v5169
      %v5171 = vpop.f32.mrf.mxu0
      %5172 = vmatprep.mubr.bf16.mxu0 0
      %5173 = vmatmul.mubr.bf16.gmra.mxu0 %v5003
      %v5174 = vpop.f32.mrf.mxu0
      %v5175 = vadd.f32 0.0, %v5174
      %v5176 = vpop.f32.mrf.mxu0
      %v5177 = vpop.f32.mrf.mxu0
      %v5178 = vadd.f32 0.0, %v5177
      %v5179 = vpop.f32.mrf.mxu0
      %5180 = vmatprep.mubr.bf16.mxu0 0
      %5181 = vmatmul.mubr.bf16.gmra.mxu0 %v5006
      %v5182 = vpop.f32.mrf.mxu0
      %v5183 = vadd.f32 0.0, %v5182
      %v5184 = vpop.f32.mrf.mxu0
      %v5185 = vpop.f32.mrf.mxu0
      %v5186 = vadd.f32 0.0, %v5185
      %v5187 = vpop.f32.mrf.mxu0
      %5188 = vmatprep.mubr.bf16.mxu0 0
      %5189 = vmatmul.mubr.bf16.gmra.mxu0 %v5009
      %v5190 = vpop.f32.mrf.mxu0
      %v5191 = vadd.f32 0.0, %v5190
      %v5192 = vpop.f32.mrf.mxu0
      %v5193 = vpop.f32.mrf.mxu0
      %v5194 = vadd.f32 0.0, %v5193
      %v5195 = vpop.f32.mrf.mxu0
      %5196 = vmatprep.mubr.bf16.mxu0 0
      %5197 = vmatmul.mubr.bf16.gmra.mxu0 %v5012
      %v5198 = vpop.f32.mrf.mxu0
      %v5199 = vadd.f32 0.0, %v5198
      %v5200 = vpop.f32.mrf.mxu0
      %v5201 = vpop.f32.mrf.mxu0
      %v5202 = vadd.f32 0.0, %v5201
      %v5203 = vpop.f32.mrf.mxu0
      %5204 = vmatprep.mubr.bf16.mxu0 0
      %5205 = vmatmul.mubr.bf16.gmra.mxu0 %v5015
      %v5206 = vpop.f32.mrf.mxu0
      %v5207 = vadd.f32 0.0, %v5206
      %v5208 = vpop.f32.mrf.mxu0
      %v5209 = vpop.f32.mrf.mxu0
      %v5210 = vadd.f32 0.0, %v5209
      %v5211 = vpop.f32.mrf.mxu0
      %5212 = vmatprep.mubr.bf16.mxu0 0
      %5213 = vmatmul.mubr.bf16.gmra.mxu0 %v5018
      %v5214 = vpop.f32.mrf.mxu0
      %v5215 = vadd.f32 0.0, %v5214
      %v5216 = vpop.f32.mrf.mxu0
      %v5217 = vpop.f32.mrf.mxu0
      %v5218 = vadd.f32 0.0, %v5217
      %v5219 = vpop.f32.mrf.mxu0
      %5220 = vdwg.mxu0
      %v5221 = vadd.f32 %v4859, %v5055
      %v5222 = vadd.f32 %v4860, %v5058
      %v5223 = vadd.f32 %v4861, %v5063
      %v5224 = vadd.f32 %v4862, %v5066
      %v5225 = vadd.f32 %v4863, %v5071
      %v5226 = vadd.f32 %v4864, %v5074
      %v5227 = vadd.f32 %v4865, %v5079
      %v5228 = vadd.f32 %v4866, %v5082
      %v5229 = vadd.f32 %v4867, %v5087
      %v5230 = vadd.f32 %v4868, %v5090
      %v5231 = vadd.f32 %v4869, %v5095
      %v5232 = vadd.f32 %v4870, %v5098
      %v5233 = vadd.f32 %v4871, %v5103
      %v5234 = vadd.f32 %v4872, %v5106
      %v5235 = vadd.f32 %v4873, %v5111
      %v5236 = vadd.f32 %v4874, %v5114
      %v5237 = vadd.f32 %v4875, %v5119
      %v5238 = vadd.f32 %v4876, %v5122
      %v5239 = vadd.f32 %v4877, %v5127
      %v5240 = vadd.f32 %v4878, %v5130
      %v5241 = vadd.f32 %v4879, %v5135
      %v5242 = vadd.f32 %v4880, %v5138
      %v5243 = vadd.f32 %v4881, %v5143
      %v5244 = vadd.f32 %v4882, %v5146
      %v5245 = vadd.f32 %v4883, %v5151
      %v5246 = vadd.f32 %v4884, %v5154
      %v5247 = vadd.f32 %v4885, %v5159
      %v5248 = vadd.f32 %v4886, %v5162
      %v5249 = vadd.f32 %v4887, %v5167
      %v5250 = vadd.f32 %v4888, %v5170
      %v5251 = vadd.f32 %v4889, %v5175
      %v5252 = vadd.f32 %v4890, %v5178
      %v5253 = vadd.f32 %v4891, %v5183
      %v5254 = vadd.f32 %v4892, %v5186
      %v5255 = vadd.f32 %v4893, %v5191
      %v5256 = vadd.f32 %v4894, %v5194
      %v5257 = vadd.f32 %v4895, %v5199
      %v5258 = vadd.f32 %v4896, %v5202
      %v5259 = vadd.f32 %v4897, %v5207
      %v5260 = vadd.f32 %v4898, %v5210
      %v5261 = vadd.f32 %v4899, %v5215
      %v5262 = vadd.f32 %v4900, %v5218
      %v5263 = vld [vmem:[#allocation2 + $0xc0] sm:$0x3]
      %v5264 = vld [vmem:[%s1 + $0x138] sm:$0xf]
      %v5265 = vld [vmem:[%s1 + $0x144] sm:$0xf]
      %v5267 = vunpack.c.l.b16 %v5263
      %v5268 = vpack.c.b16 %v5267, %v5267
      %vm5269 = vsmask.f32 6400
      %v5271 = vshrl.u32 %v4906, 16
      %v5273 = vrot.slane %v5271, 1
      %v5274 = vshll.u32 %v4906, 16
      %v5276 = vrot.slane %v5274, 2
      %v5277 = vor.u32 %v5273, %v5276
      %v5278 = vrot.slane %v4429, 1
      %v5279 = vrot.slane %v4425, 2
      %v5280 = vor.u32 %v5278, %v5279
      %v5281 = vsel %vm5269, %v5277, %v5280
      %v5282 = vrot.slane %v4437, 1
      %v5283 = vrot.slane %v4433, 2
      %v5284 = vor.u32 %v5282, %v5283
      %v5285 = vsel %vm5269, %v5280, %v5284
      %v5286 = vrot.slane %v4445, 1
      %v5287 = vrot.slane %v4441, 2
      %v5288 = vor.u32 %v5286, %v5287
      %v5289 = vsel %vm5269, %v5284, %v5288
      %v5290 = vrot.slane %v4453, 1
      %v5291 = vrot.slane %v4449, 2
      %v5292 = vor.u32 %v5290, %v5291
      %v5293 = vsel %vm5269, %v5288, %v5292
      %v5294 = vrot.slane %v4461, 1
      %v5295 = vrot.slane %v4457, 2
      %v5296 = vor.u32 %v5294, %v5295
      %v5297 = vsel %vm5269, %v5292, %v5296
      %v5298 = vrot.slane %v4469, 1
      %v5299 = vrot.slane %v4465, 2
      %v5300 = vor.u32 %v5298, %v5299
      %v5301 = vsel %vm5269, %v5296, %v5300
      %v5302 = vrot.slane %v4477, 1
      %v5303 = vrot.slane %v4473, 2
      %v5304 = vor.u32 %v5302, %v5303
      %v5305 = vsel %vm5269, %v5300, %v5304
      %v5306 = vrot.slane %v4485, 1
      %v5307 = vrot.slane %v4481, 2
      %v5308 = vor.u32 %v5306, %v5307
      %v5309 = vsel %vm5269, %v5304, %v5308
      %v5310 = vrot.slane %v4493, 1
      %v5311 = vrot.slane %v4489, 2
      %v5312 = vor.u32 %v5310, %v5311
      %v5313 = vsel %vm5269, %v5308, %v5312
      %v5314 = vrot.slane %v4501, 1
      %v5315 = vrot.slane %v4497, 2
      %v5316 = vor.u32 %v5314, %v5315
      %v5317 = vsel %vm5269, %v5312, %v5316
      %v5318 = vrot.slane %v4509, 1
      %v5319 = vrot.slane %v4505, 2
      %v5320 = vor.u32 %v5318, %v5319
      %v5321 = vsel %vm5269, %v5316, %v5320
      %v5322 = vrot.slane %v4517, 1
      %v5323 = vrot.slane %v4513, 2
      %v5324 = vor.u32 %v5322, %v5323
      %v5325 = vsel %vm5269, %v5320, %v5324
      %v5326 = vrot.slane %v4525, 1
      %v5327 = vrot.slane %v4521, 2
      %v5328 = vor.u32 %v5326, %v5327
      %v5329 = vsel %vm5269, %v5324, %v5328
      %v5330 = vrot.slane %v4533, 1
      %v5331 = vrot.slane %v4529, 2
      %v5332 = vor.u32 %v5330, %v5331
      %v5333 = vsel %vm5269, %v5328, %v5332
      %v5334 = vrot.slane %v4541, 1
      %v5335 = vrot.slane %v4537, 2
      %v5336 = vor.u32 %v5334, %v5335
      %v5337 = vsel %vm5269, %v5332, %v5336
      %v5338 = vrot.slane %v4549, 1
      %v5339 = vrot.slane %v4545, 2
      %v5340 = vor.u32 %v5338, %v5339
      %v5341 = vsel %vm5269, %v5336, %v5340
      %v5342 = vrot.slane %v4557, 1
      %v5343 = vrot.slane %v4553, 2
      %v5344 = vor.u32 %v5342, %v5343
      %v5345 = vsel %vm5269, %v5340, %v5344
      %v5346 = vrot.slane %v4565, 1
      %v5347 = vrot.slane %v4561, 2
      %v5348 = vor.u32 %v5346, %v5347
      %v5349 = vsel %vm5269, %v5344, %v5348
      %v5350 = vrot.slane %v4573, 1
      %v5351 = vrot.slane %v4569, 2
      %v5352 = vor.u32 %v5350, %v5351
      %v5353 = vsel %vm5269, %v5348, %v5352
      %v5354 = vrot.slane %v4581, 1
      %v5355 = vrot.slane %v4577, 2
      %v5356 = vor.u32 %v5354, %v5355
      %v5357 = vsel %vm5269, %v5352, %v5356
      %v5359 = vshrl.u32 %v5268, 16
      %v5361 = vrot.slane %v5359, 1
      %v5362 = vshll.u32 %v5268, 16
      %v5364 = vrot.slane %v5362, 2
      %v5365 = vor.u32 %v5361, %v5364
      %v5366 = vsel %vm5269, %v5356, %v5365
      %v5369 = vunpack.c.l.b16 %v5264
      %v5370 = vunpack.c.l.b16 %v5265
      %v5371 = vpack.c.b16 %v5370, %v5369
      %v5374 = vsel %vm1544, %v5281, 0
      %v5377 = vsel %vm1544, %v5285, 0
      %v5380 = vsel %vm1544, %v5289, 0
      %v5383 = vsel %vm1544, %v5293, 0
      %v5386 = vsel %vm1544, %v5297, 0
      %v5389 = vsel %vm1544, %v5301, 0
      %v5392 = vsel %vm1544, %v5305, 0
      %v5395 = vsel %vm1544, %v5309, 0
      %v5398 = vsel %vm1544, %v5313, 0
      %v5401 = vsel %vm1544, %v5317, 0
      %v5404 = vsel %vm1544, %v5321, 0
      %v5407 = vsel %vm1544, %v5325, 0
      %v5410 = vsel %vm1544, %v5329, 0
      %v5413 = vsel %vm1544, %v5333, 0
      %v5416 = vsel %vm1544, %v5337, 0
      %v5419 = vsel %vm1544, %v5341, 0
      %v5422 = vsel %vm1544, %v5345, 0
      %v5425 = vsel %vm1544, %v5349, 0
      %v5428 = vsel %vm1544, %v5353, 0
      %v5431 = vsel %vm1544, %v5357, 0
      %v5434 = vsel %vm1544, %v5366, 0
      %5436 = vmatprep.subr.bf16.mxu0 0
      %5437 = vmatpush1.bf16.msra.mxu0 0
      %5438 = vmatprep.subr.bf16.mxu0 0
      %5439 = vmatpush1.bf16.msra.mxu0 0
      %5440 = vmatprep.subr.bf16.mxu0 0
      %5441 = vmatpush1.bf16.msra.mxu0 0
      %5442 = vmatprep.subr.bf16.mxu0 0
      %5443 = vmatpush1.bf16.msra.mxu0 0
      %5444 = vmatprep.subr.bf16.mxu0 0
      %5445 = vmatpush1.bf16.msra.mxu0 0
      %5446 = vmatprep.subr.bf16.mxu0 0
      %5447 = vmatpush1.bf16.msra.mxu0 0
      %5448 = vmatprep.subr.bf16.mxu0 0
      %5449 = vmatpush1.bf16.msra.mxu0 0
      %5450 = vmatprep.subr.bf16.mxu0 0
      %5451 = vmatpush1.bf16.msra.mxu0 %v5371
      %5452 = vmatprep.subr.bf16.mxu0 0
      %5453 = vmatpush2.bf16.msra.mxu0 0
      %5454 = vmatprep.subr.bf16.mxu0 0
      %5455 = vmatpush2.bf16.msra.mxu0 0
      %5456 = vmatprep.subr.bf16.mxu0 0
      %5457 = vmatpush2.bf16.msra.mxu0 0
      %5458 = vmatprep.subr.bf16.mxu0 0
      %5459 = vmatpush2.bf16.msra.mxu0 0
      %5460 = vmatprep.subr.bf16.mxu0 0
      %5461 = vmatpush2.bf16.msra.mxu0 0
      %5462 = vmatprep.subr.bf16.mxu0 0
      %5463 = vmatpush2.bf16.msra.mxu0 0
      %5464 = vmatprep.subr.bf16.mxu0 0
      %5465 = vmatpush2.bf16.msra.mxu0 0
      %5466 = vmatprep.subr.bf16.mxu0 0
      %5467 = vmatpush2.bf16.msra.mxu0 0
      %5468 = vmatprep.mubr.bf16.mxu0 0
      %5469 = vmatmul.mubr.bf16.gmra.mxu0 %v5374
      %v5470 = vpop.f32.mrf.mxu0
      %v5471 = vadd.f32 0.0, %v5470
      %v5472 = vpop.f32.mrf.mxu0
      %v5473 = vpop.f32.mrf.mxu0
      %v5474 = vadd.f32 0.0, %v5473
      %v5475 = vpop.f32.mrf.mxu0
      %5476 = vmatprep.mubr.bf16.mxu0 0
      %5477 = vmatmul.mubr.bf16.gmra.mxu0 %v5377
      %v5478 = vpop.f32.mrf.mxu0
      %v5479 = vadd.f32 0.0, %v5478
      %v5480 = vpop.f32.mrf.mxu0
      %v5481 = vpop.f32.mrf.mxu0
      %v5482 = vadd.f32 0.0, %v5481
      %v5483 = vpop.f32.mrf.mxu0
      %5484 = vmatprep.mubr.bf16.mxu0 0
      %5485 = vmatmul.mubr.bf16.gmra.mxu0 %v5380
      %v5486 = vpop.f32.mrf.mxu0
      %v5487 = vadd.f32 0.0, %v5486
      %v5488 = vpop.f32.mrf.mxu0
      %v5489 = vpop.f32.mrf.mxu0
      %v5490 = vadd.f32 0.0, %v5489
      %v5491 = vpop.f32.mrf.mxu0
      %5492 = vmatprep.mubr.bf16.mxu0 0
      %5493 = vmatmul.mubr.bf16.gmra.mxu0 %v5383
      %v5494 = vpop.f32.mrf.mxu0
      %v5495 = vadd.f32 0.0, %v5494
      %v5496 = vpop.f32.mrf.mxu0
      %v5497 = vpop.f32.mrf.mxu0
      %v5498 = vadd.f32 0.0, %v5497
      %v5499 = vpop.f32.mrf.mxu0
      %5500 = vmatprep.mubr.bf16.mxu0 0
      %5501 = vmatmul.mubr.bf16.gmra.mxu0 %v5386
      %v5502 = vpop.f32.mrf.mxu0
      %v5503 = vadd.f32 0.0, %v5502
      %v5504 = vpop.f32.mrf.mxu0
      %v5505 = vpop.f32.mrf.mxu0
      %v5506 = vadd.f32 0.0, %v5505
      %v5507 = vpop.f32.mrf.mxu0
      %5508 = vmatprep.mubr.bf16.mxu0 0
      %5509 = vmatmul.mubr.bf16.gmra.mxu0 %v5389
      %v5510 = vpop.f32.mrf.mxu0
      %v5511 = vadd.f32 0.0, %v5510
      %v5512 = vpop.f32.mrf.mxu0
      %v5513 = vpop.f32.mrf.mxu0
      %v5514 = vadd.f32 0.0, %v5513
      %v5515 = vpop.f32.mrf.mxu0
      %5516 = vmatprep.mubr.bf16.mxu0 0
      %5517 = vmatmul.mubr.bf16.gmra.mxu0 %v5392
      %v5518 = vpop.f32.mrf.mxu0
      %v5519 = vadd.f32 0.0, %v5518
      %v5520 = vpop.f32.mrf.mxu0
      %v5521 = vpop.f32.mrf.mxu0
      %v5522 = vadd.f32 0.0, %v5521
      %v5523 = vpop.f32.mrf.mxu0
      %5524 = vmatprep.mubr.bf16.mxu0 0
      %5525 = vmatmul.mubr.bf16.gmra.mxu0 %v5395
      %v5526 = vpop.f32.mrf.mxu0
      %v5527 = vadd.f32 0.0, %v5526
      %v5528 = vpop.f32.mrf.mxu0
      %v5529 = vpop.f32.mrf.mxu0
      %v5530 = vadd.f32 0.0, %v5529
      %v5531 = vpop.f32.mrf.mxu0
      %5532 = vmatprep.mubr.bf16.mxu0 0
      %5533 = vmatmul.mubr.bf16.gmra.mxu0 %v5398
      %v5534 = vpop.f32.mrf.mxu0
      %v5535 = vadd.f32 0.0, %v5534
      %v5536 = vpop.f32.mrf.mxu0
      %v5537 = vpop.f32.mrf.mxu0
      %v5538 = vadd.f32 0.0, %v5537
      %v5539 = vpop.f32.mrf.mxu0
      %5540 = vmatprep.mubr.bf16.mxu0 0
      %5541 = vmatmul.mubr.bf16.gmra.mxu0 %v5401
      %v5542 = vpop.f32.mrf.mxu0
      %v5543 = vadd.f32 0.0, %v5542
      %v5544 = vpop.f32.mrf.mxu0
      %v5545 = vpop.f32.mrf.mxu0
      %v5546 = vadd.f32 0.0, %v5545
      %v5547 = vpop.f32.mrf.mxu0
      %5548 = vmatprep.mubr.bf16.mxu0 0
      %5549 = vmatmul.mubr.bf16.gmra.mxu0 %v5404
      %v5550 = vpop.f32.mrf.mxu0
      %v5551 = vadd.f32 0.0, %v5550
      %v5552 = vpop.f32.mrf.mxu0
      %v5553 = vpop.f32.mrf.mxu0
      %v5554 = vadd.f32 0.0, %v5553
      %v5555 = vpop.f32.mrf.mxu0
      %5556 = vmatprep.mubr.bf16.mxu0 0
      %5557 = vmatmul.mubr.bf16.gmra.mxu0 %v5407
      %v5558 = vpop.f32.mrf.mxu0
      %v5559 = vadd.f32 0.0, %v5558
      %v5560 = vpop.f32.mrf.mxu0
      %v5561 = vpop.f32.mrf.mxu0
      %v5562 = vadd.f32 0.0, %v5561
      %v5563 = vpop.f32.mrf.mxu0
      %5564 = vmatprep.mubr.bf16.mxu0 0
      %5565 = vmatmul.mubr.bf16.gmra.mxu0 %v5410
      %v5566 = vpop.f32.mrf.mxu0
      %v5567 = vadd.f32 0.0, %v5566
      %v5568 = vpop.f32.mrf.mxu0
      %v5569 = vpop.f32.mrf.mxu0
      %v5570 = vadd.f32 0.0, %v5569
      %v5571 = vpop.f32.mrf.mxu0
      %5572 = vmatprep.mubr.bf16.mxu0 0
      %5573 = vmatmul.mubr.bf16.gmra.mxu0 %v5413
      %v5574 = vpop.f32.mrf.mxu0
      %v5575 = vadd.f32 0.0, %v5574
      %v5576 = vpop.f32.mrf.mxu0
      %v5577 = vpop.f32.mrf.mxu0
      %v5578 = vadd.f32 0.0, %v5577
      %v5579 = vpop.f32.mrf.mxu0
      %5580 = vmatprep.mubr.bf16.mxu0 0
      %5581 = vmatmul.mubr.bf16.gmra.mxu0 %v5416
      %v5582 = vpop.f32.mrf.mxu0
      %v5583 = vadd.f32 0.0, %v5582
      %v5584 = vpop.f32.mrf.mxu0
      %v5585 = vpop.f32.mrf.mxu0
      %v5586 = vadd.f32 0.0, %v5585
      %v5587 = vpop.f32.mrf.mxu0
      %5588 = vmatprep.mubr.bf16.mxu0 0
      %5589 = vmatmul.mubr.bf16.gmra.mxu0 %v5419
      %v5590 = vpop.f32.mrf.mxu0
      %v5591 = vadd.f32 0.0, %v5590
      %v5592 = vpop.f32.mrf.mxu0
      %v5593 = vpop.f32.mrf.mxu0
      %v5594 = vadd.f32 0.0, %v5593
      %v5595 = vpop.f32.mrf.mxu0
      %5596 = vmatprep.mubr.bf16.mxu0 0
      %5597 = vmatmul.mubr.bf16.gmra.mxu0 %v5422
      %v5598 = vpop.f32.mrf.mxu0
      %v5599 = vadd.f32 0.0, %v5598
      %v5600 = vpop.f32.mrf.mxu0
      %v5601 = vpop.f32.mrf.mxu0
      %v5602 = vadd.f32 0.0, %v5601
      %v5603 = vpop.f32.mrf.mxu0
      %5604 = vmatprep.mubr.bf16.mxu0 0
      %5605 = vmatmul.mubr.bf16.gmra.mxu0 %v5425
      %v5606 = vpop.f32.mrf.mxu0
      %v5607 = vadd.f32 0.0, %v5606
      %v5608 = vpop.f32.mrf.mxu0
      %v5609 = vpop.f32.mrf.mxu0
      %v5610 = vadd.f32 0.0, %v5609
      %v5611 = vpop.f32.mrf.mxu0
      %5612 = vmatprep.mubr.bf16.mxu0 0
      %5613 = vmatmul.mubr.bf16.gmra.mxu0 %v5428
      %v5614 = vpop.f32.mrf.mxu0
      %v5615 = vadd.f32 0.0, %v5614
      %v5616 = vpop.f32.mrf.mxu0
      %v5617 = vpop.f32.mrf.mxu0
      %v5618 = vadd.f32 0.0, %v5617
      %v5619 = vpop.f32.mrf.mxu0
      %5620 = vmatprep.mubr.bf16.mxu0 0
      %5621 = vmatmul.mubr.bf16.gmra.mxu0 %v5431
      %v5622 = vpop.f32.mrf.mxu0
      %v5623 = vadd.f32 0.0, %v5622
      %v5624 = vpop.f32.mrf.mxu0
      %v5625 = vpop.f32.mrf.mxu0
      %v5626 = vadd.f32 0.0, %v5625
      %v5627 = vpop.f32.mrf.mxu0
      %5628 = vmatprep.mubr.bf16.mxu0 0
      %5629 = vmatmul.mubr.bf16.gmra.mxu0 %v5434
      %v5630 = vpop.f32.mrf.mxu0
      %v5631 = vadd.f32 0.0, %v5630
      %v5632 = vpop.f32.mrf.mxu0
      %v5633 = vpop.f32.mrf.mxu0
      %v5634 = vadd.f32 0.0, %v5633
      %v5635 = vpop.f32.mrf.mxu0
      %5636 = vdwg.mxu0
      %v5637 = vadd.f32 %v5221, %v5471
      %v5638 = vadd.f32 %v5222, %v5474
      %v5639 = vadd.f32 %v5223, %v5479
      %v5640 = vadd.f32 %v5224, %v5482
      %v5641 = vadd.f32 %v5225, %v5487
      %v5642 = vadd.f32 %v5226, %v5490
      %v5643 = vadd.f32 %v5227, %v5495
      %v5644 = vadd.f32 %v5228, %v5498
      %v5645 = vadd.f32 %v5229, %v5503
      %v5646 = vadd.f32 %v5230, %v5506
      %v5647 = vadd.f32 %v5231, %v5511
      %v5648 = vadd.f32 %v5232, %v5514
      %v5649 = vadd.f32 %v5233, %v5519
      %v5650 = vadd.f32 %v5234, %v5522
      %v5651 = vadd.f32 %v5235, %v5527
      %v5652 = vadd.f32 %v5236, %v5530
      %v5653 = vadd.f32 %v5237, %v5535
      %v5654 = vadd.f32 %v5238, %v5538
      %v5655 = vadd.f32 %v5239, %v5543
      %v5656 = vadd.f32 %v5240, %v5546
      %v5657 = vadd.f32 %v5241, %v5551
      %v5658 = vadd.f32 %v5242, %v5554
      %v5659 = vadd.f32 %v5243, %v5559
      %v5660 = vadd.f32 %v5244, %v5562
      %v5661 = vadd.f32 %v5245, %v5567
      %v5662 = vadd.f32 %v5246, %v5570
      %v5663 = vadd.f32 %v5247, %v5575
      %v5664 = vadd.f32 %v5248, %v5578
      %v5665 = vadd.f32 %v5249, %v5583
      %v5666 = vadd.f32 %v5250, %v5586
      %v5667 = vadd.f32 %v5251, %v5591
      %v5668 = vadd.f32 %v5252, %v5594
      %v5669 = vadd.f32 %v5253, %v5599
      %v5670 = vadd.f32 %v5254, %v5602
      %v5671 = vadd.f32 %v5255, %v5607
      %v5672 = vadd.f32 %v5256, %v5610
      %v5673 = vadd.f32 %v5257, %v5615
      %v5674 = vadd.f32 %v5258, %v5618
      %v5675 = vadd.f32 %v5259, %v5623
      %v5676 = vadd.f32 %v5260, %v5626
      %v5677 = vadd.f32 %v5261, %v5631
      %v5678 = vadd.f32 %v5262, %v5634
      %v5679 = vmax.f32 %v5637, 0.0
      %v5680 = vmax.f32 %v5638, 0.0
      %v5681 = vmax.f32 %v5639, 0.0
      %v5682 = vmax.f32 %v5640, 0.0
      %v5683 = vmax.f32 %v5641, 0.0
      %v5684 = vmax.f32 %v5642, 0.0
      %v5685 = vmax.f32 %v5643, 0.0
      %v5686 = vmax.f32 %v5644, 0.0
      %v5687 = vmax.f32 %v5645, 0.0
      %v5688 = vmax.f32 %v5646, 0.0
      %v5689 = vmax.f32 %v5647, 0.0
      %v5690 = vmax.f32 %v5648, 0.0
      %v5691 = vmax.f32 %v5649, 0.0
      %v5692 = vmax.f32 %v5650, 0.0
      %v5693 = vmax.f32 %v5651, 0.0
      %v5694 = vmax.f32 %v5652, 0.0
      %v5695 = vmax.f32 %v5653, 0.0
      %v5696 = vmax.f32 %v5654, 0.0
      %v5697 = vmax.f32 %v5655, 0.0
      %v5698 = vmax.f32 %v5656, 0.0
      %v5699 = vmax.f32 %v5657, 0.0
      %v5700 = vmax.f32 %v5658, 0.0
      %v5701 = vmax.f32 %v5659, 0.0
      %v5702 = vmax.f32 %v5660, 0.0
      %v5703 = vmax.f32 %v5661, 0.0
      %v5704 = vmax.f32 %v5662, 0.0
      %v5705 = vmax.f32 %v5663, 0.0
      %v5706 = vmax.f32 %v5664, 0.0
      %v5707 = vmax.f32 %v5665, 0.0
      %v5708 = vmax.f32 %v5666, 0.0
      %v5709 = vmax.f32 %v5667, 0.0
      %v5710 = vmax.f32 %v5668, 0.0
      %v5711 = vmax.f32 %v5669, 0.0
      %v5712 = vmax.f32 %v5670, 0.0
      %v5713 = vmax.f32 %v5671, 0.0
      %v5714 = vmax.f32 %v5672, 0.0
      %v5715 = vmax.f32 %v5673, 0.0
      %v5716 = vmax.f32 %v5674, 0.0
      %v5717 = vmax.f32 %v5675, 0.0
      %v5718 = vmax.f32 %v5676, 0.0
      %v5719 = vmax.f32 %v5677, 0.0
      %v5720 = vmax.f32 %v5678, 0.0
      %v5721 = vpack.c.bf16 %v5680, %v5679
      %v5722 = vpack.c.bf16 %v5682, %v5681
      %v5723 = vpack.c.bf16 %v5684, %v5683
      %v5724 = vpack.c.bf16 %v5686, %v5685
      %v5725 = vpack.c.bf16 %v5688, %v5687
      %v5726 = vpack.c.bf16 %v5690, %v5689
      %v5727 = vpack.c.bf16 %v5692, %v5691
      %v5728 = vpack.c.bf16 %v5694, %v5693
      %v5729 = vpack.c.bf16 %v5696, %v5695
      %v5730 = vpack.c.bf16 %v5698, %v5697
      %v5731 = vpack.c.bf16 %v5700, %v5699
      %v5732 = vpack.c.bf16 %v5702, %v5701
      %v5733 = vpack.c.bf16 %v5704, %v5703
      %v5734 = vpack.c.bf16 %v5706, %v5705
      %v5735 = vpack.c.bf16 %v5708, %v5707
      %v5736 = vpack.c.bf16 %v5710, %v5709
      %v5737 = vpack.c.bf16 %v5712, %v5711
      %v5738 = vpack.c.bf16 %v5714, %v5713
      %v5739 = vpack.c.bf16 %v5716, %v5715
      %v5740 = vpack.c.bf16 %v5718, %v5717
      %v5741 = vpack.c.bf16 %v5720, %v5719
      %v5742 = vld [vmem:[%s1 + $0x150] sm:$0xf]
      %v5743 = vld [vmem:[%s1 + $0x15c] sm:$0xf]
      %v5744 = vld [vmem:[%s2 + $0x1] ss:$0 sm:$0xff]
      %v5747 = vunpack.c.l.b16 %v5742
      %v5748 = vunpack.c.l.b16 %v5743
      %v5749 = vpack.c.b16 %v5748, %v5747
      %v5752 = vsel %vm1544, %v5721, 0
      %v5755 = vsel %vm1544, %v5722, 0
      %v5758 = vsel %vm1544, %v5723, 0
      %v5761 = vsel %vm1544, %v5724, 0
      %v5764 = vsel %vm1544, %v5725, 0
      %v5767 = vsel %vm1544, %v5726, 0
      %v5770 = vsel %vm1544, %v5727, 0
      %v5773 = vsel %vm1544, %v5728, 0
      %v5776 = vsel %vm1544, %v5729, 0
      %v5779 = vsel %vm1544, %v5730, 0
      %v5782 = vsel %vm1544, %v5731, 0
      %v5785 = vsel %vm1544, %v5732, 0
      %v5788 = vsel %vm1544, %v5733, 0
      %v5791 = vsel %vm1544, %v5734, 0
      %v5794 = vsel %vm1544, %v5735, 0
      %v5797 = vsel %vm1544, %v5736, 0
      %v5800 = vsel %vm1544, %v5737, 0
      %v5803 = vsel %vm1544, %v5738, 0
      %v5806 = vsel %vm1544, %v5739, 0
      %v5809 = vsel %vm1544, %v5740, 0
      %v5812 = vsel %vm1544, %v5741, 0
      %5814 = vmatprep.subr.bf16.mxu0 0
      %5815 = vmatpush1.bf16.msra.mxu0 0
      %5816 = vmatprep.subr.bf16.mxu0 0
      %5817 = vmatpush1.bf16.msra.mxu0 0
      %5818 = vmatprep.subr.bf16.mxu0 0
      %5819 = vmatpush1.bf16.msra.mxu0 0
      %5820 = vmatprep.subr.bf16.mxu0 0
      %5821 = vmatpush1.bf16.msra.mxu0 0
      %5822 = vmatprep.subr.bf16.mxu0 0
      %5823 = vmatpush1.bf16.msra.mxu0 0
      %5824 = vmatprep.subr.bf16.mxu0 0
      %5825 = vmatpush1.bf16.msra.mxu0 0
      %5826 = vmatprep.subr.bf16.mxu0 0
      %5827 = vmatpush1.bf16.msra.mxu0 0
      %5828 = vmatprep.subr.bf16.mxu0 0
      %5829 = vmatpush1.bf16.msra.mxu0 %v5749
      %5830 = vmatprep.subr.bf16.mxu0 0
      %5831 = vmatpush2.bf16.msra.mxu0 0
      %5832 = vmatprep.subr.bf16.mxu0 0
      %5833 = vmatpush2.bf16.msra.mxu0 0
      %5834 = vmatprep.subr.bf16.mxu0 0
      %5835 = vmatpush2.bf16.msra.mxu0 0
      %5836 = vmatprep.subr.bf16.mxu0 0
      %5837 = vmatpush2.bf16.msra.mxu0 0
      %5838 = vmatprep.subr.bf16.mxu0 0
      %5839 = vmatpush2.bf16.msra.mxu0 0
      %5840 = vmatprep.subr.bf16.mxu0 0
      %5841 = vmatpush2.bf16.msra.mxu0 0
      %5842 = vmatprep.subr.bf16.mxu0 0
      %5843 = vmatpush2.bf16.msra.mxu0 0
      %5844 = vmatprep.subr.bf16.mxu0 0
      %5845 = vmatpush2.bf16.msra.mxu0 0
      %5846 = vmatprep.mubr.bf16.mxu0 0
      %5847 = vmatmul.mubr.bf16.gmra.mxu0 %v5752
      %v5848 = vpop.f32.mrf.mxu0
      %v5849 = vadd.f32 %v5744, %v5848
      %v5850 = vpop.f32.mrf.mxu0
      %v5851 = vpop.f32.mrf.mxu0
      %v5852 = vadd.f32 %v5744, %v5851
      %v5853 = vpop.f32.mrf.mxu0
      %5854 = vmatprep.mubr.bf16.mxu0 0
      %5855 = vmatmul.mubr.bf16.gmra.mxu0 %v5755
      %v5856 = vpop.f32.mrf.mxu0
      %v5857 = vadd.f32 %v5744, %v5856
      %v5858 = vpop.f32.mrf.mxu0
      %v5859 = vpop.f32.mrf.mxu0
      %v5860 = vadd.f32 %v5744, %v5859
      %v5861 = vpop.f32.mrf.mxu0
      %5862 = vmatprep.mubr.bf16.mxu0 0
      %5863 = vmatmul.mubr.bf16.gmra.mxu0 %v5758
      %v5864 = vpop.f32.mrf.mxu0
      %v5865 = vadd.f32 %v5744, %v5864
      %v5866 = vpop.f32.mrf.mxu0
      %v5867 = vpop.f32.mrf.mxu0
      %v5868 = vadd.f32 %v5744, %v5867
      %v5869 = vpop.f32.mrf.mxu0
      %5870 = vmatprep.mubr.bf16.mxu0 0
      %5871 = vmatmul.mubr.bf16.gmra.mxu0 %v5761
      %v5872 = vpop.f32.mrf.mxu0
      %v5873 = vadd.f32 %v5744, %v5872
      %v5874 = vpop.f32.mrf.mxu0
      %v5875 = vpop.f32.mrf.mxu0
      %v5876 = vadd.f32 %v5744, %v5875
      %v5877 = vpop.f32.mrf.mxu0
      %5878 = vmatprep.mubr.bf16.mxu0 0
      %5879 = vmatmul.mubr.bf16.gmra.mxu0 %v5764
      %v5880 = vpop.f32.mrf.mxu0
      %v5881 = vadd.f32 %v5744, %v5880
      %v5882 = vpop.f32.mrf.mxu0
      %v5883 = vpop.f32.mrf.mxu0
      %v5884 = vadd.f32 %v5744, %v5883
      %v5885 = vpop.f32.mrf.mxu0
      %5886 = vmatprep.mubr.bf16.mxu0 0
      %5887 = vmatmul.mubr.bf16.gmra.mxu0 %v5767
      %v5888 = vpop.f32.mrf.mxu0
      %v5889 = vadd.f32 %v5744, %v5888
      %v5890 = vpop.f32.mrf.mxu0
      %v5891 = vpop.f32.mrf.mxu0
      %v5892 = vadd.f32 %v5744, %v5891
      %v5893 = vpop.f32.mrf.mxu0
      %5894 = vmatprep.mubr.bf16.mxu0 0
      %5895 = vmatmul.mubr.bf16.gmra.mxu0 %v5770
      %v5896 = vpop.f32.mrf.mxu0
      %v5897 = vadd.f32 %v5744, %v5896
      %v5898 = vpop.f32.mrf.mxu0
      %v5899 = vpop.f32.mrf.mxu0
      %v5900 = vadd.f32 %v5744, %v5899
      %v5901 = vpop.f32.mrf.mxu0
      %5902 = vmatprep.mubr.bf16.mxu0 0
      %5903 = vmatmul.mubr.bf16.gmra.mxu0 %v5773
      %v5904 = vpop.f32.mrf.mxu0
      %v5905 = vadd.f32 %v5744, %v5904
      %v5906 = vpop.f32.mrf.mxu0
      %v5907 = vpop.f32.mrf.mxu0
      %v5908 = vadd.f32 %v5744, %v5907
      %v5909 = vpop.f32.mrf.mxu0
      %5910 = vmatprep.mubr.bf16.mxu0 0
      %5911 = vmatmul.mubr.bf16.gmra.mxu0 %v5776
      %v5912 = vpop.f32.mrf.mxu0
      %v5913 = vadd.f32 %v5744, %v5912
      %v5914 = vpop.f32.mrf.mxu0
      %v5915 = vpop.f32.mrf.mxu0
      %v5916 = vadd.f32 %v5744, %v5915
      %v5917 = vpop.f32.mrf.mxu0
      %5918 = vmatprep.mubr.bf16.mxu0 0
      %5919 = vmatmul.mubr.bf16.gmra.mxu0 %v5779
      %v5920 = vpop.f32.mrf.mxu0
      %v5921 = vadd.f32 %v5744, %v5920
      %v5922 = vpop.f32.mrf.mxu0
      %v5923 = vpop.f32.mrf.mxu0
      %v5924 = vadd.f32 %v5744, %v5923
      %v5925 = vpop.f32.mrf.mxu0
      %5926 = vmatprep.mubr.bf16.mxu0 0
      %5927 = vmatmul.mubr.bf16.gmra.mxu0 %v5782
      %v5928 = vpop.f32.mrf.mxu0
      %v5929 = vadd.f32 %v5744, %v5928
      %v5930 = vpop.f32.mrf.mxu0
      %v5931 = vpop.f32.mrf.mxu0
      %v5932 = vadd.f32 %v5744, %v5931
      %v5933 = vpop.f32.mrf.mxu0
      %5934 = vmatprep.mubr.bf16.mxu0 0
      %5935 = vmatmul.mubr.bf16.gmra.mxu0 %v5785
      %v5936 = vpop.f32.mrf.mxu0
      %v5937 = vadd.f32 %v5744, %v5936
      %v5938 = vpop.f32.mrf.mxu0
      %v5939 = vpop.f32.mrf.mxu0
      %v5940 = vadd.f32 %v5744, %v5939
      %v5941 = vpop.f32.mrf.mxu0
      %5942 = vmatprep.mubr.bf16.mxu0 0
      %5943 = vmatmul.mubr.bf16.gmra.mxu0 %v5788
      %v5944 = vpop.f32.mrf.mxu0
      %v5945 = vadd.f32 %v5744, %v5944
      %v5946 = vpop.f32.mrf.mxu0
      %v5947 = vpop.f32.mrf.mxu0
      %v5948 = vadd.f32 %v5744, %v5947
      %v5949 = vpop.f32.mrf.mxu0
      %5950 = vmatprep.mubr.bf16.mxu0 0
      %5951 = vmatmul.mubr.bf16.gmra.mxu0 %v5791
      %v5952 = vpop.f32.mrf.mxu0
      %v5953 = vadd.f32 %v5744, %v5952
      %v5954 = vpop.f32.mrf.mxu0
      %v5955 = vpop.f32.mrf.mxu0
      %v5956 = vadd.f32 %v5744, %v5955
      %v5957 = vpop.f32.mrf.mxu0
      %5958 = vmatprep.mubr.bf16.mxu0 0
      %5959 = vmatmul.mubr.bf16.gmra.mxu0 %v5794
      %v5960 = vpop.f32.mrf.mxu0
      %v5961 = vadd.f32 %v5744, %v5960
      %v5962 = vpop.f32.mrf.mxu0
      %v5963 = vpop.f32.mrf.mxu0
      %v5964 = vadd.f32 %v5744, %v5963
      %v5965 = vpop.f32.mrf.mxu0
      %5966 = vmatprep.mubr.bf16.mxu0 0
      %5967 = vmatmul.mubr.bf16.gmra.mxu0 %v5797
      %v5968 = vpop.f32.mrf.mxu0
      %v5969 = vadd.f32 %v5744, %v5968
      %v5970 = vpop.f32.mrf.mxu0
      %v5971 = vpop.f32.mrf.mxu0
      %v5972 = vadd.f32 %v5744, %v5971
      %v5973 = vpop.f32.mrf.mxu0
      %5974 = vmatprep.mubr.bf16.mxu0 0
      %5975 = vmatmul.mubr.bf16.gmra.mxu0 %v5800
      %v5976 = vpop.f32.mrf.mxu0
      %v5977 = vadd.f32 %v5744, %v5976
      %v5978 = vpop.f32.mrf.mxu0
      %v5979 = vpop.f32.mrf.mxu0
      %v5980 = vadd.f32 %v5744, %v5979
      %v5981 = vpop.f32.mrf.mxu0
      %5982 = vmatprep.mubr.bf16.mxu0 0
      %5983 = vmatmul.mubr.bf16.gmra.mxu0 %v5803
      %v5984 = vpop.f32.mrf.mxu0
      %v5985 = vadd.f32 %v5744, %v5984
      %v5986 = vpop.f32.mrf.mxu0
      %v5987 = vpop.f32.mrf.mxu0
      %v5988 = vadd.f32 %v5744, %v5987
      %v5989 = vpop.f32.mrf.mxu0
      %5990 = vmatprep.mubr.bf16.mxu0 0
      %5991 = vmatmul.mubr.bf16.gmra.mxu0 %v5806
      %v5992 = vpop.f32.mrf.mxu0
      %v5993 = vadd.f32 %v5744, %v5992
      %v5994 = vpop.f32.mrf.mxu0
      %v5995 = vpop.f32.mrf.mxu0
      %v5996 = vadd.f32 %v5744, %v5995
      %v5997 = vpop.f32.mrf.mxu0
      %5998 = vmatprep.mubr.bf16.mxu0 0
      %5999 = vmatmul.mubr.bf16.gmra.mxu0 %v5809
      %v6000 = vpop.f32.mrf.mxu0
      %v6001 = vadd.f32 %v5744, %v6000
      %v6002 = vpop.f32.mrf.mxu0
      %v6003 = vpop.f32.mrf.mxu0
      %v6004 = vadd.f32 %v5744, %v6003
      %v6005 = vpop.f32.mrf.mxu0
      %6006 = vmatprep.mubr.bf16.mxu0 0
      %6007 = vmatmul.mubr.bf16.gmra.mxu0 %v5812
      %v6008 = vpop.f32.mrf.mxu0
      %v6009 = vadd.f32 %v5744, %v6008
      %v6010 = vpop.f32.mrf.mxu0
      %v6011 = vpop.f32.mrf.mxu0
      %v6012 = vadd.f32 %v5744, %v6011
      %v6013 = vpop.f32.mrf.mxu0
      %6014 = vdwg.mxu0
      %v6015 = vmax.f32 %v5849, 0.0
      %v6016 = vmax.f32 %v5852, 0.0
      %v6017 = vmax.f32 %v5857, 0.0
      %v6018 = vmax.f32 %v5860, 0.0
      %v6019 = vmax.f32 %v5865, 0.0
      %v6020 = vmax.f32 %v5868, 0.0
      %v6021 = vmax.f32 %v5873, 0.0
      %v6022 = vmax.f32 %v5876, 0.0
      %v6023 = vmax.f32 %v5881, 0.0
      %v6024 = vmax.f32 %v5884, 0.0
      %v6025 = vmax.f32 %v5889, 0.0
      %v6026 = vmax.f32 %v5892, 0.0
      %v6027 = vmax.f32 %v5897, 0.0
      %v6028 = vmax.f32 %v5900, 0.0
      %v6029 = vmax.f32 %v5905, 0.0
      %v6030 = vmax.f32 %v5908, 0.0
      %v6031 = vmax.f32 %v5913, 0.0
      %v6032 = vmax.f32 %v5916, 0.0
      %v6033 = vmax.f32 %v5921, 0.0
      %v6034 = vmax.f32 %v5924, 0.0
      %v6035 = vmax.f32 %v5929, 0.0
      %v6036 = vmax.f32 %v5932, 0.0
      %v6037 = vmax.f32 %v5937, 0.0
      %v6038 = vmax.f32 %v5940, 0.0
      %v6039 = vmax.f32 %v5945, 0.0
      %v6040 = vmax.f32 %v5948, 0.0
      %v6041 = vmax.f32 %v5953, 0.0
      %v6042 = vmax.f32 %v5956, 0.0
      %v6043 = vmax.f32 %v5961, 0.0
      %v6044 = vmax.f32 %v5964, 0.0
      %v6045 = vmax.f32 %v5969, 0.0
      %v6046 = vmax.f32 %v5972, 0.0
      %v6047 = vmax.f32 %v5977, 0.0
      %v6048 = vmax.f32 %v5980, 0.0
      %v6049 = vmax.f32 %v5985, 0.0
      %v6050 = vmax.f32 %v5988, 0.0
      %v6051 = vmax.f32 %v5993, 0.0
      %v6052 = vmax.f32 %v5996, 0.0
      %v6053 = vmax.f32 %v6001, 0.0
      %v6054 = vmax.f32 %v6004, 0.0
      %v6055 = vmax.f32 %v6009, 0.0
      %v6056 = vmax.f32 %v6012, 0.0
      %v6057 = vpack.c.bf16 %v6016, %v6015
      %v6058 = vpack.c.bf16 %v6018, %v6017
      %v6059 = vpack.c.bf16 %v6020, %v6019
      %v6060 = vpack.c.bf16 %v6022, %v6021
      %v6061 = vpack.c.bf16 %v6024, %v6023
      %v6062 = vpack.c.bf16 %v6026, %v6025
      %v6063 = vpack.c.bf16 %v6028, %v6027
      %v6064 = vpack.c.bf16 %v6030, %v6029
      %v6065 = vpack.c.bf16 %v6032, %v6031
      %v6066 = vpack.c.bf16 %v6034, %v6033
      %v6067 = vpack.c.bf16 %v6036, %v6035
      %v6068 = vpack.c.bf16 %v6038, %v6037
      %v6069 = vpack.c.bf16 %v6040, %v6039
      %v6070 = vpack.c.bf16 %v6042, %v6041
      %v6071 = vpack.c.bf16 %v6044, %v6043
      %v6072 = vpack.c.bf16 %v6046, %v6045
      %v6073 = vpack.c.bf16 %v6048, %v6047
      %v6074 = vpack.c.bf16 %v6050, %v6049
      %v6075 = vpack.c.bf16 %v6052, %v6051
      %v6076 = vpack.c.bf16 %v6054, %v6053
      %v6077 = vpack.c.bf16 %v6056, %v6055
      %v6078 = vld [vmem:[%s1 + $0x168] sm:$0xff]
      %v6079 = vld [vmem:[%s1 + $0x170] sm:$0xf]
      %v6080 = vld [vmem:[%s1 + $0x174] sm:$0xff]
      %v6081 = vld [vmem:[%s1 + $0x17c] sm:$0xf]
      %v6082 = vld [vmem:[%s1 + $0x180] sm:$0xff]
      %v6083 = vld [vmem:[%s1 + $0x188] sm:$0xf]
      %v6084 = vld [vmem:[%s1 + $0x18c] sm:$0xff]
      %v6085 = vld [vmem:[%s1 + $0x194] sm:$0xf]
      %v6086 = vld [vmem:[%s1 + $0x198] sm:$0xff]
      %v6087 = vld [vmem:[%s1 + $0x1a0] sm:$0xf]
      %v6088 = vld [vmem:[%s1 + $0x1a4] sm:$0xff]
      %v6089 = vld [vmem:[%s1 + $0x1ac] sm:$0xf]
      %v6090 = vld [vmem:[%s1 + $0x1b0] sm:$0x11]
      %v6091 = vld [vmem:[%s1 + $0x1b8] sm:$0x1]
      %s6092 = scalar_lea.vmem %s2, 2
      %v6093 = vld [vmem:[%s6092] ss:$8 sm:$0x7]
      %v6095 = vlaneseq
      %v6096 = vshrl.u32 %v6095, 7
      %v6097 = vsub.s32 0, %v6096
      %v6098 = vrot.slane %v6093, %v6097
      %v6099 = vlaneseq
      %v6100 = vshrl.u32 %v6099, 7
      %v6101 = vsub.s32 1, %v6100
      %v6102 = vrot.slane %v6093, %v6101
      %v6103 = vlaneseq
      %v6104 = vshrl.u32 %v6103, 7
      %v6105 = vsub.s32 2, %v6104
      %v6106 = vrot.slane %v6093, %v6105
      %v6124 = vunpack.c.l.b16 %v6078
      %v6125 = vunpack.c.h.b16 %v6078
      %v6126 = vunpack.c.l.b16 %v6079
      %v6127 = vunpack.c.l.b16 %v6080
      %v6128 = vunpack.c.h.b16 %v6080
      %v6129 = vunpack.c.l.b16 %v6081
      %v6130 = vunpack.c.l.b16 %v6082
      %v6131 = vunpack.c.h.b16 %v6082
      %v6132 = vunpack.c.l.b16 %v6083
      %v6133 = vunpack.c.l.b16 %v6084
      %v6134 = vunpack.c.h.b16 %v6084
      %v6135 = vunpack.c.l.b16 %v6085
      %v6136 = vunpack.c.l.b16 %v6086
      %v6137 = vunpack.c.h.b16 %v6086
      %v6138 = vunpack.c.l.b16 %v6087
      %v6139 = vunpack.c.l.b16 %v6088
      %v6140 = vunpack.c.h.b16 %v6088
      %v6141 = vunpack.c.l.b16 %v6089
      %v6142 = vunpack.c.l.b16 %v6090
      %v6143 = vunpack.c.h.b16 %v6090
      %v6144 = vunpack.c.l.b16 %v6091
      %v6145 = vpack.c.b16 %v6127, %v6124
      %v6146 = vpack.c.b16 %v6128, %v6125
      %v6147 = vpack.c.b16 %v6129, %v6126
      %v6148 = vpack.c.b16 %v6133, %v6130
      %v6149 = vpack.c.b16 %v6134, %v6131
      %v6150 = vpack.c.b16 %v6135, %v6132
      %v6151 = vpack.c.b16 %v6139, %v6136
      %v6152 = vpack.c.b16 %v6140, %v6137
      %v6153 = vpack.c.b16 %v6141, %v6138
      %v6154 = vpack.c.b16 %v6142, %v6142
      %v6155 = vpack.c.b16 %v6143, %v6143
      %v6156 = vpack.c.b16 %v6144, %v6144
      %vm6166 = vcmask 408576
      %v6168 = vsel %vm6166, %v6057, 0
      %v6171 = vsel %vm6166, %v6058, 0
      %v6174 = vsel %vm6166, %v6059, 0
      %v6177 = vsel %vm6166, %v6060, 0
      %v6180 = vsel %vm6166, %v6061, 0
      %v6183 = vsel %vm6166, %v6062, 0
      %v6186 = vsel %vm6166, %v6063, 0
      %v6189 = vsel %vm6166, %v6064, 0
      %v6192 = vsel %vm6166, %v6065, 0
      %v6195 = vsel %vm6166, %v6066, 0
      %v6198 = vsel %vm6166, %v6067, 0
      %v6201 = vsel %vm6166, %v6068, 0
      %v6204 = vsel %vm6166, %v6069, 0
      %v6207 = vsel %vm6166, %v6070, 0
      %v6210 = vsel %vm6166, %v6071, 0
      %v6213 = vsel %vm6166, %v6072, 0
      %v6216 = vsel %vm6166, %v6073, 0
      %v6219 = vsel %vm6166, %v6074, 0
      %v6222 = vsel %vm6166, %v6075, 0
      %v6225 = vsel %vm6166, %v6076, 0
      %v6228 = vsel %vm6166, %v6077, 0
      %vm6230 = vcmask 1040384
      %v6232 = vsel %vm6230, %v6154, 0
      %v6235 = vsel %vm6230, %v6155, 0
      %v6238 = vsel %vm6230, %v6156, 0
      %6240 = vmatprep.subr.bf16.mxu0 0
      %6241 = vmatpush1.bf16.msra.mxu0 0
      %6242 = vmatprep.subr.bf16.mxu0 0
      %6243 = vmatpush1.bf16.msra.mxu0 0
      %6244 = vmatprep.subr.bf16.mxu0 0
      %6245 = vmatpush1.bf16.msra.mxu0 0
      %6246 = vmatprep.subr.bf16.mxu0 0
      %6247 = vmatpush1.bf16.msra.mxu0 0
      %6248 = vmatprep.subr.bf16.mxu0 %v6235
      %6249 = vmatpush1.bf16.msra.mxu0 %v6232
      %6250 = vmatprep.subr.bf16.mxu0 %v6152
      %6251 = vmatpush1.bf16.msra.mxu0 %v6151
      %6252 = vmatprep.subr.bf16.mxu0 %v6149
      %6253 = vmatpush1.bf16.msra.mxu0 %v6148
      %6254 = vmatprep.subr.bf16.mxu0 %v6146
      %6255 = vmatpush1.bf16.msra.mxu0 %v6145
      %6256 = vmatprep.subr.bf16.mxu0 0
      %6257 = vmatpush2.bf16.msra.mxu0 0
      %6258 = vmatprep.subr.bf16.mxu0 0
      %6259 = vmatpush2.bf16.msra.mxu0 0
      %6260 = vmatprep.subr.bf16.mxu0 0
      %6261 = vmatpush2.bf16.msra.mxu0 0
      %6262 = vmatprep.subr.bf16.mxu0 0
      %6263 = vmatpush2.bf16.msra.mxu0 0
      %6264 = vmatprep.subr.bf16.mxu0 0
      %6265 = vmatpush2.bf16.msra.mxu0 0
      %6266 = vmatprep.subr.bf16.mxu0 0
      %6267 = vmatpush2.bf16.msra.mxu0 0
      %6268 = vmatprep.subr.bf16.mxu0 0
      %6269 = vmatpush2.bf16.msra.mxu0 0
      %6270 = vmatprep.subr.bf16.mxu0 0
      %6271 = vmatpush2.bf16.msra.mxu0 0
      %6272 = vmatprep.mubr.bf16.mxu0 0
      %6273 = vmatmul.mubr.bf16.gmra.mxu0 %v6168
      %v6274 = vpop.f32.mrf.mxu0
      %v6275 = vadd.f32 %v6098, %v6274
      %v6276 = vpop.f32.mrf.mxu0
      %v6277 = vadd.f32 %v6102, %v6276
      %v6278 = vpop.f32.mrf.mxu0
      %v6279 = vadd.f32 %v6098, %v6278
      %v6280 = vpop.f32.mrf.mxu0
      %v6281 = vadd.f32 %v6102, %v6280
      %6282 = vmatprep.mubr.bf16.mxu0 0
      %6283 = vmatmul.mubr.bf16.gmra.mxu0 %v6171
      %v6284 = vpop.f32.mrf.mxu0
      %v6285 = vadd.f32 %v6098, %v6284
      %v6286 = vpop.f32.mrf.mxu0
      %v6287 = vadd.f32 %v6102, %v6286
      %v6288 = vpop.f32.mrf.mxu0
      %v6289 = vadd.f32 %v6098, %v6288
      %v6290 = vpop.f32.mrf.mxu0
      %v6291 = vadd.f32 %v6102, %v6290
      %6292 = vmatprep.mubr.bf16.mxu0 0
      %6293 = vmatmul.mubr.bf16.gmra.mxu0 %v6174
      %v6294 = vpop.f32.mrf.mxu0
      %v6295 = vadd.f32 %v6098, %v6294
      %v6296 = vpop.f32.mrf.mxu0
      %v6297 = vadd.f32 %v6102, %v6296
      %v6298 = vpop.f32.mrf.mxu0
      %v6299 = vadd.f32 %v6098, %v6298
      %v6300 = vpop.f32.mrf.mxu0
      %v6301 = vadd.f32 %v6102, %v6300
      %6302 = vmatprep.mubr.bf16.mxu0 0
      %6303 = vmatmul.mubr.bf16.gmra.mxu0 %v6177
      %v6304 = vpop.f32.mrf.mxu0
      %v6305 = vadd.f32 %v6098, %v6304
      %v6306 = vpop.f32.mrf.mxu0
      %v6307 = vadd.f32 %v6102, %v6306
      %v6308 = vpop.f32.mrf.mxu0
      %v6309 = vadd.f32 %v6098, %v6308
      %v6310 = vpop.f32.mrf.mxu0
      %v6311 = vadd.f32 %v6102, %v6310
      %6312 = vmatprep.mubr.bf16.mxu0 0
      %6313 = vmatmul.mubr.bf16.gmra.mxu0 %v6180
      %v6314 = vpop.f32.mrf.mxu0
      %v6315 = vadd.f32 %v6098, %v6314
      %v6316 = vpop.f32.mrf.mxu0
      %v6317 = vadd.f32 %v6102, %v6316
      %v6318 = vpop.f32.mrf.mxu0
      %v6319 = vadd.f32 %v6098, %v6318
      %v6320 = vpop.f32.mrf.mxu0
      %v6321 = vadd.f32 %v6102, %v6320
      %6322 = vmatprep.mubr.bf16.mxu0 0
      %6323 = vmatmul.mubr.bf16.gmra.mxu0 %v6183
      %v6324 = vpop.f32.mrf.mxu0
      %v6325 = vadd.f32 %v6098, %v6324
      %v6326 = vpop.f32.mrf.mxu0
      %v6327 = vadd.f32 %v6102, %v6326
      %v6328 = vpop.f32.mrf.mxu0
      %v6329 = vadd.f32 %v6098, %v6328
      %v6330 = vpop.f32.mrf.mxu0
      %v6331 = vadd.f32 %v6102, %v6330
      %6332 = vmatprep.mubr.bf16.mxu0 0
      %6333 = vmatmul.mubr.bf16.gmra.mxu0 %v6186
      %v6334 = vpop.f32.mrf.mxu0
      %v6335 = vadd.f32 %v6098, %v6334
      %v6336 = vpop.f32.mrf.mxu0
      %v6337 = vadd.f32 %v6102, %v6336
      %v6338 = vpop.f32.mrf.mxu0
      %v6339 = vadd.f32 %v6098, %v6338
      %v6340 = vpop.f32.mrf.mxu0
      %v6341 = vadd.f32 %v6102, %v6340
      %6342 = vmatprep.mubr.bf16.mxu0 0
      %6343 = vmatmul.mubr.bf16.gmra.mxu0 %v6189
      %v6344 = vpop.f32.mrf.mxu0
      %v6345 = vadd.f32 %v6098, %v6344
      %v6346 = vpop.f32.mrf.mxu0
      %v6347 = vadd.f32 %v6102, %v6346
      %v6348 = vpop.f32.mrf.mxu0
      %v6349 = vadd.f32 %v6098, %v6348
      %v6350 = vpop.f32.mrf.mxu0
      %v6351 = vadd.f32 %v6102, %v6350
      %6352 = vmatprep.mubr.bf16.mxu0 0
      %6353 = vmatmul.mubr.bf16.gmra.mxu0 %v6192
      %v6354 = vpop.f32.mrf.mxu0
      %v6355 = vadd.f32 %v6098, %v6354
      %v6356 = vpop.f32.mrf.mxu0
      %v6357 = vadd.f32 %v6102, %v6356
      %v6358 = vpop.f32.mrf.mxu0
      %v6359 = vadd.f32 %v6098, %v6358
      %v6360 = vpop.f32.mrf.mxu0
      %v6361 = vadd.f32 %v6102, %v6360
      %6362 = vmatprep.mubr.bf16.mxu0 0
      %6363 = vmatmul.mubr.bf16.gmra.mxu0 %v6195
      %v6364 = vpop.f32.mrf.mxu0
      %v6365 = vadd.f32 %v6098, %v6364
      %v6366 = vpop.f32.mrf.mxu0
      %v6367 = vadd.f32 %v6102, %v6366
      %v6368 = vpop.f32.mrf.mxu0
      %v6369 = vadd.f32 %v6098, %v6368
      %v6370 = vpop.f32.mrf.mxu0
      %v6371 = vadd.f32 %v6102, %v6370
      %6372 = vmatprep.mubr.bf16.mxu0 0
      %6373 = vmatmul.mubr.bf16.gmra.mxu0 %v6198
      %v6374 = vpop.f32.mrf.mxu0
      %v6375 = vadd.f32 %v6098, %v6374
      %v6376 = vpop.f32.mrf.mxu0
      %v6377 = vadd.f32 %v6102, %v6376
      %v6378 = vpop.f32.mrf.mxu0
      %v6379 = vadd.f32 %v6098, %v6378
      %v6380 = vpop.f32.mrf.mxu0
      %v6381 = vadd.f32 %v6102, %v6380
      %6382 = vmatprep.mubr.bf16.mxu0 0
      %6383 = vmatmul.mubr.bf16.gmra.mxu0 %v6201
      %v6384 = vpop.f32.mrf.mxu0
      %v6385 = vadd.f32 %v6098, %v6384
      %v6386 = vpop.f32.mrf.mxu0
      %v6387 = vadd.f32 %v6102, %v6386
      %v6388 = vpop.f32.mrf.mxu0
      %v6389 = vadd.f32 %v6098, %v6388
      %v6390 = vpop.f32.mrf.mxu0
      %v6391 = vadd.f32 %v6102, %v6390
      %6392 = vmatprep.mubr.bf16.mxu0 0
      %6393 = vmatmul.mubr.bf16.gmra.mxu0 %v6204
      %v6394 = vpop.f32.mrf.mxu0
      %v6395 = vadd.f32 %v6098, %v6394
      %v6396 = vpop.f32.mrf.mxu0
      %v6397 = vadd.f32 %v6102, %v6396
      %v6398 = vpop.f32.mrf.mxu0
      %v6399 = vadd.f32 %v6098, %v6398
      %v6400 = vpop.f32.mrf.mxu0
      %v6401 = vadd.f32 %v6102, %v6400
      %6402 = vmatprep.mubr.bf16.mxu0 0
      %6403 = vmatmul.mubr.bf16.gmra.mxu0 %v6207
      %v6404 = vpop.f32.mrf.mxu0
      %v6405 = vadd.f32 %v6098, %v6404
      %v6406 = vpop.f32.mrf.mxu0
      %v6407 = vadd.f32 %v6102, %v6406
      %v6408 = vpop.f32.mrf.mxu0
      %v6409 = vadd.f32 %v6098, %v6408
      %v6410 = vpop.f32.mrf.mxu0
      %v6411 = vadd.f32 %v6102, %v6410
      %6412 = vmatprep.mubr.bf16.mxu0 0
      %6413 = vmatmul.mubr.bf16.gmra.mxu0 %v6210
      %v6414 = vpop.f32.mrf.mxu0
      %v6415 = vadd.f32 %v6098, %v6414
      %v6416 = vpop.f32.mrf.mxu0
      %v6417 = vadd.f32 %v6102, %v6416
      %v6418 = vpop.f32.mrf.mxu0
      %v6419 = vadd.f32 %v6098, %v6418
      %v6420 = vpop.f32.mrf.mxu0
      %v6421 = vadd.f32 %v6102, %v6420
      %6422 = vmatprep.mubr.bf16.mxu0 0
      %6423 = vmatmul.mubr.bf16.gmra.mxu0 %v6213
      %v6424 = vpop.f32.mrf.mxu0
      %v6425 = vadd.f32 %v6098, %v6424
      %v6426 = vpop.f32.mrf.mxu0
      %v6427 = vadd.f32 %v6102, %v6426
      %v6428 = vpop.f32.mrf.mxu0
      %v6429 = vadd.f32 %v6098, %v6428
      %v6430 = vpop.f32.mrf.mxu0
      %v6431 = vadd.f32 %v6102, %v6430
      %6432 = vmatprep.mubr.bf16.mxu0 0
      %6433 = vmatmul.mubr.bf16.gmra.mxu0 %v6216
      %v6434 = vpop.f32.mrf.mxu0
      %v6435 = vadd.f32 %v6098, %v6434
      %v6436 = vpop.f32.mrf.mxu0
      %v6437 = vadd.f32 %v6102, %v6436
      %v6438 = vpop.f32.mrf.mxu0
      %v6439 = vadd.f32 %v6098, %v6438
      %v6440 = vpop.f32.mrf.mxu0
      %v6441 = vadd.f32 %v6102, %v6440
      %6442 = vmatprep.mubr.bf16.mxu0 0
      %6443 = vmatmul.mubr.bf16.gmra.mxu0 %v6219
      %v6444 = vpop.f32.mrf.mxu0
      %v6445 = vadd.f32 %v6098, %v6444
      %v6446 = vpop.f32.mrf.mxu0
      %v6447 = vadd.f32 %v6102, %v6446
      %v6448 = vpop.f32.mrf.mxu0
      %v6449 = vadd.f32 %v6098, %v6448
      %v6450 = vpop.f32.mrf.mxu0
      %v6451 = vadd.f32 %v6102, %v6450
      %6452 = vmatprep.mubr.bf16.mxu0 0
      %6453 = vmatmul.mubr.bf16.gmra.mxu0 %v6222
      %v6454 = vpop.f32.mrf.mxu0
      %v6455 = vadd.f32 %v6098, %v6454
      %v6456 = vpop.f32.mrf.mxu0
      %v6457 = vadd.f32 %v6102, %v6456
      %v6458 = vpop.f32.mrf.mxu0
      %v6459 = vadd.f32 %v6098, %v6458
      %v6460 = vpop.f32.mrf.mxu0
      %v6461 = vadd.f32 %v6102, %v6460
      %6462 = vmatprep.mubr.bf16.mxu0 0
      %6463 = vmatmul.mubr.bf16.gmra.mxu0 %v6225
      %v6464 = vpop.f32.mrf.mxu0
      %v6465 = vadd.f32 %v6098, %v6464
      %v6466 = vpop.f32.mrf.mxu0
      %v6467 = vadd.f32 %v6102, %v6466
      %v6468 = vpop.f32.mrf.mxu0
      %v6469 = vadd.f32 %v6098, %v6468
      %v6470 = vpop.f32.mrf.mxu0
      %v6471 = vadd.f32 %v6102, %v6470
      %6472 = vmatprep.mubr.bf16.mxu0 0
      %6473 = vmatmul.mubr.bf16.gmra.mxu0 %v6228
      %v6474 = vpop.f32.mrf.mxu0
      %v6475 = vadd.f32 %v6098, %v6474
      %v6476 = vpop.f32.mrf.mxu0
      %v6477 = vadd.f32 %v6102, %v6476
      %v6478 = vpop.f32.mrf.mxu0
      %v6479 = vadd.f32 %v6098, %v6478
      %v6480 = vpop.f32.mrf.mxu0
      %v6481 = vadd.f32 %v6102, %v6480
      %6482 = vdwg.mxu0
      %6483 = vmatprep.subr.bf16.mxu0 0
      %6484 = vmatpush1.bf16.msra.mxu0 0
      %6485 = vmatprep.subr.bf16.mxu0 0
      %6486 = vmatpush1.bf16.msra.mxu0 0
      %6487 = vmatprep.subr.bf16.mxu0 0
      %6488 = vmatpush1.bf16.msra.mxu0 0
      %6489 = vmatprep.subr.bf16.mxu0 0
      %6490 = vmatpush1.bf16.msra.mxu0 0
      %6491 = vmatprep.subr.bf16.mxu0 0
      %6492 = vmatpush1.bf16.msra.mxu0 %v6238
      %6493 = vmatprep.subr.bf16.mxu0 0
      %6494 = vmatpush1.bf16.msra.mxu0 %v6153
      %6495 = vmatprep.subr.bf16.mxu0 0
      %6496 = vmatpush1.bf16.msra.mxu0 %v6150
      %6497 = vmatprep.subr.bf16.mxu0 0
      %6498 = vmatpush1.bf16.msra.mxu0 %v6147
      %6499 = vmatprep.subr.bf16.mxu0 0
      %6500 = vmatpush2.bf16.msra.mxu0 0
      %6501 = vmatprep.subr.bf16.mxu0 0
      %6502 = vmatpush2.bf16.msra.mxu0 0
      %6503 = vmatprep.subr.bf16.mxu0 0
      %6504 = vmatpush2.bf16.msra.mxu0 0
      %6505 = vmatprep.subr.bf16.mxu0 0
      %6506 = vmatpush2.bf16.msra.mxu0 0
      %6507 = vmatprep.subr.bf16.mxu0 0
      %6508 = vmatpush2.bf16.msra.mxu0 0
      %6509 = vmatprep.subr.bf16.mxu0 0
      %6510 = vmatpush2.bf16.msra.mxu0 0
      %6511 = vmatprep.subr.bf16.mxu0 0
      %6512 = vmatpush2.bf16.msra.mxu0 0
      %6513 = vmatprep.subr.bf16.mxu0 0
      %6514 = vmatpush2.bf16.msra.mxu0 0
      %6515 = vmatprep.mubr.bf16.mxu0 0
      %6516 = vmatmul.mubr.bf16.gmra.mxu0 %v6168
      %v6517 = vpop.f32.mrf.mxu0
      %v6518 = vadd.f32 %v6106, %v6517
      %v6519 = vpop.f32.mrf.mxu0
      %v6520 = vpop.f32.mrf.mxu0
      %v6521 = vadd.f32 %v6106, %v6520
      %v6522 = vpop.f32.mrf.mxu0
      %6523 = vmatprep.mubr.bf16.mxu0 0
      %6524 = vmatmul.mubr.bf16.gmra.mxu0 %v6171
      %v6525 = vpop.f32.mrf.mxu0
      %v6526 = vadd.f32 %v6106, %v6525
      %v6527 = vpop.f32.mrf.mxu0
      %v6528 = vpop.f32.mrf.mxu0
      %v6529 = vadd.f32 %v6106, %v6528
      %v6530 = vpop.f32.mrf.mxu0
      %6531 = vmatprep.mubr.bf16.mxu0 0
      %6532 = vmatmul.mubr.bf16.gmra.mxu0 %v6174
      %v6533 = vpop.f32.mrf.mxu0
      %v6534 = vadd.f32 %v6106, %v6533
      %v6535 = vpop.f32.mrf.mxu0
      %v6536 = vpop.f32.mrf.mxu0
      %v6537 = vadd.f32 %v6106, %v6536
      %v6538 = vpop.f32.mrf.mxu0
      %6539 = vmatprep.mubr.bf16.mxu0 0
      %6540 = vmatmul.mubr.bf16.gmra.mxu0 %v6177
      %v6541 = vpop.f32.mrf.mxu0
      %v6542 = vadd.f32 %v6106, %v6541
      %v6543 = vpop.f32.mrf.mxu0
      %v6544 = vpop.f32.mrf.mxu0
      %v6545 = vadd.f32 %v6106, %v6544
      %v6546 = vpop.f32.mrf.mxu0
      %6547 = vmatprep.mubr.bf16.mxu0 0
      %6548 = vmatmul.mubr.bf16.gmra.mxu0 %v6180
      %v6549 = vpop.f32.mrf.mxu0
      %v6550 = vadd.f32 %v6106, %v6549
      %v6551 = vpop.f32.mrf.mxu0
      %v6552 = vpop.f32.mrf.mxu0
      %v6553 = vadd.f32 %v6106, %v6552
      %v6554 = vpop.f32.mrf.mxu0
      %6555 = vmatprep.mubr.bf16.mxu0 0
      %6556 = vmatmul.mubr.bf16.gmra.mxu0 %v6183
      %v6557 = vpop.f32.mrf.mxu0
      %v6558 = vadd.f32 %v6106, %v6557
      %v6559 = vpop.f32.mrf.mxu0
      %v6560 = vpop.f32.mrf.mxu0
      %v6561 = vadd.f32 %v6106, %v6560
      %v6562 = vpop.f32.mrf.mxu0
      %6563 = vmatprep.mubr.bf16.mxu0 0
      %6564 = vmatmul.mubr.bf16.gmra.mxu0 %v6186
      %v6565 = vpop.f32.mrf.mxu0
      %v6566 = vadd.f32 %v6106, %v6565
      %v6567 = vpop.f32.mrf.mxu0
      %v6568 = vpop.f32.mrf.mxu0
      %v6569 = vadd.f32 %v6106, %v6568
      %v6570 = vpop.f32.mrf.mxu0
      %6571 = vmatprep.mubr.bf16.mxu0 0
      %6572 = vmatmul.mubr.bf16.gmra.mxu0 %v6189
      %v6573 = vpop.f32.mrf.mxu0
      %v6574 = vadd.f32 %v6106, %v6573
      %v6575 = vpop.f32.mrf.mxu0
      %v6576 = vpop.f32.mrf.mxu0
      %v6577 = vadd.f32 %v6106, %v6576
      %v6578 = vpop.f32.mrf.mxu0
      %6579 = vmatprep.mubr.bf16.mxu0 0
      %6580 = vmatmul.mubr.bf16.gmra.mxu0 %v6192
      %v6581 = vpop.f32.mrf.mxu0
      %v6582 = vadd.f32 %v6106, %v6581
      %v6583 = vpop.f32.mrf.mxu0
      %v6584 = vpop.f32.mrf.mxu0
      %v6585 = vadd.f32 %v6106, %v6584
      %v6586 = vpop.f32.mrf.mxu0
      %6587 = vmatprep.mubr.bf16.mxu0 0
      %6588 = vmatmul.mubr.bf16.gmra.mxu0 %v6195
      %v6589 = vpop.f32.mrf.mxu0
      %v6590 = vadd.f32 %v6106, %v6589
      %v6591 = vpop.f32.mrf.mxu0
      %v6592 = vpop.f32.mrf.mxu0
      %v6593 = vadd.f32 %v6106, %v6592
      %v6594 = vpop.f32.mrf.mxu0
      %6595 = vmatprep.mubr.bf16.mxu0 0
      %6596 = vmatmul.mubr.bf16.gmra.mxu0 %v6198
      %v6597 = vpop.f32.mrf.mxu0
      %v6598 = vadd.f32 %v6106, %v6597
      %v6599 = vpop.f32.mrf.mxu0
      %v6600 = vpop.f32.mrf.mxu0
      %v6601 = vadd.f32 %v6106, %v6600
      %v6602 = vpop.f32.mrf.mxu0
      %6603 = vmatprep.mubr.bf16.mxu0 0
      %6604 = vmatmul.mubr.bf16.gmra.mxu0 %v6201
      %v6605 = vpop.f32.mrf.mxu0
      %v6606 = vadd.f32 %v6106, %v6605
      %v6607 = vpop.f32.mrf.mxu0
      %v6608 = vpop.f32.mrf.mxu0
      %v6609 = vadd.f32 %v6106, %v6608
      %v6610 = vpop.f32.mrf.mxu0
      %6611 = vmatprep.mubr.bf16.mxu0 0
      %6612 = vmatmul.mubr.bf16.gmra.mxu0 %v6204
      %v6613 = vpop.f32.mrf.mxu0
      %v6614 = vadd.f32 %v6106, %v6613
      %v6615 = vpop.f32.mrf.mxu0
      %v6616 = vpop.f32.mrf.mxu0
      %v6617 = vadd.f32 %v6106, %v6616
      %v6618 = vpop.f32.mrf.mxu0
      %6619 = vmatprep.mubr.bf16.mxu0 0
      %6620 = vmatmul.mubr.bf16.gmra.mxu0 %v6207
      %v6621 = vpop.f32.mrf.mxu0
      %v6622 = vadd.f32 %v6106, %v6621
      %v6623 = vpop.f32.mrf.mxu0
      %v6624 = vpop.f32.mrf.mxu0
      %v6625 = vadd.f32 %v6106, %v6624
      %v6626 = vpop.f32.mrf.mxu0
      %6627 = vmatprep.mubr.bf16.mxu0 0
      %6628 = vmatmul.mubr.bf16.gmra.mxu0 %v6210
      %v6629 = vpop.f32.mrf.mxu0
      %v6630 = vadd.f32 %v6106, %v6629
      %v6631 = vpop.f32.mrf.mxu0
      %v6632 = vpop.f32.mrf.mxu0
      %v6633 = vadd.f32 %v6106, %v6632
      %v6634 = vpop.f32.mrf.mxu0
      %6635 = vmatprep.mubr.bf16.mxu0 0
      %6636 = vmatmul.mubr.bf16.gmra.mxu0 %v6213
      %v6637 = vpop.f32.mrf.mxu0
      %v6638 = vadd.f32 %v6106, %v6637
      %v6639 = vpop.f32.mrf.mxu0
      %v6640 = vpop.f32.mrf.mxu0
      %v6641 = vadd.f32 %v6106, %v6640
      %v6642 = vpop.f32.mrf.mxu0
      %6643 = vmatprep.mubr.bf16.mxu0 0
      %6644 = vmatmul.mubr.bf16.gmra.mxu0 %v6216
      %v6645 = vpop.f32.mrf.mxu0
      %v6646 = vadd.f32 %v6106, %v6645
      %v6647 = vpop.f32.mrf.mxu0
      %v6648 = vpop.f32.mrf.mxu0
      %v6649 = vadd.f32 %v6106, %v6648
      %v6650 = vpop.f32.mrf.mxu0
      %6651 = vmatprep.mubr.bf16.mxu0 0
      %6652 = vmatmul.mubr.bf16.gmra.mxu0 %v6219
      %v6653 = vpop.f32.mrf.mxu0
      %v6654 = vadd.f32 %v6106, %v6653
      %v6655 = vpop.f32.mrf.mxu0
      %v6656 = vpop.f32.mrf.mxu0
      %v6657 = vadd.f32 %v6106, %v6656
      %v6658 = vpop.f32.mrf.mxu0
      %6659 = vmatprep.mubr.bf16.mxu0 0
      %6660 = vmatmul.mubr.bf16.gmra.mxu0 %v6222
      %v6661 = vpop.f32.mrf.mxu0
      %v6662 = vadd.f32 %v6106, %v6661
      %v6663 = vpop.f32.mrf.mxu0
      %v6664 = vpop.f32.mrf.mxu0
      %v6665 = vadd.f32 %v6106, %v6664
      %v6666 = vpop.f32.mrf.mxu0
      %6667 = vmatprep.mubr.bf16.mxu0 0
      %6668 = vmatmul.mubr.bf16.gmra.mxu0 %v6225
      %v6669 = vpop.f32.mrf.mxu0
      %v6670 = vadd.f32 %v6106, %v6669
      %v6671 = vpop.f32.mrf.mxu0
      %v6672 = vpop.f32.mrf.mxu0
      %v6673 = vadd.f32 %v6106, %v6672
      %v6674 = vpop.f32.mrf.mxu0
      %6675 = vmatprep.mubr.bf16.mxu0 0
      %6676 = vmatmul.mubr.bf16.gmra.mxu0 %v6228
      %v6677 = vpop.f32.mrf.mxu0
      %v6678 = vadd.f32 %v6106, %v6677
      %v6679 = vpop.f32.mrf.mxu0
      %v6680 = vpop.f32.mrf.mxu0
      %v6681 = vadd.f32 %v6106, %v6680
      %v6682 = vpop.f32.mrf.mxu0
      %6683 = vdwg.mxu0
      %v6684 = vmax.f32 %v6275, 0.0
      %v6685 = vmax.f32 %v6277, 0.0
      %v6686 = vmax.f32 %v6518, 0.0
      %v6687 = vmax.f32 %v6279, 0.0
      %v6688 = vmax.f32 %v6281, 0.0
      %v6689 = vmax.f32 %v6521, 0.0
      %v6690 = vmax.f32 %v6285, 0.0
      %v6691 = vmax.f32 %v6287, 0.0
      %v6692 = vmax.f32 %v6526, 0.0
      %v6693 = vmax.f32 %v6289, 0.0
      %v6694 = vmax.f32 %v6291, 0.0
      %v6695 = vmax.f32 %v6529, 0.0
      %v6696 = vmax.f32 %v6295, 0.0
      %v6697 = vmax.f32 %v6297, 0.0
      %v6698 = vmax.f32 %v6534, 0.0
      %v6699 = vmax.f32 %v6299, 0.0
      %v6700 = vmax.f32 %v6301, 0.0
      %v6701 = vmax.f32 %v6537, 0.0
      %v6702 = vmax.f32 %v6305, 0.0
      %v6703 = vmax.f32 %v6307, 0.0
      %v6704 = vmax.f32 %v6542, 0.0
      %v6705 = vmax.f32 %v6309, 0.0
      %v6706 = vmax.f32 %v6311, 0.0
      %v6707 = vmax.f32 %v6545, 0.0
      %v6708 = vmax.f32 %v6315, 0.0
      %v6709 = vmax.f32 %v6317, 0.0
      %v6710 = vmax.f32 %v6550, 0.0
      %v6711 = vmax.f32 %v6319, 0.0
      %v6712 = vmax.f32 %v6321, 0.0
      %v6713 = vmax.f32 %v6553, 0.0
      %v6714 = vmax.f32 %v6325, 0.0
      %v6715 = vmax.f32 %v6327, 0.0
      %v6716 = vmax.f32 %v6558, 0.0
      %v6717 = vmax.f32 %v6329, 0.0
      %v6718 = vmax.f32 %v6331, 0.0
      %v6719 = vmax.f32 %v6561, 0.0
      %v6720 = vmax.f32 %v6335, 0.0
      %v6721 = vmax.f32 %v6337, 0.0
      %v6722 = vmax.f32 %v6566, 0.0
      %v6723 = vmax.f32 %v6339, 0.0
      %v6724 = vmax.f32 %v6341, 0.0
      %v6725 = vmax.f32 %v6569, 0.0
      %v6726 = vmax.f32 %v6345, 0.0
      %v6727 = vmax.f32 %v6347, 0.0
      %v6728 = vmax.f32 %v6574, 0.0
      %v6729 = vmax.f32 %v6349, 0.0
      %v6730 = vmax.f32 %v6351, 0.0
      %v6731 = vmax.f32 %v6577, 0.0
      %v6732 = vmax.f32 %v6355, 0.0
      %v6733 = vmax.f32 %v6357, 0.0
      %v6734 = vmax.f32 %v6582, 0.0
      %v6735 = vmax.f32 %v6359, 0.0
      %v6736 = vmax.f32 %v6361, 0.0
      %v6737 = vmax.f32 %v6585, 0.0
      %v6738 = vmax.f32 %v6365, 0.0
      %v6739 = vmax.f32 %v6367, 0.0
      %v6740 = vmax.f32 %v6590, 0.0
      %v6741 = vmax.f32 %v6369, 0.0
      %v6742 = vmax.f32 %v6371, 0.0
      %v6743 = vmax.f32 %v6593, 0.0
      %v6744 = vmax.f32 %v6375, 0.0
      %v6745 = vmax.f32 %v6377, 0.0
      %v6746 = vmax.f32 %v6598, 0.0
      %v6747 = vmax.f32 %v6379, 0.0
      %v6748 = vmax.f32 %v6381, 0.0
      %v6749 = vmax.f32 %v6601, 0.0
      %v6750 = vmax.f32 %v6385, 0.0
      %v6751 = vmax.f32 %v6387, 0.0
      %v6752 = vmax.f32 %v6606, 0.0
      %v6753 = vmax.f32 %v6389, 0.0
      %v6754 = vmax.f32 %v6391, 0.0
      %v6755 = vmax.f32 %v6609, 0.0
      %v6756 = vmax.f32 %v6395, 0.0
      %v6757 = vmax.f32 %v6397, 0.0
      %v6758 = vmax.f32 %v6614, 0.0
      %v6759 = vmax.f32 %v6399, 0.0
      %v6760 = vmax.f32 %v6401, 0.0
      %v6761 = vmax.f32 %v6617, 0.0
      %v6762 = vmax.f32 %v6405, 0.0
      %v6763 = vmax.f32 %v6407, 0.0
      %v6764 = vmax.f32 %v6622, 0.0
      %v6765 = vmax.f32 %v6409, 0.0
      %v6766 = vmax.f32 %v6411, 0.0
      %v6767 = vmax.f32 %v6625, 0.0
      %v6768 = vmax.f32 %v6415, 0.0
      %v6769 = vmax.f32 %v6417, 0.0
      %v6770 = vmax.f32 %v6630, 0.0
      %v6771 = vmax.f32 %v6419, 0.0
      %v6772 = vmax.f32 %v6421, 0.0
      %v6773 = vmax.f32 %v6633, 0.0
      %v6774 = vmax.f32 %v6425, 0.0
      %v6775 = vmax.f32 %v6427, 0.0
      %v6776 = vmax.f32 %v6638, 0.0
      %v6777 = vmax.f32 %v6429, 0.0
      %v6778 = vmax.f32 %v6431, 0.0
      %v6779 = vmax.f32 %v6641, 0.0
      %v6780 = vmax.f32 %v6435, 0.0
      %v6781 = vmax.f32 %v6437, 0.0
      %v6782 = vmax.f32 %v6646, 0.0
      %v6783 = vmax.f32 %v6439, 0.0
      %v6784 = vmax.f32 %v6441, 0.0
      %v6785 = vmax.f32 %v6649, 0.0
      %v6786 = vmax.f32 %v6445, 0.0
      %v6787 = vmax.f32 %v6447, 0.0
      %v6788 = vmax.f32 %v6654, 0.0
      %v6789 = vmax.f32 %v6449, 0.0
      %v6790 = vmax.f32 %v6451, 0.0
      %v6791 = vmax.f32 %v6657, 0.0
      %v6792 = vmax.f32 %v6455, 0.0
      %v6793 = vmax.f32 %v6457, 0.0
      %v6794 = vmax.f32 %v6662, 0.0
      %v6795 = vmax.f32 %v6459, 0.0
      %v6796 = vmax.f32 %v6461, 0.0
      %v6797 = vmax.f32 %v6665, 0.0
      %v6798 = vmax.f32 %v6465, 0.0
      %v6799 = vmax.f32 %v6467, 0.0
      %v6800 = vmax.f32 %v6670, 0.0
      %v6801 = vmax.f32 %v6469, 0.0
      %v6802 = vmax.f32 %v6471, 0.0
      %v6803 = vmax.f32 %v6673, 0.0
      %v6804 = vmax.f32 %v6475, 0.0
      %v6805 = vmax.f32 %v6477, 0.0
      %v6806 = vmax.f32 %v6678, 0.0
      %v6807 = vmax.f32 %v6479, 0.0
      %v6808 = vmax.f32 %v6481, 0.0
      %v6809 = vmax.f32 %v6681, 0.0
      %v6810 = vpack.c.bf16 %v6687, %v6684
      %v6811 = vpack.c.bf16 %v6688, %v6685
      %v6812 = vpack.c.bf16 %v6689, %v6686
      %v6813 = vpack.c.bf16 %v6693, %v6690
      %v6814 = vpack.c.bf16 %v6694, %v6691
      %v6815 = vpack.c.bf16 %v6695, %v6692
      %v6816 = vpack.c.bf16 %v6699, %v6696
      %v6817 = vpack.c.bf16 %v6700, %v6697
      %v6818 = vpack.c.bf16 %v6701, %v6698
      %v6819 = vpack.c.bf16 %v6705, %v6702
      %v6820 = vpack.c.bf16 %v6706, %v6703
      %v6821 = vpack.c.bf16 %v6707, %v6704
      %v6822 = vpack.c.bf16 %v6711, %v6708
      %v6823 = vpack.c.bf16 %v6712, %v6709
      %v6824 = vpack.c.bf16 %v6713, %v6710
      %v6825 = vpack.c.bf16 %v6717, %v6714
      %v6826 = vpack.c.bf16 %v6718, %v6715
      %v6827 = vpack.c.bf16 %v6719, %v6716
      %v6828 = vpack.c.bf16 %v6723, %v6720
      %v6829 = vpack.c.bf16 %v6724, %v6721
      %v6830 = vpack.c.bf16 %v6725, %v6722
      %v6831 = vpack.c.bf16 %v6729, %v6726
      %v6832 = vpack.c.bf16 %v6730, %v6727
      %v6833 = vpack.c.bf16 %v6731, %v6728
      %v6834 = vpack.c.bf16 %v6735, %v6732
      %v6835 = vpack.c.bf16 %v6736, %v6733
      %v6836 = vpack.c.bf16 %v6737, %v6734
      %v6837 = vpack.c.bf16 %v6741, %v6738
      %v6838 = vpack.c.bf16 %v6742, %v6739
      %v6839 = vpack.c.bf16 %v6743, %v6740
      %v6840 = vpack.c.bf16 %v6747, %v6744
      %v6841 = vpack.c.bf16 %v6748, %v6745
      %v6842 = vpack.c.bf16 %v6749, %v6746
      %v6843 = vpack.c.bf16 %v6753, %v6750
      %v6844 = vpack.c.bf16 %v6754, %v6751
      %v6845 = vpack.c.bf16 %v6755, %v6752
      %v6846 = vpack.c.bf16 %v6759, %v6756
      %v6847 = vpack.c.bf16 %v6760, %v6757
      %v6848 = vpack.c.bf16 %v6761, %v6758
      %v6849 = vpack.c.bf16 %v6765, %v6762
      %v6850 = vpack.c.bf16 %v6766, %v6763
      %v6851 = vpack.c.bf16 %v6767, %v6764
      %v6852 = vpack.c.bf16 %v6771, %v6768
      %v6853 = vpack.c.bf16 %v6772, %v6769
      %v6854 = vpack.c.bf16 %v6773, %v6770
      %v6855 = vpack.c.bf16 %v6777, %v6774
      %v6856 = vpack.c.bf16 %v6778, %v6775
      %v6857 = vpack.c.bf16 %v6779, %v6776
      %v6858 = vpack.c.bf16 %v6783, %v6780
      %v6859 = vpack.c.bf16 %v6784, %v6781
      %v6860 = vpack.c.bf16 %v6785, %v6782
      %v6861 = vpack.c.bf16 %v6789, %v6786
      %v6862 = vpack.c.bf16 %v6790, %v6787
      %v6863 = vpack.c.bf16 %v6791, %v6788
      %v6864 = vpack.c.bf16 %v6795, %v6792
      %v6865 = vpack.c.bf16 %v6796, %v6793
      %v6866 = vpack.c.bf16 %v6797, %v6794
      %v6867 = vpack.c.bf16 %v6801, %v6798
      %v6868 = vpack.c.bf16 %v6802, %v6799
      %v6869 = vpack.c.bf16 %v6803, %v6800
      %v6870 = vpack.c.bf16 %v6807, %v6804
      %v6871 = vpack.c.bf16 %v6808, %v6805
      %v6872 = vpack.c.bf16 %v6809, %v6806
      %v6873 = vld [vmem:[%s1 + $0x1c8] sm:$0xf]
      %v6874 = vld [vmem:[%s1 + $0x1d4] sm:$0xf]
      %v6875 = vld [vmem:[%s1 + $0x1e0] sm:$0xf]
      %v6876 = vld [vmem:[%s1 + $0x1ec] sm:$0xf]
      %v6877 = vld [vmem:[%s1 + $0x1f8] sm:$0xf]
      %v6878 = vld [vmem:[%s1 + $0x204] sm:$0xf]
      %v6879 = vld [vmem:[%s1 + $0x210] sm:$0xf]
      %v6880 = vld [vmem:[%s1 + $0x21c] sm:$0xf]
      %v6881 = vld [vmem:[%s1 + $0x228] sm:$0xf]
      %v6882 = vld [vmem:[%s1 + $0x234] sm:$0xf]
      %v6883 = vld [vmem:[%s1 + $0x240] sm:$0xf]
      %v6884 = vld [vmem:[%s1 + $0x24c] sm:$0xf]
      %v6885 = vld [vmem:[%s1 + $0x258] sm:$0xf]
      %v6886 = vld [vmem:[%s1 + $0x264] sm:$0xf]
      %v6887 = vld [vmem:[%s1 + $0x270] sm:$0xf]
      %v6888 = vld [vmem:[%s1 + $0x27c] sm:$0xf]
      %v6889 = vld [vmem:[%s1 + $0x288] sm:$0xf]
      %v6890 = vld [vmem:[%s1 + $0x294] sm:$0xf]
      %v6891 = vld [vmem:[%s1 + $0x2a0] sm:$0xf]
      %v6892 = vld [vmem:[%s1 + $0x2ac] sm:$0xf]
      %v6893 = vld [vmem:[%s1 + $0x2b8] sm:$0xf]
      %v6894 = vld [vmem:[%s1 + $0x2c4] sm:$0xf]
      %v6895 = vld [vmem:[%s1 + $0x2d0] sm:$0xf]
      %v6896 = vld [vmem:[%s1 + $0x2dc] sm:$0xf]
      %v6897 = vld [vmem:[%s1 + $0x2e8] sm:$0xf]
      %v6898 = vld [vmem:[%s1 + $0x2f4] sm:$0xf]
      %v6899 = vld [vmem:[%s1 + $0x300] sm:$0xf]
      %v6900 = vld [vmem:[%s1 + $0x30c] sm:$0xf]
      %v6901 = vld [vmem:[%s1 + $0x318] sm:$0xf]
      %v6902 = vld [vmem:[%s1 + $0x324] sm:$0xf]
      %v6903 = vld [vmem:[%s1 + $0x330] sm:$0xf]
      %v6904 = vld [vmem:[%s1 + $0x33c] sm:$0xf]
      %v6905 = vld [vmem:[%s1 + $0x348] sm:$0x3]
      %v6906 = vld [vmem:[%s2 + $0x3] ss:$0 sm:$0xff]
      %v6940 = vunpack.c.l.b16 %v6873
      %v6941 = vunpack.c.l.b16 %v6874
      %v6942 = vunpack.c.l.b16 %v6875
      %v6943 = vunpack.c.l.b16 %v6876
      %v6944 = vunpack.c.l.b16 %v6877
      %v6945 = vunpack.c.l.b16 %v6878
      %v6946 = vunpack.c.l.b16 %v6879
      %v6947 = vunpack.c.l.b16 %v6880
      %v6948 = vunpack.c.l.b16 %v6881
      %v6949 = vunpack.c.l.b16 %v6882
      %v6950 = vunpack.c.l.b16 %v6883
      %v6951 = vunpack.c.l.b16 %v6884
      %v6952 = vunpack.c.l.b16 %v6885
      %v6953 = vunpack.c.l.b16 %v6886
      %v6954 = vunpack.c.l.b16 %v6887
      %v6955 = vunpack.c.l.b16 %v6888
      %v6956 = vunpack.c.l.b16 %v6889
      %v6957 = vunpack.c.l.b16 %v6890
      %v6958 = vunpack.c.l.b16 %v6891
      %v6959 = vunpack.c.l.b16 %v6892
      %v6960 = vunpack.c.l.b16 %v6893
      %v6961 = vunpack.c.l.b16 %v6894
      %v6962 = vunpack.c.l.b16 %v6895
      %v6963 = vunpack.c.l.b16 %v6896
      %v6964 = vunpack.c.l.b16 %v6897
      %v6965 = vunpack.c.l.b16 %v6898
      %v6966 = vunpack.c.l.b16 %v6899
      %v6967 = vunpack.c.l.b16 %v6900
      %v6968 = vunpack.c.l.b16 %v6901
      %v6969 = vunpack.c.l.b16 %v6902
      %v6970 = vunpack.c.l.b16 %v6903
      %v6971 = vunpack.c.l.b16 %v6904
      %v6972 = vunpack.c.l.b16 %v6905
      %v6973 = vpack.c.b16 %v6941, %v6940
      %v6974 = vpack.c.b16 %v6943, %v6942
      %v6975 = vpack.c.b16 %v6945, %v6944
      %v6976 = vpack.c.b16 %v6947, %v6946
      %v6977 = vpack.c.b16 %v6949, %v6948
      %v6978 = vpack.c.b16 %v6951, %v6950
      %v6979 = vpack.c.b16 %v6953, %v6952
      %v6980 = vpack.c.b16 %v6955, %v6954
      %v6981 = vpack.c.b16 %v6957, %v6956
      %v6982 = vpack.c.b16 %v6959, %v6958
      %v6983 = vpack.c.b16 %v6961, %v6960
      %v6984 = vpack.c.b16 %v6963, %v6962
      %v6985 = vpack.c.b16 %v6965, %v6964
      %v6986 = vpack.c.b16 %v6967, %v6966
      %v6987 = vpack.c.b16 %v6969, %v6968
      %v6988 = vpack.c.b16 %v6971, %v6970
      %v6989 = vpack.c.b16 %v6972, %v6972
      %vm7006 = vcmask 31744
      %v7008 = vsel %vm7006, %v6812, 0
      %v7011 = vsel %vm7006, %v6815, 0
      %v7014 = vsel %vm7006, %v6818, 0
      %v7017 = vsel %vm7006, %v6821, 0
      %v7020 = vsel %vm7006, %v6824, 0
      %v7023 = vsel %vm7006, %v6827, 0
      %v7026 = vsel %vm7006, %v6830, 0
      %v7029 = vsel %vm7006, %v6833, 0
      %v7032 = vsel %vm7006, %v6836, 0
      %v7035 = vsel %vm7006, %v6839, 0
      %v7038 = vsel %vm7006, %v6842, 0
      %v7041 = vsel %vm7006, %v6845, 0
      %v7044 = vsel %vm7006, %v6848, 0
      %v7047 = vsel %vm7006, %v6851, 0
      %v7050 = vsel %vm7006, %v6854, 0
      %v7053 = vsel %vm7006, %v6857, 0
      %v7056 = vsel %vm7006, %v6860, 0
      %v7059 = vsel %vm7006, %v6863, 0
      %v7062 = vsel %vm7006, %v6866, 0
      %v7065 = vsel %vm7006, %v6869, 0
      %v7068 = vsel %vm7006, %v6872, 0
      %vm7070 = vcmask 1041408
      %v7072 = vsel %vm7070, %v6989, 0
      %7074 = vmatprep.subr.bf16.mxu0 0
      %7075 = vmatpush1.bf16.msra.mxu0 %v6980
      %7076 = vmatprep.subr.bf16.mxu0 0
      %7077 = vmatpush1.bf16.msra.mxu0 %v6979
      %7078 = vmatprep.subr.bf16.mxu0 0
      %7079 = vmatpush1.bf16.msra.mxu0 %v6978
      %7080 = vmatprep.subr.bf16.mxu0 0
      %7081 = vmatpush1.bf16.msra.mxu0 %v6977
      %7082 = vmatprep.subr.bf16.mxu0 0
      %7083 = vmatpush1.bf16.msra.mxu0 %v6976
      %7084 = vmatprep.subr.bf16.mxu0 0
      %7085 = vmatpush1.bf16.msra.mxu0 %v6975
      %7086 = vmatprep.subr.bf16.mxu0 0
      %7087 = vmatpush1.bf16.msra.mxu0 %v6974
      %7088 = vmatprep.subr.bf16.mxu0 0
      %7089 = vmatpush1.bf16.msra.mxu0 %v6973
      %7090 = vmatprep.subr.bf16.mxu0 0
      %7091 = vmatpush2.bf16.msra.mxu0 %v6988
      %7092 = vmatprep.subr.bf16.mxu0 0
      %7093 = vmatpush2.bf16.msra.mxu0 %v6987
      %7094 = vmatprep.subr.bf16.mxu0 0
      %7095 = vmatpush2.bf16.msra.mxu0 %v6986
      %7096 = vmatprep.subr.bf16.mxu0 0
      %7097 = vmatpush2.bf16.msra.mxu0 %v6985
      %7098 = vmatprep.subr.bf16.mxu0 0
      %7099 = vmatpush2.bf16.msra.mxu0 %v6984
      %7100 = vmatprep.subr.bf16.mxu0 0
      %7101 = vmatpush2.bf16.msra.mxu0 %v6983
      %7102 = vmatprep.subr.bf16.mxu0 0
      %7103 = vmatpush2.bf16.msra.mxu0 %v6982
      %7104 = vmatprep.subr.bf16.mxu0 0
      %7105 = vmatpush2.bf16.msra.mxu0 %v6981
      %7106 = vmatprep.mubr.bf16.mxu0 %v6811
      %7107 = vmatmul.mubr.bf16.gmra.mxu0 %v6810
      %v7108 = vpop.f32.mrf.mxu0
      %v7109 = vadd.f32 %v6906, %v7108
      %v7110 = vpop.f32.mrf.mxu0
      %v7111 = vpop.f32.mrf.mxu0
      %v7112 = vadd.f32 %v6906, %v7111
      %v7113 = vpop.f32.mrf.mxu0
      %7114 = vmatprep.mubr.bf16.mxu0 %v6814
      %7115 = vmatmul.mubr.bf16.gmra.mxu0 %v6813
      %v7116 = vpop.f32.mrf.mxu0
      %v7117 = vadd.f32 %v6906, %v7116
      %v7118 = vpop.f32.mrf.mxu0
      %v7119 = vpop.f32.mrf.mxu0
      %v7120 = vadd.f32 %v6906, %v7119
      %v7121 = vpop.f32.mrf.mxu0
      %7122 = vmatprep.mubr.bf16.mxu0 %v6817
      %7123 = vmatmul.mubr.bf16.gmra.mxu0 %v6816
      %v7124 = vpop.f32.mrf.mxu0
      %v7125 = vadd.f32 %v6906, %v7124
      %v7126 = vpop.f32.mrf.mxu0
      %v7127 = vpop.f32.mrf.mxu0
      %v7128 = vadd.f32 %v6906, %v7127
      %v7129 = vpop.f32.mrf.mxu0
      %7130 = vmatprep.mubr.bf16.mxu0 %v6820
      %7131 = vmatmul.mubr.bf16.gmra.mxu0 %v6819
      %v7132 = vpop.f32.mrf.mxu0
      %v7133 = vadd.f32 %v6906, %v7132
      %v7134 = vpop.f32.mrf.mxu0
      %v7135 = vpop.f32.mrf.mxu0
      %v7136 = vadd.f32 %v6906, %v7135
      %v7137 = vpop.f32.mrf.mxu0
      %7138 = vmatprep.mubr.bf16.mxu0 %v6823
      %7139 = vmatmul.mubr.bf16.gmra.mxu0 %v6822
      %v7140 = vpop.f32.mrf.mxu0
      %v7141 = vadd.f32 %v6906, %v7140
      %v7142 = vpop.f32.mrf.mxu0
      %v7143 = vpop.f32.mrf.mxu0
      %v7144 = vadd.f32 %v6906, %v7143
      %v7145 = vpop.f32.mrf.mxu0
      %7146 = vmatprep.mubr.bf16.mxu0 %v6826
      %7147 = vmatmul.mubr.bf16.gmra.mxu0 %v6825
      %v7148 = vpop.f32.mrf.mxu0
      %v7149 = vadd.f32 %v6906, %v7148
      %v7150 = vpop.f32.mrf.mxu0
      %v7151 = vpop.f32.mrf.mxu0
      %v7152 = vadd.f32 %v6906, %v7151
      %v7153 = vpop.f32.mrf.mxu0
      %7154 = vmatprep.mubr.bf16.mxu0 %v6829
      %7155 = vmatmul.mubr.bf16.gmra.mxu0 %v6828
      %v7156 = vpop.f32.mrf.mxu0
      %v7157 = vadd.f32 %v6906, %v7156
      %v7158 = vpop.f32.mrf.mxu0
      %v7159 = vpop.f32.mrf.mxu0
      %v7160 = vadd.f32 %v6906, %v7159
      %v7161 = vpop.f32.mrf.mxu0
      %7162 = vmatprep.mubr.bf16.mxu0 %v6832
      %7163 = vmatmul.mubr.bf16.gmra.mxu0 %v6831
      %v7164 = vpop.f32.mrf.mxu0
      %v7165 = vadd.f32 %v6906, %v7164
      %v7166 = vpop.f32.mrf.mxu0
      %v7167 = vpop.f32.mrf.mxu0
      %v7168 = vadd.f32 %v6906, %v7167
      %v7169 = vpop.f32.mrf.mxu0
      %7170 = vmatprep.mubr.bf16.mxu0 %v6835
      %7171 = vmatmul.mubr.bf16.gmra.mxu0 %v6834
      %v7172 = vpop.f32.mrf.mxu0
      %v7173 = vadd.f32 %v6906, %v7172
      %v7174 = vpop.f32.mrf.mxu0
      %v7175 = vpop.f32.mrf.mxu0
      %v7176 = vadd.f32 %v6906, %v7175
      %v7177 = vpop.f32.mrf.mxu0
      %7178 = vmatprep.mubr.bf16.mxu0 %v6838
      %7179 = vmatmul.mubr.bf16.gmra.mxu0 %v6837
      %v7180 = vpop.f32.mrf.mxu0
      %v7181 = vadd.f32 %v6906, %v7180
      %v7182 = vpop.f32.mrf.mxu0
      %v7183 = vpop.f32.mrf.mxu0
      %v7184 = vadd.f32 %v6906, %v7183
      %v7185 = vpop.f32.mrf.mxu0
      %7186 = vmatprep.mubr.bf16.mxu0 %v6841
      %7187 = vmatmul.mubr.bf16.gmra.mxu0 %v6840
      %v7188 = vpop.f32.mrf.mxu0
      %v7189 = vadd.f32 %v6906, %v7188
      %v7190 = vpop.f32.mrf.mxu0
      %v7191 = vpop.f32.mrf.mxu0
      %v7192 = vadd.f32 %v6906, %v7191
      %v7193 = vpop.f32.mrf.mxu0
      %7194 = vmatprep.mubr.bf16.mxu0 %v6844
      %7195 = vmatmul.mubr.bf16.gmra.mxu0 %v6843
      %v7196 = vpop.f32.mrf.mxu0
      %v7197 = vadd.f32 %v6906, %v7196
      %v7198 = vpop.f32.mrf.mxu0
      %v7199 = vpop.f32.mrf.mxu0
      %v7200 = vadd.f32 %v6906, %v7199
      %v7201 = vpop.f32.mrf.mxu0
      %7202 = vmatprep.mubr.bf16.mxu0 %v6847
      %7203 = vmatmul.mubr.bf16.gmra.mxu0 %v6846
      %v7204 = vpop.f32.mrf.mxu0
      %v7205 = vadd.f32 %v6906, %v7204
      %v7206 = vpop.f32.mrf.mxu0
      %v7207 = vpop.f32.mrf.mxu0
      %v7208 = vadd.f32 %v6906, %v7207
      %v7209 = vpop.f32.mrf.mxu0
      %7210 = vmatprep.mubr.bf16.mxu0 %v6850
      %7211 = vmatmul.mubr.bf16.gmra.mxu0 %v6849
      %v7212 = vpop.f32.mrf.mxu0
      %v7213 = vadd.f32 %v6906, %v7212
      %v7214 = vpop.f32.mrf.mxu0
      %v7215 = vpop.f32.mrf.mxu0
      %v7216 = vadd.f32 %v6906, %v7215
      %v7217 = vpop.f32.mrf.mxu0
      %7218 = vmatprep.mubr.bf16.mxu0 %v6853
      %7219 = vmatmul.mubr.bf16.gmra.mxu0 %v6852
      %v7220 = vpop.f32.mrf.mxu0
      %v7221 = vadd.f32 %v6906, %v7220
      %v7222 = vpop.f32.mrf.mxu0
      %v7223 = vpop.f32.mrf.mxu0
      %v7224 = vadd.f32 %v6906, %v7223
      %v7225 = vpop.f32.mrf.mxu0
      %7226 = vmatprep.mubr.bf16.mxu0 %v6856
      %7227 = vmatmul.mubr.bf16.gmra.mxu0 %v6855
      %v7228 = vpop.f32.mrf.mxu0
      %v7229 = vadd.f32 %v6906, %v7228
      %v7230 = vpop.f32.mrf.mxu0
      %v7231 = vpop.f32.mrf.mxu0
      %v7232 = vadd.f32 %v6906, %v7231
      %v7233 = vpop.f32.mrf.mxu0
      %7234 = vmatprep.mubr.bf16.mxu0 %v6859
      %7235 = vmatmul.mubr.bf16.gmra.mxu0 %v6858
      %v7236 = vpop.f32.mrf.mxu0
      %v7237 = vadd.f32 %v6906, %v7236
      %v7238 = vpop.f32.mrf.mxu0
      %v7239 = vpop.f32.mrf.mxu0
      %v7240 = vadd.f32 %v6906, %v7239
      %v7241 = vpop.f32.mrf.mxu0
      %7242 = vmatprep.mubr.bf16.mxu0 %v6862
      %7243 = vmatmul.mubr.bf16.gmra.mxu0 %v6861
      %v7244 = vpop.f32.mrf.mxu0
      %v7245 = vadd.f32 %v6906, %v7244
      %v7246 = vpop.f32.mrf.mxu0
      %v7247 = vpop.f32.mrf.mxu0
      %v7248 = vadd.f32 %v6906, %v7247
      %v7249 = vpop.f32.mrf.mxu0
      %7250 = vmatprep.mubr.bf16.mxu0 %v6865
      %7251 = vmatmul.mubr.bf16.gmra.mxu0 %v6864
      %v7252 = vpop.f32.mrf.mxu0
      %v7253 = vadd.f32 %v6906, %v7252
      %v7254 = vpop.f32.mrf.mxu0
      %v7255 = vpop.f32.mrf.mxu0
      %v7256 = vadd.f32 %v6906, %v7255
      %v7257 = vpop.f32.mrf.mxu0
      %7258 = vmatprep.mubr.bf16.mxu0 %v6868
      %7259 = vmatmul.mubr.bf16.gmra.mxu0 %v6867
      %v7260 = vpop.f32.mrf.mxu0
      %v7261 = vadd.f32 %v6906, %v7260
      %v7262 = vpop.f32.mrf.mxu0
      %v7263 = vpop.f32.mrf.mxu0
      %v7264 = vadd.f32 %v6906, %v7263
      %v7265 = vpop.f32.mrf.mxu0
      %7266 = vmatprep.mubr.bf16.mxu0 %v6871
      %7267 = vmatmul.mubr.bf16.gmra.mxu0 %v6870
      %v7268 = vpop.f32.mrf.mxu0
      %v7269 = vadd.f32 %v6906, %v7268
      %v7270 = vpop.f32.mrf.mxu0
      %v7271 = vpop.f32.mrf.mxu0
      %v7272 = vadd.f32 %v6906, %v7271
      %v7273 = vpop.f32.mrf.mxu0
      %7274 = vdwg.mxu0
      %7275 = vmatprep.subr.bf16.mxu0 0
      %7276 = vmatpush1.bf16.msra.mxu0 0
      %7277 = vmatprep.subr.bf16.mxu0 0
      %7278 = vmatpush1.bf16.msra.mxu0 0
      %7279 = vmatprep.subr.bf16.mxu0 0
      %7280 = vmatpush1.bf16.msra.mxu0 0
      %7281 = vmatprep.subr.bf16.mxu0 0
      %7282 = vmatpush1.bf16.msra.mxu0 0
      %7283 = vmatprep.subr.bf16.mxu0 0
      %7284 = vmatpush1.bf16.msra.mxu0 0
      %7285 = vmatprep.subr.bf16.mxu0 0
      %7286 = vmatpush1.bf16.msra.mxu0 0
      %7287 = vmatprep.subr.bf16.mxu0 0
      %7288 = vmatpush1.bf16.msra.mxu0 0
      %7289 = vmatprep.subr.bf16.mxu0 0
      %7290 = vmatpush1.bf16.msra.mxu0 %v7072
      %7291 = vmatprep.subr.bf16.mxu0 0
      %7292 = vmatpush2.bf16.msra.mxu0 0
      %7293 = vmatprep.subr.bf16.mxu0 0
      %7294 = vmatpush2.bf16.msra.mxu0 0
      %7295 = vmatprep.subr.bf16.mxu0 0
      %7296 = vmatpush2.bf16.msra.mxu0 0
      %7297 = vmatprep.subr.bf16.mxu0 0
      %7298 = vmatpush2.bf16.msra.mxu0 0
      %7299 = vmatprep.subr.bf16.mxu0 0
      %7300 = vmatpush2.bf16.msra.mxu0 0
      %7301 = vmatprep.subr.bf16.mxu0 0
      %7302 = vmatpush2.bf16.msra.mxu0 0
      %7303 = vmatprep.subr.bf16.mxu0 0
      %7304 = vmatpush2.bf16.msra.mxu0 0
      %7305 = vmatprep.subr.bf16.mxu0 0
      %7306 = vmatpush2.bf16.msra.mxu0 0
      %7307 = vmatprep.mubr.bf16.mxu0 0
      %7308 = vmatmul.mubr.bf16.gmra.mxu0 %v7008
      %v7309 = vpop.f32.mrf.mxu0
      %v7310 = vadd.f32 %v7109, %v7309
      %v7311 = vpop.f32.mrf.mxu0
      %v7312 = vpop.f32.mrf.mxu0
      %v7313 = vadd.f32 %v7112, %v7312
      %v7314 = vpop.f32.mrf.mxu0
      %7315 = vmatprep.mubr.bf16.mxu0 0
      %7316 = vmatmul.mubr.bf16.gmra.mxu0 %v7011
      %v7317 = vpop.f32.mrf.mxu0
      %v7318 = vadd.f32 %v7117, %v7317
      %v7319 = vpop.f32.mrf.mxu0
      %v7320 = vpop.f32.mrf.mxu0
      %v7321 = vadd.f32 %v7120, %v7320
      %v7322 = vpop.f32.mrf.mxu0
      %7323 = vmatprep.mubr.bf16.mxu0 0
      %7324 = vmatmul.mubr.bf16.gmra.mxu0 %v7014
      %v7325 = vpop.f32.mrf.mxu0
      %v7326 = vadd.f32 %v7125, %v7325
      %v7327 = vpop.f32.mrf.mxu0
      %v7328 = vpop.f32.mrf.mxu0
      %v7329 = vadd.f32 %v7128, %v7328
      %v7330 = vpop.f32.mrf.mxu0
      %7331 = vmatprep.mubr.bf16.mxu0 0
      %7332 = vmatmul.mubr.bf16.gmra.mxu0 %v7017
      %v7333 = vpop.f32.mrf.mxu0
      %v7334 = vadd.f32 %v7133, %v7333
      %v7335 = vpop.f32.mrf.mxu0
      %v7336 = vpop.f32.mrf.mxu0
      %v7337 = vadd.f32 %v7136, %v7336
      %v7338 = vpop.f32.mrf.mxu0
      %7339 = vmatprep.mubr.bf16.mxu0 0
      %7340 = vmatmul.mubr.bf16.gmra.mxu0 %v7020
      %v7341 = vpop.f32.mrf.mxu0
      %v7342 = vadd.f32 %v7141, %v7341
      %v7343 = vpop.f32.mrf.mxu0
      %v7344 = vpop.f32.mrf.mxu0
      %v7345 = vadd.f32 %v7144, %v7344
      %v7346 = vpop.f32.mrf.mxu0
      %7347 = vmatprep.mubr.bf16.mxu0 0
      %7348 = vmatmul.mubr.bf16.gmra.mxu0 %v7023
      %v7349 = vpop.f32.mrf.mxu0
      %v7350 = vadd.f32 %v7149, %v7349
      %v7351 = vpop.f32.mrf.mxu0
      %v7352 = vpop.f32.mrf.mxu0
      %v7353 = vadd.f32 %v7152, %v7352
      %v7354 = vpop.f32.mrf.mxu0
      %7355 = vmatprep.mubr.bf16.mxu0 0
      %7356 = vmatmul.mubr.bf16.gmra.mxu0 %v7026
      %v7357 = vpop.f32.mrf.mxu0
      %v7358 = vadd.f32 %v7157, %v7357
      %v7359 = vpop.f32.mrf.mxu0
      %v7360 = vpop.f32.mrf.mxu0
      %v7361 = vadd.f32 %v7160, %v7360
      %v7362 = vpop.f32.mrf.mxu0
      %7363 = vmatprep.mubr.bf16.mxu0 0
      %7364 = vmatmul.mubr.bf16.gmra.mxu0 %v7029
      %v7365 = vpop.f32.mrf.mxu0
      %v7366 = vadd.f32 %v7165, %v7365
      %v7367 = vpop.f32.mrf.mxu0
      %v7368 = vpop.f32.mrf.mxu0
      %v7369 = vadd.f32 %v7168, %v7368
      %v7370 = vpop.f32.mrf.mxu0
      %7371 = vmatprep.mubr.bf16.mxu0 0
      %7372 = vmatmul.mubr.bf16.gmra.mxu0 %v7032
      %v7373 = vpop.f32.mrf.mxu0
      %v7374 = vadd.f32 %v7173, %v7373
      %v7375 = vpop.f32.mrf.mxu0
      %v7376 = vpop.f32.mrf.mxu0
      %v7377 = vadd.f32 %v7176, %v7376
      %v7378 = vpop.f32.mrf.mxu0
      %7379 = vmatprep.mubr.bf16.mxu0 0
      %7380 = vmatmul.mubr.bf16.gmra.mxu0 %v7035
      %v7381 = vpop.f32.mrf.mxu0
      %v7382 = vadd.f32 %v7181, %v7381
      %v7383 = vpop.f32.mrf.mxu0
      %v7384 = vpop.f32.mrf.mxu0
      %v7385 = vadd.f32 %v7184, %v7384
      %v7386 = vpop.f32.mrf.mxu0
      %7387 = vmatprep.mubr.bf16.mxu0 0
      %7388 = vmatmul.mubr.bf16.gmra.mxu0 %v7038
      %v7389 = vpop.f32.mrf.mxu0
      %v7390 = vadd.f32 %v7189, %v7389
      %v7391 = vpop.f32.mrf.mxu0
      %v7392 = vpop.f32.mrf.mxu0
      %v7393 = vadd.f32 %v7192, %v7392
      %v7394 = vpop.f32.mrf.mxu0
      %7395 = vmatprep.mubr.bf16.mxu0 0
      %7396 = vmatmul.mubr.bf16.gmra.mxu0 %v7041
      %v7397 = vpop.f32.mrf.mxu0
      %v7398 = vadd.f32 %v7197, %v7397
      %v7399 = vpop.f32.mrf.mxu0
      %v7400 = vpop.f32.mrf.mxu0
      %v7401 = vadd.f32 %v7200, %v7400
      %v7402 = vpop.f32.mrf.mxu0
      %7403 = vmatprep.mubr.bf16.mxu0 0
      %7404 = vmatmul.mubr.bf16.gmra.mxu0 %v7044
      %v7405 = vpop.f32.mrf.mxu0
      %v7406 = vadd.f32 %v7205, %v7405
      %v7407 = vpop.f32.mrf.mxu0
      %v7408 = vpop.f32.mrf.mxu0
      %v7409 = vadd.f32 %v7208, %v7408
      %v7410 = vpop.f32.mrf.mxu0
      %7411 = vmatprep.mubr.bf16.mxu0 0
      %7412 = vmatmul.mubr.bf16.gmra.mxu0 %v7047
      %v7413 = vpop.f32.mrf.mxu0
      %v7414 = vadd.f32 %v7213, %v7413
      %v7415 = vpop.f32.mrf.mxu0
      %v7416 = vpop.f32.mrf.mxu0
      %v7417 = vadd.f32 %v7216, %v7416
      %v7418 = vpop.f32.mrf.mxu0
      %7419 = vmatprep.mubr.bf16.mxu0 0
      %7420 = vmatmul.mubr.bf16.gmra.mxu0 %v7050
      %v7421 = vpop.f32.mrf.mxu0
      %v7422 = vadd.f32 %v7221, %v7421
      %v7423 = vpop.f32.mrf.mxu0
      %v7424 = vpop.f32.mrf.mxu0
      %v7425 = vadd.f32 %v7224, %v7424
      %v7426 = vpop.f32.mrf.mxu0
      %7427 = vmatprep.mubr.bf16.mxu0 0
      %7428 = vmatmul.mubr.bf16.gmra.mxu0 %v7053
      %v7429 = vpop.f32.mrf.mxu0
      %v7430 = vadd.f32 %v7229, %v7429
      %v7431 = vpop.f32.mrf.mxu0
      %v7432 = vpop.f32.mrf.mxu0
      %v7433 = vadd.f32 %v7232, %v7432
      %v7434 = vpop.f32.mrf.mxu0
      %7435 = vmatprep.mubr.bf16.mxu0 0
      %7436 = vmatmul.mubr.bf16.gmra.mxu0 %v7056
      %v7437 = vpop.f32.mrf.mxu0
      %v7438 = vadd.f32 %v7237, %v7437
      %v7439 = vpop.f32.mrf.mxu0
      %v7440 = vpop.f32.mrf.mxu0
      %v7441 = vadd.f32 %v7240, %v7440
      %v7442 = vpop.f32.mrf.mxu0
      %7443 = vmatprep.mubr.bf16.mxu0 0
      %7444 = vmatmul.mubr.bf16.gmra.mxu0 %v7059
      %v7445 = vpop.f32.mrf.mxu0
      %v7446 = vadd.f32 %v7245, %v7445
      %v7447 = vpop.f32.mrf.mxu0
      %v7448 = vpop.f32.mrf.mxu0
      %v7449 = vadd.f32 %v7248, %v7448
      %v7450 = vpop.f32.mrf.mxu0
      %7451 = vmatprep.mubr.bf16.mxu0 0
      %7452 = vmatmul.mubr.bf16.gmra.mxu0 %v7062
      %v7453 = vpop.f32.mrf.mxu0
      %v7454 = vadd.f32 %v7253, %v7453
      %v7455 = vpop.f32.mrf.mxu0
      %v7456 = vpop.f32.mrf.mxu0
      %v7457 = vadd.f32 %v7256, %v7456
      %v7458 = vpop.f32.mrf.mxu0
      %7459 = vmatprep.mubr.bf16.mxu0 0
      %7460 = vmatmul.mubr.bf16.gmra.mxu0 %v7065
      %v7461 = vpop.f32.mrf.mxu0
      %v7462 = vadd.f32 %v7261, %v7461
      %v7463 = vpop.f32.mrf.mxu0
      %v7464 = vpop.f32.mrf.mxu0
      %v7465 = vadd.f32 %v7264, %v7464
      %v7466 = vpop.f32.mrf.mxu0
      %7467 = vmatprep.mubr.bf16.mxu0 0
      %7468 = vmatmul.mubr.bf16.gmra.mxu0 %v7068
      %v7469 = vpop.f32.mrf.mxu0
      %v7470 = vadd.f32 %v7269, %v7469
      %v7471 = vpop.f32.mrf.mxu0
      %v7472 = vpop.f32.mrf.mxu0
      %v7473 = vadd.f32 %v7272, %v7472
      %v7474 = vpop.f32.mrf.mxu0
      %7475 = vdwg.mxu0
      %v7476 = vlaneseq
      %v7477 = vand.u32 %v7476, 127
      %vm7478 = vcmp.ge.s32.totalorder %v7477, 7
      %vm7479 = vcmp.lt.s32.totalorder %v7477, 123
      %vm7480 = vmand %vm7478, %vm7479
      %vm7481 = vcmp.lt.s32.totalorder %v7477, 19
      %vm7482 = vmand %vm7478, %vm7481
      %v7483 = vsel %vm7482, 1, 0
      %vm7484 = vcmp.eq.s32.totalorder %v7483, 1
      %v7485 = vsel %vm7484, %v7310, -inf
      %v7486 = vsel %vm7484, %v7313, -inf
      %v7487 = vsel %vm7484, %v7318, -inf
      %v7488 = vsel %vm7484, %v7321, -inf
      %v7489 = vsel %vm7484, %v7326, -inf
      %v7490 = vsel %vm7484, %v7329, -inf
      %v7491 = vsel %vm7484, %v7334, -inf
      %v7492 = vsel %vm7484, %v7337, -inf
      %v7493 = vsel %vm7484, %v7342, -inf
      %v7494 = vsel %vm7484, %v7345, -inf
      %v7495 = vsel %vm7484, %v7350, -inf
      %v7496 = vsel %vm7484, %v7353, -inf
      %v7497 = vsel %vm7484, %v7358, -inf
      %v7498 = vsel %vm7484, %v7361, -inf
      %v7499 = vsel %vm7484, %v7366, -inf
      %v7500 = vsel %vm7484, %v7369, -inf
      %v7501 = vsel %vm7484, %v7374, -inf
      %v7502 = vsel %vm7484, %v7377, -inf
      %v7503 = vsel %vm7484, %v7382, -inf
      %v7504 = vsel %vm7484, %v7385, -inf
      %v7505 = vsel %vm7484, %v7390, -inf
      %v7506 = vsel %vm7484, %v7393, -inf
      %v7507 = vsel %vm7484, %v7398, -inf
      %v7508 = vsel %vm7484, %v7401, -inf
      %v7509 = vsel %vm7484, %v7406, -inf
      %v7510 = vsel %vm7484, %v7409, -inf
      %v7511 = vsel %vm7484, %v7414, -inf
      %v7512 = vsel %vm7484, %v7417, -inf
      %v7513 = vsel %vm7484, %v7422, -inf
      %v7514 = vsel %vm7484, %v7425, -inf
      %v7515 = vsel %vm7484, %v7430, -inf
      %v7516 = vsel %vm7484, %v7433, -inf
      %v7517 = vsel %vm7484, %v7438, -inf
      %v7518 = vsel %vm7484, %v7441, -inf
      %v7519 = vsel %vm7484, %v7446, -inf
      %v7520 = vsel %vm7484, %v7449, -inf
      %v7521 = vsel %vm7484, %v7454, -inf
      %v7522 = vsel %vm7484, %v7457, -inf
      %v7523 = vsel %vm7484, %v7462, -inf
      %v7524 = vsel %vm7484, %v7465, -inf
      %v7525 = vsel %vm7484, %v7470, -inf
      %v7526 = vsel %vm7484, %v7473, -inf
      %7527 = vmax.xlane.f32.xlu0 %v7485
      %v7528 = vpop.xlane.xlu0 %7527
      %7529 = vmax.xlane.f32.xlu0 %v7486
      %v7530 = vpop.xlane.xlu0 %7529
      %7531 = vmax.xlane.f32.xlu0 %v7487
      %v7532 = vpop.xlane.xlu0 %7531
      %7533 = vmax.xlane.f32.xlu0 %v7488
      %v7534 = vpop.xlane.xlu0 %7533
      %7535 = vmax.xlane.f32.xlu0 %v7489
      %v7536 = vpop.xlane.xlu0 %7535
      %7537 = vmax.xlane.f32.xlu0 %v7490
      %v7538 = vpop.xlane.xlu0 %7537
      %7539 = vmax.xlane.f32.xlu0 %v7491
      %v7540 = vpop.xlane.xlu0 %7539
      %7541 = vmax.xlane.f32.xlu0 %v7492
      %v7542 = vpop.xlane.xlu0 %7541
      %7543 = vmax.xlane.f32.xlu0 %v7493
      %v7544 = vpop.xlane.xlu0 %7543
      %7545 = vmax.xlane.f32.xlu0 %v7494
      %v7546 = vpop.xlane.xlu0 %7545
      %7547 = vmax.xlane.f32.xlu0 %v7495
      %v7548 = vpop.xlane.xlu0 %7547
      %7549 = vmax.xlane.f32.xlu0 %v7496
      %v7550 = vpop.xlane.xlu0 %7549
      %7551 = vmax.xlane.f32.xlu0 %v7497
      %v7552 = vpop.xlane.xlu0 %7551
      %7553 = vmax.xlane.f32.xlu0 %v7498
      %v7554 = vpop.xlane.xlu0 %7553
      %7555 = vmax.xlane.f32.xlu0 %v7499
      %v7556 = vpop.xlane.xlu0 %7555
      %7557 = vmax.xlane.f32.xlu0 %v7500
      %v7558 = vpop.xlane.xlu0 %7557
      %7559 = vmax.xlane.f32.xlu0 %v7501
      %v7560 = vpop.xlane.xlu0 %7559
      %7561 = vmax.xlane.f32.xlu0 %v7502
      %v7562 = vpop.xlane.xlu0 %7561
      %7563 = vmax.xlane.f32.xlu0 %v7503
      %v7564 = vpop.xlane.xlu0 %7563
      %7565 = vmax.xlane.f32.xlu0 %v7504
      %v7566 = vpop.xlane.xlu0 %7565
      %7567 = vmax.xlane.f32.xlu0 %v7505
      %v7568 = vpop.xlane.xlu0 %7567
      %7569 = vmax.xlane.f32.xlu0 %v7506
      %v7570 = vpop.xlane.xlu0 %7569
      %7571 = vmax.xlane.f32.xlu0 %v7507
      %v7572 = vpop.xlane.xlu0 %7571
      %7573 = vmax.xlane.f32.xlu0 %v7508
      %v7574 = vpop.xlane.xlu0 %7573
      %7575 = vmax.xlane.f32.xlu0 %v7509
      %v7576 = vpop.xlane.xlu0 %7575
      %7577 = vmax.xlane.f32.xlu0 %v7510
      %v7578 = vpop.xlane.xlu0 %7577
      %7579 = vmax.xlane.f32.xlu0 %v7511
      %v7580 = vpop.xlane.xlu0 %7579
      %7581 = vmax.xlane.f32.xlu0 %v7512
      %v7582 = vpop.xlane.xlu0 %7581
      %7583 = vmax.xlane.f32.xlu0 %v7513
      %v7584 = vpop.xlane.xlu0 %7583
      %7585 = vmax.xlane.f32.xlu0 %v7514
      %v7586 = vpop.xlane.xlu0 %7585
      %7587 = vmax.xlane.f32.xlu0 %v7515
      %v7588 = vpop.xlane.xlu0 %7587
      %7589 = vmax.xlane.f32.xlu0 %v7516
      %v7590 = vpop.xlane.xlu0 %7589
      %7591 = vmax.xlane.f32.xlu0 %v7517
      %v7592 = vpop.xlane.xlu0 %7591
      %7593 = vmax.xlane.f32.xlu0 %v7518
      %v7594 = vpop.xlane.xlu0 %7593
      %7595 = vmax.xlane.f32.xlu0 %v7519
      %v7596 = vpop.xlane.xlu0 %7595
      %7597 = vmax.xlane.f32.xlu0 %v7520
      %v7598 = vpop.xlane.xlu0 %7597
      %7599 = vmax.xlane.f32.xlu0 %v7521
      %v7600 = vpop.xlane.xlu0 %7599
      %7601 = vmax.xlane.f32.xlu0 %v7522
      %v7602 = vpop.xlane.xlu0 %7601
      %7603 = vmax.xlane.f32.xlu0 %v7523
      %v7604 = vpop.xlane.xlu0 %7603
      %7605 = vmax.xlane.f32.xlu0 %v7524
      %v7606 = vpop.xlane.xlu0 %7605
      %7607 = vmax.xlane.f32.xlu0 %v7525
      %v7608 = vpop.xlane.xlu0 %7607
      %7609 = vmax.xlane.f32.xlu0 %v7526
      %v7610 = vpop.xlane.xlu0 %7609
      %v7611 = vsel %vm7484, %v7528, 0.0
      %v7612 = vsel %vm7484, %v7530, 0.0
      %v7613 = vsel %vm7484, %v7532, 0.0
      %v7614 = vsel %vm7484, %v7534, 0.0
      %v7615 = vsel %vm7484, %v7536, 0.0
      %v7616 = vsel %vm7484, %v7538, 0.0
      %v7617 = vsel %vm7484, %v7540, 0.0
      %v7618 = vsel %vm7484, %v7542, 0.0
      %v7619 = vsel %vm7484, %v7544, 0.0
      %v7620 = vsel %vm7484, %v7546, 0.0
      %v7621 = vsel %vm7484, %v7548, 0.0
      %v7622 = vsel %vm7484, %v7550, 0.0
      %v7623 = vsel %vm7484, %v7552, 0.0
      %v7624 = vsel %vm7484, %v7554, 0.0
      %v7625 = vsel %vm7484, %v7556, 0.0
      %v7626 = vsel %vm7484, %v7558, 0.0
      %v7627 = vsel %vm7484, %v7560, 0.0
      %v7628 = vsel %vm7484, %v7562, 0.0
      %v7629 = vsel %vm7484, %v7564, 0.0
      %v7630 = vsel %vm7484, %v7566, 0.0
      %v7631 = vsel %vm7484, %v7568, 0.0
      %v7632 = vsel %vm7484, %v7570, 0.0
      %v7633 = vsel %vm7484, %v7572, 0.0
      %v7634 = vsel %vm7484, %v7574, 0.0
      %v7635 = vsel %vm7484, %v7576, 0.0
      %v7636 = vsel %vm7484, %v7578, 0.0
      %v7637 = vsel %vm7484, %v7580, 0.0
      %v7638 = vsel %vm7484, %v7582, 0.0
      %v7639 = vsel %vm7484, %v7584, 0.0
      %v7640 = vsel %vm7484, %v7586, 0.0
      %v7641 = vsel %vm7484, %v7588, 0.0
      %v7642 = vsel %vm7484, %v7590, 0.0
      %v7643 = vsel %vm7484, %v7592, 0.0
      %v7644 = vsel %vm7484, %v7594, 0.0
      %v7645 = vsel %vm7484, %v7596, 0.0
      %v7646 = vsel %vm7484, %v7598, 0.0
      %v7647 = vsel %vm7484, %v7600, 0.0
      %v7648 = vsel %vm7484, %v7602, 0.0
      %v7649 = vsel %vm7484, %v7604, 0.0
      %v7650 = vsel %vm7484, %v7606, 0.0
      %v7651 = vsel %vm7484, %v7608, 0.0
      %v7652 = vsel %vm7484, %v7610, 0.0
      %vm7653 = vcmp.ge.s32.totalorder %v7477, 19
      %vm7654 = vcmp.lt.s32.totalorder %v7477, 31
      %vm7655 = vmand %vm7653, %vm7654
      %v7656 = vsel %vm7655, 1, 0
      %vm7657 = vcmp.eq.s32.totalorder %v7656, 1
      %v7658 = vsel %vm7657, %v7310, -inf
      %v7659 = vsel %vm7657, %v7313, -inf
      %v7660 = vsel %vm7657, %v7318, -inf
      %v7661 = vsel %vm7657, %v7321, -inf
      %v7662 = vsel %vm7657, %v7326, -inf
      %v7663 = vsel %vm7657, %v7329, -inf
      %v7664 = vsel %vm7657, %v7334, -inf
      %v7665 = vsel %vm7657, %v7337, -inf
      %v7666 = vsel %vm7657, %v7342, -inf
      %v7667 = vsel %vm7657, %v7345, -inf
      %v7668 = vsel %vm7657, %v7350, -inf
      %v7669 = vsel %vm7657, %v7353, -inf
      %v7670 = vsel %vm7657, %v7358, -inf
      %v7671 = vsel %vm7657, %v7361, -inf
      %v7672 = vsel %vm7657, %v7366, -inf
      %v7673 = vsel %vm7657, %v7369, -inf
      %v7674 = vsel %vm7657, %v7374, -inf
      %v7675 = vsel %vm7657, %v7377, -inf
      %v7676 = vsel %vm7657, %v7382, -inf
      %v7677 = vsel %vm7657, %v7385, -inf
      %v7678 = vsel %vm7657, %v7390, -inf
      %v7679 = vsel %vm7657, %v7393, -inf
      %v7680 = vsel %vm7657, %v7398, -inf
      %v7681 = vsel %vm7657, %v7401, -inf
      %v7682 = vsel %vm7657, %v7406, -inf
      %v7683 = vsel %vm7657, %v7409, -inf
      %v7684 = vsel %vm7657, %v7414, -inf
      %v7685 = vsel %vm7657, %v7417, -inf
      %v7686 = vsel %vm7657, %v7422, -inf
      %v7687 = vsel %vm7657, %v7425, -inf
      %v7688 = vsel %vm7657, %v7430, -inf
      %v7689 = vsel %vm7657, %v7433, -inf
      %v7690 = vsel %vm7657, %v7438, -inf
      %v7691 = vsel %vm7657, %v7441, -inf
      %v7692 = vsel %vm7657, %v7446, -inf
      %v7693 = vsel %vm7657, %v7449, -inf
      %v7694 = vsel %vm7657, %v7454, -inf
      %v7695 = vsel %vm7657, %v7457, -inf
      %v7696 = vsel %vm7657, %v7462, -inf
      %v7697 = vsel %vm7657, %v7465, -inf
      %v7698 = vsel %vm7657, %v7470, -inf
      %v7699 = vsel %vm7657, %v7473, -inf
      %7700 = vmax.xlane.f32.xlu0 %v7658
      %v7701 = vpop.xlane.xlu0 %7700
      %7702 = vmax.xlane.f32.xlu0 %v7659
      %v7703 = vpop.xlane.xlu0 %7702
      %7704 = vmax.xlane.f32.xlu0 %v7660
      %v7705 = vpop.xlane.xlu0 %7704
      %7706 = vmax.xlane.f32.xlu0 %v7661
      %v7707 = vpop.xlane.xlu0 %7706
      %7708 = vmax.xlane.f32.xlu0 %v7662
      %v7709 = vpop.xlane.xlu0 %7708
      %7710 = vmax.xlane.f32.xlu0 %v7663
      %v7711 = vpop.xlane.xlu0 %7710
      %7712 = vmax.xlane.f32.xlu0 %v7664
      %v7713 = vpop.xlane.xlu0 %7712
      %7714 = vmax.xlane.f32.xlu0 %v7665
      %v7715 = vpop.xlane.xlu0 %7714
      %7716 = vmax.xlane.f32.xlu0 %v7666
      %v7717 = vpop.xlane.xlu0 %7716
      %7718 = vmax.xlane.f32.xlu0 %v7667
      %v7719 = vpop.xlane.xlu0 %7718
      %7720 = vmax.xlane.f32.xlu0 %v7668
      %v7721 = vpop.xlane.xlu0 %7720
      %7722 = vmax.xlane.f32.xlu0 %v7669
      %v7723 = vpop.xlane.xlu0 %7722
      %7724 = vmax.xlane.f32.xlu0 %v7670
      %v7725 = vpop.xlane.xlu0 %7724
      %7726 = vmax.xlane.f32.xlu0 %v7671
      %v7727 = vpop.xlane.xlu0 %7726
      %7728 = vmax.xlane.f32.xlu0 %v7672
      %v7729 = vpop.xlane.xlu0 %7728
      %7730 = vmax.xlane.f32.xlu0 %v7673
      %v7731 = vpop.xlane.xlu0 %7730
      %7732 = vmax.xlane.f32.xlu0 %v7674
      %v7733 = vpop.xlane.xlu0 %7732
      %7734 = vmax.xlane.f32.xlu0 %v7675
      %v7735 = vpop.xlane.xlu0 %7734
      %7736 = vmax.xlane.f32.xlu0 %v7676
      %v7737 = vpop.xlane.xlu0 %7736
      %7738 = vmax.xlane.f32.xlu0 %v7677
      %v7739 = vpop.xlane.xlu0 %7738
      %7740 = vmax.xlane.f32.xlu0 %v7678
      %v7741 = vpop.xlane.xlu0 %7740
      %7742 = vmax.xlane.f32.xlu0 %v7679
      %v7743 = vpop.xlane.xlu0 %7742
      %7744 = vmax.xlane.f32.xlu0 %v7680
      %v7745 = vpop.xlane.xlu0 %7744
      %7746 = vmax.xlane.f32.xlu0 %v7681
      %v7747 = vpop.xlane.xlu0 %7746
      %7748 = vmax.xlane.f32.xlu0 %v7682
      %v7749 = vpop.xlane.xlu0 %7748
      %7750 = vmax.xlane.f32.xlu0 %v7683
      %v7751 = vpop.xlane.xlu0 %7750
      %7752 = vmax.xlane.f32.xlu0 %v7684
      %v7753 = vpop.xlane.xlu0 %7752
      %7754 = vmax.xlane.f32.xlu0 %v7685
      %v7755 = vpop.xlane.xlu0 %7754
      %7756 = vmax.xlane.f32.xlu0 %v7686
      %v7757 = vpop.xlane.xlu0 %7756
      %7758 = vmax.xlane.f32.xlu0 %v7687
      %v7759 = vpop.xlane.xlu0 %7758
      %7760 = vmax.xlane.f32.xlu0 %v7688
      %v7761 = vpop.xlane.xlu0 %7760
      %7762 = vmax.xlane.f32.xlu0 %v7689
      %v7763 = vpop.xlane.xlu0 %7762
      %7764 = vmax.xlane.f32.xlu0 %v7690
      %v7765 = vpop.xlane.xlu0 %7764
      %7766 = vmax.xlane.f32.xlu0 %v7691
      %v7767 = vpop.xlane.xlu0 %7766
      %7768 = vmax.xlane.f32.xlu0 %v7692
      %v7769 = vpop.xlane.xlu0 %7768
      %7770 = vmax.xlane.f32.xlu0 %v7693
      %v7771 = vpop.xlane.xlu0 %7770
      %7772 = vmax.xlane.f32.xlu0 %v7694
      %v7773 = vpop.xlane.xlu0 %7772
      %7774 = vmax.xlane.f32.xlu0 %v7695
      %v7775 = vpop.xlane.xlu0 %7774
      %7776 = vmax.xlane.f32.xlu0 %v7696
      %v7777 = vpop.xlane.xlu0 %7776
      %7778 = vmax.xlane.f32.xlu0 %v7697
      %v7779 = vpop.xlane.xlu0 %7778
      %7780 = vmax.xlane.f32.xlu0 %v7698
      %v7781 = vpop.xlane.xlu0 %7780
      %7782 = vmax.xlane.f32.xlu0 %v7699
      %v7783 = vpop.xlane.xlu0 %7782
      %v7784 = vsel %vm7657, %v7701, %v7611
      %v7785 = vsel %vm7657, %v7703, %v7612
      %v7786 = vsel %vm7657, %v7705, %v7613
      %v7787 = vsel %vm7657, %v7707, %v7614
      %v7788 = vsel %vm7657, %v7709, %v7615
      %v7789 = vsel %vm7657, %v7711, %v7616
      %v7790 = vsel %vm7657, %v7713, %v7617
      %v7791 = vsel %vm7657, %v7715, %v7618
      %v7792 = vsel %vm7657, %v7717, %v7619
      %v7793 = vsel %vm7657, %v7719, %v7620
      %v7794 = vsel %vm7657, %v7721, %v7621
      %v7795 = vsel %vm7657, %v7723, %v7622
      %v7796 = vsel %vm7657, %v7725, %v7623
      %v7797 = vsel %vm7657, %v7727, %v7624
      %v7798 = vsel %vm7657, %v7729, %v7625
      %v7799 = vsel %vm7657, %v7731, %v7626
      %v7800 = vsel %vm7657, %v7733, %v7627
      %v7801 = vsel %vm7657, %v7735, %v7628
      %v7802 = vsel %vm7657, %v7737, %v7629
      %v7803 = vsel %vm7657, %v7739, %v7630
      %v7804 = vsel %vm7657, %v7741, %v7631
      %v7805 = vsel %vm7657, %v7743, %v7632
      %v7806 = vsel %vm7657, %v7745, %v7633
      %v7807 = vsel %vm7657, %v7747, %v7634
      %v7808 = vsel %vm7657, %v7749, %v7635
      %v7809 = vsel %vm7657, %v7751, %v7636
      %v7810 = vsel %vm7657, %v7753, %v7637
      %v7811 = vsel %vm7657, %v7755, %v7638
      %v7812 = vsel %vm7657, %v7757, %v7639
      %v7813 = vsel %vm7657, %v7759, %v7640
      %v7814 = vsel %vm7657, %v7761, %v7641
      %v7815 = vsel %vm7657, %v7763, %v7642
      %v7816 = vsel %vm7657, %v7765, %v7643
      %v7817 = vsel %vm7657, %v7767, %v7644
      %v7818 = vsel %vm7657, %v7769, %v7645
      %v7819 = vsel %vm7657, %v7771, %v7646
      %v7820 = vsel %vm7657, %v7773, %v7647
      %v7821 = vsel %vm7657, %v7775, %v7648
      %v7822 = vsel %vm7657, %v7777, %v7649
      %v7823 = vsel %vm7657, %v7779, %v7650
      %v7824 = vsel %vm7657, %v7781, %v7651
      %v7825 = vsel %vm7657, %v7783, %v7652
      %vm7826 = vcmp.ge.s32.totalorder %v7477, 31
      %vm7827 = vcmp.lt.s32.totalorder %v7477, 43
      %vm7828 = vmand %vm7826, %vm7827
      %v7829 = vsel %vm7828, 1, 0
      %vm7830 = vcmp.eq.s32.totalorder %v7829, 1
      %v7831 = vsel %vm7830, %v7310, -inf
      %v7832 = vsel %vm7830, %v7313, -inf
      %v7833 = vsel %vm7830, %v7318, -inf
      %v7834 = vsel %vm7830, %v7321, -inf
      %v7835 = vsel %vm7830, %v7326, -inf
      %v7836 = vsel %vm7830, %v7329, -inf
      %v7837 = vsel %vm7830, %v7334, -inf
      %v7838 = vsel %vm7830, %v7337, -inf
      %v7839 = vsel %vm7830, %v7342, -inf
      %v7840 = vsel %vm7830, %v7345, -inf
      %v7841 = vsel %vm7830, %v7350, -inf
      %v7842 = vsel %vm7830, %v7353, -inf
      %v7843 = vsel %vm7830, %v7358, -inf
      %v7844 = vsel %vm7830, %v7361, -inf
      %v7845 = vsel %vm7830, %v7366, -inf
      %v7846 = vsel %vm7830, %v7369, -inf
      %v7847 = vsel %vm7830, %v7374, -inf
      %v7848 = vsel %vm7830, %v7377, -inf
      %v7849 = vsel %vm7830, %v7382, -inf
      %v7850 = vsel %vm7830, %v7385, -inf
      %v7851 = vsel %vm7830, %v7390, -inf
      %v7852 = vsel %vm7830, %v7393, -inf
      %v7853 = vsel %vm7830, %v7398, -inf
      %v7854 = vsel %vm7830, %v7401, -inf
      %v7855 = vsel %vm7830, %v7406, -inf
      %v7856 = vsel %vm7830, %v7409, -inf
      %v7857 = vsel %vm7830, %v7414, -inf
      %v7858 = vsel %vm7830, %v7417, -inf
      %v7859 = vsel %vm7830, %v7422, -inf
      %v7860 = vsel %vm7830, %v7425, -inf
      %v7861 = vsel %vm7830, %v7430, -inf
      %v7862 = vsel %vm7830, %v7433, -inf
      %v7863 = vsel %vm7830, %v7438, -inf
      %v7864 = vsel %vm7830, %v7441, -inf
      %v7865 = vsel %vm7830, %v7446, -inf
      %v7866 = vsel %vm7830, %v7449, -inf
      %v7867 = vsel %vm7830, %v7454, -inf
      %v7868 = vsel %vm7830, %v7457, -inf
      %v7869 = vsel %vm7830, %v7462, -inf
      %v7870 = vsel %vm7830, %v7465, -inf
      %v7871 = vsel %vm7830, %v7470, -inf
      %v7872 = vsel %vm7830, %v7473, -inf
      %7873 = vmax.xlane.f32.xlu0 %v7831
      %v7874 = vpop.xlane.xlu0 %7873
      %7875 = vmax.xlane.f32.xlu0 %v7832
      %v7876 = vpop.xlane.xlu0 %7875
      %7877 = vmax.xlane.f32.xlu0 %v7833
      %v7878 = vpop.xlane.xlu0 %7877
      %7879 = vmax.xlane.f32.xlu0 %v7834
      %v7880 = vpop.xlane.xlu0 %7879
      %7881 = vmax.xlane.f32.xlu0 %v7835
      %v7882 = vpop.xlane.xlu0 %7881
      %7883 = vmax.xlane.f32.xlu0 %v7836
      %v7884 = vpop.xlane.xlu0 %7883
      %7885 = vmax.xlane.f32.xlu0 %v7837
      %v7886 = vpop.xlane.xlu0 %7885
      %7887 = vmax.xlane.f32.xlu0 %v7838
      %v7888 = vpop.xlane.xlu0 %7887
      %7889 = vmax.xlane.f32.xlu0 %v7839
      %v7890 = vpop.xlane.xlu0 %7889
      %7891 = vmax.xlane.f32.xlu0 %v7840
      %v7892 = vpop.xlane.xlu0 %7891
      %7893 = vmax.xlane.f32.xlu0 %v7841
      %v7894 = vpop.xlane.xlu0 %7893
      %7895 = vmax.xlane.f32.xlu0 %v7842
      %v7896 = vpop.xlane.xlu0 %7895
      %7897 = vmax.xlane.f32.xlu0 %v7843
      %v7898 = vpop.xlane.xlu0 %7897
      %7899 = vmax.xlane.f32.xlu0 %v7844
      %v7900 = vpop.xlane.xlu0 %7899
      %7901 = vmax.xlane.f32.xlu0 %v7845
      %v7902 = vpop.xlane.xlu0 %7901
      %7903 = vmax.xlane.f32.xlu0 %v7846
      %v7904 = vpop.xlane.xlu0 %7903
      %7905 = vmax.xlane.f32.xlu0 %v7847
      %v7906 = vpop.xlane.xlu0 %7905
      %7907 = vmax.xlane.f32.xlu0 %v7848
      %v7908 = vpop.xlane.xlu0 %7907
      %7909 = vmax.xlane.f32.xlu0 %v7849
      %v7910 = vpop.xlane.xlu0 %7909
      %7911 = vmax.xlane.f32.xlu0 %v7850
      %v7912 = vpop.xlane.xlu0 %7911
      %7913 = vmax.xlane.f32.xlu0 %v7851
      %v7914 = vpop.xlane.xlu0 %7913
      %7915 = vmax.xlane.f32.xlu0 %v7852
      %v7916 = vpop.xlane.xlu0 %7915
      %7917 = vmax.xlane.f32.xlu0 %v7853
      %v7918 = vpop.xlane.xlu0 %7917
      %7919 = vmax.xlane.f32.xlu0 %v7854
      %v7920 = vpop.xlane.xlu0 %7919
      %7921 = vmax.xlane.f32.xlu0 %v7855
      %v7922 = vpop.xlane.xlu0 %7921
      %7923 = vmax.xlane.f32.xlu0 %v7856
      %v7924 = vpop.xlane.xlu0 %7923
      %7925 = vmax.xlane.f32.xlu0 %v7857
      %v7926 = vpop.xlane.xlu0 %7925
      %7927 = vmax.xlane.f32.xlu0 %v7858
      %v7928 = vpop.xlane.xlu0 %7927
      %7929 = vmax.xlane.f32.xlu0 %v7859
      %v7930 = vpop.xlane.xlu0 %7929
      %7931 = vmax.xlane.f32.xlu0 %v7860
      %v7932 = vpop.xlane.xlu0 %7931
      %7933 = vmax.xlane.f32.xlu0 %v7861
      %v7934 = vpop.xlane.xlu0 %7933
      %7935 = vmax.xlane.f32.xlu0 %v7862
      %v7936 = vpop.xlane.xlu0 %7935
      %7937 = vmax.xlane.f32.xlu0 %v7863
      %v7938 = vpop.xlane.xlu0 %7937
      %7939 = vmax.xlane.f32.xlu0 %v7864
      %v7940 = vpop.xlane.xlu0 %7939
      %7941 = vmax.xlane.f32.xlu0 %v7865
      %v7942 = vpop.xlane.xlu0 %7941
      %7943 = vmax.xlane.f32.xlu0 %v7866
      %v7944 = vpop.xlane.xlu0 %7943
      %7945 = vmax.xlane.f32.xlu0 %v7867
      %v7946 = vpop.xlane.xlu0 %7945
      %7947 = vmax.xlane.f32.xlu0 %v7868
      %v7948 = vpop.xlane.xlu0 %7947
      %7949 = vmax.xlane.f32.xlu0 %v7869
      %v7950 = vpop.xlane.xlu0 %7949
      %7951 = vmax.xlane.f32.xlu0 %v7870
      %v7952 = vpop.xlane.xlu0 %7951
      %7953 = vmax.xlane.f32.xlu0 %v7871
      %v7954 = vpop.xlane.xlu0 %7953
      %7955 = vmax.xlane.f32.xlu0 %v7872
      %v7956 = vpop.xlane.xlu0 %7955
      %v7957 = vsel %vm7830, %v7874, %v7784
      %v7958 = vsel %vm7830, %v7876, %v7785
      %v7959 = vsel %vm7830, %v7878, %v7786
      %v7960 = vsel %vm7830, %v7880, %v7787
      %v7961 = vsel %vm7830, %v7882, %v7788
      %v7962 = vsel %vm7830, %v7884, %v7789
      %v7963 = vsel %vm7830, %v7886, %v7790
      %v7964 = vsel %vm7830, %v7888, %v7791
      %v7965 = vsel %vm7830, %v7890, %v7792
      %v7966 = vsel %vm7830, %v7892, %v7793
      %v7967 = vsel %vm7830, %v7894, %v7794
      %v7968 = vsel %vm7830, %v7896, %v7795
      %v7969 = vsel %vm7830, %v7898, %v7796
      %v7970 = vsel %vm7830, %v7900, %v7797
      %v7971 = vsel %vm7830, %v7902, %v7798
      %v7972 = vsel %vm7830, %v7904, %v7799
      %v7973 = vsel %vm7830, %v7906, %v7800
      %v7974 = vsel %vm7830, %v7908, %v7801
      %v7975 = vsel %vm7830, %v7910, %v7802
      %v7976 = vsel %vm7830, %v7912, %v7803
      %v7977 = vsel %vm7830, %v7914, %v7804
      %v7978 = vsel %vm7830, %v7916, %v7805
      %v7979 = vsel %vm7830, %v7918, %v7806
      %v7980 = vsel %vm7830, %v7920, %v7807
      %v7981 = vsel %vm7830, %v7922, %v7808
      %v7982 = vsel %vm7830, %v7924, %v7809
      %v7983 = vsel %vm7830, %v7926, %v7810
      %v7984 = vsel %vm7830, %v7928, %v7811
      %v7985 = vsel %vm7830, %v7930, %v7812
      %v7986 = vsel %vm7830, %v7932, %v7813
      %v7987 = vsel %vm7830, %v7934, %v7814
      %v7988 = vsel %vm7830, %v7936, %v7815
      %v7989 = vsel %vm7830, %v7938, %v7816
      %v7990 = vsel %vm7830, %v7940, %v7817
      %v7991 = vsel %vm7830, %v7942, %v7818
      %v7992 = vsel %vm7830, %v7944, %v7819
      %v7993 = vsel %vm7830, %v7946, %v7820
      %v7994 = vsel %vm7830, %v7948, %v7821
      %v7995 = vsel %vm7830, %v7950, %v7822
      %v7996 = vsel %vm7830, %v7952, %v7823
      %v7997 = vsel %vm7830, %v7954, %v7824
      %v7998 = vsel %vm7830, %v7956, %v7825
      %vm7999 = vcmp.ge.s32.totalorder %v7477, 43
      %vm8000 = vcmp.lt.s32.totalorder %v7477, 55
      %vm8001 = vmand %vm7999, %vm8000
      %v8002 = vsel %vm8001, 1, 0
      %vm8003 = vcmp.eq.s32.totalorder %v8002, 1
      %v8004 = vsel %vm8003, %v7310, -inf
      %v8005 = vsel %vm8003, %v7313, -inf
      %v8006 = vsel %vm8003, %v7318, -inf
      %v8007 = vsel %vm8003, %v7321, -inf
      %v8008 = vsel %vm8003, %v7326, -inf
      %v8009 = vsel %vm8003, %v7329, -inf
      %v8010 = vsel %vm8003, %v7334, -inf
      %v8011 = vsel %vm8003, %v7337, -inf
      %v8012 = vsel %vm8003, %v7342, -inf
      %v8013 = vsel %vm8003, %v7345, -inf
      %v8014 = vsel %vm8003, %v7350, -inf
      %v8015 = vsel %vm8003, %v7353, -inf
      %v8016 = vsel %vm8003, %v7358, -inf
      %v8017 = vsel %vm8003, %v7361, -inf
      %v8018 = vsel %vm8003, %v7366, -inf
      %v8019 = vsel %vm8003, %v7369, -inf
      %v8020 = vsel %vm8003, %v7374, -inf
      %v8021 = vsel %vm8003, %v7377, -inf
      %v8022 = vsel %vm8003, %v7382, -inf
      %v8023 = vsel %vm8003, %v7385, -inf
      %v8024 = vsel %vm8003, %v7390, -inf
      %v8025 = vsel %vm8003, %v7393, -inf
      %v8026 = vsel %vm8003, %v7398, -inf
      %v8027 = vsel %vm8003, %v7401, -inf
      %v8028 = vsel %vm8003, %v7406, -inf
      %v8029 = vsel %vm8003, %v7409, -inf
      %v8030 = vsel %vm8003, %v7414, -inf
      %v8031 = vsel %vm8003, %v7417, -inf
      %v8032 = vsel %vm8003, %v7422, -inf
      %v8033 = vsel %vm8003, %v7425, -inf
      %v8034 = vsel %vm8003, %v7430, -inf
      %v8035 = vsel %vm8003, %v7433, -inf
      %v8036 = vsel %vm8003, %v7438, -inf
      %v8037 = vsel %vm8003, %v7441, -inf
      %v8038 = vsel %vm8003, %v7446, -inf
      %v8039 = vsel %vm8003, %v7449, -inf
      %v8040 = vsel %vm8003, %v7454, -inf
      %v8041 = vsel %vm8003, %v7457, -inf
      %v8042 = vsel %vm8003, %v7462, -inf
      %v8043 = vsel %vm8003, %v7465, -inf
      %v8044 = vsel %vm8003, %v7470, -inf
      %v8045 = vsel %vm8003, %v7473, -inf
      %8046 = vmax.xlane.f32.xlu0 %v8004
      %v8047 = vpop.xlane.xlu0 %8046
      %8048 = vmax.xlane.f32.xlu0 %v8005
      %v8049 = vpop.xlane.xlu0 %8048
      %8050 = vmax.xlane.f32.xlu0 %v8006
      %v8051 = vpop.xlane.xlu0 %8050
      %8052 = vmax.xlane.f32.xlu0 %v8007
      %v8053 = vpop.xlane.xlu0 %8052
      %8054 = vmax.xlane.f32.xlu0 %v8008
      %v8055 = vpop.xlane.xlu0 %8054
      %8056 = vmax.xlane.f32.xlu0 %v8009
      %v8057 = vpop.xlane.xlu0 %8056
      %8058 = vmax.xlane.f32.xlu0 %v8010
      %v8059 = vpop.xlane.xlu0 %8058
      %8060 = vmax.xlane.f32.xlu0 %v8011
      %v8061 = vpop.xlane.xlu0 %8060
      %8062 = vmax.xlane.f32.xlu0 %v8012
      %v8063 = vpop.xlane.xlu0 %8062
      %8064 = vmax.xlane.f32.xlu0 %v8013
      %v8065 = vpop.xlane.xlu0 %8064
      %8066 = vmax.xlane.f32.xlu0 %v8014
      %v8067 = vpop.xlane.xlu0 %8066
      %8068 = vmax.xlane.f32.xlu0 %v8015
      %v8069 = vpop.xlane.xlu0 %8068
      %8070 = vmax.xlane.f32.xlu0 %v8016
      %v8071 = vpop.xlane.xlu0 %8070
      %8072 = vmax.xlane.f32.xlu0 %v8017
      %v8073 = vpop.xlane.xlu0 %8072
      %8074 = vmax.xlane.f32.xlu0 %v8018
      %v8075 = vpop.xlane.xlu0 %8074
      %8076 = vmax.xlane.f32.xlu0 %v8019
      %v8077 = vpop.xlane.xlu0 %8076
      %8078 = vmax.xlane.f32.xlu0 %v8020
      %v8079 = vpop.xlane.xlu0 %8078
      %8080 = vmax.xlane.f32.xlu0 %v8021
      %v8081 = vpop.xlane.xlu0 %8080
      %8082 = vmax.xlane.f32.xlu0 %v8022
      %v8083 = vpop.xlane.xlu0 %8082
      %8084 = vmax.xlane.f32.xlu0 %v8023
      %v8085 = vpop.xlane.xlu0 %8084
      %8086 = vmax.xlane.f32.xlu0 %v8024
      %v8087 = vpop.xlane.xlu0 %8086
      %8088 = vmax.xlane.f32.xlu0 %v8025
      %v8089 = vpop.xlane.xlu0 %8088
      %8090 = vmax.xlane.f32.xlu0 %v8026
      %v8091 = vpop.xlane.xlu0 %8090
      %8092 = vmax.xlane.f32.xlu0 %v8027
      %v8093 = vpop.xlane.xlu0 %8092
      %8094 = vmax.xlane.f32.xlu0 %v8028
      %v8095 = vpop.xlane.xlu0 %8094
      %8096 = vmax.xlane.f32.xlu0 %v8029
      %v8097 = vpop.xlane.xlu0 %8096
      %8098 = vmax.xlane.f32.xlu0 %v8030
      %v8099 = vpop.xlane.xlu0 %8098
      %8100 = vmax.xlane.f32.xlu0 %v8031
      %v8101 = vpop.xlane.xlu0 %8100
      %8102 = vmax.xlane.f32.xlu0 %v8032
      %v8103 = vpop.xlane.xlu0 %8102
      %8104 = vmax.xlane.f32.xlu0 %v8033
      %v8105 = vpop.xlane.xlu0 %8104
      %8106 = vmax.xlane.f32.xlu0 %v8034
      %v8107 = vpop.xlane.xlu0 %8106
      %8108 = vmax.xlane.f32.xlu0 %v8035
      %v8109 = vpop.xlane.xlu0 %8108
      %8110 = vmax.xlane.f32.xlu0 %v8036
      %v8111 = vpop.xlane.xlu0 %8110
      %8112 = vmax.xlane.f32.xlu0 %v8037
      %v8113 = vpop.xlane.xlu0 %8112
      %8114 = vmax.xlane.f32.xlu0 %v8038
      %v8115 = vpop.xlane.xlu0 %8114
      %8116 = vmax.xlane.f32.xlu0 %v8039
      %v8117 = vpop.xlane.xlu0 %8116
      %8118 = vmax.xlane.f32.xlu0 %v8040
      %v8119 = vpop.xlane.xlu0 %8118
      %8120 = vmax.xlane.f32.xlu0 %v8041
      %v8121 = vpop.xlane.xlu0 %8120
      %8122 = vmax.xlane.f32.xlu0 %v8042
      %v8123 = vpop.xlane.xlu0 %8122
      %8124 = vmax.xlane.f32.xlu0 %v8043
      %v8125 = vpop.xlane.xlu0 %8124
      %8126 = vmax.xlane.f32.xlu0 %v8044
      %v8127 = vpop.xlane.xlu0 %8126
      %8128 = vmax.xlane.f32.xlu0 %v8045
      %v8129 = vpop.xlane.xlu0 %8128
      %v8130 = vsel %vm8003, %v8047, %v7957
      %v8131 = vsel %vm8003, %v8049, %v7958
      %v8132 = vsel %vm8003, %v8051, %v7959
      %v8133 = vsel %vm8003, %v8053, %v7960
      %v8134 = vsel %vm8003, %v8055, %v7961
      %v8135 = vsel %vm8003, %v8057, %v7962
      %v8136 = vsel %vm8003, %v8059, %v7963
      %v8137 = vsel %vm8003, %v8061, %v7964
      %v8138 = vsel %vm8003, %v8063, %v7965
      %v8139 = vsel %vm8003, %v8065, %v7966
      %v8140 = vsel %vm8003, %v8067, %v7967
      %v8141 = vsel %vm8003, %v8069, %v7968
      %v8142 = vsel %vm8003, %v8071, %v7969
      %v8143 = vsel %vm8003, %v8073, %v7970
      %v8144 = vsel %vm8003, %v8075, %v7971
      %v8145 = vsel %vm8003, %v8077, %v7972
      %v8146 = vsel %vm8003, %v8079, %v7973
      %v8147 = vsel %vm8003, %v8081, %v7974
      %v8148 = vsel %vm8003, %v8083, %v7975
      %v8149 = vsel %vm8003, %v8085, %v7976
      %v8150 = vsel %vm8003, %v8087, %v7977
      %v8151 = vsel %vm8003, %v8089, %v7978
      %v8152 = vsel %vm8003, %v8091, %v7979
      %v8153 = vsel %vm8003, %v8093, %v7980
      %v8154 = vsel %vm8003, %v8095, %v7981
      %v8155 = vsel %vm8003, %v8097, %v7982
      %v8156 = vsel %vm8003, %v8099, %v7983
      %v8157 = vsel %vm8003, %v8101, %v7984
      %v8158 = vsel %vm8003, %v8103, %v7985
      %v8159 = vsel %vm8003, %v8105, %v7986
      %v8160 = vsel %vm8003, %v8107, %v7987
      %v8161 = vsel %vm8003, %v8109, %v7988
      %v8162 = vsel %vm8003, %v8111, %v7989
      %v8163 = vsel %vm8003, %v8113, %v7990
      %v8164 = vsel %vm8003, %v8115, %v7991
      %v8165 = vsel %vm8003, %v8117, %v7992
      %v8166 = vsel %vm8003, %v8119, %v7993
      %v8167 = vsel %vm8003, %v8121, %v7994
      %v8168 = vsel %vm8003, %v8123, %v7995
      %v8169 = vsel %vm8003, %v8125, %v7996
      %v8170 = vsel %vm8003, %v8127, %v7997
      %v8171 = vsel %vm8003, %v8129, %v7998
      %vm8172 = vcmp.ge.s32.totalorder %v7477, 55
      %vm8173 = vcmp.lt.s32.totalorder %v7477, 67
      %vm8174 = vmand %vm8172, %vm8173
      %v8175 = vsel %vm8174, 1, 0
      %vm8176 = vcmp.eq.s32.totalorder %v8175, 1
      %v8177 = vsel %vm8176, %v7310, -inf
      %v8178 = vsel %vm8176, %v7313, -inf
      %v8179 = vsel %vm8176, %v7318, -inf
      %v8180 = vsel %vm8176, %v7321, -inf
      %v8181 = vsel %vm8176, %v7326, -inf
      %v8182 = vsel %vm8176, %v7329, -inf
      %v8183 = vsel %vm8176, %v7334, -inf
      %v8184 = vsel %vm8176, %v7337, -inf
      %v8185 = vsel %vm8176, %v7342, -inf
      %v8186 = vsel %vm8176, %v7345, -inf
      %v8187 = vsel %vm8176, %v7350, -inf
      %v8188 = vsel %vm8176, %v7353, -inf
      %v8189 = vsel %vm8176, %v7358, -inf
      %v8190 = vsel %vm8176, %v7361, -inf
      %v8191 = vsel %vm8176, %v7366, -inf
      %v8192 = vsel %vm8176, %v7369, -inf
      %v8193 = vsel %vm8176, %v7374, -inf
      %v8194 = vsel %vm8176, %v7377, -inf
      %v8195 = vsel %vm8176, %v7382, -inf
      %v8196 = vsel %vm8176, %v7385, -inf
      %v8197 = vsel %vm8176, %v7390, -inf
      %v8198 = vsel %vm8176, %v7393, -inf
      %v8199 = vsel %vm8176, %v7398, -inf
      %v8200 = vsel %vm8176, %v7401, -inf
      %v8201 = vsel %vm8176, %v7406, -inf
      %v8202 = vsel %vm8176, %v7409, -inf
      %v8203 = vsel %vm8176, %v7414, -inf
      %v8204 = vsel %vm8176, %v7417, -inf
      %v8205 = vsel %vm8176, %v7422, -inf
      %v8206 = vsel %vm8176, %v7425, -inf
      %v8207 = vsel %vm8176, %v7430, -inf
      %v8208 = vsel %vm8176, %v7433, -inf
      %v8209 = vsel %vm8176, %v7438, -inf
      %v8210 = vsel %vm8176, %v7441, -inf
      %v8211 = vsel %vm8176, %v7446, -inf
      %v8212 = vsel %vm8176, %v7449, -inf
      %v8213 = vsel %vm8176, %v7454, -inf
      %v8214 = vsel %vm8176, %v7457, -inf
      %v8215 = vsel %vm8176, %v7462, -inf
      %v8216 = vsel %vm8176, %v7465, -inf
      %v8217 = vsel %vm8176, %v7470, -inf
      %v8218 = vsel %vm8176, %v7473, -inf
      %8219 = vmax.xlane.f32.xlu0 %v8177
      %v8220 = vpop.xlane.xlu0 %8219
      %8221 = vmax.xlane.f32.xlu0 %v8178
      %v8222 = vpop.xlane.xlu0 %8221
      %8223 = vmax.xlane.f32.xlu0 %v8179
      %v8224 = vpop.xlane.xlu0 %8223
      %8225 = vmax.xlane.f32.xlu0 %v8180
      %v8226 = vpop.xlane.xlu0 %8225
      %8227 = vmax.xlane.f32.xlu0 %v8181
      %v8228 = vpop.xlane.xlu0 %8227
      %8229 = vmax.xlane.f32.xlu0 %v8182
      %v8230 = vpop.xlane.xlu0 %8229
      %8231 = vmax.xlane.f32.xlu0 %v8183
      %v8232 = vpop.xlane.xlu0 %8231
      %8233 = vmax.xlane.f32.xlu0 %v8184
      %v8234 = vpop.xlane.xlu0 %8233
      %8235 = vmax.xlane.f32.xlu0 %v8185
      %v8236 = vpop.xlane.xlu0 %8235
      %8237 = vmax.xlane.f32.xlu0 %v8186
      %v8238 = vpop.xlane.xlu0 %8237
      %8239 = vmax.xlane.f32.xlu0 %v8187
      %v8240 = vpop.xlane.xlu0 %8239
      %8241 = vmax.xlane.f32.xlu0 %v8188
      %v8242 = vpop.xlane.xlu0 %8241
      %8243 = vmax.xlane.f32.xlu0 %v8189
      %v8244 = vpop.xlane.xlu0 %8243
      %8245 = vmax.xlane.f32.xlu0 %v8190
      %v8246 = vpop.xlane.xlu0 %8245
      %8247 = vmax.xlane.f32.xlu0 %v8191
      %v8248 = vpop.xlane.xlu0 %8247
      %8249 = vmax.xlane.f32.xlu0 %v8192
      %v8250 = vpop.xlane.xlu0 %8249
      %8251 = vmax.xlane.f32.xlu0 %v8193
      %v8252 = vpop.xlane.xlu0 %8251
      %8253 = vmax.xlane.f32.xlu0 %v8194
      %v8254 = vpop.xlane.xlu0 %8253
      %8255 = vmax.xlane.f32.xlu0 %v8195
      %v8256 = vpop.xlane.xlu0 %8255
      %8257 = vmax.xlane.f32.xlu0 %v8196
      %v8258 = vpop.xlane.xlu0 %8257
      %8259 = vmax.xlane.f32.xlu0 %v8197
      %v8260 = vpop.xlane.xlu0 %8259
      %8261 = vmax.xlane.f32.xlu0 %v8198
      %v8262 = vpop.xlane.xlu0 %8261
      %8263 = vmax.xlane.f32.xlu0 %v8199
      %v8264 = vpop.xlane.xlu0 %8263
      %8265 = vmax.xlane.f32.xlu0 %v8200
      %v8266 = vpop.xlane.xlu0 %8265
      %8267 = vmax.xlane.f32.xlu0 %v8201
      %v8268 = vpop.xlane.xlu0 %8267
      %8269 = vmax.xlane.f32.xlu0 %v8202
      %v8270 = vpop.xlane.xlu0 %8269
      %8271 = vmax.xlane.f32.xlu0 %v8203
      %v8272 = vpop.xlane.xlu0 %8271
      %8273 = vmax.xlane.f32.xlu0 %v8204
      %v8274 = vpop.xlane.xlu0 %8273
      %8275 = vmax.xlane.f32.xlu0 %v8205
      %v8276 = vpop.xlane.xlu0 %8275
      %8277 = vmax.xlane.f32.xlu0 %v8206
      %v8278 = vpop.xlane.xlu0 %8277
      %8279 = vmax.xlane.f32.xlu0 %v8207
      %v8280 = vpop.xlane.xlu0 %8279
      %8281 = vmax.xlane.f32.xlu0 %v8208
      %v8282 = vpop.xlane.xlu0 %8281
      %8283 = vmax.xlane.f32.xlu0 %v8209
      %v8284 = vpop.xlane.xlu0 %8283
      %8285 = vmax.xlane.f32.xlu0 %v8210
      %v8286 = vpop.xlane.xlu0 %8285
      %8287 = vmax.xlane.f32.xlu0 %v8211
      %v8288 = vpop.xlane.xlu0 %8287
      %8289 = vmax.xlane.f32.xlu0 %v8212
      %v8290 = vpop.xlane.xlu0 %8289
      %8291 = vmax.xlane.f32.xlu0 %v8213
      %v8292 = vpop.xlane.xlu0 %8291
      %8293 = vmax.xlane.f32.xlu0 %v8214
      %v8294 = vpop.xlane.xlu0 %8293
      %8295 = vmax.xlane.f32.xlu0 %v8215
      %v8296 = vpop.xlane.xlu0 %8295
      %8297 = vmax.xlane.f32.xlu0 %v8216
      %v8298 = vpop.xlane.xlu0 %8297
      %8299 = vmax.xlane.f32.xlu0 %v8217
      %v8300 = vpop.xlane.xlu0 %8299
      %8301 = vmax.xlane.f32.xlu0 %v8218
      %v8302 = vpop.xlane.xlu0 %8301
      %v8303 = vsel %vm8176, %v8220, %v8130
      %v8304 = vsel %vm8176, %v8222, %v8131
      %v8305 = vsel %vm8176, %v8224, %v8132
      %v8306 = vsel %vm8176, %v8226, %v8133
      %v8307 = vsel %vm8176, %v8228, %v8134
      %v8308 = vsel %vm8176, %v8230, %v8135
      %v8309 = vsel %vm8176, %v8232, %v8136
      %v8310 = vsel %vm8176, %v8234, %v8137
      %v8311 = vsel %vm8176, %v8236, %v8138
      %v8312 = vsel %vm8176, %v8238, %v8139
      %v8313 = vsel %vm8176, %v8240, %v8140
      %v8314 = vsel %vm8176, %v8242, %v8141
      %v8315 = vsel %vm8176, %v8244, %v8142
      %v8316 = vsel %vm8176, %v8246, %v8143
      %v8317 = vsel %vm8176, %v8248, %v8144
      %v8318 = vsel %vm8176, %v8250, %v8145
      %v8319 = vsel %vm8176, %v8252, %v8146
      %v8320 = vsel %vm8176, %v8254, %v8147
      %v8321 = vsel %vm8176, %v8256, %v8148
      %v8322 = vsel %vm8176, %v8258, %v8149
      %v8323 = vsel %vm8176, %v8260, %v8150
      %v8324 = vsel %vm8176, %v8262, %v8151
      %v8325 = vsel %vm8176, %v8264, %v8152
      %v8326 = vsel %vm8176, %v8266, %v8153
      %v8327 = vsel %vm8176, %v8268, %v8154
      %v8328 = vsel %vm8176, %v8270, %v8155
      %v8329 = vsel %vm8176, %v8272, %v8156
      %v8330 = vsel %vm8176, %v8274, %v8157
      %v8331 = vsel %vm8176, %v8276, %v8158
      %v8332 = vsel %vm8176, %v8278, %v8159
      %v8333 = vsel %vm8176, %v8280, %v8160
      %v8334 = vsel %vm8176, %v8282, %v8161
      %v8335 = vsel %vm8176, %v8284, %v8162
      %v8336 = vsel %vm8176, %v8286, %v8163
      %v8337 = vsel %vm8176, %v8288, %v8164
      %v8338 = vsel %vm8176, %v8290, %v8165
      %v8339 = vsel %vm8176, %v8292, %v8166
      %v8340 = vsel %vm8176, %v8294, %v8167
      %v8341 = vsel %vm8176, %v8296, %v8168
      %v8342 = vsel %vm8176, %v8298, %v8169
      %v8343 = vsel %vm8176, %v8300, %v8170
      %v8344 = vsel %vm8176, %v8302, %v8171
      %vm8345 = vcmp.ge.s32.totalorder %v7477, 67
      %vm8346 = vcmp.lt.s32.totalorder %v7477, 79
      %vm8347 = vmand %vm8345, %vm8346
      %v8348 = vsel %vm8347, 1, 0
      %vm8349 = vcmp.eq.s32.totalorder %v8348, 1
      %v8350 = vsel %vm8349, %v7310, -inf
      %v8351 = vsel %vm8349, %v7313, -inf
      %v8352 = vsel %vm8349, %v7318, -inf
      %v8353 = vsel %vm8349, %v7321, -inf
      %v8354 = vsel %vm8349, %v7326, -inf
      %v8355 = vsel %vm8349, %v7329, -inf
      %v8356 = vsel %vm8349, %v7334, -inf
      %v8357 = vsel %vm8349, %v7337, -inf
      %v8358 = vsel %vm8349, %v7342, -inf
      %v8359 = vsel %vm8349, %v7345, -inf
      %v8360 = vsel %vm8349, %v7350, -inf
      %v8361 = vsel %vm8349, %v7353, -inf
      %v8362 = vsel %vm8349, %v7358, -inf
      %v8363 = vsel %vm8349, %v7361, -inf
      %v8364 = vsel %vm8349, %v7366, -inf
      %v8365 = vsel %vm8349, %v7369, -inf
      %v8366 = vsel %vm8349, %v7374, -inf
      %v8367 = vsel %vm8349, %v7377, -inf
      %v8368 = vsel %vm8349, %v7382, -inf
      %v8369 = vsel %vm8349, %v7385, -inf
      %v8370 = vsel %vm8349, %v7390, -inf
      %v8371 = vsel %vm8349, %v7393, -inf
      %v8372 = vsel %vm8349, %v7398, -inf
      %v8373 = vsel %vm8349, %v7401, -inf
      %v8374 = vsel %vm8349, %v7406, -inf
      %v8375 = vsel %vm8349, %v7409, -inf
      %v8376 = vsel %vm8349, %v7414, -inf
      %v8377 = vsel %vm8349, %v7417, -inf
      %v8378 = vsel %vm8349, %v7422, -inf
      %v8379 = vsel %vm8349, %v7425, -inf
      %v8380 = vsel %vm8349, %v7430, -inf
      %v8381 = vsel %vm8349, %v7433, -inf
      %v8382 = vsel %vm8349, %v7438, -inf
      %v8383 = vsel %vm8349, %v7441, -inf
      %v8384 = vsel %vm8349, %v7446, -inf
      %v8385 = vsel %vm8349, %v7449, -inf
      %v8386 = vsel %vm8349, %v7454, -inf
      %v8387 = vsel %vm8349, %v7457, -inf
      %v8388 = vsel %vm8349, %v7462, -inf
      %v8389 = vsel %vm8349, %v7465, -inf
      %v8390 = vsel %vm8349, %v7470, -inf
      %v8391 = vsel %vm8349, %v7473, -inf
      %8392 = vmax.xlane.f32.xlu0 %v8350
      %v8393 = vpop.xlane.xlu0 %8392
      %8394 = vmax.xlane.f32.xlu0 %v8351
      %v8395 = vpop.xlane.xlu0 %8394
      %8396 = vmax.xlane.f32.xlu0 %v8352
      %v8397 = vpop.xlane.xlu0 %8396
      %8398 = vmax.xlane.f32.xlu0 %v8353
      %v8399 = vpop.xlane.xlu0 %8398
      %8400 = vmax.xlane.f32.xlu0 %v8354
      %v8401 = vpop.xlane.xlu0 %8400
      %8402 = vmax.xlane.f32.xlu0 %v8355
      %v8403 = vpop.xlane.xlu0 %8402
      %8404 = vmax.xlane.f32.xlu0 %v8356
      %v8405 = vpop.xlane.xlu0 %8404
      %8406 = vmax.xlane.f32.xlu0 %v8357
      %v8407 = vpop.xlane.xlu0 %8406
      %8408 = vmax.xlane.f32.xlu0 %v8358
      %v8409 = vpop.xlane.xlu0 %8408
      %8410 = vmax.xlane.f32.xlu0 %v8359
      %v8411 = vpop.xlane.xlu0 %8410
      %8412 = vmax.xlane.f32.xlu0 %v8360
      %v8413 = vpop.xlane.xlu0 %8412
      %8414 = vmax.xlane.f32.xlu0 %v8361
      %v8415 = vpop.xlane.xlu0 %8414
      %8416 = vmax.xlane.f32.xlu0 %v8362
      %v8417 = vpop.xlane.xlu0 %8416
      %8418 = vmax.xlane.f32.xlu0 %v8363
      %v8419 = vpop.xlane.xlu0 %8418
      %8420 = vmax.xlane.f32.xlu0 %v8364
      %v8421 = vpop.xlane.xlu0 %8420
      %8422 = vmax.xlane.f32.xlu0 %v8365
      %v8423 = vpop.xlane.xlu0 %8422
      %8424 = vmax.xlane.f32.xlu0 %v8366
      %v8425 = vpop.xlane.xlu0 %8424
      %8426 = vmax.xlane.f32.xlu0 %v8367
      %v8427 = vpop.xlane.xlu0 %8426
      %8428 = vmax.xlane.f32.xlu0 %v8368
      %v8429 = vpop.xlane.xlu0 %8428
      %8430 = vmax.xlane.f32.xlu0 %v8369
      %v8431 = vpop.xlane.xlu0 %8430
      %8432 = vmax.xlane.f32.xlu0 %v8370
      %v8433 = vpop.xlane.xlu0 %8432
      %8434 = vmax.xlane.f32.xlu0 %v8371
      %v8435 = vpop.xlane.xlu0 %8434
      %8436 = vmax.xlane.f32.xlu0 %v8372
      %v8437 = vpop.xlane.xlu0 %8436
      %8438 = vmax.xlane.f32.xlu0 %v8373
      %v8439 = vpop.xlane.xlu0 %8438
      %8440 = vmax.xlane.f32.xlu0 %v8374
      %v8441 = vpop.xlane.xlu0 %8440
      %8442 = vmax.xlane.f32.xlu0 %v8375
      %v8443 = vpop.xlane.xlu0 %8442
      %8444 = vmax.xlane.f32.xlu0 %v8376
      %v8445 = vpop.xlane.xlu0 %8444
      %8446 = vmax.xlane.f32.xlu0 %v8377
      %v8447 = vpop.xlane.xlu0 %8446
      %8448 = vmax.xlane.f32.xlu0 %v8378
      %v8449 = vpop.xlane.xlu0 %8448
      %8450 = vmax.xlane.f32.xlu0 %v8379
      %v8451 = vpop.xlane.xlu0 %8450
      %8452 = vmax.xlane.f32.xlu0 %v8380
      %v8453 = vpop.xlane.xlu0 %8452
      %8454 = vmax.xlane.f32.xlu0 %v8381
      %v8455 = vpop.xlane.xlu0 %8454
      %8456 = vmax.xlane.f32.xlu0 %v8382
      %v8457 = vpop.xlane.xlu0 %8456
      %8458 = vmax.xlane.f32.xlu0 %v8383
      %v8459 = vpop.xlane.xlu0 %8458
      %8460 = vmax.xlane.f32.xlu0 %v8384
      %v8461 = vpop.xlane.xlu0 %8460
      %8462 = vmax.xlane.f32.xlu0 %v8385
      %v8463 = vpop.xlane.xlu0 %8462
      %8464 = vmax.xlane.f32.xlu0 %v8386
      %v8465 = vpop.xlane.xlu0 %8464
      %8466 = vmax.xlane.f32.xlu0 %v8387
      %v8467 = vpop.xlane.xlu0 %8466
      %8468 = vmax.xlane.f32.xlu0 %v8388
      %v8469 = vpop.xlane.xlu0 %8468
      %8470 = vmax.xlane.f32.xlu0 %v8389
      %v8471 = vpop.xlane.xlu0 %8470
      %8472 = vmax.xlane.f32.xlu0 %v8390
      %v8473 = vpop.xlane.xlu0 %8472
      %8474 = vmax.xlane.f32.xlu0 %v8391
      %v8475 = vpop.xlane.xlu0 %8474
      %v8476 = vsel %vm8349, %v8393, %v8303
      %v8477 = vsel %vm8349, %v8395, %v8304
      %v8478 = vsel %vm8349, %v8397, %v8305
      %v8479 = vsel %vm8349, %v8399, %v8306
      %v8480 = vsel %vm8349, %v8401, %v8307
      %v8481 = vsel %vm8349, %v8403, %v8308
      %v8482 = vsel %vm8349, %v8405, %v8309
      %v8483 = vsel %vm8349, %v8407, %v8310
      %v8484 = vsel %vm8349, %v8409, %v8311
      %v8485 = vsel %vm8349, %v8411, %v8312
      %v8486 = vsel %vm8349, %v8413, %v8313
      %v8487 = vsel %vm8349, %v8415, %v8314
      %v8488 = vsel %vm8349, %v8417, %v8315
      %v8489 = vsel %vm8349, %v8419, %v8316
      %v8490 = vsel %vm8349, %v8421, %v8317
      %v8491 = vsel %vm8349, %v8423, %v8318
      %v8492 = vsel %vm8349, %v8425, %v8319
      %v8493 = vsel %vm8349, %v8427, %v8320
      %v8494 = vsel %vm8349, %v8429, %v8321
      %v8495 = vsel %vm8349, %v8431, %v8322
      %v8496 = vsel %vm8349, %v8433, %v8323
      %v8497 = vsel %vm8349, %v8435, %v8324
      %v8498 = vsel %vm8349, %v8437, %v8325
      %v8499 = vsel %vm8349, %v8439, %v8326
      %v8500 = vsel %vm8349, %v8441, %v8327
      %v8501 = vsel %vm8349, %v8443, %v8328
      %v8502 = vsel %vm8349, %v8445, %v8329
      %v8503 = vsel %vm8349, %v8447, %v8330
      %v8504 = vsel %vm8349, %v8449, %v8331
      %v8505 = vsel %vm8349, %v8451, %v8332
      %v8506 = vsel %vm8349, %v8453, %v8333
      %v8507 = vsel %vm8349, %v8455, %v8334
      %v8508 = vsel %vm8349, %v8457, %v8335
      %v8509 = vsel %vm8349, %v8459, %v8336
      %v8510 = vsel %vm8349, %v8461, %v8337
      %v8511 = vsel %vm8349, %v8463, %v8338
      %v8512 = vsel %vm8349, %v8465, %v8339
      %v8513 = vsel %vm8349, %v8467, %v8340
      %v8514 = vsel %vm8349, %v8469, %v8341
      %v8515 = vsel %vm8349, %v8471, %v8342
      %v8516 = vsel %vm8349, %v8473, %v8343
      %v8517 = vsel %vm8349, %v8475, %v8344
      %vm8518 = vcmp.ge.s32.totalorder %v7477, 79
      %vm8519 = vcmp.lt.s32.totalorder %v7477, 90
      %vm8520 = vmand %vm8518, %vm8519
      %v8521 = vsel %vm8520, 1, 0
      %vm8522 = vcmp.eq.s32.totalorder %v8521, 1
      %v8523 = vsel %vm8522, %v7310, -inf
      %v8524 = vsel %vm8522, %v7313, -inf
      %v8525 = vsel %vm8522, %v7318, -inf
      %v8526 = vsel %vm8522, %v7321, -inf
      %v8527 = vsel %vm8522, %v7326, -inf
      %v8528 = vsel %vm8522, %v7329, -inf
      %v8529 = vsel %vm8522, %v7334, -inf
      %v8530 = vsel %vm8522, %v7337, -inf
      %v8531 = vsel %vm8522, %v7342, -inf
      %v8532 = vsel %vm8522, %v7345, -inf
      %v8533 = vsel %vm8522, %v7350, -inf
      %v8534 = vsel %vm8522, %v7353, -inf
      %v8535 = vsel %vm8522, %v7358, -inf
      %v8536 = vsel %vm8522, %v7361, -inf
      %v8537 = vsel %vm8522, %v7366, -inf
      %v8538 = vsel %vm8522, %v7369, -inf
      %v8539 = vsel %vm8522, %v7374, -inf
      %v8540 = vsel %vm8522, %v7377, -inf
      %v8541 = vsel %vm8522, %v7382, -inf
      %v8542 = vsel %vm8522, %v7385, -inf
      %v8543 = vsel %vm8522, %v7390, -inf
      %v8544 = vsel %vm8522, %v7393, -inf
      %v8545 = vsel %vm8522, %v7398, -inf
      %v8546 = vsel %vm8522, %v7401, -inf
      %v8547 = vsel %vm8522, %v7406, -inf
      %v8548 = vsel %vm8522, %v7409, -inf
      %v8549 = vsel %vm8522, %v7414, -inf
      %v8550 = vsel %vm8522, %v7417, -inf
      %v8551 = vsel %vm8522, %v7422, -inf
      %v8552 = vsel %vm8522, %v7425, -inf
      %v8553 = vsel %vm8522, %v7430, -inf
      %v8554 = vsel %vm8522, %v7433, -inf
      %v8555 = vsel %vm8522, %v7438, -inf
      %v8556 = vsel %vm8522, %v7441, -inf
      %v8557 = vsel %vm8522, %v7446, -inf
      %v8558 = vsel %vm8522, %v7449, -inf
      %v8559 = vsel %vm8522, %v7454, -inf
      %v8560 = vsel %vm8522, %v7457, -inf
      %v8561 = vsel %vm8522, %v7462, -inf
      %v8562 = vsel %vm8522, %v7465, -inf
      %v8563 = vsel %vm8522, %v7470, -inf
      %v8564 = vsel %vm8522, %v7473, -inf
      %8565 = vmax.xlane.f32.xlu0 %v8523
      %v8566 = vpop.xlane.xlu0 %8565
      %8567 = vmax.xlane.f32.xlu0 %v8524
      %v8568 = vpop.xlane.xlu0 %8567
      %8569 = vmax.xlane.f32.xlu0 %v8525
      %v8570 = vpop.xlane.xlu0 %8569
      %8571 = vmax.xlane.f32.xlu0 %v8526
      %v8572 = vpop.xlane.xlu0 %8571
      %8573 = vmax.xlane.f32.xlu0 %v8527
      %v8574 = vpop.xlane.xlu0 %8573
      %8575 = vmax.xlane.f32.xlu0 %v8528
      %v8576 = vpop.xlane.xlu0 %8575
      %8577 = vmax.xlane.f32.xlu0 %v8529
      %v8578 = vpop.xlane.xlu0 %8577
      %8579 = vmax.xlane.f32.xlu0 %v8530
      %v8580 = vpop.xlane.xlu0 %8579
      %8581 = vmax.xlane.f32.xlu0 %v8531
      %v8582 = vpop.xlane.xlu0 %8581
      %8583 = vmax.xlane.f32.xlu0 %v8532
      %v8584 = vpop.xlane.xlu0 %8583
      %8585 = vmax.xlane.f32.xlu0 %v8533
      %v8586 = vpop.xlane.xlu0 %8585
      %8587 = vmax.xlane.f32.xlu0 %v8534
      %v8588 = vpop.xlane.xlu0 %8587
      %8589 = vmax.xlane.f32.xlu0 %v8535
      %v8590 = vpop.xlane.xlu0 %8589
      %8591 = vmax.xlane.f32.xlu0 %v8536
      %v8592 = vpop.xlane.xlu0 %8591
      %8593 = vmax.xlane.f32.xlu0 %v8537
      %v8594 = vpop.xlane.xlu0 %8593
      %8595 = vmax.xlane.f32.xlu0 %v8538
      %v8596 = vpop.xlane.xlu0 %8595
      %8597 = vmax.xlane.f32.xlu0 %v8539
      %v8598 = vpop.xlane.xlu0 %8597
      %8599 = vmax.xlane.f32.xlu0 %v8540
      %v8600 = vpop.xlane.xlu0 %8599
      %8601 = vmax.xlane.f32.xlu0 %v8541
      %v8602 = vpop.xlane.xlu0 %8601
      %8603 = vmax.xlane.f32.xlu0 %v8542
      %v8604 = vpop.xlane.xlu0 %8603
      %8605 = vmax.xlane.f32.xlu0 %v8543
      %v8606 = vpop.xlane.xlu0 %8605
      %8607 = vmax.xlane.f32.xlu0 %v8544
      %v8608 = vpop.xlane.xlu0 %8607
      %8609 = vmax.xlane.f32.xlu0 %v8545
      %v8610 = vpop.xlane.xlu0 %8609
      %8611 = vmax.xlane.f32.xlu0 %v8546
      %v8612 = vpop.xlane.xlu0 %8611
      %8613 = vmax.xlane.f32.xlu0 %v8547
      %v8614 = vpop.xlane.xlu0 %8613
      %8615 = vmax.xlane.f32.xlu0 %v8548
      %v8616 = vpop.xlane.xlu0 %8615
      %8617 = vmax.xlane.f32.xlu0 %v8549
      %v8618 = vpop.xlane.xlu0 %8617
      %8619 = vmax.xlane.f32.xlu0 %v8550
      %v8620 = vpop.xlane.xlu0 %8619
      %8621 = vmax.xlane.f32.xlu0 %v8551
      %v8622 = vpop.xlane.xlu0 %8621
      %8623 = vmax.xlane.f32.xlu0 %v8552
      %v8624 = vpop.xlane.xlu0 %8623
      %8625 = vmax.xlane.f32.xlu0 %v8553
      %v8626 = vpop.xlane.xlu0 %8625
      %8627 = vmax.xlane.f32.xlu0 %v8554
      %v8628 = vpop.xlane.xlu0 %8627
      %8629 = vmax.xlane.f32.xlu0 %v8555
      %v8630 = vpop.xlane.xlu0 %8629
      %8631 = vmax.xlane.f32.xlu0 %v8556
      %v8632 = vpop.xlane.xlu0 %8631
      %8633 = vmax.xlane.f32.xlu0 %v8557
      %v8634 = vpop.xlane.xlu0 %8633
      %8635 = vmax.xlane.f32.xlu0 %v8558
      %v8636 = vpop.xlane.xlu0 %8635
      %8637 = vmax.xlane.f32.xlu0 %v8559
      %v8638 = vpop.xlane.xlu0 %8637
      %8639 = vmax.xlane.f32.xlu0 %v8560
      %v8640 = vpop.xlane.xlu0 %8639
      %8641 = vmax.xlane.f32.xlu0 %v8561
      %v8642 = vpop.xlane.xlu0 %8641
      %8643 = vmax.xlane.f32.xlu0 %v8562
      %v8644 = vpop.xlane.xlu0 %8643
      %8645 = vmax.xlane.f32.xlu0 %v8563
      %v8646 = vpop.xlane.xlu0 %8645
      %8647 = vmax.xlane.f32.xlu0 %v8564
      %v8648 = vpop.xlane.xlu0 %8647
      %v8649 = vsel %vm8522, %v8566, %v8476
      %v8650 = vsel %vm8522, %v8568, %v8477
      %v8651 = vsel %vm8522, %v8570, %v8478
      %v8652 = vsel %vm8522, %v8572, %v8479
      %v8653 = vsel %vm8522, %v8574, %v8480
      %v8654 = vsel %vm8522, %v8576, %v8481
      %v8655 = vsel %vm8522, %v8578, %v8482
      %v8656 = vsel %vm8522, %v8580, %v8483
      %v8657 = vsel %vm8522, %v8582, %v8484
      %v8658 = vsel %vm8522, %v8584, %v8485
      %v8659 = vsel %vm8522, %v8586, %v8486
      %v8660 = vsel %vm8522, %v8588, %v8487
      %v8661 = vsel %vm8522, %v8590, %v8488
      %v8662 = vsel %vm8522, %v8592, %v8489
      %v8663 = vsel %vm8522, %v8594, %v8490
      %v8664 = vsel %vm8522, %v8596, %v8491
      %v8665 = vsel %vm8522, %v8598, %v8492
      %v8666 = vsel %vm8522, %v8600, %v8493
      %v8667 = vsel %vm8522, %v8602, %v8494
      %v8668 = vsel %vm8522, %v8604, %v8495
      %v8669 = vsel %vm8522, %v8606, %v8496
      %v8670 = vsel %vm8522, %v8608, %v8497
      %v8671 = vsel %vm8522, %v8610, %v8498
      %v8672 = vsel %vm8522, %v8612, %v8499
      %v8673 = vsel %vm8522, %v8614, %v8500
      %v8674 = vsel %vm8522, %v8616, %v8501
      %v8675 = vsel %vm8522, %v8618, %v8502
      %v8676 = vsel %vm8522, %v8620, %v8503
      %v8677 = vsel %vm8522, %v8622, %v8504
      %v8678 = vsel %vm8522, %v8624, %v8505
      %v8679 = vsel %vm8522, %v8626, %v8506
      %v8680 = vsel %vm8522, %v8628, %v8507
      %v8681 = vsel %vm8522, %v8630, %v8508
      %v8682 = vsel %vm8522, %v8632, %v8509
      %v8683 = vsel %vm8522, %v8634, %v8510
      %v8684 = vsel %vm8522, %v8636, %v8511
      %v8685 = vsel %vm8522, %v8638, %v8512
      %v8686 = vsel %vm8522, %v8640, %v8513
      %v8687 = vsel %vm8522, %v8642, %v8514
      %v8688 = vsel %vm8522, %v8644, %v8515
      %v8689 = vsel %vm8522, %v8646, %v8516
      %v8690 = vsel %vm8522, %v8648, %v8517
      %vm8691 = vcmp.ge.s32.totalorder %v7477, 90
      %vm8692 = vcmp.lt.s32.totalorder %v7477, 101
      %vm8693 = vmand %vm8691, %vm8692
      %v8694 = vsel %vm8693, 1, 0
      %vm8695 = vcmp.eq.s32.totalorder %v8694, 1
      %v8696 = vsel %vm8695, %v7310, -inf
      %v8697 = vsel %vm8695, %v7313, -inf
      %v8698 = vsel %vm8695, %v7318, -inf
      %v8699 = vsel %vm8695, %v7321, -inf
      %v8700 = vsel %vm8695, %v7326, -inf
      %v8701 = vsel %vm8695, %v7329, -inf
      %v8702 = vsel %vm8695, %v7334, -inf
      %v8703 = vsel %vm8695, %v7337, -inf
      %v8704 = vsel %vm8695, %v7342, -inf
      %v8705 = vsel %vm8695, %v7345, -inf
      %v8706 = vsel %vm8695, %v7350, -inf
      %v8707 = vsel %vm8695, %v7353, -inf
      %v8708 = vsel %vm8695, %v7358, -inf
      %v8709 = vsel %vm8695, %v7361, -inf
      %v8710 = vsel %vm8695, %v7366, -inf
      %v8711 = vsel %vm8695, %v7369, -inf
      %v8712 = vsel %vm8695, %v7374, -inf
      %v8713 = vsel %vm8695, %v7377, -inf
      %v8714 = vsel %vm8695, %v7382, -inf
      %v8715 = vsel %vm8695, %v7385, -inf
      %v8716 = vsel %vm8695, %v7390, -inf
      %v8717 = vsel %vm8695, %v7393, -inf
      %v8718 = vsel %vm8695, %v7398, -inf
      %v8719 = vsel %vm8695, %v7401, -inf
      %v8720 = vsel %vm8695, %v7406, -inf
      %v8721 = vsel %vm8695, %v7409, -inf
      %v8722 = vsel %vm8695, %v7414, -inf
      %v8723 = vsel %vm8695, %v7417, -inf
      %v8724 = vsel %vm8695, %v7422, -inf
      %v8725 = vsel %vm8695, %v7425, -inf
      %v8726 = vsel %vm8695, %v7430, -inf
      %v8727 = vsel %vm8695, %v7433, -inf
      %v8728 = vsel %vm8695, %v7438, -inf
      %v8729 = vsel %vm8695, %v7441, -inf
      %v8730 = vsel %vm8695, %v7446, -inf
      %v8731 = vsel %vm8695, %v7449, -inf
      %v8732 = vsel %vm8695, %v7454, -inf
      %v8733 = vsel %vm8695, %v7457, -inf
      %v8734 = vsel %vm8695, %v7462, -inf
      %v8735 = vsel %vm8695, %v7465, -inf
      %v8736 = vsel %vm8695, %v7470, -inf
      %v8737 = vsel %vm8695, %v7473, -inf
      %8738 = vmax.xlane.f32.xlu0 %v8696
      %v8739 = vpop.xlane.xlu0 %8738
      %8740 = vmax.xlane.f32.xlu0 %v8697
      %v8741 = vpop.xlane.xlu0 %8740
      %8742 = vmax.xlane.f32.xlu0 %v8698
      %v8743 = vpop.xlane.xlu0 %8742
      %8744 = vmax.xlane.f32.xlu0 %v8699
      %v8745 = vpop.xlane.xlu0 %8744
      %8746 = vmax.xlane.f32.xlu0 %v8700
      %v8747 = vpop.xlane.xlu0 %8746
      %8748 = vmax.xlane.f32.xlu0 %v8701
      %v8749 = vpop.xlane.xlu0 %8748
      %8750 = vmax.xlane.f32.xlu0 %v8702
      %v8751 = vpop.xlane.xlu0 %8750
      %8752 = vmax.xlane.f32.xlu0 %v8703
      %v8753 = vpop.xlane.xlu0 %8752
      %8754 = vmax.xlane.f32.xlu0 %v8704
      %v8755 = vpop.xlane.xlu0 %8754
      %8756 = vmax.xlane.f32.xlu0 %v8705
      %v8757 = vpop.xlane.xlu0 %8756
      %8758 = vmax.xlane.f32.xlu0 %v8706
      %v8759 = vpop.xlane.xlu0 %8758
      %8760 = vmax.xlane.f32.xlu0 %v8707
      %v8761 = vpop.xlane.xlu0 %8760
      %8762 = vmax.xlane.f32.xlu0 %v8708
      %v8763 = vpop.xlane.xlu0 %8762
      %8764 = vmax.xlane.f32.xlu0 %v8709
      %v8765 = vpop.xlane.xlu0 %8764
      %8766 = vmax.xlane.f32.xlu0 %v8710
      %v8767 = vpop.xlane.xlu0 %8766
      %8768 = vmax.xlane.f32.xlu0 %v8711
      %v8769 = vpop.xlane.xlu0 %8768
      %8770 = vmax.xlane.f32.xlu0 %v8712
      %v8771 = vpop.xlane.xlu0 %8770
      %8772 = vmax.xlane.f32.xlu0 %v8713
      %v8773 = vpop.xlane.xlu0 %8772
      %8774 = vmax.xlane.f32.xlu0 %v8714
      %v8775 = vpop.xlane.xlu0 %8774
      %8776 = vmax.xlane.f32.xlu0 %v8715
      %v8777 = vpop.xlane.xlu0 %8776
      %8778 = vmax.xlane.f32.xlu0 %v8716
      %v8779 = vpop.xlane.xlu0 %8778
      %8780 = vmax.xlane.f32.xlu0 %v8717
      %v8781 = vpop.xlane.xlu0 %8780
      %8782 = vmax.xlane.f32.xlu0 %v8718
      %v8783 = vpop.xlane.xlu0 %8782
      %8784 = vmax.xlane.f32.xlu0 %v8719
      %v8785 = vpop.xlane.xlu0 %8784
      %8786 = vmax.xlane.f32.xlu0 %v8720
      %v8787 = vpop.xlane.xlu0 %8786
      %8788 = vmax.xlane.f32.xlu0 %v8721
      %v8789 = vpop.xlane.xlu0 %8788
      %8790 = vmax.xlane.f32.xlu0 %v8722
      %v8791 = vpop.xlane.xlu0 %8790
      %8792 = vmax.xlane.f32.xlu0 %v8723
      %v8793 = vpop.xlane.xlu0 %8792
      %8794 = vmax.xlane.f32.xlu0 %v8724
      %v8795 = vpop.xlane.xlu0 %8794
      %8796 = vmax.xlane.f32.xlu0 %v8725
      %v8797 = vpop.xlane.xlu0 %8796
      %8798 = vmax.xlane.f32.xlu0 %v8726
      %v8799 = vpop.xlane.xlu0 %8798
      %8800 = vmax.xlane.f32.xlu0 %v8727
      %v8801 = vpop.xlane.xlu0 %8800
      %8802 = vmax.xlane.f32.xlu0 %v8728
      %v8803 = vpop.xlane.xlu0 %8802
      %8804 = vmax.xlane.f32.xlu0 %v8729
      %v8805 = vpop.xlane.xlu0 %8804
      %8806 = vmax.xlane.f32.xlu0 %v8730
      %v8807 = vpop.xlane.xlu0 %8806
      %8808 = vmax.xlane.f32.xlu0 %v8731
      %v8809 = vpop.xlane.xlu0 %8808
      %8810 = vmax.xlane.f32.xlu0 %v8732
      %v8811 = vpop.xlane.xlu0 %8810
      %8812 = vmax.xlane.f32.xlu0 %v8733
      %v8813 = vpop.xlane.xlu0 %8812
      %8814 = vmax.xlane.f32.xlu0 %v8734
      %v8815 = vpop.xlane.xlu0 %8814
      %8816 = vmax.xlane.f32.xlu0 %v8735
      %v8817 = vpop.xlane.xlu0 %8816
      %8818 = vmax.xlane.f32.xlu0 %v8736
      %v8819 = vpop.xlane.xlu0 %8818
      %8820 = vmax.xlane.f32.xlu0 %v8737
      %v8821 = vpop.xlane.xlu0 %8820
      %v8822 = vsel %vm8695, %v8739, %v8649
      %v8823 = vsel %vm8695, %v8741, %v8650
      %v8824 = vsel %vm8695, %v8743, %v8651
      %v8825 = vsel %vm8695, %v8745, %v8652
      %v8826 = vsel %vm8695, %v8747, %v8653
      %v8827 = vsel %vm8695, %v8749, %v8654
      %v8828 = vsel %vm8695, %v8751, %v8655
      %v8829 = vsel %vm8695, %v8753, %v8656
      %v8830 = vsel %vm8695, %v8755, %v8657
      %v8831 = vsel %vm8695, %v8757, %v8658
      %v8832 = vsel %vm8695, %v8759, %v8659
      %v8833 = vsel %vm8695, %v8761, %v8660
      %v8834 = vsel %vm8695, %v8763, %v8661
      %v8835 = vsel %vm8695, %v8765, %v8662
      %v8836 = vsel %vm8695, %v8767, %v8663
      %v8837 = vsel %vm8695, %v8769, %v8664
      %v8838 = vsel %vm8695, %v8771, %v8665
      %v8839 = vsel %vm8695, %v8773, %v8666
      %v8840 = vsel %vm8695, %v8775, %v8667
      %v8841 = vsel %vm8695, %v8777, %v8668
      %v8842 = vsel %vm8695, %v8779, %v8669
      %v8843 = vsel %vm8695, %v8781, %v8670
      %v8844 = vsel %vm8695, %v8783, %v8671
      %v8845 = vsel %vm8695, %v8785, %v8672
      %v8846 = vsel %vm8695, %v8787, %v8673
      %v8847 = vsel %vm8695, %v8789, %v8674
      %v8848 = vsel %vm8695, %v8791, %v8675
      %v8849 = vsel %vm8695, %v8793, %v8676
      %v8850 = vsel %vm8695, %v8795, %v8677
      %v8851 = vsel %vm8695, %v8797, %v8678
      %v8852 = vsel %vm8695, %v8799, %v8679
      %v8853 = vsel %vm8695, %v8801, %v8680
      %v8854 = vsel %vm8695, %v8803, %v8681
      %v8855 = vsel %vm8695, %v8805, %v8682
      %v8856 = vsel %vm8695, %v8807, %v8683
      %v8857 = vsel %vm8695, %v8809, %v8684
      %v8858 = vsel %vm8695, %v8811, %v8685
      %v8859 = vsel %vm8695, %v8813, %v8686
      %v8860 = vsel %vm8695, %v8815, %v8687
      %v8861 = vsel %vm8695, %v8817, %v8688
      %v8862 = vsel %vm8695, %v8819, %v8689
      %v8863 = vsel %vm8695, %v8821, %v8690
      %vm8864 = vcmp.ge.s32.totalorder %v7477, 101
      %vm8865 = vcmp.lt.s32.totalorder %v7477, 112
      %vm8866 = vmand %vm8864, %vm8865
      %v8867 = vsel %vm8866, 1, 0
      %vm8868 = vcmp.eq.s32.totalorder %v8867, 1
      %v8869 = vsel %vm8868, %v7310, -inf
      %v8870 = vsel %vm8868, %v7313, -inf
      %v8871 = vsel %vm8868, %v7318, -inf
      %v8872 = vsel %vm8868, %v7321, -inf
      %v8873 = vsel %vm8868, %v7326, -inf
      %v8874 = vsel %vm8868, %v7329, -inf
      %v8875 = vsel %vm8868, %v7334, -inf
      %v8876 = vsel %vm8868, %v7337, -inf
      %v8877 = vsel %vm8868, %v7342, -inf
      %v8878 = vsel %vm8868, %v7345, -inf
      %v8879 = vsel %vm8868, %v7350, -inf
      %v8880 = vsel %vm8868, %v7353, -inf
      %v8881 = vsel %vm8868, %v7358, -inf
      %v8882 = vsel %vm8868, %v7361, -inf
      %v8883 = vsel %vm8868, %v7366, -inf
      %v8884 = vsel %vm8868, %v7369, -inf
      %v8885 = vsel %vm8868, %v7374, -inf
      %v8886 = vsel %vm8868, %v7377, -inf
      %v8887 = vsel %vm8868, %v7382, -inf
      %v8888 = vsel %vm8868, %v7385, -inf
      %v8889 = vsel %vm8868, %v7390, -inf
      %v8890 = vsel %vm8868, %v7393, -inf
      %v8891 = vsel %vm8868, %v7398, -inf
      %v8892 = vsel %vm8868, %v7401, -inf
      %v8893 = vsel %vm8868, %v7406, -inf
      %v8894 = vsel %vm8868, %v7409, -inf
      %v8895 = vsel %vm8868, %v7414, -inf
      %v8896 = vsel %vm8868, %v7417, -inf
      %v8897 = vsel %vm8868, %v7422, -inf
      %v8898 = vsel %vm8868, %v7425, -inf
      %v8899 = vsel %vm8868, %v7430, -inf
      %v8900 = vsel %vm8868, %v7433, -inf
      %v8901 = vsel %vm8868, %v7438, -inf
      %v8902 = vsel %vm8868, %v7441, -inf
      %v8903 = vsel %vm8868, %v7446, -inf
      %v8904 = vsel %vm8868, %v7449, -inf
      %v8905 = vsel %vm8868, %v7454, -inf
      %v8906 = vsel %vm8868, %v7457, -inf
      %v8907 = vsel %vm8868, %v7462, -inf
      %v8908 = vsel %vm8868, %v7465, -inf
      %v8909 = vsel %vm8868, %v7470, -inf
      %v8910 = vsel %vm8868, %v7473, -inf
      %8911 = vmax.xlane.f32.xlu0 %v8869
      %v8912 = vpop.xlane.xlu0 %8911
      %8913 = vmax.xlane.f32.xlu0 %v8870
      %v8914 = vpop.xlane.xlu0 %8913
      %8915 = vmax.xlane.f32.xlu0 %v8871
      %v8916 = vpop.xlane.xlu0 %8915
      %8917 = vmax.xlane.f32.xlu0 %v8872
      %v8918 = vpop.xlane.xlu0 %8917
      %8919 = vmax.xlane.f32.xlu0 %v8873
      %v8920 = vpop.xlane.xlu0 %8919
      %8921 = vmax.xlane.f32.xlu0 %v8874
      %v8922 = vpop.xlane.xlu0 %8921
      %8923 = vmax.xlane.f32.xlu0 %v8875
      %v8924 = vpop.xlane.xlu0 %8923
      %8925 = vmax.xlane.f32.xlu0 %v8876
      %v8926 = vpop.xlane.xlu0 %8925
      %8927 = vmax.xlane.f32.xlu0 %v8877
      %v8928 = vpop.xlane.xlu0 %8927
      %8929 = vmax.xlane.f32.xlu0 %v8878
      %v8930 = vpop.xlane.xlu0 %8929
      %8931 = vmax.xlane.f32.xlu0 %v8879
      %v8932 = vpop.xlane.xlu0 %8931
      %8933 = vmax.xlane.f32.xlu0 %v8880
      %v8934 = vpop.xlane.xlu0 %8933
      %8935 = vmax.xlane.f32.xlu0 %v8881
      %v8936 = vpop.xlane.xlu0 %8935
      %8937 = vmax.xlane.f32.xlu0 %v8882
      %v8938 = vpop.xlane.xlu0 %8937
      %8939 = vmax.xlane.f32.xlu0 %v8883
      %v8940 = vpop.xlane.xlu0 %8939
      %8941 = vmax.xlane.f32.xlu0 %v8884
      %v8942 = vpop.xlane.xlu0 %8941
      %8943 = vmax.xlane.f32.xlu0 %v8885
      %v8944 = vpop.xlane.xlu0 %8943
      %8945 = vmax.xlane.f32.xlu0 %v8886
      %v8946 = vpop.xlane.xlu0 %8945
      %8947 = vmax.xlane.f32.xlu0 %v8887
      %v8948 = vpop.xlane.xlu0 %8947
      %8949 = vmax.xlane.f32.xlu0 %v8888
      %v8950 = vpop.xlane.xlu0 %8949
      %8951 = vmax.xlane.f32.xlu0 %v8889
      %v8952 = vpop.xlane.xlu0 %8951
      %8953 = vmax.xlane.f32.xlu0 %v8890
      %v8954 = vpop.xlane.xlu0 %8953
      %8955 = vmax.xlane.f32.xlu0 %v8891
      %v8956 = vpop.xlane.xlu0 %8955
      %8957 = vmax.xlane.f32.xlu0 %v8892
      %v8958 = vpop.xlane.xlu0 %8957
      %8959 = vmax.xlane.f32.xlu0 %v8893
      %v8960 = vpop.xlane.xlu0 %8959
      %8961 = vmax.xlane.f32.xlu0 %v8894
      %v8962 = vpop.xlane.xlu0 %8961
      %8963 = vmax.xlane.f32.xlu0 %v8895
      %v8964 = vpop.xlane.xlu0 %8963
      %8965 = vmax.xlane.f32.xlu0 %v8896
      %v8966 = vpop.xlane.xlu0 %8965
      %8967 = vmax.xlane.f32.xlu0 %v8897
      %v8968 = vpop.xlane.xlu0 %8967
      %8969 = vmax.xlane.f32.xlu0 %v8898
      %v8970 = vpop.xlane.xlu0 %8969
      %8971 = vmax.xlane.f32.xlu0 %v8899
      %v8972 = vpop.xlane.xlu0 %8971
      %8973 = vmax.xlane.f32.xlu0 %v8900
      %v8974 = vpop.xlane.xlu0 %8973
      %8975 = vmax.xlane.f32.xlu0 %v8901
      %v8976 = vpop.xlane.xlu0 %8975
      %8977 = vmax.xlane.f32.xlu0 %v8902
      %v8978 = vpop.xlane.xlu0 %8977
      %8979 = vmax.xlane.f32.xlu0 %v8903
      %v8980 = vpop.xlane.xlu0 %8979
      %8981 = vmax.xlane.f32.xlu0 %v8904
      %v8982 = vpop.xlane.xlu0 %8981
      %8983 = vmax.xlane.f32.xlu0 %v8905
      %v8984 = vpop.xlane.xlu0 %8983
      %8985 = vmax.xlane.f32.xlu0 %v8906
      %v8986 = vpop.xlane.xlu0 %8985
      %8987 = vmax.xlane.f32.xlu0 %v8907
      %v8988 = vpop.xlane.xlu0 %8987
      %8989 = vmax.xlane.f32.xlu0 %v8908
      %v8990 = vpop.xlane.xlu0 %8989
      %8991 = vmax.xlane.f32.xlu0 %v8909
      %v8992 = vpop.xlane.xlu0 %8991
      %8993 = vmax.xlane.f32.xlu0 %v8910
      %v8994 = vpop.xlane.xlu0 %8993
      %v8995 = vsel %vm8868, %v8912, %v8822
      %v8996 = vsel %vm8868, %v8914, %v8823
      %v8997 = vsel %vm8868, %v8916, %v8824
      %v8998 = vsel %vm8868, %v8918, %v8825
      %v8999 = vsel %vm8868, %v8920, %v8826
      %v9000 = vsel %vm8868, %v8922, %v8827
      %v9001 = vsel %vm8868, %v8924, %v8828
      %v9002 = vsel %vm8868, %v8926, %v8829
      %v9003 = vsel %vm8868, %v8928, %v8830
      %v9004 = vsel %vm8868, %v8930, %v8831
      %v9005 = vsel %vm8868, %v8932, %v8832
      %v9006 = vsel %vm8868, %v8934, %v8833
      %v9007 = vsel %vm8868, %v8936, %v8834
      %v9008 = vsel %vm8868, %v8938, %v8835
      %v9009 = vsel %vm8868, %v8940, %v8836
      %v9010 = vsel %vm8868, %v8942, %v8837
      %v9011 = vsel %vm8868, %v8944, %v8838
      %v9012 = vsel %vm8868, %v8946, %v8839
      %v9013 = vsel %vm8868, %v8948, %v8840
      %v9014 = vsel %vm8868, %v8950, %v8841
      %v9015 = vsel %vm8868, %v8952, %v8842
      %v9016 = vsel %vm8868, %v8954, %v8843
      %v9017 = vsel %vm8868, %v8956, %v8844
      %v9018 = vsel %vm8868, %v8958, %v8845
      %v9019 = vsel %vm8868, %v8960, %v8846
      %v9020 = vsel %vm8868, %v8962, %v8847
      %v9021 = vsel %vm8868, %v8964, %v8848
      %v9022 = vsel %vm8868, %v8966, %v8849
      %v9023 = vsel %vm8868, %v8968, %v8850
      %v9024 = vsel %vm8868, %v8970, %v8851
      %v9025 = vsel %vm8868, %v8972, %v8852
      %v9026 = vsel %vm8868, %v8974, %v8853
      %v9027 = vsel %vm8868, %v8976, %v8854
      %v9028 = vsel %vm8868, %v8978, %v8855
      %v9029 = vsel %vm8868, %v8980, %v8856
      %v9030 = vsel %vm8868, %v8982, %v8857
      %v9031 = vsel %vm8868, %v8984, %v8858
      %v9032 = vsel %vm8868, %v8986, %v8859
      %v9033 = vsel %vm8868, %v8988, %v8860
      %v9034 = vsel %vm8868, %v8990, %v8861
      %v9035 = vsel %vm8868, %v8992, %v8862
      %v9036 = vsel %vm8868, %v8994, %v8863
      %vm9037 = vcmp.ge.s32.totalorder %v7477, 112
      %vm9038 = vmand %vm9037, %vm7479
      %v9039 = vsel %vm9038, 1, 0
      %vm9040 = vcmp.eq.s32.totalorder %v9039, 1
      %v9041 = vsel %vm9040, %v7310, -inf
      %v9042 = vsel %vm9040, %v7313, -inf
      %v9043 = vsel %vm9040, %v7318, -inf
      %v9044 = vsel %vm9040, %v7321, -inf
      %v9045 = vsel %vm9040, %v7326, -inf
      %v9046 = vsel %vm9040, %v7329, -inf
      %v9047 = vsel %vm9040, %v7334, -inf
      %v9048 = vsel %vm9040, %v7337, -inf
      %v9049 = vsel %vm9040, %v7342, -inf
      %v9050 = vsel %vm9040, %v7345, -inf
      %v9051 = vsel %vm9040, %v7350, -inf
      %v9052 = vsel %vm9040, %v7353, -inf
      %v9053 = vsel %vm9040, %v7358, -inf
      %v9054 = vsel %vm9040, %v7361, -inf
      %v9055 = vsel %vm9040, %v7366, -inf
      %v9056 = vsel %vm9040, %v7369, -inf
      %v9057 = vsel %vm9040, %v7374, -inf
      %v9058 = vsel %vm9040, %v7377, -inf
      %v9059 = vsel %vm9040, %v7382, -inf
      %v9060 = vsel %vm9040, %v7385, -inf
      %v9061 = vsel %vm9040, %v7390, -inf
      %v9062 = vsel %vm9040, %v7393, -inf
      %v9063 = vsel %vm9040, %v7398, -inf
      %v9064 = vsel %vm9040, %v7401, -inf
      %v9065 = vsel %vm9040, %v7406, -inf
      %v9066 = vsel %vm9040, %v7409, -inf
      %v9067 = vsel %vm9040, %v7414, -inf
      %v9068 = vsel %vm9040, %v7417, -inf
      %v9069 = vsel %vm9040, %v7422, -inf
      %v9070 = vsel %vm9040, %v7425, -inf
      %v9071 = vsel %vm9040, %v7430, -inf
      %v9072 = vsel %vm9040, %v7433, -inf
      %v9073 = vsel %vm9040, %v7438, -inf
      %v9074 = vsel %vm9040, %v7441, -inf
      %v9075 = vsel %vm9040, %v7446, -inf
      %v9076 = vsel %vm9040, %v7449, -inf
      %v9077 = vsel %vm9040, %v7454, -inf
      %v9078 = vsel %vm9040, %v7457, -inf
      %v9079 = vsel %vm9040, %v7462, -inf
      %v9080 = vsel %vm9040, %v7465, -inf
      %v9081 = vsel %vm9040, %v7470, -inf
      %v9082 = vsel %vm9040, %v7473, -inf
      %9083 = vmax.xlane.f32.xlu0 %v9041
      %v9084 = vpop.xlane.xlu0 %9083
      %9085 = vmax.xlane.f32.xlu0 %v9042
      %v9086 = vpop.xlane.xlu0 %9085
      %9087 = vmax.xlane.f32.xlu0 %v9043
      %v9088 = vpop.xlane.xlu0 %9087
      %9089 = vmax.xlane.f32.xlu0 %v9044
      %v9090 = vpop.xlane.xlu0 %9089
      %9091 = vmax.xlane.f32.xlu0 %v9045
      %v9092 = vpop.xlane.xlu0 %9091
      %9093 = vmax.xlane.f32.xlu0 %v9046
      %v9094 = vpop.xlane.xlu0 %9093
      %9095 = vmax.xlane.f32.xlu0 %v9047
      %v9096 = vpop.xlane.xlu0 %9095
      %9097 = vmax.xlane.f32.xlu0 %v9048
      %v9098 = vpop.xlane.xlu0 %9097
      %9099 = vmax.xlane.f32.xlu0 %v9049
      %v9100 = vpop.xlane.xlu0 %9099
      %9101 = vmax.xlane.f32.xlu0 %v9050
      %v9102 = vpop.xlane.xlu0 %9101
      %9103 = vmax.xlane.f32.xlu0 %v9051
      %v9104 = vpop.xlane.xlu0 %9103
      %9105 = vmax.xlane.f32.xlu0 %v9052
      %v9106 = vpop.xlane.xlu0 %9105
      %9107 = vmax.xlane.f32.xlu0 %v9053
      %v9108 = vpop.xlane.xlu0 %9107
      %9109 = vmax.xlane.f32.xlu0 %v9054
      %v9110 = vpop.xlane.xlu0 %9109
      %9111 = vmax.xlane.f32.xlu0 %v9055
      %v9112 = vpop.xlane.xlu0 %9111
      %9113 = vmax.xlane.f32.xlu0 %v9056
      %v9114 = vpop.xlane.xlu0 %9113
      %9115 = vmax.xlane.f32.xlu0 %v9057
      %v9116 = vpop.xlane.xlu0 %9115
      %9117 = vmax.xlane.f32.xlu0 %v9058
      %v9118 = vpop.xlane.xlu0 %9117
      %9119 = vmax.xlane.f32.xlu0 %v9059
      %v9120 = vpop.xlane.xlu0 %9119
      %9121 = vmax.xlane.f32.xlu0 %v9060
      %v9122 = vpop.xlane.xlu0 %9121
      %9123 = vmax.xlane.f32.xlu0 %v9061
      %v9124 = vpop.xlane.xlu0 %9123
      %9125 = vmax.xlane.f32.xlu0 %v9062
      %v9126 = vpop.xlane.xlu0 %9125
      %9127 = vmax.xlane.f32.xlu0 %v9063
      %v9128 = vpop.xlane.xlu0 %9127
      %9129 = vmax.xlane.f32.xlu0 %v9064
      %v9130 = vpop.xlane.xlu0 %9129
      %9131 = vmax.xlane.f32.xlu0 %v9065
      %v9132 = vpop.xlane.xlu0 %9131
      %9133 = vmax.xlane.f32.xlu0 %v9066
      %v9134 = vpop.xlane.xlu0 %9133
      %9135 = vmax.xlane.f32.xlu0 %v9067
      %v9136 = vpop.xlane.xlu0 %9135
      %9137 = vmax.xlane.f32.xlu0 %v9068
      %v9138 = vpop.xlane.xlu0 %9137
      %9139 = vmax.xlane.f32.xlu0 %v9069
      %v9140 = vpop.xlane.xlu0 %9139
      %9141 = vmax.xlane.f32.xlu0 %v9070
      %v9142 = vpop.xlane.xlu0 %9141
      %9143 = vmax.xlane.f32.xlu0 %v9071
      %v9144 = vpop.xlane.xlu0 %9143
      %9145 = vmax.xlane.f32.xlu0 %v9072
      %v9146 = vpop.xlane.xlu0 %9145
      %9147 = vmax.xlane.f32.xlu0 %v9073
      %v9148 = vpop.xlane.xlu0 %9147
      %9149 = vmax.xlane.f32.xlu0 %v9074
      %v9150 = vpop.xlane.xlu0 %9149
      %9151 = vmax.xlane.f32.xlu0 %v9075
      %v9152 = vpop.xlane.xlu0 %9151
      %9153 = vmax.xlane.f32.xlu0 %v9076
      %v9154 = vpop.xlane.xlu0 %9153
      %9155 = vmax.xlane.f32.xlu0 %v9077
      %v9156 = vpop.xlane.xlu0 %9155
      %9157 = vmax.xlane.f32.xlu0 %v9078
      %v9158 = vpop.xlane.xlu0 %9157
      %9159 = vmax.xlane.f32.xlu0 %v9079
      %v9160 = vpop.xlane.xlu0 %9159
      %9161 = vmax.xlane.f32.xlu0 %v9080
      %v9162 = vpop.xlane.xlu0 %9161
      %9163 = vmax.xlane.f32.xlu0 %v9081
      %v9164 = vpop.xlane.xlu0 %9163
      %9165 = vmax.xlane.f32.xlu0 %v9082
      %v9166 = vpop.xlane.xlu0 %9165
      %v9167 = vsel %vm9040, %v9084, %v8995
      %v9168 = vsel %vm9040, %v9086, %v8996
      %v9169 = vsel %vm9040, %v9088, %v8997
      %v9170 = vsel %vm9040, %v9090, %v8998
      %v9171 = vsel %vm9040, %v9092, %v8999
      %v9172 = vsel %vm9040, %v9094, %v9000
      %v9173 = vsel %vm9040, %v9096, %v9001
      %v9174 = vsel %vm9040, %v9098, %v9002
      %v9175 = vsel %vm9040, %v9100, %v9003
      %v9176 = vsel %vm9040, %v9102, %v9004
      %v9177 = vsel %vm9040, %v9104, %v9005
      %v9178 = vsel %vm9040, %v9106, %v9006
      %v9179 = vsel %vm9040, %v9108, %v9007
      %v9180 = vsel %vm9040, %v9110, %v9008
      %v9181 = vsel %vm9040, %v9112, %v9009
      %v9182 = vsel %vm9040, %v9114, %v9010
      %v9183 = vsel %vm9040, %v9116, %v9011
      %v9184 = vsel %vm9040, %v9118, %v9012
      %v9185 = vsel %vm9040, %v9120, %v9013
      %v9186 = vsel %vm9040, %v9122, %v9014
      %v9187 = vsel %vm9040, %v9124, %v9015
      %v9188 = vsel %vm9040, %v9126, %v9016
      %v9189 = vsel %vm9040, %v9128, %v9017
      %v9190 = vsel %vm9040, %v9130, %v9018
      %v9191 = vsel %vm9040, %v9132, %v9019
      %v9192 = vsel %vm9040, %v9134, %v9020
      %v9193 = vsel %vm9040, %v9136, %v9021
      %v9194 = vsel %vm9040, %v9138, %v9022
      %v9195 = vsel %vm9040, %v9140, %v9023
      %v9196 = vsel %vm9040, %v9142, %v9024
      %v9197 = vsel %vm9040, %v9144, %v9025
      %v9198 = vsel %vm9040, %v9146, %v9026
      %v9199 = vsel %vm9040, %v9148, %v9027
      %v9200 = vsel %vm9040, %v9150, %v9028
      %v9201 = vsel %vm9040, %v9152, %v9029
      %v9202 = vsel %vm9040, %v9154, %v9030
      %v9203 = vsel %vm9040, %v9156, %v9031
      %v9204 = vsel %vm9040, %v9158, %v9032
      %v9205 = vsel %vm9040, %v9160, %v9033
      %v9206 = vsel %vm9040, %v9162, %v9034
      %v9207 = vsel %vm9040, %v9164, %v9035
      %v9208 = vsel %vm9040, %v9166, %v9036
      %v9209 = vsel %vm7480, 1, 0
      %vm9210 = vcmp.eq.s32.totalorder %v9209, 1
      %v9211 = vsel %vm9210, %v9167, %v7310
      %v9212 = vsel %vm9210, %v9168, %v7313
      %v9213 = vsel %vm9210, %v9169, %v7318
      %v9214 = vsel %vm9210, %v9170, %v7321
      %v9215 = vsel %vm9210, %v9171, %v7326
      %v9216 = vsel %vm9210, %v9172, %v7329
      %v9217 = vsel %vm9210, %v9173, %v7334
      %v9218 = vsel %vm9210, %v9174, %v7337
      %v9219 = vsel %vm9210, %v9175, %v7342
      %v9220 = vsel %vm9210, %v9176, %v7345
      %v9221 = vsel %vm9210, %v9177, %v7350
      %v9222 = vsel %vm9210, %v9178, %v7353
      %v9223 = vsel %vm9210, %v9179, %v7358
      %v9224 = vsel %vm9210, %v9180, %v7361
      %v9225 = vsel %vm9210, %v9181, %v7366
      %v9226 = vsel %vm9210, %v9182, %v7369
      %v9227 = vsel %vm9210, %v9183, %v7374
      %v9228 = vsel %vm9210, %v9184, %v7377
      %v9229 = vsel %vm9210, %v9185, %v7382
      %v9230 = vsel %vm9210, %v9186, %v7385
      %v9231 = vsel %vm9210, %v9187, %v7390
      %v9232 = vsel %vm9210, %v9188, %v7393
      %v9233 = vsel %vm9210, %v9189, %v7398
      %v9234 = vsel %vm9210, %v9190, %v7401
      %v9235 = vsel %vm9210, %v9191, %v7406
      %v9236 = vsel %vm9210, %v9192, %v7409
      %v9237 = vsel %vm9210, %v9193, %v7414
      %v9238 = vsel %vm9210, %v9194, %v7417
      %v9239 = vsel %vm9210, %v9195, %v7422
      %v9240 = vsel %vm9210, %v9196, %v7425
      %v9241 = vsel %vm9210, %v9197, %v7430
      %v9242 = vsel %vm9210, %v9198, %v7433
      %v9243 = vsel %vm9210, %v9199, %v7438
      %v9244 = vsel %vm9210, %v9200, %v7441
      %v9245 = vsel %vm9210, %v9201, %v7446
      %v9246 = vsel %vm9210, %v9202, %v7449
      %v9247 = vsel %vm9210, %v9203, %v7454
      %v9248 = vsel %vm9210, %v9204, %v7457
      %v9249 = vsel %vm9210, %v9205, %v7462
      %v9250 = vsel %vm9210, %v9206, %v7465
      %v9251 = vsel %vm9210, %v9207, %v7470
      %v9252 = vsel %vm9210, %v9208, %v7473
      %v9253 = vsub.f32 %v7310, %v9211
      %v9254 = vsub.f32 %v7313, %v9212
      %v9255 = vsub.f32 %v7318, %v9213
      %v9256 = vsub.f32 %v7321, %v9214
      %v9257 = vsub.f32 %v7326, %v9215
      %v9258 = vsub.f32 %v7329, %v9216
      %v9259 = vsub.f32 %v7334, %v9217
      %v9260 = vsub.f32 %v7337, %v9218
      %v9261 = vsub.f32 %v7342, %v9219
      %v9262 = vsub.f32 %v7345, %v9220
      %v9263 = vsub.f32 %v7350, %v9221
      %v9264 = vsub.f32 %v7353, %v9222
      %v9265 = vsub.f32 %v7358, %v9223
      %v9266 = vsub.f32 %v7361, %v9224
      %v9267 = vsub.f32 %v7366, %v9225
      %v9268 = vsub.f32 %v7369, %v9226
      %v9269 = vsub.f32 %v7374, %v9227
      %v9270 = vsub.f32 %v7377, %v9228
      %v9271 = vsub.f32 %v7382, %v9229
      %v9272 = vsub.f32 %v7385, %v9230
      %v9273 = vsub.f32 %v7390, %v9231
      %v9274 = vsub.f32 %v7393, %v9232
      %v9275 = vsub.f32 %v7398, %v9233
      %v9276 = vsub.f32 %v7401, %v9234
      %v9277 = vsub.f32 %v7406, %v9235
      %v9278 = vsub.f32 %v7409, %v9236
      %v9279 = vsub.f32 %v7414, %v9237
      %v9280 = vsub.f32 %v7417, %v9238
      %v9281 = vsub.f32 %v7422, %v9239
      %v9282 = vsub.f32 %v7425, %v9240
      %v9283 = vsub.f32 %v7430, %v9241
      %v9284 = vsub.f32 %v7433, %v9242
      %v9285 = vsub.f32 %v7438, %v9243
      %v9286 = vsub.f32 %v7441, %v9244
      %v9287 = vsub.f32 %v7446, %v9245
      %v9288 = vsub.f32 %v7449, %v9246
      %v9289 = vsub.f32 %v7454, %v9247
      %v9290 = vsub.f32 %v7457, %v9248
      %v9291 = vsub.f32 %v7462, %v9249
      %v9292 = vsub.f32 %v7465, %v9250
      %v9293 = vsub.f32 %v7470, %v9251
      %v9294 = vsub.f32 %v7473, %v9252
      %v9295 = vmul.f32 %v9253, 1.442695
      %v9296 = vpow.pop %v9295
      %v9297 = vmul.f32 %v9254, 1.442695
      %v9298 = vpow.pop %v9297
      %v9299 = vmul.f32 %v9255, 1.442695
      %v9300 = vpow.pop %v9299
      %v9301 = vmul.f32 %v9256, 1.442695
      %v9302 = vpow.pop %v9301
      %v9303 = vmul.f32 %v9257, 1.442695
      %v9304 = vpow.pop %v9303
      %v9305 = vmul.f32 %v9258, 1.442695
      %v9306 = vpow.pop %v9305
      %v9307 = vmul.f32 %v9259, 1.442695
      %v9308 = vpow.pop %v9307
      %v9309 = vmul.f32 %v9260, 1.442695
      %v9310 = vpow.pop %v9309
      %v9311 = vmul.f32 %v9261, 1.442695
      %v9312 = vpow.pop %v9311
      %v9313 = vmul.f32 %v9262, 1.442695
      %v9314 = vpow.pop %v9313
      %v9315 = vmul.f32 %v9263, 1.442695
      %v9316 = vpow.pop %v9315
      %v9317 = vmul.f32 %v9264, 1.442695
      %v9318 = vpow.pop %v9317
      %v9319 = vmul.f32 %v9265, 1.442695
      %v9320 = vpow.pop %v9319
      %v9321 = vmul.f32 %v9266, 1.442695
      %v9322 = vpow.pop %v9321
      %v9323 = vmul.f32 %v9267, 1.442695
      %v9324 = vpow.pop %v9323
      %v9325 = vmul.f32 %v9268, 1.442695
      %v9326 = vpow.pop %v9325
      %v9327 = vmul.f32 %v9269, 1.442695
      %v9328 = vpow.pop %v9327
      %v9329 = vmul.f32 %v9270, 1.442695
      %v9330 = vpow.pop %v9329
      %v9331 = vmul.f32 %v9271, 1.442695
      %v9332 = vpow.pop %v9331
      %v9333 = vmul.f32 %v9272, 1.442695
      %v9334 = vpow.pop %v9333
      %v9335 = vmul.f32 %v9273, 1.442695
      %v9336 = vpow.pop %v9335
      %v9337 = vmul.f32 %v9274, 1.442695
      %v9338 = vpow.pop %v9337
      %v9339 = vmul.f32 %v9275, 1.442695
      %v9340 = vpow.pop %v9339
      %v9341 = vmul.f32 %v9276, 1.442695
      %v9342 = vpow.pop %v9341
      %v9343 = vmul.f32 %v9277, 1.442695
      %v9344 = vpow.pop %v9343
      %v9345 = vmul.f32 %v9278, 1.442695
      %v9346 = vpow.pop %v9345
      %v9347 = vmul.f32 %v9279, 1.442695
      %v9348 = vpow.pop %v9347
      %v9349 = vmul.f32 %v9280, 1.442695
      %v9350 = vpow.pop %v9349
      %v9351 = vmul.f32 %v9281, 1.442695
      %v9352 = vpow.pop %v9351
      %v9353 = vmul.f32 %v9282, 1.442695
      %v9354 = vpow.pop %v9353
      %v9355 = vmul.f32 %v9283, 1.442695
      %v9356 = vpow.pop %v9355
      %v9357 = vmul.f32 %v9284, 1.442695
      %v9358 = vpow.pop %v9357
      %v9359 = vmul.f32 %v9285, 1.442695
      %v9360 = vpow.pop %v9359
      %v9361 = vmul.f32 %v9286, 1.442695
      %v9362 = vpow.pop %v9361
      %v9363 = vmul.f32 %v9287, 1.442695
      %v9364 = vpow.pop %v9363
      %v9365 = vmul.f32 %v9288, 1.442695
      %v9366 = vpow.pop %v9365
      %v9367 = vmul.f32 %v9289, 1.442695
      %v9368 = vpow.pop %v9367
      %v9369 = vmul.f32 %v9290, 1.442695
      %v9370 = vpow.pop %v9369
      %v9371 = vmul.f32 %v9291, 1.442695
      %v9372 = vpow.pop %v9371
      %v9373 = vmul.f32 %v9292, 1.442695
      %v9374 = vpow.pop %v9373
      %v9375 = vmul.f32 %v9293, 1.442695
      %v9376 = vpow.pop %v9375
      %v9377 = vmul.f32 %v9294, 1.442695
      %v9378 = vpow.pop %v9377
      %v9379 = vld [vmem:[%s2 + $0x18] sm:$0xff]
      %v9380 = vld [vmem:[%s2 + $0x30] sm:$0xff]
      %v9381 = vld [vmem:[%s2 + $0x48] sm:$0xff]
      %v9382 = vld [vmem:[%s2 + $0x60] sm:$0xff]
      %v9383 = vld [vmem:[%s2 + $0x78] sm:$0xff]
      %v9384 = vld [vmem:[%s2 + $0x90] sm:$0xff]
      %v9385 = vld [vmem:[%s2 + $0xa8] sm:$0xff]
      %v9386 = vld [vmem:[%s2 + $0xc0] sm:$0xff]
      %v9387 = vld [vmem:[%s2 + $0xd8] sm:$0xff]
      %v9388 = vld [vmem:[%s2 + $0xf0] sm:$0xff]
      %v9389 = vld [vmem:[%s2 + $0x108] sm:$0xff]
      %v9390 = vld [vmem:[%s2 + $0x120] sm:$0xff]
      %v9391 = vld [vmem:[%s2 + $0x138] sm:$0xff]
      %v9392 = vld [vmem:[%s2 + $0x150] sm:$0xff]
      %v9393 = vld [vmem:[%s2 + $0x168] sm:$0xff]
      %v9394 = vld [vmem:[%s2 + $0x180] sm:$0xff]
      %9395 = vmatprep.subr.mxu0 0.0
      %9396 = vmatpush1.msra.mxu0 %v9394
      %9397 = vmatprep.subr.mxu0 0.0
      %9398 = vmatpush1.msra.mxu0 %v9393
      %9399 = vmatprep.subr.mxu0 0.0
      %9400 = vmatpush1.msra.mxu0 %v9392
      %9401 = vmatprep.subr.mxu0 0.0
      %9402 = vmatpush1.msra.mxu0 %v9391
      %9403 = vmatprep.subr.mxu0 0.0
      %9404 = vmatpush1.msra.mxu0 %v9390
      %9405 = vmatprep.subr.mxu0 0.0
      %9406 = vmatpush1.msra.mxu0 %v9389
      %9407 = vmatprep.subr.mxu0 0.0
      %9408 = vmatpush1.msra.mxu0 %v9388
      %9409 = vmatprep.subr.mxu0 0.0
      %9410 = vmatpush1.msra.mxu0 %v9387
      %9411 = vmatprep.subr.mxu0 0.0
      %9412 = vmatpush1.msra.mxu0 %v9386
      %9413 = vmatprep.subr.mxu0 0.0
      %9414 = vmatpush1.msra.mxu0 %v9385
      %9415 = vmatprep.subr.mxu0 0.0
      %9416 = vmatpush1.msra.mxu0 %v9384
      %9417 = vmatprep.subr.mxu0 0.0
      %9418 = vmatpush1.msra.mxu0 %v9383
      %9419 = vmatprep.subr.mxu0 0.0
      %9420 = vmatpush1.msra.mxu0 %v9382
      %9421 = vmatprep.subr.mxu0 0.0
      %9422 = vmatpush1.msra.mxu0 %v9381
      %9423 = vmatprep.subr.mxu0 0.0
      %9424 = vmatpush1.msra.mxu0 %v9380
      %9425 = vmatprep.subr.mxu0 0.0
      %9426 = vmatpush1.msra.mxu0 %v9379
      %9427 = vmatprep.subr.mxu0 0.0
      %9428 = vmatpush2.msra.mxu0 0.0
      %9429 = vmatprep.subr.mxu0 0.0
      %9430 = vmatpush2.msra.mxu0 0.0
      %9431 = vmatprep.subr.mxu0 0.0
      %9432 = vmatpush2.msra.mxu0 0.0
      %9433 = vmatprep.subr.mxu0 0.0
      %9434 = vmatpush2.msra.mxu0 0.0
      %9435 = vmatprep.subr.mxu0 0.0
      %9436 = vmatpush2.msra.mxu0 0.0
      %9437 = vmatprep.subr.mxu0 0.0
      %9438 = vmatpush2.msra.mxu0 0.0
      %9439 = vmatprep.subr.mxu0 0.0
      %9440 = vmatpush2.msra.mxu0 0.0
      %9441 = vmatprep.subr.mxu0 0.0
      %9442 = vmatpush2.msra.mxu0 0.0
      %9443 = vmatprep.subr.mxu0 0.0
      %9444 = vmatpush2.msra.mxu0 0.0
      %9445 = vmatprep.subr.mxu0 0.0
      %9446 = vmatpush2.msra.mxu0 0.0
      %9447 = vmatprep.subr.mxu0 0.0
      %9448 = vmatpush2.msra.mxu0 0.0
      %9449 = vmatprep.subr.mxu0 0.0
      %9450 = vmatpush2.msra.mxu0 0.0
      %9451 = vmatprep.subr.mxu0 0.0
      %9452 = vmatpush2.msra.mxu0 0.0
      %9453 = vmatprep.subr.mxu0 0.0
      %9454 = vmatpush2.msra.mxu0 0.0
      %9455 = vmatprep.subr.mxu0 0.0
      %9456 = vmatpush2.msra.mxu0 0.0
      %9457 = vmatprep.subr.mxu0 0.0
      %9458 = vmatpush2.msra.mxu0 0.0
      %9459 = vmatprep.mubr.f32.mxu0 0.0
      %9460 = vmatmul.mubr.f32.gmra.mxu0 %v9296
      %v9461 = vpop.f32.mrf.mxu0
      %v9462 = vadd.f32 0.0, %v9461
      %v9463 = vpop.f32.mrf.mxu0
      %9464 = vmatprep.mubr.f32.mxu0 0.0
      %9465 = vmatmul.mubr.f32.gmra.mxu0 %v9298
      %v9466 = vpop.f32.mrf.mxu0
      %v9467 = vadd.f32 0.0, %v9466
      %v9468 = vpop.f32.mrf.mxu0
      %9469 = vmatprep.mubr.f32.mxu0 0.0
      %9470 = vmatmul.mubr.f32.gmra.mxu0 %v9300
      %v9471 = vpop.f32.mrf.mxu0
      %v9472 = vadd.f32 0.0, %v9471
      %v9473 = vpop.f32.mrf.mxu0
      %9474 = vmatprep.mubr.f32.mxu0 0.0
      %9475 = vmatmul.mubr.f32.gmra.mxu0 %v9302
      %v9476 = vpop.f32.mrf.mxu0
      %v9477 = vadd.f32 0.0, %v9476
      %v9478 = vpop.f32.mrf.mxu0
      %9479 = vmatprep.mubr.f32.mxu0 0.0
      %9480 = vmatmul.mubr.f32.gmra.mxu0 %v9304
      %v9481 = vpop.f32.mrf.mxu0
      %v9482 = vadd.f32 0.0, %v9481
      %v9483 = vpop.f32.mrf.mxu0
      %9484 = vmatprep.mubr.f32.mxu0 0.0
      %9485 = vmatmul.mubr.f32.gmra.mxu0 %v9306
      %v9486 = vpop.f32.mrf.mxu0
      %v9487 = vadd.f32 0.0, %v9486
      %v9488 = vpop.f32.mrf.mxu0
      %9489 = vmatprep.mubr.f32.mxu0 0.0
      %9490 = vmatmul.mubr.f32.gmra.mxu0 %v9308
      %v9491 = vpop.f32.mrf.mxu0
      %v9492 = vadd.f32 0.0, %v9491
      %v9493 = vpop.f32.mrf.mxu0
      %9494 = vmatprep.mubr.f32.mxu0 0.0
      %9495 = vmatmul.mubr.f32.gmra.mxu0 %v9310
      %v9496 = vpop.f32.mrf.mxu0
      %v9497 = vadd.f32 0.0, %v9496
      %v9498 = vpop.f32.mrf.mxu0
      %9499 = vmatprep.mubr.f32.mxu0 0.0
      %9500 = vmatmul.mubr.f32.gmra.mxu0 %v9312
      %v9501 = vpop.f32.mrf.mxu0
      %v9502 = vadd.f32 0.0, %v9501
      %v9503 = vpop.f32.mrf.mxu0
      %9504 = vmatprep.mubr.f32.mxu0 0.0
      %9505 = vmatmul.mubr.f32.gmra.mxu0 %v9314
      %v9506 = vpop.f32.mrf.mxu0
      %v9507 = vadd.f32 0.0, %v9506
      %v9508 = vpop.f32.mrf.mxu0
      %9509 = vmatprep.mubr.f32.mxu0 0.0
      %9510 = vmatmul.mubr.f32.gmra.mxu0 %v9316
      %v9511 = vpop.f32.mrf.mxu0
      %v9512 = vadd.f32 0.0, %v9511
      %v9513 = vpop.f32.mrf.mxu0
      %9514 = vmatprep.mubr.f32.mxu0 0.0
      %9515 = vmatmul.mubr.f32.gmra.mxu0 %v9318
      %v9516 = vpop.f32.mrf.mxu0
      %v9517 = vadd.f32 0.0, %v9516
      %v9518 = vpop.f32.mrf.mxu0
      %9519 = vmatprep.mubr.f32.mxu0 0.0
      %9520 = vmatmul.mubr.f32.gmra.mxu0 %v9320
      %v9521 = vpop.f32.mrf.mxu0
      %v9522 = vadd.f32 0.0, %v9521
      %v9523 = vpop.f32.mrf.mxu0
      %9524 = vmatprep.mubr.f32.mxu0 0.0
      %9525 = vmatmul.mubr.f32.gmra.mxu0 %v9322
      %v9526 = vpop.f32.mrf.mxu0
      %v9527 = vadd.f32 0.0, %v9526
      %v9528 = vpop.f32.mrf.mxu0
      %9529 = vmatprep.mubr.f32.mxu0 0.0
      %9530 = vmatmul.mubr.f32.gmra.mxu0 %v9324
      %v9531 = vpop.f32.mrf.mxu0
      %v9532 = vadd.f32 0.0, %v9531
      %v9533 = vpop.f32.mrf.mxu0
      %9534 = vmatprep.mubr.f32.mxu0 0.0
      %9535 = vmatmul.mubr.f32.gmra.mxu0 %v9326
      %v9536 = vpop.f32.mrf.mxu0
      %v9537 = vadd.f32 0.0, %v9536
      %v9538 = vpop.f32.mrf.mxu0
      %9539 = vmatprep.mubr.f32.mxu0 0.0
      %9540 = vmatmul.mubr.f32.gmra.mxu0 %v9328
      %v9541 = vpop.f32.mrf.mxu0
      %v9542 = vadd.f32 0.0, %v9541
      %v9543 = vpop.f32.mrf.mxu0
      %9544 = vmatprep.mubr.f32.mxu0 0.0
      %9545 = vmatmul.mubr.f32.gmra.mxu0 %v9330
      %v9546 = vpop.f32.mrf.mxu0
      %v9547 = vadd.f32 0.0, %v9546
      %v9548 = vpop.f32.mrf.mxu0
      %9549 = vmatprep.mubr.f32.mxu0 0.0
      %9550 = vmatmul.mubr.f32.gmra.mxu0 %v9332
      %v9551 = vpop.f32.mrf.mxu0
      %v9552 = vadd.f32 0.0, %v9551
      %v9553 = vpop.f32.mrf.mxu0
      %9554 = vmatprep.mubr.f32.mxu0 0.0
      %9555 = vmatmul.mubr.f32.gmra.mxu0 %v9334
      %v9556 = vpop.f32.mrf.mxu0
      %v9557 = vadd.f32 0.0, %v9556
      %v9558 = vpop.f32.mrf.mxu0
      %9559 = vmatprep.mubr.f32.mxu0 0.0
      %9560 = vmatmul.mubr.f32.gmra.mxu0 %v9336
      %v9561 = vpop.f32.mrf.mxu0
      %v9562 = vadd.f32 0.0, %v9561
      %v9563 = vpop.f32.mrf.mxu0
      %9564 = vmatprep.mubr.f32.mxu0 0.0
      %9565 = vmatmul.mubr.f32.gmra.mxu0 %v9338
      %v9566 = vpop.f32.mrf.mxu0
      %v9567 = vadd.f32 0.0, %v9566
      %v9568 = vpop.f32.mrf.mxu0
      %9569 = vmatprep.mubr.f32.mxu0 0.0
      %9570 = vmatmul.mubr.f32.gmra.mxu0 %v9340
      %v9571 = vpop.f32.mrf.mxu0
      %v9572 = vadd.f32 0.0, %v9571
      %v9573 = vpop.f32.mrf.mxu0
      %9574 = vmatprep.mubr.f32.mxu0 0.0
      %9575 = vmatmul.mubr.f32.gmra.mxu0 %v9342
      %v9576 = vpop.f32.mrf.mxu0
      %v9577 = vadd.f32 0.0, %v9576
      %v9578 = vpop.f32.mrf.mxu0
      %9579 = vmatprep.mubr.f32.mxu0 0.0
      %9580 = vmatmul.mubr.f32.gmra.mxu0 %v9344
      %v9581 = vpop.f32.mrf.mxu0
      %v9582 = vadd.f32 0.0, %v9581
      %v9583 = vpop.f32.mrf.mxu0
      %9584 = vmatprep.mubr.f32.mxu0 0.0
      %9585 = vmatmul.mubr.f32.gmra.mxu0 %v9346
      %v9586 = vpop.f32.mrf.mxu0
      %v9587 = vadd.f32 0.0, %v9586
      %v9588 = vpop.f32.mrf.mxu0
      %9589 = vmatprep.mubr.f32.mxu0 0.0
      %9590 = vmatmul.mubr.f32.gmra.mxu0 %v9348
      %v9591 = vpop.f32.mrf.mxu0
      %v9592 = vadd.f32 0.0, %v9591
      %v9593 = vpop.f32.mrf.mxu0
      %9594 = vmatprep.mubr.f32.mxu0 0.0
      %9595 = vmatmul.mubr.f32.gmra.mxu0 %v9350
      %v9596 = vpop.f32.mrf.mxu0
      %v9597 = vadd.f32 0.0, %v9596
      %v9598 = vpop.f32.mrf.mxu0
      %9599 = vmatprep.mubr.f32.mxu0 0.0
      %9600 = vmatmul.mubr.f32.gmra.mxu0 %v9352
      %v9601 = vpop.f32.mrf.mxu0
      %v9602 = vadd.f32 0.0, %v9601
      %v9603 = vpop.f32.mrf.mxu0
      %9604 = vmatprep.mubr.f32.mxu0 0.0
      %9605 = vmatmul.mubr.f32.gmra.mxu0 %v9354
      %v9606 = vpop.f32.mrf.mxu0
      %v9607 = vadd.f32 0.0, %v9606
      %v9608 = vpop.f32.mrf.mxu0
      %9609 = vmatprep.mubr.f32.mxu0 0.0
      %9610 = vmatmul.mubr.f32.gmra.mxu0 %v9356
      %v9611 = vpop.f32.mrf.mxu0
      %v9612 = vadd.f32 0.0, %v9611
      %v9613 = vpop.f32.mrf.mxu0
      %9614 = vmatprep.mubr.f32.mxu0 0.0
      %9615 = vmatmul.mubr.f32.gmra.mxu0 %v9358
      %v9616 = vpop.f32.mrf.mxu0
      %v9617 = vadd.f32 0.0, %v9616
      %v9618 = vpop.f32.mrf.mxu0
      %9619 = vmatprep.mubr.f32.mxu0 0.0
      %9620 = vmatmul.mubr.f32.gmra.mxu0 %v9360
      %v9621 = vpop.f32.mrf.mxu0
      %v9622 = vadd.f32 0.0, %v9621
      %v9623 = vpop.f32.mrf.mxu0
      %9624 = vmatprep.mubr.f32.mxu0 0.0
      %9625 = vmatmul.mubr.f32.gmra.mxu0 %v9362
      %v9626 = vpop.f32.mrf.mxu0
      %v9627 = vadd.f32 0.0, %v9626
      %v9628 = vpop.f32.mrf.mxu0
      %9629 = vmatprep.mubr.f32.mxu0 0.0
      %9630 = vmatmul.mubr.f32.gmra.mxu0 %v9364
      %v9631 = vpop.f32.mrf.mxu0
      %v9632 = vadd.f32 0.0, %v9631
      %v9633 = vpop.f32.mrf.mxu0
      %9634 = vmatprep.mubr.f32.mxu0 0.0
      %9635 = vmatmul.mubr.f32.gmra.mxu0 %v9366
      %v9636 = vpop.f32.mrf.mxu0
      %v9637 = vadd.f32 0.0, %v9636
      %v9638 = vpop.f32.mrf.mxu0
      %9639 = vmatprep.mubr.f32.mxu0 0.0
      %9640 = vmatmul.mubr.f32.gmra.mxu0 %v9368
      %v9641 = vpop.f32.mrf.mxu0
      %v9642 = vadd.f32 0.0, %v9641
      %v9643 = vpop.f32.mrf.mxu0
      %9644 = vmatprep.mubr.f32.mxu0 0.0
      %9645 = vmatmul.mubr.f32.gmra.mxu0 %v9370
      %v9646 = vpop.f32.mrf.mxu0
      %v9647 = vadd.f32 0.0, %v9646
      %v9648 = vpop.f32.mrf.mxu0
      %9649 = vmatprep.mubr.f32.mxu0 0.0
      %9650 = vmatmul.mubr.f32.gmra.mxu0 %v9372
      %v9651 = vpop.f32.mrf.mxu0
      %v9652 = vadd.f32 0.0, %v9651
      %v9653 = vpop.f32.mrf.mxu0
      %9654 = vmatprep.mubr.f32.mxu0 0.0
      %9655 = vmatmul.mubr.f32.gmra.mxu0 %v9374
      %v9656 = vpop.f32.mrf.mxu0
      %v9657 = vadd.f32 0.0, %v9656
      %v9658 = vpop.f32.mrf.mxu0
      %9659 = vmatprep.mubr.f32.mxu0 0.0
      %9660 = vmatmul.mubr.f32.gmra.mxu0 %v9376
      %v9661 = vpop.f32.mrf.mxu0
      %v9662 = vadd.f32 0.0, %v9661
      %v9663 = vpop.f32.mrf.mxu0
      %9664 = vmatprep.mubr.f32.mxu0 0.0
      %9665 = vmatmul.mubr.f32.gmra.mxu0 %v9378
      %v9666 = vpop.f32.mrf.mxu0
      %v9667 = vadd.f32 0.0, %v9666
      %v9668 = vpop.f32.mrf.mxu0
      %9669 = vdwg.mxu0
      %v9670 = vsel %vm9210, %v9462, 1.0
      %v9671 = vsel %vm9210, %v9467, 1.0
      %v9672 = vsel %vm9210, %v9472, 1.0
      %v9673 = vsel %vm9210, %v9477, 1.0
      %v9674 = vsel %vm9210, %v9482, 1.0
      %v9675 = vsel %vm9210, %v9487, 1.0
      %v9676 = vsel %vm9210, %v9492, 1.0
      %v9677 = vsel %vm9210, %v9497, 1.0
      %v9678 = vsel %vm9210, %v9502, 1.0
      %v9679 = vsel %vm9210, %v9507, 1.0
      %v9680 = vsel %vm9210, %v9512, 1.0
      %v9681 = vsel %vm9210, %v9517, 1.0
      %v9682 = vsel %vm9210, %v9522, 1.0
      %v9683 = vsel %vm9210, %v9527, 1.0
      %v9684 = vsel %vm9210, %v9532, 1.0
      %v9685 = vsel %vm9210, %v9537, 1.0
      %v9686 = vsel %vm9210, %v9542, 1.0
      %v9687 = vsel %vm9210, %v9547, 1.0
      %v9688 = vsel %vm9210, %v9552, 1.0
      %v9689 = vsel %vm9210, %v9557, 1.0
      %v9690 = vsel %vm9210, %v9562, 1.0
      %v9691 = vsel %vm9210, %v9567, 1.0
      %v9692 = vsel %vm9210, %v9572, 1.0
      %v9693 = vsel %vm9210, %v9577, 1.0
      %v9694 = vsel %vm9210, %v9582, 1.0
      %v9695 = vsel %vm9210, %v9587, 1.0
      %v9696 = vsel %vm9210, %v9592, 1.0
      %v9697 = vsel %vm9210, %v9597, 1.0
      %v9698 = vsel %vm9210, %v9602, 1.0
      %v9699 = vsel %vm9210, %v9607, 1.0
      %v9700 = vsel %vm9210, %v9612, 1.0
      %v9701 = vsel %vm9210, %v9617, 1.0
      %v9702 = vsel %vm9210, %v9622, 1.0
      %v9703 = vsel %vm9210, %v9627, 1.0
      %v9704 = vsel %vm9210, %v9632, 1.0
      %v9705 = vsel %vm9210, %v9637, 1.0
      %v9706 = vsel %vm9210, %v9642, 1.0
      %v9707 = vsel %vm9210, %v9647, 1.0
      %v9708 = vsel %vm9210, %v9652, 1.0
      %v9709 = vsel %vm9210, %v9657, 1.0
      %v9710 = vsel %vm9210, %v9662, 1.0
      %v9711 = vsel %vm9210, %v9667, 1.0
      %v9712 = vlog2.pop %v9670
      %v9713 = vmul.f32 %v9712, 0.6931472
      %v9714 = vlog2.pop %v9671
      %v9715 = vmul.f32 %v9714, 0.6931472
      %v9716 = vlog2.pop %v9672
      %v9717 = vmul.f32 %v9716, 0.6931472
      %v9718 = vlog2.pop %v9673
      %v9719 = vmul.f32 %v9718, 0.6931472
      %v9720 = vlog2.pop %v9674
      %v9721 = vmul.f32 %v9720, 0.6931472
      %v9722 = vlog2.pop %v9675
      %v9723 = vmul.f32 %v9722, 0.6931472
      %v9724 = vlog2.pop %v9676
      %v9725 = vmul.f32 %v9724, 0.6931472
      %v9726 = vlog2.pop %v9677
      %v9727 = vmul.f32 %v9726, 0.6931472
      %v9728 = vlog2.pop %v9678
      %v9729 = vmul.f32 %v9728, 0.6931472
      %v9730 = vlog2.pop %v9679
      %v9731 = vmul.f32 %v9730, 0.6931472
      %v9732 = vlog2.pop %v9680
      %v9733 = vmul.f32 %v9732, 0.6931472
      %v9734 = vlog2.pop %v9681
      %v9735 = vmul.f32 %v9734, 0.6931472
      %v9736 = vlog2.pop %v9682
      %v9737 = vmul.f32 %v9736, 0.6931472
      %v9738 = vlog2.pop %v9683
      %v9739 = vmul.f32 %v9738, 0.6931472
      %v9740 = vlog2.pop %v9684
      %v9741 = vmul.f32 %v9740, 0.6931472
      %v9742 = vlog2.pop %v9685
      %v9743 = vmul.f32 %v9742, 0.6931472
      %v9744 = vlog2.pop %v9686
      %v9745 = vmul.f32 %v9744, 0.6931472
      %v9746 = vlog2.pop %v9687
      %v9747 = vmul.f32 %v9746, 0.6931472
      %v9748 = vlog2.pop %v9688
      %v9749 = vmul.f32 %v9748, 0.6931472
      %v9750 = vlog2.pop %v9689
      %v9751 = vmul.f32 %v9750, 0.6931472
      %v9752 = vlog2.pop %v9690
      %v9753 = vmul.f32 %v9752, 0.6931472
      %v9754 = vlog2.pop %v9691
      %v9755 = vmul.f32 %v9754, 0.6931472
      %v9756 = vlog2.pop %v9692
      %v9757 = vmul.f32 %v9756, 0.6931472
      %v9758 = vlog2.pop %v9693
      %v9759 = vmul.f32 %v9758, 0.6931472
      %v9760 = vlog2.pop %v9694
      %v9761 = vmul.f32 %v9760, 0.6931472
      %v9762 = vlog2.pop %v9695
      %v9763 = vmul.f32 %v9762, 0.6931472
      %v9764 = vlog2.pop %v9696
      %v9765 = vmul.f32 %v9764, 0.6931472
      %v9766 = vlog2.pop %v9697
      %v9767 = vmul.f32 %v9766, 0.6931472
      %v9768 = vlog2.pop %v9698
      %v9769 = vmul.f32 %v9768, 0.6931472
      %v9770 = vlog2.pop %v9699
      %v9771 = vmul.f32 %v9770, 0.6931472
      %v9772 = vlog2.pop %v9700
      %v9773 = vmul.f32 %v9772, 0.6931472
      %v9774 = vlog2.pop %v9701
      %v9775 = vmul.f32 %v9774, 0.6931472
      %v9776 = vlog2.pop %v9702
      %v9777 = vmul.f32 %v9776, 0.6931472
      %v9778 = vlog2.pop %v9703
      %v9779 = vmul.f32 %v9778, 0.6931472
      %v9780 = vlog2.pop %v9704
      %v9781 = vmul.f32 %v9780, 0.6931472
      %v9782 = vlog2.pop %v9705
      %v9783 = vmul.f32 %v9782, 0.6931472
      %v9784 = vlog2.pop %v9706
      %v9785 = vmul.f32 %v9784, 0.6931472
      %v9786 = vlog2.pop %v9707
      %v9787 = vmul.f32 %v9786, 0.6931472
      %v9788 = vlog2.pop %v9708
      %v9789 = vmul.f32 %v9788, 0.6931472
      %v9790 = vlog2.pop %v9709
      %v9791 = vmul.f32 %v9790, 0.6931472
      %v9792 = vlog2.pop %v9710
      %v9793 = vmul.f32 %v9792, 0.6931472
      %v9794 = vlog2.pop %v9711
      %v9795 = vmul.f32 %v9794, 0.6931472
      %v9796 = vmul.f32 %v7310, 0.5
      %v9797 = vmul.f32 %v7313, 0.5
      %v9798 = vmul.f32 %v7318, 0.5
      %v9799 = vmul.f32 %v7321, 0.5
      %v9800 = vmul.f32 %v7326, 0.5
      %v9801 = vmul.f32 %v7329, 0.5
      %v9802 = vmul.f32 %v7334, 0.5
      %v9803 = vmul.f32 %v7337, 0.5
      %v9804 = vmul.f32 %v7342, 0.5
      %v9805 = vmul.f32 %v7345, 0.5
      %v9806 = vmul.f32 %v7350, 0.5
      %v9807 = vmul.f32 %v7353, 0.5
      %v9808 = vmul.f32 %v7358, 0.5
      %v9809 = vmul.f32 %v7361, 0.5
      %v9810 = vmul.f32 %v7366, 0.5
      %v9811 = vmul.f32 %v7369, 0.5
      %v9812 = vmul.f32 %v7374, 0.5
      %v9813 = vmul.f32 %v7377, 0.5
      %v9814 = vmul.f32 %v7382, 0.5
      %v9815 = vmul.f32 %v7385, 0.5
      %v9816 = vmul.f32 %v7390, 0.5
      %v9817 = vmul.f32 %v7393, 0.5
      %v9818 = vmul.f32 %v7398, 0.5
      %v9819 = vmul.f32 %v7401, 0.5
      %v9820 = vmul.f32 %v7406, 0.5
      %v9821 = vmul.f32 %v7409, 0.5
      %v9822 = vmul.f32 %v7414, 0.5
      %v9823 = vmul.f32 %v7417, 0.5
      %v9824 = vmul.f32 %v7422, 0.5
      %v9825 = vmul.f32 %v7425, 0.5
      %v9826 = vmul.f32 %v7430, 0.5
      %v9827 = vmul.f32 %v7433, 0.5
      %v9828 = vmul.f32 %v7438, 0.5
      %v9829 = vmul.f32 %v7441, 0.5
      %v9830 = vmul.f32 %v7446, 0.5
      %v9831 = vmul.f32 %v7449, 0.5
      %v9832 = vmul.f32 %v7454, 0.5
      %v9833 = vmul.f32 %v7457, 0.5
      %v9834 = vmul.f32 %v7462, 0.5
      %v9835 = vmul.f32 %v7465, 0.5
      %v9836 = vmul.f32 %v7470, 0.5
      %v9837 = vmul.f32 %v7473, 0.5
      %v9838 = vtanh.pop %v9796
      %v9839 = vtanh.pop %v9797
      %v9840 = vtanh.pop %v9798
      %v9841 = vtanh.pop %v9799
      %v9842 = vtanh.pop %v9800
      %v9843 = vtanh.pop %v9801
      %v9844 = vtanh.pop %v9802
      %v9845 = vtanh.pop %v9803
      %v9846 = vtanh.pop %v9804
      %v9847 = vtanh.pop %v9805
      %v9848 = vtanh.pop %v9806
      %v9849 = vtanh.pop %v9807
      %v9850 = vtanh.pop %v9808
      %v9851 = vtanh.pop %v9809
      %v9852 = vtanh.pop %v9810
      %v9853 = vtanh.pop %v9811
      %v9854 = vtanh.pop %v9812
      %v9855 = vtanh.pop %v9813
      %v9856 = vtanh.pop %v9814
      %v9857 = vtanh.pop %v9815
      %v9858 = vtanh.pop %v9816
      %v9859 = vtanh.pop %v9817
      %v9860 = vtanh.pop %v9818
      %v9861 = vtanh.pop %v9819
      %v9862 = vtanh.pop %v9820
      %v9863 = vtanh.pop %v9821
      %v9864 = vtanh.pop %v9822
      %v9865 = vtanh.pop %v9823
      %v9866 = vtanh.pop %v9824
      %v9867 = vtanh.pop %v9825
      %v9868 = vtanh.pop %v9826
      %v9869 = vtanh.pop %v9827
      %v9870 = vtanh.pop %v9828
      %v9871 = vtanh.pop %v9829
      %v9872 = vtanh.pop %v9830
      %v9873 = vtanh.pop %v9831
      %v9874 = vtanh.pop %v9832
      %v9875 = vtanh.pop %v9833
      %v9876 = vtanh.pop %v9834
      %v9877 = vtanh.pop %v9835
      %v9878 = vtanh.pop %v9836
      %v9879 = vtanh.pop %v9837
      %v9880 = vadd.f32 %v9838, 1.0
      %v9881 = vadd.f32 %v9839, 1.0
      %v9882 = vadd.f32 %v9840, 1.0
      %v9883 = vadd.f32 %v9841, 1.0
      %v9884 = vadd.f32 %v9842, 1.0
      %v9885 = vadd.f32 %v9843, 1.0
      %v9886 = vadd.f32 %v9844, 1.0
      %v9887 = vadd.f32 %v9845, 1.0
      %v9888 = vadd.f32 %v9846, 1.0
      %v9889 = vadd.f32 %v9847, 1.0
      %v9890 = vadd.f32 %v9848, 1.0
      %v9891 = vadd.f32 %v9849, 1.0
      %v9892 = vadd.f32 %v9850, 1.0
      %v9893 = vadd.f32 %v9851, 1.0
      %v9894 = vadd.f32 %v9852, 1.0
      %v9895 = vadd.f32 %v9853, 1.0
      %v9896 = vadd.f32 %v9854, 1.0
      %v9897 = vadd.f32 %v9855, 1.0
      %v9898 = vadd.f32 %v9856, 1.0
      %v9899 = vadd.f32 %v9857, 1.0
      %v9900 = vadd.f32 %v9858, 1.0
      %v9901 = vadd.f32 %v9859, 1.0
      %v9902 = vadd.f32 %v9860, 1.0
      %v9903 = vadd.f32 %v9861, 1.0
      %v9904 = vadd.f32 %v9862, 1.0
      %v9905 = vadd.f32 %v9863, 1.0
      %v9906 = vadd.f32 %v9864, 1.0
      %v9907 = vadd.f32 %v9865, 1.0
      %v9908 = vadd.f32 %v9866, 1.0
      %v9909 = vadd.f32 %v9867, 1.0
      %v9910 = vadd.f32 %v9868, 1.0
      %v9911 = vadd.f32 %v9869, 1.0
      %v9912 = vadd.f32 %v9870, 1.0
      %v9913 = vadd.f32 %v9871, 1.0
      %v9914 = vadd.f32 %v9872, 1.0
      %v9915 = vadd.f32 %v9873, 1.0
      %v9916 = vadd.f32 %v9874, 1.0
      %v9917 = vadd.f32 %v9875, 1.0
      %v9918 = vadd.f32 %v9876, 1.0
      %v9919 = vadd.f32 %v9877, 1.0
      %v9920 = vadd.f32 %v9878, 1.0
      %v9921 = vadd.f32 %v9879, 1.0
      %v9922 = vmul.f32 %v9880, 0.5
      %v9923 = vmul.f32 %v9881, 0.5
      %v9924 = vmul.f32 %v9882, 0.5
      %v9925 = vmul.f32 %v9883, 0.5
      %v9926 = vmul.f32 %v9884, 0.5
      %v9927 = vmul.f32 %v9885, 0.5
      %v9928 = vmul.f32 %v9886, 0.5
      %v9929 = vmul.f32 %v9887, 0.5
      %v9930 = vmul.f32 %v9888, 0.5
      %v9931 = vmul.f32 %v9889, 0.5
      %v9932 = vmul.f32 %v9890, 0.5
      %v9933 = vmul.f32 %v9891, 0.5
      %v9934 = vmul.f32 %v9892, 0.5
      %v9935 = vmul.f32 %v9893, 0.5
      %v9936 = vmul.f32 %v9894, 0.5
      %v9937 = vmul.f32 %v9895, 0.5
      %v9938 = vmul.f32 %v9896, 0.5
      %v9939 = vmul.f32 %v9897, 0.5
      %v9940 = vmul.f32 %v9898, 0.5
      %v9941 = vmul.f32 %v9899, 0.5
      %v9942 = vmul.f32 %v9900, 0.5
      %v9943 = vmul.f32 %v9901, 0.5
      %v9944 = vmul.f32 %v9902, 0.5
      %v9945 = vmul.f32 %v9903, 0.5
      %v9946 = vmul.f32 %v9904, 0.5
      %v9947 = vmul.f32 %v9905, 0.5
      %v9948 = vmul.f32 %v9906, 0.5
      %v9949 = vmul.f32 %v9907, 0.5
      %v9950 = vmul.f32 %v9908, 0.5
      %v9951 = vmul.f32 %v9909, 0.5
      %v9952 = vmul.f32 %v9910, 0.5
      %v9953 = vmul.f32 %v9911, 0.5
      %v9954 = vmul.f32 %v9912, 0.5
      %v9955 = vmul.f32 %v9913, 0.5
      %v9956 = vmul.f32 %v9914, 0.5
      %v9957 = vmul.f32 %v9915, 0.5
      %v9958 = vmul.f32 %v9916, 0.5
      %v9959 = vmul.f32 %v9917, 0.5
      %v9960 = vmul.f32 %v9918, 0.5
      %v9961 = vmul.f32 %v9919, 0.5
      %v9962 = vmul.f32 %v9920, 0.5
      %v9963 = vmul.f32 %v9921, 0.5
      %vm9964 = vcmp.lt.s32.totalorder %v7477, 3
      %v9965 = vsel %vm9964, 1, 0
      %vm9966 = vcmp.eq.s32.totalorder %v9965, 1
      %v9967 = vsel %vm9966, %v9922, %v7310
      %v9968 = vsel %vm9966, %v9923, %v7313
      %v9969 = vsel %vm9966, %v9924, %v7318
      %v9970 = vsel %vm9966, %v9925, %v7321
      %v9971 = vsel %vm9966, %v9926, %v7326
      %v9972 = vsel %vm9966, %v9927, %v7329
      %v9973 = vsel %vm9966, %v9928, %v7334
      %v9974 = vsel %vm9966, %v9929, %v7337
      %v9975 = vsel %vm9966, %v9930, %v7342
      %v9976 = vsel %vm9966, %v9931, %v7345
      %v9977 = vsel %vm9966, %v9932, %v7350
      %v9978 = vsel %vm9966, %v9933, %v7353
      %v9979 = vsel %vm9966, %v9934, %v7358
      %v9980 = vsel %vm9966, %v9935, %v7361
      %v9981 = vsel %vm9966, %v9936, %v7366
      %v9982 = vsel %vm9966, %v9937, %v7369
      %v9983 = vsel %vm9966, %v9938, %v7374
      %v9984 = vsel %vm9966, %v9939, %v7377
      %v9985 = vsel %vm9966, %v9940, %v7382
      %v9986 = vsel %vm9966, %v9941, %v7385
      %v9987 = vsel %vm9966, %v9942, %v7390
      %v9988 = vsel %vm9966, %v9943, %v7393
      %v9989 = vsel %vm9966, %v9944, %v7398
      %v9990 = vsel %vm9966, %v9945, %v7401
      %v9991 = vsel %vm9966, %v9946, %v7406
      %v9992 = vsel %vm9966, %v9947, %v7409
      %v9993 = vsel %vm9966, %v9948, %v7414
      %v9994 = vsel %vm9966, %v9949, %v7417
      %v9995 = vsel %vm9966, %v9950, %v7422
      %v9996 = vsel %vm9966, %v9951, %v7425
      %v9997 = vsel %vm9966, %v9952, %v7430
      %v9998 = vsel %vm9966, %v9953, %v7433
      %v9999 = vsel %vm9966, %v9954, %v7438
      %v10000 = vsel %vm9966, %v9955, %v7441
      %v10001 = vsel %vm9966, %v9956, %v7446
      %v10002 = vsel %vm9966, %v9957, %v7449
      %v10003 = vsel %vm9966, %v9958, %v7454
      %v10004 = vsel %vm9966, %v9959, %v7457
      %v10005 = vsel %vm9966, %v9960, %v7462
      %v10006 = vsel %vm9966, %v9961, %v7465
      %v10007 = vsel %vm9966, %v9962, %v7470
      %v10008 = vsel %vm9966, %v9963, %v7473
      %v10009 = vsub.f32 %v9253, %v9713
      %v10010 = vsub.f32 %v9254, %v9715
      %v10011 = vsub.f32 %v9255, %v9717
      %v10012 = vsub.f32 %v9256, %v9719
      %v10013 = vsub.f32 %v9257, %v9721
      %v10014 = vsub.f32 %v9258, %v9723
      %v10015 = vsub.f32 %v9259, %v9725
      %v10016 = vsub.f32 %v9260, %v9727
      %v10017 = vsub.f32 %v9261, %v9729
      %v10018 = vsub.f32 %v9262, %v9731
      %v10019 = vsub.f32 %v9263, %v9733
      %v10020 = vsub.f32 %v9264, %v9735
      %v10021 = vsub.f32 %v9265, %v9737
      %v10022 = vsub.f32 %v9266, %v9739
      %v10023 = vsub.f32 %v9267, %v9741
      %v10024 = vsub.f32 %v9268, %v9743
      %v10025 = vsub.f32 %v9269, %v9745
      %v10026 = vsub.f32 %v9270, %v9747
      %v10027 = vsub.f32 %v9271, %v9749
      %v10028 = vsub.f32 %v9272, %v9751
      %v10029 = vsub.f32 %v9273, %v9753
      %v10030 = vsub.f32 %v9274, %v9755
      %v10031 = vsub.f32 %v9275, %v9757
      %v10032 = vsub.f32 %v9276, %v9759
      %v10033 = vsub.f32 %v9277, %v9761
      %v10034 = vsub.f32 %v9278, %v9763
      %v10035 = vsub.f32 %v9279, %v9765
      %v10036 = vsub.f32 %v9280, %v9767
      %v10037 = vsub.f32 %v9281, %v9769
      %v10038 = vsub.f32 %v9282, %v9771
      %v10039 = vsub.f32 %v9283, %v9773
      %v10040 = vsub.f32 %v9284, %v9775
      %v10041 = vsub.f32 %v9285, %v9777
      %v10042 = vsub.f32 %v9286, %v9779
      %v10043 = vsub.f32 %v9287, %v9781
      %v10044 = vsub.f32 %v9288, %v9783
      %v10045 = vsub.f32 %v9289, %v9785
      %v10046 = vsub.f32 %v9290, %v9787
      %v10047 = vsub.f32 %v9291, %v9789
      %v10048 = vsub.f32 %v9292, %v9791
      %v10049 = vsub.f32 %v9293, %v9793
      %v10050 = vsub.f32 %v9294, %v9795
      %v10051 = vsel %vm9210, %v10009, %v9967
      %v10052 = vsel %vm9210, %v10010, %v9968
      %v10053 = vsel %vm9210, %v10011, %v9969
      %v10054 = vsel %vm9210, %v10012, %v9970
      %v10055 = vsel %vm9210, %v10013, %v9971
      %v10056 = vsel %vm9210, %v10014, %v9972
      %v10057 = vsel %vm9210, %v10015, %v9973
      %v10058 = vsel %vm9210, %v10016, %v9974
      %v10059 = vsel %vm9210, %v10017, %v9975
      %v10060 = vsel %vm9210, %v10018, %v9976
      %v10061 = vsel %vm9210, %v10019, %v9977
      %v10062 = vsel %vm9210, %v10020, %v9978
      %v10063 = vsel %vm9210, %v10021, %v9979
      %v10064 = vsel %vm9210, %v10022, %v9980
      %v10065 = vsel %vm9210, %v10023, %v9981
      %v10066 = vsel %vm9210, %v10024, %v9982
      %v10067 = vsel %vm9210, %v10025, %v9983
      %v10068 = vsel %vm9210, %v10026, %v9984
      %v10069 = vsel %vm9210, %v10027, %v9985
      %v10070 = vsel %vm9210, %v10028, %v9986
      %v10071 = vsel %vm9210, %v10029, %v9987
      %v10072 = vsel %vm9210, %v10030, %v9988
      %v10073 = vsel %vm9210, %v10031, %v9989
      %v10074 = vsel %vm9210, %v10032, %v9990
      %v10075 = vsel %vm9210, %v10033, %v9991
      %v10076 = vsel %vm9210, %v10034, %v9992
      %v10077 = vsel %vm9210, %v10035, %v9993
      %v10078 = vsel %vm9210, %v10036, %v9994
      %v10079 = vsel %vm9210, %v10037, %v9995
      %v10080 = vsel %vm9210, %v10038, %v9996
      %v10081 = vsel %vm9210, %v10039, %v9997
      %v10082 = vsel %vm9210, %v10040, %v9998
      %v10083 = vsel %vm9210, %v10041, %v9999
      %v10084 = vsel %vm9210, %v10042, %v10000
      %v10085 = vsel %vm9210, %v10043, %v10001
      %v10086 = vsel %vm9210, %v10044, %v10002
      %v10087 = vsel %vm9210, %v10045, %v10003
      %v10088 = vsel %vm9210, %v10046, %v10004
      %v10089 = vsel %vm9210, %v10047, %v10005
      %v10090 = vsel %vm9210, %v10048, %v10006
      %v10091 = vsel %vm9210, %v10049, %v10007
      %v10092 = vsel %vm9210, %v10050, %v10008
      %vm10093 = vcmp.ge.s32.totalorder %v7477, 123
      %v10094 = vsel %vm10093, 1, 0
      %vm10095 = vcmp.eq.s32.totalorder %v10094, 1
      %v10096 = vsel %vm10095, 0.0, %v10051
      %v10097 = vsel %vm10095, 0.0, %v10052
      %v10098 = vsel %vm10095, 0.0, %v10053
      %v10099 = vsel %vm10095, 0.0, %v10054
      %v10100 = vsel %vm10095, 0.0, %v10055
      %v10101 = vsel %vm10095, 0.0, %v10056
      %v10102 = vsel %vm10095, 0.0, %v10057
      %v10103 = vsel %vm10095, 0.0, %v10058
      %v10104 = vsel %vm10095, 0.0, %v10059
      %v10105 = vsel %vm10095, 0.0, %v10060
      %v10106 = vsel %vm10095, 0.0, %v10061
      %v10107 = vsel %vm10095, 0.0, %v10062
      %v10108 = vsel %vm10095, 0.0, %v10063
      %v10109 = vsel %vm10095, 0.0, %v10064
      %v10110 = vsel %vm10095, 0.0, %v10065
      %v10111 = vsel %vm10095, 0.0, %v10066
      %v10112 = vsel %vm10095, 0.0, %v10067
      %v10113 = vsel %vm10095, 0.0, %v10068
      %v10114 = vsel %vm10095, 0.0, %v10069
      %v10115 = vsel %vm10095, 0.0, %v10070
      %v10116 = vsel %vm10095, 0.0, %v10071
      %v10117 = vsel %vm10095, 0.0, %v10072
      %v10118 = vsel %vm10095, 0.0, %v10073
      %v10119 = vsel %vm10095, 0.0, %v10074
      %v10120 = vsel %vm10095, 0.0, %v10075
      %v10121 = vsel %vm10095, 0.0, %v10076
      %v10122 = vsel %vm10095, 0.0, %v10077
      %v10123 = vsel %vm10095, 0.0, %v10078
      %v10124 = vsel %vm10095, 0.0, %v10079
      %v10125 = vsel %vm10095, 0.0, %v10080
      %v10126 = vsel %vm10095, 0.0, %v10081
      %v10127 = vsel %vm10095, 0.0, %v10082
      %v10128 = vsel %vm10095, 0.0, %v10083
      %v10129 = vsel %vm10095, 0.0, %v10084
      %v10130 = vsel %vm10095, 0.0, %v10085
      %v10131 = vsel %vm10095, 0.0, %v10086
      %v10132 = vsel %vm10095, 0.0, %v10087
      %v10133 = vsel %vm10095, 0.0, %v10088
      %v10134 = vsel %vm10095, 0.0, %v10089
      %v10135 = vsel %vm10095, 0.0, %v10090
      %v10136 = vsel %vm10095, 0.0, %v10091
      %v10137 = vsel %vm10095, 0.0, %v10092
      %10138 = vst [vmem:[%s170] sm:$0xff] %v10096
      %10139 = vst [vmem:[%s170 + $0x8] sm:$0xff] %v10097
      %10140 = vst [vmem:[%s170 + $0x10] sm:$0xff] %v10098
      %10141 = vst [vmem:[%s170 + $0x18] sm:$0xff] %v10099
      %10142 = vst [vmem:[%s170 + $0x20] sm:$0xff] %v10100
      %10143 = vst [vmem:[%s170 + $0x28] sm:$0xff] %v10101
      %10144 = vst [vmem:[%s170 + $0x30] sm:$0xff] %v10102
      %10145 = vst [vmem:[%s170 + $0x38] sm:$0xff] %v10103
      %10146 = vst [vmem:[%s170 + $0x40] sm:$0xff] %v10104
      %10147 = vst [vmem:[%s170 + $0x48] sm:$0xff] %v10105
      %10148 = vst [vmem:[%s170 + $0x50] sm:$0xff] %v10106
      %10149 = vst [vmem:[%s170 + $0x58] sm:$0xff] %v10107
      %10150 = vst [vmem:[%s170 + $0x60] sm:$0xff] %v10108
      %10151 = vst [vmem:[%s170 + $0x68] sm:$0xff] %v10109
      %10152 = vst [vmem:[%s170 + $0x70] sm:$0xff] %v10110
      %10153 = vst [vmem:[%s170 + $0x78] sm:$0xff] %v10111
      %10154 = vst [vmem:[%s170 + $0x80] sm:$0xff] %v10112
      %10155 = vst [vmem:[%s170 + $0x88] sm:$0xff] %v10113
      %10156 = vst [vmem:[%s170 + $0x90] sm:$0xff] %v10114
      %10157 = vst [vmem:[%s170 + $0x98] sm:$0xff] %v10115
      %10158 = vst [vmem:[%s170 + $0xa0] sm:$0xff] %v10116
      %10159 = vst [vmem:[%s170 + $0xa8] sm:$0xff] %v10117
      %10160 = vst [vmem:[%s170 + $0xb0] sm:$0xff] %v10118
      %10161 = vst [vmem:[%s170 + $0xb8] sm:$0xff] %v10119
      %10162 = vst [vmem:[%s170 + $0xc0] sm:$0xff] %v10120
      %10163 = vst [vmem:[%s170 + $0xc8] sm:$0xff] %v10121
      %10164 = vst [vmem:[%s170 + $0xd0] sm:$0xff] %v10122
      %10165 = vst [vmem:[%s170 + $0xd8] sm:$0xff] %v10123
      %10166 = vst [vmem:[%s170 + $0xe0] sm:$0xff] %v10124
      %10167 = vst [vmem:[%s170 + $0xe8] sm:$0xff] %v10125
      %10168 = vst [vmem:[%s170 + $0xf0] sm:$0xff] %v10126
      %10169 = vst [vmem:[%s170 + $0xf8] sm:$0xff] %v10127
      %10170 = vst [vmem:[%s170 + $0x100] sm:$0xff] %v10128
      %10171 = vst [vmem:[%s170 + $0x108] sm:$0xff] %v10129
      %10172 = vst [vmem:[%s170 + $0x110] sm:$0xff] %v10130
      %10173 = vst [vmem:[%s170 + $0x118] sm:$0xff] %v10131
      %10174 = vst [vmem:[%s170 + $0x120] sm:$0xff] %v10132
      %10175 = vst [vmem:[%s170 + $0x128] sm:$0xff] %v10133
      %10176 = vst [vmem:[%s170 + $0x130] sm:$0xff] %v10134
      %10177 = vst [vmem:[%s170 + $0x138] sm:$0xff] %v10135
      %10178 = vst [vmem:[%s170 + $0x140] sm:$0xff] %v10136
      %10179 = vst [vmem:[%s170 + $0x148] sm:$0xff] %v10137
      %p10180 = scmp.lt.s32.totalorder %s14, 1
      %s10181 = scalar_select %p10180, %s14, 1
      %s10182 = smul.addr %s10181, 42
      %s10183 = smul.addr %s10182, 8
      %s10184 = scalar_lea.vmem %s3, %s10183
      // Predicated region
      $region33: #{_lambda_.1} parent=31 // pred_check
        %p10185 = pneg %p100
      $region34: #{_lambda_.1} parent=31 // pred_check_branch
        %10187 = sbr.rel (%p10185) target = $region36
      $region35: #{_lambda_.1} parent=31 // pred_region
        _
      $region36: #{_lambda_.1} parent=31 // pred_fallthru
        _
    $region32: #{_lambda_.1} parent=5 // pred_fallthru
      _
    %p10188 = scmp.le.s32.totalorder 2, %s9
    // Predicated region
    $region37: #{_lambda_.1} parent=5 // pred_check
      %p10189 = pneg %p10188
    $region38: #{_lambda_.1} parent=5 // pred_check_branch
      %10191 = sbr.rel (%p10189) target = $region40
    $region39: #{_lambda_.1} parent=5 // pred_region
      %s10192 = ssub.s32 %s9, 2
      // Predicated region
      $region41: #{_lambda_.1} parent=39 // pred_check
        %p10193 = pneg %p106
      $region42: #{_lambda_.1} parent=39 // pred_check_branch
        %10195 = sbr.rel (%p10193) target = $region44
      $region43: #{_lambda_.1} parent=39 // pred_region
        %p10196 = scmp.lt.s32.totalorder %s15, 1
        %s10197 = scalar_select %p10196, %s15, 1
        %s10198 = smul.addr %s10197, 42
        %s10199 = smul.addr %s10198, 8
        %s10200 = scalar_lea.vmem %s3, %s10199
      $region44: #{_lambda_.1} parent=39 // pred_fallthru
        _
    $region40: #{_lambda_.1} parent=5 // pred_fallthru
      _
  $region6: #{_lambda_.1} parent=0 // loop_footer
    %s13 = sadd.s32 1, %s9
  $region7: #{_lambda_.1} parent=0 // loop_footer_branch
    %8 = sbr.rel target = $region3
  $region8: #{_lambda_.1} parent=0 // loop_exit
    _

</llo_original>
